<compile_context>
chip_gen: v7x
topology: tpu7x:2x2x1
jax: 0.10.0
libtpu: 0.0.40
codegen_flags: <defaults>
</compile_context>

<pallas_src>
import functools
import numpy as np
import jax
import jax.numpy as jnp
from jax import lax
from jax.experimental import pallas as pl
from jax.experimental.pallas import tpu as pltpu

NEG_SLOPE = 0.01   # F.leaky_relu default
EPS = 1e-5         # nn.GroupNorm default


def _leaky(v):
    return jnp.maximum(v, NEG_SLOPE * v)


# ----------------------------------------------------------------------------
# Fused NCA stage kernel: all `steps` updates for one batch element.
# Layout inside the kernel: (channels, P) with P = H*W on the lane axis.
# refs = (t, x, [fire_mask], 14 weights, out)
# ----------------------------------------------------------------------------
def _nca_stage_kernel(*refs, H, W, Cx, steps, apply_mask):
    if apply_mask:
        (t_ref, x_ref, mask_ref, pt0_w, pt0_b, pt1_w, pt1_b, pt2_w, pt2_b,
         g_x, b_x, g_p, b_p, w_taps, b_all, w1, b1, out_ref) = refs
    else:
        (t_ref, x_ref, pt0_w, pt0_b, pt1_w, pt1_b, pt2_w, pt2_b,
         g_x, b_x, g_p, b_p, w_taps, b_all, w1, b1, out_ref) = refs
        mask_ref = None

    b = pl.program_id(0)
    P = H * W

    # ---- load weights once (hoisted out of the step loop) -------------------
    w_tap_v = w_taps[...]          # (9, hidden, Cp)
    b_all_v = b_all[...]           # (hidden, 1)
    w1_v = w1[...]                 # (Cx, hidden)
    b1_v = b1[...]                 # (Cx, 1)
    g_x_v, b_x_v = g_x[...], b_x[...]
    g_p_v, b_p_v = g_p[...], b_p[...]
    hidden = w1_v.shape[1]

    # ---- analytic pixel coordinates + boundary masks (no coords-table DMA) --
    p_idx = lax.broadcasted_iota(jnp.int32, (1, P), 1)      # 0..P-1 on lanes
    pf = p_idx.astype(jnp.float32)
    hf = jnp.floor(pf / float(W))                            # major (row) index
    wf = pf - hf * float(W)                                  # minor (col) index
    is_w0 = wf == 0.0
    is_wl = wf == float(W - 1)
    is_h0 = hf == 0.0
    is_hl = hf == float(H - 1)

    # ---- pos / time encoder: step-invariant -> computed once per batch ------
    # torch: linspace(1,0,last_dim); requires square spatial dims (as in torch).
    inv_w = 1.0 / (W - 1) if W > 1 else 0.0
    inv_h = 1.0 / (H - 1) if H > 1 else 0.0
    pos_x = 1.0 - wf * inv_w
    pos_y = 1.0 - hf * inv_h
    ar = jnp.zeros((1, P), jnp.float32) + t_ref[b]           # alive_rate broadcast
    pos = jnp.concatenate([pos_x, pos_y, ar], axis=0)        # (3, P)
    pe = _leaky(jnp.dot(pt0_w[...], pos, preferred_element_type=jnp.float32) + pt0_b[...])
    pe = _leaky(jnp.dot(pt1_w[...], pe, preferred_element_type=jnp.float32) + pt1_b[...])
    pt = _leaky(jnp.dot(pt2_w[...], pe, preferred_element_type=jnp.float32) + pt2_b[...])  # (3,P)
    sum_pt = jnp.sum(pt)

    n_elem = float((Cx + 3) * P)
    bias_full = jnp.broadcast_to(b_all_v, (hidden, P))       # hoisted broadcast

    if apply_mask:
        masks = mask_ref[0]                                  # (steps, P)

    def rot(a, delta):
        """a[..., (p + delta) mod P] via static lane slice + concat."""
        d = delta % P
        if d == 0:
            return a
        return jnp.concatenate([a[:, d:], a[:, :d]], axis=1)

    x = x_ref[0]                                             # (Cx, P) raw state

    # TODO(synk): for very large H*W this full-P single-pass block should be
    # lane-tiled (multiples of 128) with a two-pass GroupNorm stats pass to stay
    # inside v7x's 64 MiB VMEM; at the sizes used here full-P blocks are tiny.
    for s in range(steps):        # `steps` is a small static int -> unrolled
        # ---- GroupNorm(num_groups=1) over concat([x, pos_enc]), centred var --
        mean = (jnp.sum(x) + sum_pt) / n_elem
        xc = x - mean
        ptc = pt - mean
        var = (jnp.sum(xc * xc) + jnp.sum(ptc * ptc)) / n_elem
        rstd = lax.rsqrt(var + EPS)
        xn = xc * rstd * g_x_v + b_x_v
        ptn = ptc * rstd * g_p_v + b_p_v
        dxn = jnp.concatenate([xn, ptn], axis=0)             # (Cp, P)

        # ---- 3x3 reflect-padded taps + folded perceive/fc0, per-tap accumulate
        left = rot(dxn, -1)                                  # cyclic shift left
        right = rot(dxn, 1)                                  # cyclic shift right
        cs = [jnp.where(is_w0, right, left),                 # col offset -1 (reflect)
              dxn,                                           # col offset  0
              jnp.where(is_wl, left, right)]                 # col offset +1 (reflect)
        acc = bias_full
        for kj in range(3):
            c = cs[kj]
            up = rot(c, -W)
            down = rot(c, W)
            rows = [jnp.where(is_h0, down, up),              # row offset -1 (reflect)
                    c,                                       # row offset  0
                    jnp.where(is_hl, up, down)]              # row offset +1 (reflect)
            for ki in range(3):
                acc = acc + jnp.dot(w_tap_v[ki * 3 + kj], rows[ki],
                                    preferred_element_type=jnp.float32)
        hid = _leaky(acc)                                    # (hidden, P)
        # nn.Dropout(p=0.25) is identity in eval mode.
        dx = jnp.dot(w1_v, hid, preferred_element_type=jnp.float32) + b1_v   # (Cx, P)

        if apply_mask:
            dx = dx * masks[s:s + 1, :]                      # per-pixel fire mask

        x = x + dx                                           # residual update

    out_ref[0] = x


def nca_stage(x_flat, t, p, *, H, W, steps, fire_mask=None):
    """Run `steps` NCA updates. x_flat: (B, Cx, P); t: (B,) f32;
    fire_mask: (B, steps, P) f32 (1.0 = fire) or None (fire_rate == 0)."""
    B, Cx, P = x_flat.shape
    apply_mask = fire_mask is not None

    weight_names = ['pt0_w', 'pt0_b', 'pt1_w', 'pt1_b', 'pt2_w', 'pt2_b',
                    'gamma_x', 'beta_x', 'gamma_p', 'beta_p',
                    'w_taps', 'b_all', 'w1', 'b1']
    weights = [p[k] for k in weight_names]

    in_specs = [pl.BlockSpec(memory_space=pltpu.MemorySpace.SMEM),   # t (B,)
                pl.BlockSpec((1, Cx, P), lambda b: (b, 0, 0))]        # state
    args = [t, x_flat]
    if apply_mask:
        in_specs.append(pl.BlockSpec((1, steps, P), lambda b: (b, 0, 0)))
        args.append(fire_mask)
    for w in weights:
        in_specs.append(pl.BlockSpec(w.shape, lambda b, nd=w.ndim: (0,) * nd))
    args += weights

    kernel = functools.partial(_nca_stage_kernel, H=H, W=W, Cx=Cx,
                               steps=int(steps), apply_mask=apply_mask)
    return pl.pallas_call(
        kernel,
        grid=(B,),
        in_specs=in_specs,
        out_specs=pl.BlockSpec((1, Cx, P), lambda b: (b, 0, 0)),
        out_shape=jax.ShapeDtypeStruct((B, Cx, P), jnp.float32),
        compiler_params=pltpu.CompilerParams(
            dimension_semantics=("parallel",)),
    )(*args)


# ----------------------------------------------------------------------------
# Full forward pass
# ----------------------------------------------------------------------------
def forward(x, params, t, steps=1, fire_rate=0.5, key=None):
    """x: (B, H, W, C) float32; t: (B,) float32 (alive_rate); fire_rate static."""
    if key is None:
        key = jax.random.PRNGKey(1)
    B, H, W, C = x.shape
    t = t.astype(jnp.float32)

    a = jnp.transpose(x, (0, 3, 2, 1)).astype(jnp.float32)   # torch x.transpose(1,3) -> (B,C,W,H)
    # TODO(synk): fft2/ifft2 has no Pallas TPU primitive; computed with jnp.fft (XLA).
    a = jnp.fft.fft2(a, norm='forward')
    a_old = a
    factor = 5
    D2 = a.shape[2] // factor
    D3 = a.shape[3] // factor
    ac = a[..., :D2, :D3]
    xr = jnp.concatenate([ac.real, ac.imag], axis=1)          # (B, 2C, D2, D3)
    xr = xr.reshape(B, 2 * C, D2 * D3).astype(jnp.float32)

    # model_0 stage: reference forward passes fire_rate literal 0 -> no mask.
    xr = nca_stage(xr, t, params['model_0'], H=D2, W=D3, steps=steps, fire_mask=None)

    xr = xr.reshape(B, 2 * C, D2, D3)
    comp = lax.complex(xr[:, :C], xr[:, C:])                  # split channels -> complex
    a = jnp.fft.ifft2(a_old.at[..., :D2, :D3].set(comp), norm='forward').real   # (B,C,W,H)

    # model_1 stage: per-pixel stochastic fire mask (torch.rand > fire_rate).
    P1 = W * H
    u = jax.random.uniform(key, (B, steps, P1), jnp.float32)
    fire_mask = (u > fire_rate).astype(jnp.float32)
    af = a.reshape(B, C, P1).astype(jnp.float32)
    af = nca_stage(af, t, params['model_1'], H=W, W=H, steps=steps, fire_mask=fire_mask)
    a = af.reshape(B, C, W, H)
    return jnp.transpose(a, (0, 3, 2, 1))                     # final x.transpose(1,3) -> (B,H,W,C)


# ----------------------------------------------------------------------------
# Deterministic parameter construction (shapes follow the torch __init__),
# plus offline fusion of perceive(conv0/conv1/identity) + fc0 into 9 tap slabs.
# ----------------------------------------------------------------------------
def _uniform(key, shape, fan_in):
    s = 1.0 / np.sqrt(fan_in)
    return jax.random.uniform(key, shape, jnp.float32, -s, s)


def make_model_params(key, state_ch, hidden, depthwise):
    extra = 3
    Cp = state_ch + extra
    keys = jax.random.split(key, 14)
    # torch-equivalent raw parameters (Conv2d weight layouts)
    pt0_w = _uniform(keys[0], (16, 3, 1, 1), 3);   pt0_b = _uniform(keys[1], (16,), 3)
    pt1_w = _uniform(keys[2], (16, 16, 1, 1), 16); pt1_b = _uniform(keys[3], (16,), 16)
    pt2_w = _uniform(keys[4], (3, 16, 1, 1), 16);  pt2_b = _uniform(keys[5], (3,), 16)
    gamma = jnp.ones((Cp,), jnp.float32)           # GroupNorm default init
    beta = jnp.zeros((Cp,), jnp.float32)
    if depthwise:   # model_0: groups = Cp, weight (Cp, 1, 3, 3)
        c0_w = _uniform(keys[6], (Cp, 1, 3, 3), 9); c0_b = _uniform(keys[7], (Cp,), 9)
        c1_w = _uniform(keys[8], (Cp, 1, 3, 3), 9); c1_b = _uniform(keys[9], (Cp,), 9)
    else:           # model_1: dense conv, weight (Cp, Cp, 3, 3)
        fan = Cp * 9
        c0_w = _uniform(keys[6], (Cp, Cp, 3, 3), fan); c0_b = _uniform(keys[7], (Cp,), fan)
        c1_w = _uniform(keys[8], (Cp, Cp, 3, 3), fan); c1_b = _uniform(keys[9], (Cp,), fan)
    fc0_w = _uniform(keys[10], (hidden, 3 * Cp, 1, 1), 3 * Cp)
    fc0_b = _uniform(keys[11], (hidden,), 3 * Cp)
    fc1_w = _uniform(keys[12], (state_ch, hidden, 1, 1), hidden)
    fc1_b = _uniform(keys[13], (state_ch,), hidden)

    # fold perceive (identity | conv0 | conv1) + fc0 into 9 per-tap (hidden, Cp) slabs
    W0 = fc0_w[:, :, 0, 0]                       # (hidden, 3*Cp)
    W0_id, W0_y1, W0_y2 = W0[:, :Cp], W0[:, Cp:2 * Cp], W0[:, 2 * Cp:]
    taps = []
    for ki in range(3):                          # kernel row (offset ki-1)
        for kj in range(3):                      # kernel col (offset kj-1)
            if depthwise:
                wk = (W0_y1 * c0_w[:, 0, ki, kj][None, :]
                      + W0_y2 * c1_w[:, 0, ki, kj][None, :])
            else:
                wk = W0_y1 @ c0_w[:, :, ki, kj] + W0_y2 @ c1_w[:, :, ki, kj]
            if ki == 1 and kj == 1:
                wk = wk + W0_id                  # centre tap carries identity features
            taps.append(wk)
    w_taps = jnp.stack(taps, axis=0)             # (9, hidden, Cp)
    b_all = (fc0_b + W0_y1 @ c0_b + W0_y2 @ c1_b)[:, None]   # (hidden, 1)

    return dict(
        pt0_w=pt0_w[:, :, 0, 0], pt0_b=pt0_b[:, None],
        pt1_w=pt1_w[:, :, 0, 0], pt1_b=pt1_b[:, None],
        pt2_w=pt2_w[:, :, 0, 0], pt2_b=pt2_b[:, None],
        gamma_x=gamma[:state_ch, None], beta_x=beta[:state_ch, None],
        gamma_p=gamma[state_ch:, None], beta_p=beta[state_ch:, None],
        w_taps=w_taps, b_all=b_all,
        w1=fc1_w[:, :, 0, 0], b1=fc1_b[:, None],
    )


def make_params(key, channel_n, hidden):
    k0, k1 = jax.random.split(key)
    return {
        'model_0': make_model_params(k0, 2 * channel_n, hidden, depthwise=True),
        'model_1': make_model_params(k1, channel_n, hidden, depthwise=False),
    }


if __name__ == "__main__":
    channel_n = 4
    hidden = 32
    B, H, W = 2, 16, 16
    steps = 2
    fire_rate = 0.5

    root = jax.random.PRNGKey(0)
    kx, kt, kp, kr = jax.random.split(root, 4)
    x = jax.random.normal(kx, (B, H, W, channel_n), jnp.float32)
    t = jax.random.uniform(kt, (B,), jnp.float32)       # alive_rate per batch element
    params = make_params(kp, channel_n, hidden)

    fwd = jax.jit(lambda xx, tt, kk: forward(xx, params, tt, steps=steps,
                                             fire_rate=fire_rate, key=kk))
    out = jax.block_until_ready(fwd(x, t, kr))
    assert out.shape == (B, H, W, channel_n)
    assert bool(jnp.all(jnp.isfinite(out)))
    print("KERNEL_OK")
</pallas_src>

<mosaic_0001>
module attributes {stable_mosaic.version = 11 : i64} {
  func.func @_nca_stage_kernel(%arg0: i32, %arg1: memref<2xf32, #tpu.memory_space<smem>>, %arg2: memref<1x8x9xf32, #tpu.memory_space<vmem>>, %arg3: memref<16x3xf32, #tpu.memory_space<vmem>>, %arg4: memref<16x1xf32, #tpu.memory_space<vmem>>, %arg5: memref<16x16xf32, #tpu.memory_space<vmem>>, %arg6: memref<16x1xf32, #tpu.memory_space<vmem>>, %arg7: memref<3x16xf32, #tpu.memory_space<vmem>>, %arg8: memref<3x1xf32, #tpu.memory_space<vmem>>, %arg9: memref<8x1xf32, #tpu.memory_space<vmem>>, %arg10: memref<8x1xf32, #tpu.memory_space<vmem>>, %arg11: memref<3x1xf32, #tpu.memory_space<vmem>>, %arg12: memref<3x1xf32, #tpu.memory_space<vmem>>, %arg13: memref<9x32x11xf32, #tpu.memory_space<vmem>>, %arg14: memref<32x1xf32, #tpu.memory_space<vmem>>, %arg15: memref<8x32xf32, #tpu.memory_space<vmem>>, %arg16: memref<8x1xf32, #tpu.memory_space<vmem>>, %arg17: memref<1x8x9xf32, #tpu.memory_space<vmem>>) attributes {dimension_semantics = [#tpu.dimension_semantics<parallel>], iteration_bounds = array<i64: 2>, scalar_prefetch = 0 : i64, scratch_operands = 0 : i64, tpu.core_type = #tpu.core_type<tc>, window_params = [{transform_indices = @transform_0, window_bounds = array<i64: 2>}, {transform_indices = @transform_1, window_bounds = array<i64: 1, 8, 9>}, {pipeline_mode = #tpu.pipeline_mode<synchronous>, transform_indices = @transform_2, window_bounds = array<i64: 16, 3>}, {pipeline_mode = #tpu.pipeline_mode<synchronous>, transform_indices = @transform_3, window_bounds = array<i64: 16, 1>}, {pipeline_mode = #tpu.pipeline_mode<synchronous>, transform_indices = @transform_4, window_bounds = array<i64: 16, 16>}, {pipeline_mode = #tpu.pipeline_mode<synchronous>, transform_indices = @transform_5, window_bounds = array<i64: 16, 1>}, {pipeline_mode = #tpu.pipeline_mode<synchronous>, transform_indices = @transform_6, window_bounds = array<i64: 3, 16>}, {pipeline_mode = #tpu.pipeline_mode<synchronous>, transform_indices = @transform_7, window_bounds = array<i64: 3, 1>}, {pipeline_mode = #tpu.pipeline_mode<synchronous>, transform_indices = @transform_8, window_bounds = array<i64: 8, 1>}, {pipeline_mode = #tpu.pipeline_mode<synchronous>, transform_indices = @transform_9, window_bounds = array<i64: 8, 1>}, {pipeline_mode = #tpu.pipeline_mode<synchronous>, transform_indices = @transform_10, window_bounds = array<i64: 3, 1>}, {pipeline_mode = #tpu.pipeline_mode<synchronous>, transform_indices = @transform_11, window_bounds = array<i64: 3, 1>}, {pipeline_mode = #tpu.pipeline_mode<synchronous>, transform_indices = @transform_12, window_bounds = array<i64: 9, 32, 11>}, {pipeline_mode = #tpu.pipeline_mode<synchronous>, transform_indices = @transform_13, window_bounds = array<i64: 32, 1>}, {pipeline_mode = #tpu.pipeline_mode<synchronous>, transform_indices = @transform_14, window_bounds = array<i64: 8, 32>}, {pipeline_mode = #tpu.pipeline_mode<synchronous>, transform_indices = @transform_15, window_bounds = array<i64: 8, 1>}, {transform_indices = @transform_16, window_bounds = array<i64: 1, 8, 9>}]} {
    %c0 = arith.constant 0 : index
    %c0_0 = arith.constant 0 : index
    %c0_1 = arith.constant 0 : index
    %0 = vector.load %arg13[%c0, %c0_0, %c0_1] : memref<9x32x11xf32, #tpu.memory_space<vmem>>, vector<9x32x11xf32>
    %c0_2 = arith.constant 0 : index
    %c0_3 = arith.constant 0 : index
    %1 = vector.load %arg14[%c0_2, %c0_3] : memref<32x1xf32, #tpu.memory_space<vmem>>, vector<32x1xf32>
    %c0_4 = arith.constant 0 : index
    %c0_5 = arith.constant 0 : index
    %2 = vector.load %arg15[%c0_4, %c0_5] : memref<8x32xf32, #tpu.memory_space<vmem>>, vector<8x32xf32>
    %c0_6 = arith.constant 0 : index
    %c0_7 = arith.constant 0 : index
    %3 = vector.load %arg16[%c0_6, %c0_7] : memref<8x1xf32, #tpu.memory_space<vmem>>, vector<8x1xf32>
    %c0_8 = arith.constant 0 : index
    %c0_9 = arith.constant 0 : index
    %4 = vector.load %arg9[%c0_8, %c0_9] : memref<8x1xf32, #tpu.memory_space<vmem>>, vector<8x1xf32>
    %c0_10 = arith.constant 0 : index
    %c0_11 = arith.constant 0 : index
    %5 = vector.load %arg10[%c0_10, %c0_11] : memref<8x1xf32, #tpu.memory_space<vmem>>, vector<8x1xf32>
    %c0_12 = arith.constant 0 : index
    %c0_13 = arith.constant 0 : index
    %6 = vector.load %arg11[%c0_12, %c0_13] : memref<3x1xf32, #tpu.memory_space<vmem>>, vector<3x1xf32>
    %c0_14 = arith.constant 0 : index
    %c0_15 = arith.constant 0 : index
    %7 = vector.load %arg12[%c0_14, %c0_15] : memref<3x1xf32, #tpu.memory_space<vmem>>, vector<3x1xf32>
    %8 = tpu.iota {dimensions = array<i32: 1>} : vector<1x9xi32>
    %9 = arith.sitofp %8 : vector<1x9xi32> to vector<1x9xf32>
    %cst = arith.constant 3.000000e+00 : f32
    %10 = vector.broadcast %cst : f32 to vector<1x9xf32>
    %11 = arith.divf %9, %10 : vector<1x9xf32>
    %12 = math.floor %11 : vector<1x9xf32>
    %cst_16 = arith.constant 3.000000e+00 : f32
    %13 = vector.broadcast %cst_16 : f32 to vector<1x9xf32>
    %14 = arith.mulf %12, %13 : vector<1x9xf32>
    %15 = arith.subf %9, %14 : vector<1x9xf32>
    %cst_17 = arith.constant 0.000000e+00 : f32
    %16 = vector.broadcast %cst_17 : f32 to vector<1x9xf32>
    %17 = arith.cmpf oeq, %15, %16 : vector<1x9xf32>
    %cst_18 = arith.constant 2.000000e+00 : f32
    %18 = vector.broadcast %cst_18 : f32 to vector<1x9xf32>
    %19 = arith.cmpf oeq, %15, %18 : vector<1x9xf32>
    %cst_19 = arith.constant 0.000000e+00 : f32
    %20 = vector.broadcast %cst_19 : f32 to vector<1x9xf32>
    %21 = arith.cmpf oeq, %12, %20 : vector<1x9xf32>
    %cst_20 = arith.constant 2.000000e+00 : f32
    %22 = vector.broadcast %cst_20 : f32 to vector<1x9xf32>
    %23 = arith.cmpf oeq, %12, %22 : vector<1x9xf32>
    %cst_21 = arith.constant 5.000000e-01 : f32
    %24 = vector.broadcast %cst_21 : f32 to vector<1x9xf32>
    %25 = arith.mulf %15, %24 : vector<1x9xf32>
    %cst_22 = arith.constant 1.000000e+00 : f32
    %26 = vector.broadcast %cst_22 : f32 to vector<1x9xf32>
    %27 = arith.subf %26, %25 : vector<1x9xf32>
    %cst_23 = arith.constant 5.000000e-01 : f32
    %28 = vector.broadcast %cst_23 : f32 to vector<1x9xf32>
    %29 = arith.mulf %12, %28 : vector<1x9xf32>
    %cst_24 = arith.constant 1.000000e+00 : f32
    %30 = vector.broadcast %cst_24 : f32 to vector<1x9xf32>
    %31 = arith.subf %30, %29 : vector<1x9xf32>
    %cst_25 = arith.constant 0.000000e+00 : f32
    %32 = vector.broadcast %cst_25 : f32 to vector<1x9xf32>
    %33 = arith.index_cast %arg0 : i32 to index
    %34 = memref.load %arg1[%33] : memref<2xf32, #tpu.memory_space<smem>>
    %35 = vector.broadcast %34 : f32 to vector<1x9xf32>
    %36 = arith.addf %32, %35 : vector<1x9xf32>
    %37 = tpu.concatenate %27, %31, %36 in 0 : vector<1x9xf32>, vector<1x9xf32>, vector<1x9xf32> -> vector<3x9xf32>
    %c0_26 = arith.constant 0 : index
    %c0_27 = arith.constant 0 : index
    %38 = vector.load %arg3[%c0_26, %c0_27] : memref<16x3xf32, #tpu.memory_space<vmem>>, vector<16x3xf32>
    %cst_28 = arith.constant dense<0.000000e+00> : vector<16x9xf32>
    %39 = tpu.matmul %38, %37, %cst_28 {dimension_numbers = #tpu.dot_dimension_numbers<[1], [0], [0], [1], [0, 0, 1, 1], [], []>} : vector<16x3xf32>, vector<3x9xf32>, vector<16x9xf32> -> vector<16x9xf32>
    %c0_29 = arith.constant 0 : index
    %c0_30 = arith.constant 0 : index
    %40 = vector.load %arg4[%c0_29, %c0_30] : memref<16x1xf32, #tpu.memory_space<vmem>>, vector<16x1xf32>
    %41 = vector.broadcast %40 : vector<16x1xf32> to vector<16x9xf32>
    %42 = arith.addf %39, %41 : vector<16x9xf32>
    %cst_31 = arith.constant 0.00999999977 : f32
    %43 = vector.broadcast %cst_31 : f32 to vector<16x9xf32>
    %44 = arith.mulf %43, %42 : vector<16x9xf32>
    %45 = arith.maximumf %42, %44 : vector<16x9xf32>
    %c0_32 = arith.constant 0 : index
    %c0_33 = arith.constant 0 : index
    %46 = vector.load %arg5[%c0_32, %c0_33] : memref<16x16xf32, #tpu.memory_space<vmem>>, vector<16x16xf32>
    %cst_34 = arith.constant dense<0.000000e+00> : vector<16x9xf32>
    %47 = tpu.matmul %46, %45, %cst_34 {dimension_numbers = #tpu.dot_dimension_numbers<[1], [0], [0], [1], [0, 0, 1, 1], [], []>} : vector<16x16xf32>, vector<16x9xf32>, vector<16x9xf32> -> vector<16x9xf32>
    %c0_35 = arith.constant 0 : index
    %c0_36 = arith.constant 0 : index
    %48 = vector.load %arg6[%c0_35, %c0_36] : memref<16x1xf32, #tpu.memory_space<vmem>>, vector<16x1xf32>
    %49 = vector.broadcast %48 : vector<16x1xf32> to vector<16x9xf32>
    %50 = arith.addf %47, %49 : vector<16x9xf32>
    %cst_37 = arith.constant 0.00999999977 : f32
    %51 = vector.broadcast %cst_37 : f32 to vector<16x9xf32>
    %52 = arith.mulf %51, %50 : vector<16x9xf32>
    %53 = arith.maximumf %50, %52 : vector<16x9xf32>
    %c0_38 = arith.constant 0 : index
    %c0_39 = arith.constant 0 : index
    %54 = vector.load %arg7[%c0_38, %c0_39] : memref<3x16xf32, #tpu.memory_space<vmem>>, vector<3x16xf32>
    %cst_40 = arith.constant dense<0.000000e+00> : vector<3x9xf32>
    %55 = tpu.matmul %54, %53, %cst_40 {dimension_numbers = #tpu.dot_dimension_numbers<[1], [0], [0], [1], [0, 0, 1, 1], [], []>} : vector<3x16xf32>, vector<16x9xf32>, vector<3x9xf32> -> vector<3x9xf32>
    %c0_41 = arith.constant 0 : index
    %c0_42 = arith.constant 0 : index
    %56 = vector.load %arg8[%c0_41, %c0_42] : memref<3x1xf32, #tpu.memory_space<vmem>>, vector<3x1xf32>
    %57 = vector.broadcast %56 : vector<3x1xf32> to vector<3x9xf32>
    %58 = arith.addf %55, %57 : vector<3x9xf32>
    %cst_43 = arith.constant 0.00999999977 : f32
    %59 = vector.broadcast %cst_43 : f32 to vector<3x9xf32>
    %60 = arith.mulf %59, %58 : vector<3x9xf32>
    %61 = arith.maximumf %58, %60 : vector<3x9xf32>
    %62 = vector.shape_cast %61 : vector<3x9xf32> to vector<1x3x9xf32>
    %cst_44 = arith.constant dense<0.000000e+00> : vector<1xf32>
    %63 = vector.multi_reduction <add>, %62, %cst_44 [1, 2] : vector<1x3x9xf32> to vector<1xf32>
    %64 = vector.shape_cast %63 : vector<1xf32> to vector<1x1x1xf32>
    %65 = vector.extract %64[0, 0, 0] : f32 from vector<1x1x1xf32>
    %66 = vector.shape_cast %1 : vector<32x1xf32> to vector<32x1xf32>
    %67 = vector.broadcast %66 : vector<32x1xf32> to vector<32x9xf32>
    %c0_45 = arith.constant 0 : index
    %c0_46 = arith.constant 0 : index
    %c0_47 = arith.constant 0 : index
    %68 = vector.load %arg2[%c0_45, %c0_46, %c0_47] : memref<1x8x9xf32, #tpu.memory_space<vmem>>, vector<1x8x9xf32>
    %69 = vector.shape_cast %68 : vector<1x8x9xf32> to vector<8x9xf32>
    %70 = vector.shape_cast %69 : vector<8x9xf32> to vector<1x8x9xf32>
    %cst_48 = arith.constant dense<0.000000e+00> : vector<1xf32>
    %71 = vector.multi_reduction <add>, %70, %cst_48 [1, 2] : vector<1x8x9xf32> to vector<1xf32>
    %72 = vector.shape_cast %71 : vector<1xf32> to vector<1x1x1xf32>
    %73 = vector.extract %72[0, 0, 0] : f32 from vector<1x1x1xf32>
    %74 = arith.addf %73, %65 : f32
    %cst_49 = arith.constant 9.900000e+01 : f32
    %75 = arith.divf %74, %cst_49 : f32
    %76 = vector.broadcast %75 : f32 to vector<8x9xf32>
    %77 = arith.subf %69, %76 : vector<8x9xf32>
    %78 = vector.broadcast %75 : f32 to vector<3x9xf32>
    %79 = arith.subf %61, %78 : vector<3x9xf32>
    %80 = arith.mulf %77, %77 : vector<8x9xf32>
    %81 = vector.shape_cast %80 : vector<8x9xf32> to vector<1x8x9xf32>
    %cst_50 = arith.constant dense<0.000000e+00> : vector<1xf32>
    %82 = vector.multi_reduction <add>, %81, %cst_50 [1, 2] : vector<1x8x9xf32> to vector<1xf32>
    %83 = vector.shape_cast %82 : vector<1xf32> to vector<1x1x1xf32>
    %84 = vector.extract %83[0, 0, 0] : f32 from vector<1x1x1xf32>
    %85 = arith.mulf %79, %79 : vector<3x9xf32>
    %86 = vector.shape_cast %85 : vector<3x9xf32> to vector<1x3x9xf32>
    %cst_51 = arith.constant dense<0.000000e+00> : vector<1xf32>
    %87 = vector.multi_reduction <add>, %86, %cst_51 [1, 2] : vector<1x3x9xf32> to vector<1xf32>
    %88 = vector.shape_cast %87 : vector<1xf32> to vector<1x1x1xf32>
    %89 = vector.extract %88[0, 0, 0] : f32 from vector<1x1x1xf32>
    %90 = arith.addf %84, %89 : f32
    %cst_52 = arith.constant 9.900000e+01 : f32
    %91 = arith.divf %90, %cst_52 : f32
    %cst_53 = arith.constant 9.99999974E-6 : f32
    %92 = arith.addf %91, %cst_53 : f32
    %93 = math.rsqrt %92 : f32
    %94 = vector.broadcast %93 : f32 to vector<8x9xf32>
    %95 = arith.mulf %77, %94 : vector<8x9xf32>
    %96 = vector.broadcast %4 : vector<8x1xf32> to vector<8x9xf32>
    %97 = arith.mulf %95, %96 : vector<8x9xf32>
    %98 = vector.broadcast %5 : vector<8x1xf32> to vector<8x9xf32>
    %99 = arith.addf %97, %98 : vector<8x9xf32>
    %100 = vector.broadcast %93 : f32 to vector<3x9xf32>
    %101 = arith.mulf %79, %100 : vector<3x9xf32>
    %102 = vector.broadcast %6 : vector<3x1xf32> to vector<3x9xf32>
    %103 = arith.mulf %101, %102 : vector<3x9xf32>
    %104 = vector.broadcast %7 : vector<3x1xf32> to vector<3x9xf32>
    %105 = arith.addf %103, %104 : vector<3x9xf32>
    %106 = tpu.concatenate %99, %105 in 0 : vector<8x9xf32>, vector<3x9xf32> -> vector<11x9xf32>
    %107 = vector.extract_strided_slice %106 {offsets = [0, 8], sizes = [11, 1], strides = [1, 1]} : vector<11x9xf32> to vector<11x1xf32>
    %108 = vector.extract_strided_slice %106 {offsets = [0, 0], sizes = [11, 8], strides = [1, 1]} : vector<11x9xf32> to vector<11x8xf32>
    %109 = tpu.concatenate %107, %108 in 1 : vector<11x1xf32>, vector<11x8xf32> -> vector<11x9xf32>
    %110 = vector.extract_strided_slice %106 {offsets = [0, 1], sizes = [11, 8], strides = [1, 1]} : vector<11x9xf32> to vector<11x8xf32>
    %111 = vector.extract_strided_slice %106 {offsets = [0, 0], sizes = [11, 1], strides = [1, 1]} : vector<11x9xf32> to vector<11x1xf32>
    %112 = tpu.concatenate %110, %111 in 1 : vector<11x8xf32>, vector<11x1xf32> -> vector<11x9xf32>
    %113 = vector.shape_cast %17 : vector<1x9xi1> to vector<1x9xi1>
    %114 = vector.broadcast %113 : vector<1x9xi1> to vector<11x9xi1>
    %115 = arith.select %114, %112, %109 : vector<11x9xi1>, vector<11x9xf32>
    %116 = vector.shape_cast %19 : vector<1x9xi1> to vector<1x9xi1>
    %117 = vector.broadcast %116 : vector<1x9xi1> to vector<11x9xi1>
    %118 = arith.select %117, %109, %112 : vector<11x9xi1>, vector<11x9xf32>
    %119 = vector.extract_strided_slice %115 {offsets = [0, 6], sizes = [11, 3], strides = [1, 1]} : vector<11x9xf32> to vector<11x3xf32>
    %120 = vector.extract_strided_slice %115 {offsets = [0, 0], sizes = [11, 6], strides = [1, 1]} : vector<11x9xf32> to vector<11x6xf32>
    %121 = tpu.concatenate %119, %120 in 1 : vector<11x3xf32>, vector<11x6xf32> -> vector<11x9xf32>
    %122 = vector.extract_strided_slice %115 {offsets = [0, 3], sizes = [11, 6], strides = [1, 1]} : vector<11x9xf32> to vector<11x6xf32>
    %123 = vector.extract_strided_slice %115 {offsets = [0, 0], sizes = [11, 3], strides = [1, 1]} : vector<11x9xf32> to vector<11x3xf32>
    %124 = tpu.concatenate %122, %123 in 1 : vector<11x6xf32>, vector<11x3xf32> -> vector<11x9xf32>
    %125 = vector.shape_cast %21 : vector<1x9xi1> to vector<1x9xi1>
    %126 = vector.broadcast %125 : vector<1x9xi1> to vector<11x9xi1>
    %127 = arith.select %126, %124, %121 : vector<11x9xi1>, vector<11x9xf32>
    %128 = vector.shape_cast %23 : vector<1x9xi1> to vector<1x9xi1>
    %129 = vector.broadcast %128 : vector<1x9xi1> to vector<11x9xi1>
    %130 = arith.select %129, %121, %124 : vector<11x9xi1>, vector<11x9xf32>
    %131 = vector.extract_strided_slice %0 {offsets = [0, 0, 0], sizes = [1, 32, 11], strides = [1, 1, 1]} : vector<9x32x11xf32> to vector<1x32x11xf32>
    %132 = vector.shape_cast %131 : vector<1x32x11xf32> to vector<32x11xf32>
    %cst_54 = arith.constant dense<0.000000e+00> : vector<32x9xf32>
    %133 = tpu.matmul %132, %127, %cst_54 {dimension_numbers = #tpu.dot_dimension_numbers<[1], [0], [0], [1], [0, 0, 1, 1], [], []>} : vector<32x11xf32>, vector<11x9xf32>, vector<32x9xf32> -> vector<32x9xf32>
    %134 = arith.addf %67, %133 : vector<32x9xf32>
    %135 = vector.extract_strided_slice %0 {offsets = [3, 0, 0], sizes = [1, 32, 11], strides = [1, 1, 1]} : vector<9x32x11xf32> to vector<1x32x11xf32>
    %136 = vector.shape_cast %135 : vector<1x32x11xf32> to vector<32x11xf32>
    %cst_55 = arith.constant dense<0.000000e+00> : vector<32x9xf32>
    %137 = tpu.matmul %136, %115, %cst_55 {dimension_numbers = #tpu.dot_dimension_numbers<[1], [0], [0], [1], [0, 0, 1, 1], [], []>} : vector<32x11xf32>, vector<11x9xf32>, vector<32x9xf32> -> vector<32x9xf32>
    %138 = arith.addf %134, %137 : vector<32x9xf32>
    %139 = vector.extract_strided_slice %0 {offsets = [6, 0, 0], sizes = [1, 32, 11], strides = [1, 1, 1]} : vector<9x32x11xf32> to vector<1x32x11xf32>
    %140 = vector.shape_cast %139 : vector<1x32x11xf32> to vector<32x11xf32>
    %cst_56 = arith.constant dense<0.000000e+00> : vector<32x9xf32>
    %141 = tpu.matmul %140, %130, %cst_56 {dimension_numbers = #tpu.dot_dimension_numbers<[1], [0], [0], [1], [0, 0, 1, 1], [], []>} : vector<32x11xf32>, vector<11x9xf32>, vector<32x9xf32> -> vector<32x9xf32>
    %142 = arith.addf %138, %141 : vector<32x9xf32>
    %143 = vector.extract_strided_slice %106 {offsets = [0, 6], sizes = [11, 3], strides = [1, 1]} : vector<11x9xf32> to vector<11x3xf32>
    %144 = vector.extract_strided_slice %106 {offsets = [0, 0], sizes = [11, 6], strides = [1, 1]} : vector<11x9xf32> to vector<11x6xf32>
    %145 = tpu.concatenate %143, %144 in 1 : vector<11x3xf32>, vector<11x6xf32> -> vector<11x9xf32>
    %146 = vector.extract_strided_slice %106 {offsets = [0, 3], sizes = [11, 6], strides = [1, 1]} : vector<11x9xf32> to vector<11x6xf32>
    %147 = vector.extract_strided_slice %106 {offsets = [0, 0], sizes = [11, 3], strides = [1, 1]} : vector<11x9xf32> to vector<11x3xf32>
    %148 = tpu.concatenate %146, %147 in 1 : vector<11x6xf32>, vector<11x3xf32> -> vector<11x9xf32>
    %149 = vector.shape_cast %21 : vector<1x9xi1> to vector<1x9xi1>
    %150 = vector.broadcast %149 : vector<1x9xi1> to vector<11x9xi1>
    %151 = arith.select %150, %148, %145 : vector<11x9xi1>, vector<11x9xf32>
    %152 = vector.shape_cast %23 : vector<1x9xi1> to vector<1x9xi1>
    %153 = vector.broadcast %152 : vector<1x9xi1> to vector<11x9xi1>
    %154 = arith.select %153, %145, %148 : vector<11x9xi1>, vector<11x9xf32>
    %155 = vector.extract_strided_slice %0 {offsets = [1, 0, 0], sizes = [1, 32, 11], strides = [1, 1, 1]} : vector<9x32x11xf32> to vector<1x32x11xf32>
    %156 = vector.shape_cast %155 : vector<1x32x11xf32> to vector<32x11xf32>
    %cst_57 = arith.constant dense<0.000000e+00> : vector<32x9xf32>
    %157 = tpu.matmul %156, %151, %cst_57 {dimension_numbers = #tpu.dot_dimension_numbers<[1], [0], [0], [1], [0, 0, 1, 1], [], []>} : vector<32x11xf32>, vector<11x9xf32>, vector<32x9xf32> -> vector<32x9xf32>
    %158 = arith.addf %142, %157 : vector<32x9xf32>
    %159 = vector.extract_strided_slice %0 {offsets = [4, 0, 0], sizes = [1, 32, 11], strides = [1, 1, 1]} : vector<9x32x11xf32> to vector<1x32x11xf32>
    %160 = vector.shape_cast %159 : vector<1x32x11xf32> to vector<32x11xf32>
    %cst_58 = arith.constant dense<0.000000e+00> : vector<32x9xf32>
    %161 = tpu.matmul %160, %106, %cst_58 {dimension_numbers = #tpu.dot_dimension_numbers<[1], [0], [0], [1], [0, 0, 1, 1], [], []>} : vector<32x11xf32>, vector<11x9xf32>, vector<32x9xf32> -> vector<32x9xf32>
    %162 = arith.addf %158, %161 : vector<32x9xf32>
    %163 = vector.extract_strided_slice %0 {offsets = [7, 0, 0], sizes = [1, 32, 11], strides = [1, 1, 1]} : vector<9x32x11xf32> to vector<1x32x11xf32>
    %164 = vector.shape_cast %163 : vector<1x32x11xf32> to vector<32x11xf32>
    %cst_59 = arith.constant dense<0.000000e+00> : vector<32x9xf32>
    %165 = tpu.matmul %164, %154, %cst_59 {dimension_numbers = #tpu.dot_dimension_numbers<[1], [0], [0], [1], [0, 0, 1, 1], [], []>} : vector<32x11xf32>, vector<11x9xf32>, vector<32x9xf32> -> vector<32x9xf32>
    %166 = arith.addf %162, %165 : vector<32x9xf32>
    %167 = vector.extract_strided_slice %118 {offsets = [0, 6], sizes = [11, 3], strides = [1, 1]} : vector<11x9xf32> to vector<11x3xf32>
    %168 = vector.extract_strided_slice %118 {offsets = [0, 0], sizes = [11, 6], strides = [1, 1]} : vector<11x9xf32> to vector<11x6xf32>
    %169 = tpu.concatenate %167, %168 in 1 : vector<11x3xf32>, vector<11x6xf32> -> vector<11x9xf32>
    %170 = vector.extract_strided_slice %118 {offsets = [0, 3], sizes = [11, 6], strides = [1, 1]} : vector<11x9xf32> to vector<11x6xf32>
    %171 = vector.extract_strided_slice %118 {offsets = [0, 0], sizes = [11, 3], strides = [1, 1]} : vector<11x9xf32> to vector<11x3xf32>
    %172 = tpu.concatenate %170, %171 in 1 : vector<11x6xf32>, vector<11x3xf32> -> vector<11x9xf32>
    %173 = vector.shape_cast %21 : vector<1x9xi1> to vector<1x9xi1>
    %174 = vector.broadcast %173 : vector<1x9xi1> to vector<11x9xi1>
    %175 = arith.select %174, %172, %169 : vector<11x9xi1>, vector<11x9xf32>
    %176 = vector.shape_cast %23 : vector<1x9xi1> to vector<1x9xi1>
    %177 = vector.broadcast %176 : vector<1x9xi1> to vector<11x9xi1>
    %178 = arith.select %177, %169, %172 : vector<11x9xi1>, vector<11x9xf32>
    %179 = vector.extract_strided_slice %0 {offsets = [2, 0, 0], sizes = [1, 32, 11], strides = [1, 1, 1]} : vector<9x32x11xf32> to vector<1x32x11xf32>
    %180 = vector.shape_cast %179 : vector<1x32x11xf32> to vector<32x11xf32>
    %cst_60 = arith.constant dense<0.000000e+00> : vector<32x9xf32>
    %181 = tpu.matmul %180, %175, %cst_60 {dimension_numbers = #tpu.dot_dimension_numbers<[1], [0], [0], [1], [0, 0, 1, 1], [], []>} : vector<32x11xf32>, vector<11x9xf32>, vector<32x9xf32> -> vector<32x9xf32>
    %182 = arith.addf %166, %181 : vector<32x9xf32>
    %183 = vector.extract_strided_slice %0 {offsets = [5, 0, 0], sizes = [1, 32, 11], strides = [1, 1, 1]} : vector<9x32x11xf32> to vector<1x32x11xf32>
    %184 = vector.shape_cast %183 : vector<1x32x11xf32> to vector<32x11xf32>
    %cst_61 = arith.constant dense<0.000000e+00> : vector<32x9xf32>
    %185 = tpu.matmul %184, %118, %cst_61 {dimension_numbers = #tpu.dot_dimension_numbers<[1], [0], [0], [1], [0, 0, 1, 1], [], []>} : vector<32x11xf32>, vector<11x9xf32>, vector<32x9xf32> -> vector<32x9xf32>
    %186 = arith.addf %182, %185 : vector<32x9xf32>
    %187 = vector.extract_strided_slice %0 {offsets = [8, 0, 0], sizes = [1, 32, 11], strides = [1, 1, 1]} : vector<9x32x11xf32> to vector<1x32x11xf32>
    %188 = vector.shape_cast %187 : vector<1x32x11xf32> to vector<32x11xf32>
    %cst_62 = arith.constant dense<0.000000e+00> : vector<32x9xf32>
    %189 = tpu.matmul %188, %178, %cst_62 {dimension_numbers = #tpu.dot_dimension_numbers<[1], [0], [0], [1], [0, 0, 1, 1], [], []>} : vector<32x11xf32>, vector<11x9xf32>, vector<32x9xf32> -> vector<32x9xf32>
    %190 = arith.addf %186, %189 : vector<32x9xf32>
    %cst_63 = arith.constant 0.00999999977 : f32
    %191 = vector.broadcast %cst_63 : f32 to vector<32x9xf32>
    %192 = arith.mulf %191, %190 : vector<32x9xf32>
    %193 = arith.maximumf %190, %192 : vector<32x9xf32>
    %cst_64 = arith.constant dense<0.000000e+00> : vector<8x9xf32>
    %194 = tpu.matmul %2, %193, %cst_64 {dimension_numbers = #tpu.dot_dimension_numbers<[1], [0], [0], [1], [0, 0, 1, 1], [], []>} : vector<8x32xf32>, vector<32x9xf32>, vector<8x9xf32> -> vector<8x9xf32>
    %195 = vector.broadcast %3 : vector<8x1xf32> to vector<8x9xf32>
    %196 = arith.addf %194, %195 : vector<8x9xf32>
    %197 = arith.addf %69, %196 : vector<8x9xf32>
    %198 = vector.shape_cast %197 : vector<8x9xf32> to vector<1x8x9xf32>
    %cst_65 = arith.constant dense<0.000000e+00> : vector<1xf32>
    %199 = vector.multi_reduction <add>, %198, %cst_65 [1, 2] : vector<1x8x9xf32> to vector<1xf32>
    %200 = vector.shape_cast %199 : vector<1xf32> to vector<1x1x1xf32>
    %201 = vector.extract %200[0, 0, 0] : f32 from vector<1x1x1xf32>
    %202 = arith.addf %201, %65 : f32
    %cst_66 = arith.constant 9.900000e+01 : f32
    %203 = arith.divf %202, %cst_66 : f32
    %204 = vector.broadcast %203 : f32 to vector<8x9xf32>
    %205 = arith.subf %197, %204 : vector<8x9xf32>
    %206 = vector.broadcast %203 : f32 to vector<3x9xf32>
    %207 = arith.subf %61, %206 : vector<3x9xf32>
    %208 = arith.mulf %205, %205 : vector<8x9xf32>
    %209 = vector.shape_cast %208 : vector<8x9xf32> to vector<1x8x9xf32>
    %cst_67 = arith.constant dense<0.000000e+00> : vector<1xf32>
    %210 = vector.multi_reduction <add>, %209, %cst_67 [1, 2] : vector<1x8x9xf32> to vector<1xf32>
    %211 = vector.shape_cast %210 : vector<1xf32> to vector<1x1x1xf32>
    %212 = vector.extract %211[0, 0, 0] : f32 from vector<1x1x1xf32>
    %213 = arith.mulf %207, %207 : vector<3x9xf32>
    %214 = vector.shape_cast %213 : vector<3x9xf32> to vector<1x3x9xf32>
    %cst_68 = arith.constant dense<0.000000e+00> : vector<1xf32>
    %215 = vector.multi_reduction <add>, %214, %cst_68 [1, 2] : vector<1x3x9xf32> to vector<1xf32>
    %216 = vector.shape_cast %215 : vector<1xf32> to vector<1x1x1xf32>
    %217 = vector.extract %216[0, 0, 0] : f32 from vector<1x1x1xf32>
    %218 = arith.addf %212, %217 : f32
    %cst_69 = arith.constant 9.900000e+01 : f32
    %219 = arith.divf %218, %cst_69 : f32
    %cst_70 = arith.constant 9.99999974E-6 : f32
    %220 = arith.addf %219, %cst_70 : f32
    %221 = math.rsqrt %220 : f32
    %222 = vector.broadcast %221 : f32 to vector<8x9xf32>
    %223 = arith.mulf %205, %222 : vector<8x9xf32>
    %224 = vector.broadcast %4 : vector<8x1xf32> to vector<8x9xf32>
    %225 = arith.mulf %223, %224 : vector<8x9xf32>
    %226 = vector.broadcast %5 : vector<8x1xf32> to vector<8x9xf32>
    %227 = arith.addf %225, %226 : vector<8x9xf32>
    %228 = vector.broadcast %221 : f32 to vector<3x9xf32>
    %229 = arith.mulf %207, %228 : vector<3x9xf32>
    %230 = vector.broadcast %6 : vector<3x1xf32> to vector<3x9xf32>
    %231 = arith.mulf %229, %230 : vector<3x9xf32>
    %232 = vector.broadcast %7 : vector<3x1xf32> to vector<3x9xf32>
    %233 = arith.addf %231, %232 : vector<3x9xf32>
    %234 = tpu.concatenate %227, %233 in 0 : vector<8x9xf32>, vector<3x9xf32> -> vector<11x9xf32>
    %235 = vector.extract_strided_slice %234 {offsets = [0, 8], sizes = [11, 1], strides = [1, 1]} : vector<11x9xf32> to vector<11x1xf32>
    %236 = vector.extract_strided_slice %234 {offsets = [0, 0], sizes = [11, 8], strides = [1, 1]} : vector<11x9xf32> to vector<11x8xf32>
    %237 = tpu.concatenate %235, %236 in 1 : vector<11x1xf32>, vector<11x8xf32> -> vector<11x9xf32>
    %238 = vector.extract_strided_slice %234 {offsets = [0, 1], sizes = [11, 8], strides = [1, 1]} : vector<11x9xf32> to vector<11x8xf32>
    %239 = vector.extract_strided_slice %234 {offsets = [0, 0], sizes = [11, 1], strides = [1, 1]} : vector<11x9xf32> to vector<11x1xf32>
    %240 = tpu.concatenate %238, %239 in 1 : vector<11x8xf32>, vector<11x1xf32> -> vector<11x9xf32>
    %241 = vector.shape_cast %17 : vector<1x9xi1> to vector<1x9xi1>
    %242 = vector.broadcast %241 : vector<1x9xi1> to vector<11x9xi1>
    %243 = arith.select %242, %240, %237 : vector<11x9xi1>, vector<11x9xf32>
    %244 = vector.shape_cast %19 : vector<1x9xi1> to vector<1x9xi1>
    %245 = vector.broadcast %244 : vector<1x9xi1> to vector<11x9xi1>
    %246 = arith.select %245, %237, %240 : vector<11x9xi1>, vector<11x9xf32>
    %247 = vector.extract_strided_slice %243 {offsets = [0, 6], sizes = [11, 3], strides = [1, 1]} : vector<11x9xf32> to vector<11x3xf32>
    %248 = vector.extract_strided_slice %243 {offsets = [0, 0], sizes = [11, 6], strides = [1, 1]} : vector<11x9xf32> to vector<11x6xf32>
    %249 = tpu.concatenate %247, %248 in 1 : vector<11x3xf32>, vector<11x6xf32> -> vector<11x9xf32>
    %250 = vector.extract_strided_slice %243 {offsets = [0, 3], sizes = [11, 6], strides = [1, 1]} : vector<11x9xf32> to vector<11x6xf32>
    %251 = vector.extract_strided_slice %243 {offsets = [0, 0], sizes = [11, 3], strides = [1, 1]} : vector<11x9xf32> to vector<11x3xf32>
    %252 = tpu.concatenate %250, %251 in 1 : vector<11x6xf32>, vector<11x3xf32> -> vector<11x9xf32>
    %253 = vector.shape_cast %21 : vector<1x9xi1> to vector<1x9xi1>
    %254 = vector.broadcast %253 : vector<1x9xi1> to vector<11x9xi1>
    %255 = arith.select %254, %252, %249 : vector<11x9xi1>, vector<11x9xf32>
    %256 = vector.shape_cast %23 : vector<1x9xi1> to vector<1x9xi1>
    %257 = vector.broadcast %256 : vector<1x9xi1> to vector<11x9xi1>
    %258 = arith.select %257, %249, %252 : vector<11x9xi1>, vector<11x9xf32>
    %259 = vector.extract_strided_slice %0 {offsets = [0, 0, 0], sizes = [1, 32, 11], strides = [1, 1, 1]} : vector<9x32x11xf32> to vector<1x32x11xf32>
    %260 = vector.shape_cast %259 : vector<1x32x11xf32> to vector<32x11xf32>
    %cst_71 = arith.constant dense<0.000000e+00> : vector<32x9xf32>
    %261 = tpu.matmul %260, %255, %cst_71 {dimension_numbers = #tpu.dot_dimension_numbers<[1], [0], [0], [1], [0, 0, 1, 1], [], []>} : vector<32x11xf32>, vector<11x9xf32>, vector<32x9xf32> -> vector<32x9xf32>
    %262 = arith.addf %67, %261 : vector<32x9xf32>
    %263 = vector.extract_strided_slice %0 {offsets = [3, 0, 0], sizes = [1, 32, 11], strides = [1, 1, 1]} : vector<9x32x11xf32> to vector<1x32x11xf32>
    %264 = vector.shape_cast %263 : vector<1x32x11xf32> to vector<32x11xf32>
    %cst_72 = arith.constant dense<0.000000e+00> : vector<32x9xf32>
    %265 = tpu.matmul %264, %243, %cst_72 {dimension_numbers = #tpu.dot_dimension_numbers<[1], [0], [0], [1], [0, 0, 1, 1], [], []>} : vector<32x11xf32>, vector<11x9xf32>, vector<32x9xf32> -> vector<32x9xf32>
    %266 = arith.addf %262, %265 : vector<32x9xf32>
    %267 = vector.extract_strided_slice %0 {offsets = [6, 0, 0], sizes = [1, 32, 11], strides = [1, 1, 1]} : vector<9x32x11xf32> to vector<1x32x11xf32>
    %268 = vector.shape_cast %267 : vector<1x32x11xf32> to vector<32x11xf32>
    %cst_73 = arith.constant dense<0.000000e+00> : vector<32x9xf32>
    %269 = tpu.matmul %268, %258, %cst_73 {dimension_numbers = #tpu.dot_dimension_numbers<[1], [0], [0], [1], [0, 0, 1, 1], [], []>} : vector<32x11xf32>, vector<11x9xf32>, vector<32x9xf32> -> vector<32x9xf32>
    %270 = arith.addf %266, %269 : vector<32x9xf32>
    %271 = vector.extract_strided_slice %234 {offsets = [0, 6], sizes = [11, 3], strides = [1, 1]} : vector<11x9xf32> to vector<11x3xf32>
    %272 = vector.extract_strided_slice %234 {offsets = [0, 0], sizes = [11, 6], strides = [1, 1]} : vector<11x9xf32> to vector<11x6xf32>
    %273 = tpu.concatenate %271, %272 in 1 : vector<11x3xf32>, vector<11x6xf32> -> vector<11x9xf32>
    %274 = vector.extract_strided_slice %234 {offsets = [0, 3], sizes = [11, 6], strides = [1, 1]} : vector<11x9xf32> to vector<11x6xf32>
    %275 = vector.extract_strided_slice %234 {offsets = [0, 0], sizes = [11, 3], strides = [1, 1]} : vector<11x9xf32> to vector<11x3xf32>
    %276 = tpu.concatenate %274, %275 in 1 : vector<11x6xf32>, vector<11x3xf32> -> vector<11x9xf32>
    %277 = vector.shape_cast %21 : vector<1x9xi1> to vector<1x9xi1>
    %278 = vector.broadcast %277 : vector<1x9xi1> to vector<11x9xi1>
    %279 = arith.select %278, %276, %273 : vector<11x9xi1>, vector<11x9xf32>
    %280 = vector.shape_cast %23 : vector<1x9xi1> to vector<1x9xi1>
    %281 = vector.broadcast %280 : vector<1x9xi1> to vector<11x9xi1>
    %282 = arith.select %281, %273, %276 : vector<11x9xi1>, vector<11x9xf32>
    %283 = vector.extract_strided_slice %0 {offsets = [1, 0, 0], sizes = [1, 32, 11], strides = [1, 1, 1]} : vector<9x32x11xf32> to vector<1x32x11xf32>
    %284 = vector.shape_cast %283 : vector<1x32x11xf32> to vector<32x11xf32>
    %cst_74 = arith.constant dense<0.000000e+00> : vector<32x9xf32>
    %285 = tpu.matmul %284, %279, %cst_74 {dimension_numbers = #tpu.dot_dimension_numbers<[1], [0], [0], [1], [0, 0, 1, 1], [], []>} : vector<32x11xf32>, vector<11x9xf32>, vector<32x9xf32> -> vector<32x9xf32>
    %286 = arith.addf %270, %285 : vector<32x9xf32>
    %287 = vector.extract_strided_slice %0 {offsets = [4, 0, 0], sizes = [1, 32, 11], strides = [1, 1, 1]} : vector<9x32x11xf32> to vector<1x32x11xf32>
    %288 = vector.shape_cast %287 : vector<1x32x11xf32> to vector<32x11xf32>
    %cst_75 = arith.constant dense<0.000000e+00> : vector<32x9xf32>
    %289 = tpu.matmul %288, %234, %cst_75 {dimension_numbers = #tpu.dot_dimension_numbers<[1], [0], [0], [1], [0, 0, 1, 1], [], []>} : vector<32x11xf32>, vector<11x9xf32>, vector<32x9xf32> -> vector<32x9xf32>
    %290 = arith.addf %286, %289 : vector<32x9xf32>
    %291 = vector.extract_strided_slice %0 {offsets = [7, 0, 0], sizes = [1, 32, 11], strides = [1, 1, 1]} : vector<9x32x11xf32> to vector<1x32x11xf32>
    %292 = vector.shape_cast %291 : vector<1x32x11xf32> to vector<32x11xf32>
    %cst_76 = arith.constant dense<0.000000e+00> : vector<32x9xf32>
    %293 = tpu.matmul %292, %282, %cst_76 {dimension_numbers = #tpu.dot_dimension_numbers<[1], [0], [0], [1], [0, 0, 1, 1], [], []>} : vector<32x11xf32>, vector<11x9xf32>, vector<32x9xf32> -> vector<32x9xf32>
    %294 = arith.addf %290, %293 : vector<32x9xf32>
    %295 = vector.extract_strided_slice %246 {offsets = [0, 6], sizes = [11, 3], strides = [1, 1]} : vector<11x9xf32> to vector<11x3xf32>
    %296 = vector.extract_strided_slice %246 {offsets = [0, 0], sizes = [11, 6], strides = [1, 1]} : vector<11x9xf32> to vector<11x6xf32>
    %297 = tpu.concatenate %295, %296 in 1 : vector<11x3xf32>, vector<11x6xf32> -> vector<11x9xf32>
    %298 = vector.extract_strided_slice %246 {offsets = [0, 3], sizes = [11, 6], strides = [1, 1]} : vector<11x9xf32> to vector<11x6xf32>
    %299 = vector.extract_strided_slice %246 {offsets = [0, 0], sizes = [11, 3], strides = [1, 1]} : vector<11x9xf32> to vector<11x3xf32>
    %300 = tpu.concatenate %298, %299 in 1 : vector<11x6xf32>, vector<11x3xf32> -> vector<11x9xf32>
    %301 = vector.shape_cast %21 : vector<1x9xi1> to vector<1x9xi1>
    %302 = vector.broadcast %301 : vector<1x9xi1> to vector<11x9xi1>
    %303 = arith.select %302, %300, %297 : vector<11x9xi1>, vector<11x9xf32>
    %304 = vector.shape_cast %23 : vector<1x9xi1> to vector<1x9xi1>
    %305 = vector.broadcast %304 : vector<1x9xi1> to vector<11x9xi1>
    %306 = arith.select %305, %297, %300 : vector<11x9xi1>, vector<11x9xf32>
    %307 = vector.extract_strided_slice %0 {offsets = [2, 0, 0], sizes = [1, 32, 11], strides = [1, 1, 1]} : vector<9x32x11xf32> to vector<1x32x11xf32>
    %308 = vector.shape_cast %307 : vector<1x32x11xf32> to vector<32x11xf32>
    %cst_77 = arith.constant dense<0.000000e+00> : vector<32x9xf32>
    %309 = tpu.matmul %308, %303, %cst_77 {dimension_numbers = #tpu.dot_dimension_numbers<[1], [0], [0], [1], [0, 0, 1, 1], [], []>} : vector<32x11xf32>, vector<11x9xf32>, vector<32x9xf32> -> vector<32x9xf32>
    %310 = arith.addf %294, %309 : vector<32x9xf32>
    %311 = vector.extract_strided_slice %0 {offsets = [5, 0, 0], sizes = [1, 32, 11], strides = [1, 1, 1]} : vector<9x32x11xf32> to vector<1x32x11xf32>
    %312 = vector.shape_cast %311 : vector<1x32x11xf32> to vector<32x11xf32>
    %cst_78 = arith.constant dense<0.000000e+00> : vector<32x9xf32>
    %313 = tpu.matmul %312, %246, %cst_78 {dimension_numbers = #tpu.dot_dimension_numbers<[1], [0], [0], [1], [0, 0, 1, 1], [], []>} : vector<32x11xf32>, vector<11x9xf32>, vector<32x9xf32> -> vector<32x9xf32>
    %314 = arith.addf %310, %313 : vector<32x9xf32>
    %315 = vector.extract_strided_slice %0 {offsets = [8, 0, 0], sizes = [1, 32, 11], strides = [1, 1, 1]} : vector<9x32x11xf32> to vector<1x32x11xf32>
    %316 = vector.shape_cast %315 : vector<1x32x11xf32> to vector<32x11xf32>
    %cst_79 = arith.constant dense<0.000000e+00> : vector<32x9xf32>
    %317 = tpu.matmul %316, %306, %cst_79 {dimension_numbers = #tpu.dot_dimension_numbers<[1], [0], [0], [1], [0, 0, 1, 1], [], []>} : vector<32x11xf32>, vector<11x9xf32>, vector<32x9xf32> -> vector<32x9xf32>
    %318 = arith.addf %314, %317 : vector<32x9xf32>
    %cst_80 = arith.constant 0.00999999977 : f32
    %319 = vector.broadcast %cst_80 : f32 to vector<32x9xf32>
    %320 = arith.mulf %319, %318 : vector<32x9xf32>
    %321 = arith.maximumf %318, %320 : vector<32x9xf32>
    %cst_81 = arith.constant dense<0.000000e+00> : vector<8x9xf32>
    %322 = tpu.matmul %2, %321, %cst_81 {dimension_numbers = #tpu.dot_dimension_numbers<[1], [0], [0], [1], [0, 0, 1, 1], [], []>} : vector<8x32xf32>, vector<32x9xf32>, vector<8x9xf32> -> vector<8x9xf32>
    %323 = vector.broadcast %3 : vector<8x1xf32> to vector<8x9xf32>
    %324 = arith.addf %322, %323 : vector<8x9xf32>
    %325 = arith.addf %197, %324 : vector<8x9xf32>
    %c0_82 = arith.constant 0 : index
    %c0_83 = arith.constant 0 : index
    %c0_84 = arith.constant 0 : index
    %326 = vector.load %arg17[%c0_82, %c0_83, %c0_84] : memref<1x8x9xf32, #tpu.memory_space<vmem>>, vector<1x8x9xf32>
    %327 = vector.shape_cast %326 : vector<1x8x9xf32> to vector<8x9xf32>
    %328 = vector.shape_cast %325 : vector<8x9xf32> to vector<1x8x9xf32>
    tpu.vector_store %arg17[%c0_82, %c0_83, %c0_84], %328 {strides = array<i32>} : memref<1x8x9xf32, #tpu.memory_space<vmem>>, vector<1x8x9xf32>,
    return
  }
  func.func @transform_0(%arg0: i32) -> i32 {
    %c0_i32 = arith.constant 0 : i32
    %c0_i32_0 = arith.constant 0 : i32
    return %c0_i32 : i32
  }
  func.func @transform_1(%arg0: i32) -> (i32, i32, i32) {
    %c0_i32 = arith.constant 0 : i32
    %c0_i32_0 = arith.constant 0 : i32
    %c0_i32_1 = arith.constant 0 : i32
    return %arg0, %c0_i32, %c0_i32_0 : i32, i32, i32
  }
  func.func @transform_2(%arg0: i32) -> (i32, i32) {
    %c0_i32 = arith.constant 0 : i32
    %c0_i32_0 = arith.constant 0 : i32
    %c0_i32_1 = arith.constant 0 : i32
    return %c0_i32, %c0_i32_0 : i32, i32
  }
  func.func @transform_3(%arg0: i32) -> (i32, i32) {
    %c0_i32 = arith.constant 0 : i32
    %c0_i32_0 = arith.constant 0 : i32
    %c0_i32_1 = arith.constant 0 : i32
    return %c0_i32, %c0_i32_0 : i32, i32
  }
  func.func @transform_4(%arg0: i32) -> (i32, i32) {
    %c0_i32 = arith.constant 0 : i32
    %c0_i32_0 = arith.constant 0 : i32
    %c0_i32_1 = arith.constant 0 : i32
    return %c0_i32, %c0_i32_0 : i32, i32
  }
  func.func @transform_5(%arg0: i32) -> (i32, i32) {
    %c0_i32 = arith.constant 0 : i32
    %c0_i32_0 = arith.constant 0 : i32
    %c0_i32_1 = arith.constant 0 : i32
    return %c0_i32, %c0_i32_0 : i32, i32
  }
  func.func @transform_6(%arg0: i32) -> (i32, i32) {
    %c0_i32 = arith.constant 0 : i32
    %c0_i32_0 = arith.constant 0 : i32
    %c0_i32_1 = arith.constant 0 : i32
    return %c0_i32, %c0_i32_0 : i32, i32
  }
  func.func @transform_7(%arg0: i32) -> (i32, i32) {
    %c0_i32 = arith.constant 0 : i32
    %c0_i32_0 = arith.constant 0 : i32
    %c0_i32_1 = arith.constant 0 : i32
    return %c0_i32, %c0_i32_0 : i32, i32
  }
  func.func @transform_8(%arg0: i32) -> (i32, i32) {
    %c0_i32 = arith.constant 0 : i32
    %c0_i32_0 = arith.constant 0 : i32
    %c0_i32_1 = arith.constant 0 : i32
    return %c0_i32, %c0_i32_0 : i32, i32
  }
  func.func @transform_9(%arg0: i32) -> (i32, i32) {
    %c0_i32 = arith.constant 0 : i32
    %c0_i32_0 = arith.constant 0 : i32
    %c0_i32_1 = arith.constant 0 : i32
    return %c0_i32, %c0_i32_0 : i32, i32
  }
  func.func @transform_10(%arg0: i32) -> (i32, i32) {
    %c0_i32 = arith.constant 0 : i32
    %c0_i32_0 = arith.constant 0 : i32
    %c0_i32_1 = arith.constant 0 : i32
    return %c0_i32, %c0_i32_0 : i32, i32
  }
  func.func @transform_11(%arg0: i32) -> (i32, i32) {
    %c0_i32 = arith.constant 0 : i32
    %c0_i32_0 = arith.constant 0 : i32
    %c0_i32_1 = arith.constant 0 : i32
    return %c0_i32, %c0_i32_0 : i32, i32
  }
  func.func @transform_12(%arg0: i32) -> (i32, i32, i32) {
    %c0_i32 = arith.constant 0 : i32
    %c0_i32_0 = arith.constant 0 : i32
    %c0_i32_1 = arith.constant 0 : i32
    %c0_i32_2 = arith.constant 0 : i32
    return %c0_i32, %c0_i32_0, %c0_i32_1 : i32, i32, i32
  }
  func.func @transform_13(%arg0: i32) -> (i32, i32) {
    %c0_i32 = arith.constant 0 : i32
    %c0_i32_0 = arith.constant 0 : i32
    %c0_i32_1 = arith.constant 0 : i32
    return %c0_i32, %c0_i32_0 : i32, i32
  }
  func.func @transform_14(%arg0: i32) -> (i32, i32) {
    %c0_i32 = arith.constant 0 : i32
    %c0_i32_0 = arith.constant 0 : i32
    %c0_i32_1 = arith.constant 0 : i32
    return %c0_i32, %c0_i32_0 : i32, i32
  }
  func.func @transform_15(%arg0: i32) -> (i32, i32) {
    %c0_i32 = arith.constant 0 : i32
    %c0_i32_0 = arith.constant 0 : i32
    %c0_i32_1 = arith.constant 0 : i32
    return %c0_i32, %c0_i32_0 : i32, i32
  }
  func.func @transform_16(%arg0: i32) -> (i32, i32, i32) {
    %c0_i32 = arith.constant 0 : i32
    %c0_i32_0 = arith.constant 0 : i32
    %c0_i32_1 = arith.constant 0 : i32
    return %arg0, %c0_i32, %c0_i32_0 : i32, i32, i32
  }
}

module attributes {stable_mosaic.version = 11 : i64} {
  func.func @_nca_stage_kernel(%arg0: i32, %arg1: memref<2xf32, #tpu.memory_space<smem>>, %arg2: memref<1x4x256xf32, #tpu.memory_space<vmem>>, %arg3: memref<1x2x256xf32, #tpu.memory_space<vmem>>, %arg4: memref<16x3xf32, #tpu.memory_space<vmem>>, %arg5: memref<16x1xf32, #tpu.memory_space<vmem>>, %arg6: memref<16x16xf32, #tpu.memory_space<vmem>>, %arg7: memref<16x1xf32, #tpu.memory_space<vmem>>, %arg8: memref<3x16xf32, #tpu.memory_space<vmem>>, %arg9: memref<3x1xf32, #tpu.memory_space<vmem>>, %arg10: memref<4x1xf32, #tpu.memory_space<vmem>>, %arg11: memref<4x1xf32, #tpu.memory_space<vmem>>, %arg12: memref<3x1xf32, #tpu.memory_space<vmem>>, %arg13: memref<3x1xf32, #tpu.memory_space<vmem>>, %arg14: memref<9x32x7xf32, #tpu.memory_space<vmem>>, %arg15: memref<32x1xf32, #tpu.memory_space<vmem>>, %arg16: memref<4x32xf32, #tpu.memory_space<vmem>>, %arg17: memref<4x1xf32, #tpu.memory_space<vmem>>, %arg18: memref<1x4x256xf32, #tpu.memory_space<vmem>>) attributes {dimension_semantics = [#tpu.dimension_semantics<parallel>], iteration_bounds = array<i64: 2>, scalar_prefetch = 0 : i64, scratch_operands = 0 : i64, tpu.core_type = #tpu.core_type<tc>, window_params = [{transform_indices = @transform_0, window_bounds = array<i64: 2>}, {transform_indices = @transform_1, window_bounds = array<i64: 1, 4, 256>}, {transform_indices = @transform_2, window_bounds = array<i64: 1, 2, 256>}, {pipeline_mode = #tpu.pipeline_mode<synchronous>, transform_indices = @transform_3, window_bounds = array<i64: 16, 3>}, {pipeline_mode = #tpu.pipeline_mode<synchronous>, transform_indices = @transform_4, window_bounds = array<i64: 16, 1>}, {pipeline_mode = #tpu.pipeline_mode<synchronous>, transform_indices = @transform_5, window_bounds = array<i64: 16, 16>}, {pipeline_mode = #tpu.pipeline_mode<synchronous>, transform_indices = @transform_6, window_bounds = array<i64: 16, 1>}, {pipeline_mode = #tpu.pipeline_mode<synchronous>, transform_indices = @transform_7, window_bounds = array<i64: 3, 16>}, {pipeline_mode = #tpu.pipeline_mode<synchronous>, transform_indices = @transform_8, window_bounds = array<i64: 3, 1>}, {pipeline_mode = #tpu.pipeline_mode<synchronous>, transform_indices = @transform_9, window_bounds = array<i64: 4, 1>}, {pipeline_mode = #tpu.pipeline_mode<synchronous>, transform_indices = @transform_10, window_bounds = array<i64: 4, 1>}, {pipeline_mode = #tpu.pipeline_mode<synchronous>, transform_indices = @transform_11, window_bounds = array<i64: 3, 1>}, {pipeline_mode = #tpu.pipeline_mode<synchronous>, transform_indices = @transform_12, window_bounds = array<i64: 3, 1>}, {pipeline_mode = #tpu.pipeline_mode<synchronous>, transform_indices = @transform_13, window_bounds = array<i64: 9, 32, 7>}, {pipeline_mode = #tpu.pipeline_mode<synchronous>, transform_indices = @transform_14, window_bounds = array<i64: 32, 1>}, {pipeline_mode = #tpu.pipeline_mode<synchronous>, transform_indices = @transform_15, window_bounds = array<i64: 4, 32>}, {pipeline_mode = #tpu.pipeline_mode<synchronous>, transform_indices = @transform_16, window_bounds = array<i64: 4, 1>}, {transform_indices = @transform_17, window_bounds = array<i64: 1, 4, 256>}]} {
    %c0 = arith.constant 0 : index
    %c0_0 = arith.constant 0 : index
    %c0_1 = arith.constant 0 : index
    %0 = vector.load %arg14[%c0, %c0_0, %c0_1] : memref<9x32x7xf32, #tpu.memory_space<vmem>>, vector<9x32x7xf32>
    %c0_2 = arith.constant 0 : index
    %c0_3 = arith.constant 0 : index
    %1 = vector.load %arg15[%c0_2, %c0_3] : memref<32x1xf32, #tpu.memory_space<vmem>>, vector<32x1xf32>
    %c0_4 = arith.constant 0 : index
    %c0_5 = arith.constant 0 : index
    %2 = vector.load %arg16[%c0_4, %c0_5] : memref<4x32xf32, #tpu.memory_space<vmem>>, vector<4x32xf32>
    %c0_6 = arith.constant 0 : index
    %c0_7 = arith.constant 0 : index
    %3 = vector.load %arg17[%c0_6, %c0_7] : memref<4x1xf32, #tpu.memory_space<vmem>>, vector<4x1xf32>
    %c0_8 = arith.constant 0 : index
    %c0_9 = arith.constant 0 : index
    %4 = vector.load %arg10[%c0_8, %c0_9] : memref<4x1xf32, #tpu.memory_space<vmem>>, vector<4x1xf32>
    %c0_10 = arith.constant 0 : index
    %c0_11 = arith.constant 0 : index
    %5 = vector.load %arg11[%c0_10, %c0_11] : memref<4x1xf32, #tpu.memory_space<vmem>>, vector<4x1xf32>
    %c0_12 = arith.constant 0 : index
    %c0_13 = arith.constant 0 : index
    %6 = vector.load %arg12[%c0_12, %c0_13] : memref<3x1xf32, #tpu.memory_space<vmem>>, vector<3x1xf32>
    %c0_14 = arith.constant 0 : index
    %c0_15 = arith.constant 0 : index
    %7 = vector.load %arg13[%c0_14, %c0_15] : memref<3x1xf32, #tpu.memory_space<vmem>>, vector<3x1xf32>
    %8 = tpu.iota {dimensions = array<i32: 1>} : vector<1x256xi32>
    %9 = arith.sitofp %8 : vector<1x256xi32> to vector<1x256xf32>
    %cst = arith.constant 1.600000e+01 : f32
    %10 = vector.broadcast %cst : f32 to vector<1x256xf32>
    %11 = arith.divf %9, %10 : vector<1x256xf32>
    %12 = math.floor %11 : vector<1x256xf32>
    %cst_16 = arith.constant 1.600000e+01 : f32
    %13 = vector.broadcast %cst_16 : f32 to vector<1x256xf32>
    %14 = arith.mulf %12, %13 : vector<1x256xf32>
    %15 = arith.subf %9, %14 : vector<1x256xf32>
    %cst_17 = arith.constant 0.000000e+00 : f32
    %16 = vector.broadcast %cst_17 : f32 to vector<1x256xf32>
    %17 = arith.cmpf oeq, %15, %16 : vector<1x256xf32>
    %cst_18 = arith.constant 1.500000e+01 : f32
    %18 = vector.broadcast %cst_18 : f32 to vector<1x256xf32>
    %19 = arith.cmpf oeq, %15, %18 : vector<1x256xf32>
    %cst_19 = arith.constant 0.000000e+00 : f32
    %20 = vector.broadcast %cst_19 : f32 to vector<1x256xf32>
    %21 = arith.cmpf oeq, %12, %20 : vector<1x256xf32>
    %cst_20 = arith.constant 1.500000e+01 : f32
    %22 = vector.broadcast %cst_20 : f32 to vector<1x256xf32>
    %23 = arith.cmpf oeq, %12, %22 : vector<1x256xf32>
    %cst_21 = arith.constant 0.0666666701 : f32
    %24 = vector.broadcast %cst_21 : f32 to vector<1x256xf32>
    %25 = arith.mulf %15, %24 : vector<1x256xf32>
    %cst_22 = arith.constant 1.000000e+00 : f32
    %26 = vector.broadcast %cst_22 : f32 to vector<1x256xf32>
    %27 = arith.subf %26, %25 : vector<1x256xf32>
    %cst_23 = arith.constant 0.0666666701 : f32
    %28 = vector.broadcast %cst_23 : f32 to vector<1x256xf32>
    %29 = arith.mulf %12, %28 : vector<1x256xf32>
    %cst_24 = arith.constant 1.000000e+00 : f32
    %30 = vector.broadcast %cst_24 : f32 to vector<1x256xf32>
    %31 = arith.subf %30, %29 : vector<1x256xf32>
    %cst_25 = arith.constant 0.000000e+00 : f32
    %32 = vector.broadcast %cst_25 : f32 to vector<1x256xf32>
    %33 = arith.index_cast %arg0 : i32 to index
    %34 = memref.load %arg1[%33] : memref<2xf32, #tpu.memory_space<smem>>
    %35 = vector.broadcast %34 : f32 to vector<1x256xf32>
    %36 = arith.addf %32, %35 : vector<1x256xf32>
    %37 = tpu.concatenate %27, %31, %36 in 0 : vector<1x256xf32>, vector<1x256xf32>, vector<1x256xf32> -> vector<3x256xf32>
    %c0_26 = arith.constant 0 : index
    %c0_27 = arith.constant 0 : index
    %38 = vector.load %arg4[%c0_26, %c0_27] : memref<16x3xf32, #tpu.memory_space<vmem>>, vector<16x3xf32>
    %cst_28 = arith.constant dense<0.000000e+00> : vector<16x256xf32>
    %39 = tpu.matmul %38, %37, %cst_28 {dimension_numbers = #tpu.dot_dimension_numbers<[1], [0], [0], [1], [0, 0, 1, 1], [], []>} : vector<16x3xf32>, vector<3x256xf32>, vector<16x256xf32> -> vector<16x256xf32>
    %c0_29 = arith.constant 0 : index
    %c0_30 = arith.constant 0 : index
    %40 = vector.load %arg5[%c0_29, %c0_30] : memref<16x1xf32, #tpu.memory_space<vmem>>, vector<16x1xf32>
    %41 = vector.broadcast %40 : vector<16x1xf32> to vector<16x256xf32>
    %42 = arith.addf %39, %41 : vector<16x256xf32>
    %cst_31 = arith.constant 0.00999999977 : f32
    %43 = vector.broadcast %cst_31 : f32 to vector<16x256xf32>
    %44 = arith.mulf %43, %42 : vector<16x256xf32>
    %45 = arith.maximumf %42, %44 : vector<16x256xf32>
    %c0_32 = arith.constant 0 : index
    %c0_33 = arith.constant 0 : index
    %46 = vector.load %arg6[%c0_32, %c0_33] : memref<16x16xf32, #tpu.memory_space<vmem>>, vector<16x16xf32>
    %cst_34 = arith.constant dense<0.000000e+00> : vector<16x256xf32>
    %47 = tpu.matmul %46, %45, %cst_34 {dimension_numbers = #tpu.dot_dimension_numbers<[1], [0], [0], [1], [0, 0, 1, 1], [], []>} : vector<16x16xf32>, vector<16x256xf32>, vector<16x256xf32> -> vector<16x256xf32>
    %c0_35 = arith.constant 0 : index
    %c0_36 = arith.constant 0 : index
    %48 = vector.load %arg7[%c0_35, %c0_36] : memref<16x1xf32, #tpu.memory_space<vmem>>, vector<16x1xf32>
    %49 = vector.broadcast %48 : vector<16x1xf32> to vector<16x256xf32>
    %50 = arith.addf %47, %49 : vector<16x256xf32>
    %cst_37 = arith.constant 0.00999999977 : f32
    %51 = vector.broadcast %cst_37 : f32 to vector<16x256xf32>
    %52 = arith.mulf %51, %50 : vector<16x256xf32>
    %53 = arith.maximumf %50, %52 : vector<16x256xf32>
    %c0_38 = arith.constant 0 : index
    %c0_39 = arith.constant 0 : index
    %54 = vector.load %arg8[%c0_38, %c0_39] : memref<3x16xf32, #tpu.memory_space<vmem>>, vector<3x16xf32>
    %cst_40 = arith.constant dense<0.000000e+00> : vector<3x256xf32>
    %55 = tpu.matmul %54, %53, %cst_40 {dimension_numbers = #tpu.dot_dimension_numbers<[1], [0], [0], [1], [0, 0, 1, 1], [], []>} : vector<3x16xf32>, vector<16x256xf32>, vector<3x256xf32> -> vector<3x256xf32>
    %c0_41 = arith.constant 0 : index
    %c0_42 = arith.constant 0 : index
    %56 = vector.load %arg9[%c0_41, %c0_42] : memref<3x1xf32, #tpu.memory_space<vmem>>, vector<3x1xf32>
    %57 = vector.broadcast %56 : vector<3x1xf32> to vector<3x256xf32>
    %58 = arith.addf %55, %57 : vector<3x256xf32>
    %cst_43 = arith.constant 0.00999999977 : f32
    %59 = vector.broadcast %cst_43 : f32 to vector<3x256xf32>
    %60 = arith.mulf %59, %58 : vector<3x256xf32>
    %61 = arith.maximumf %58, %60 : vector<3x256xf32>
    %62 = vector.shape_cast %61 : vector<3x256xf32> to vector<1x3x256xf32>
    %cst_44 = arith.constant dense<0.000000e+00> : vector<1xf32>
    %63 = vector.multi_reduction <add>, %62, %cst_44 [1, 2] : vector<1x3x256xf32> to vector<1xf32>
    %64 = vector.shape_cast %63 : vector<1xf32> to vector<1x1x1xf32>
    %65 = vector.extract %64[0, 0, 0] : f32 from vector<1x1x1xf32>
    %66 = vector.shape_cast %1 : vector<32x1xf32> to vector<32x1xf32>
    %67 = vector.broadcast %66 : vector<32x1xf32> to vector<32x256xf32>
    %c0_45 = arith.constant 0 : index
    %c0_46 = arith.constant 0 : index
    %c0_47 = arith.constant 0 : index
    %68 = vector.load %arg3[%c0_45, %c0_46, %c0_47] : memref<1x2x256xf32, #tpu.memory_space<vmem>>, vector<1x2x256xf32>
    %69 = vector.shape_cast %68 : vector<1x2x256xf32> to vector<2x256xf32>
    %c0_48 = arith.constant 0 : index
    %c0_49 = arith.constant 0 : index
    %c0_50 = arith.constant 0 : index
    %70 = vector.load %arg2[%c0_48, %c0_49, %c0_50] : memref<1x4x256xf32, #tpu.memory_space<vmem>>, vector<1x4x256xf32>
    %71 = vector.shape_cast %70 : vector<1x4x256xf32> to vector<4x256xf32>
    %72 = vector.shape_cast %71 : vector<4x256xf32> to vector<1x4x256xf32>
    %cst_51 = arith.constant dense<0.000000e+00> : vector<1xf32>
    %73 = vector.multi_reduction <add>, %72, %cst_51 [1, 2] : vector<1x4x256xf32> to vector<1xf32>
    %74 = vector.shape_cast %73 : vector<1xf32> to vector<1x1x1xf32>
    %75 = vector.extract %74[0, 0, 0] : f32 from vector<1x1x1xf32>
    %76 = arith.addf %75, %65 : f32
    %cst_52 = arith.constant 1.792000e+03 : f32
    %77 = arith.divf %76, %cst_52 : f32
    %78 = vector.broadcast %77 : f32 to vector<4x256xf32>
    %79 = arith.subf %71, %78 : vector<4x256xf32>
    %80 = vector.broadcast %77 : f32 to vector<3x256xf32>
    %81 = arith.subf %61, %80 : vector<3x256xf32>
    %82 = arith.mulf %79, %79 : vector<4x256xf32>
    %83 = vector.shape_cast %82 : vector<4x256xf32> to vector<1x4x256xf32>
    %cst_53 = arith.constant dense<0.000000e+00> : vector<1xf32>
    %84 = vector.multi_reduction <add>, %83, %cst_53 [1, 2] : vector<1x4x256xf32> to vector<1xf32>
    %85 = vector.shape_cast %84 : vector<1xf32> to vector<1x1x1xf32>
    %86 = vector.extract %85[0, 0, 0] : f32 from vector<1x1x1xf32>
    %87 = arith.mulf %81, %81 : vector<3x256xf32>
    %88 = vector.shape_cast %87 : vector<3x256xf32> to vector<1x3x256xf32>
    %cst_54 = arith.constant dense<0.000000e+00> : vector<1xf32>
    %89 = vector.multi_reduction <add>, %88, %cst_54 [1, 2] : vector<1x3x256xf32> to vector<1xf32>
    %90 = vector.shape_cast %89 : vector<1xf32> to vector<1x1x1xf32>
    %91 = vector.extract %90[0, 0, 0] : f32 from vector<1x1x1xf32>
    %92 = arith.addf %86, %91 : f32
    %cst_55 = arith.constant 1.792000e+03 : f32
    %93 = arith.divf %92, %cst_55 : f32
    %cst_56 = arith.constant 9.99999974E-6 : f32
    %94 = arith.addf %93, %cst_56 : f32
    %95 = math.rsqrt %94 : f32
    %96 = vector.broadcast %95 : f32 to vector<4x256xf32>
    %97 = arith.mulf %79, %96 : vector<4x256xf32>
    %98 = vector.broadcast %4 : vector<4x1xf32> to vector<4x256xf32>
    %99 = arith.mulf %97, %98 : vector<4x256xf32>
    %100 = vector.broadcast %5 : vector<4x1xf32> to vector<4x256xf32>
    %101 = arith.addf %99, %100 : vector<4x256xf32>
    %102 = vector.broadcast %95 : f32 to vector<3x256xf32>
    %103 = arith.mulf %81, %102 : vector<3x256xf32>
    %104 = vector.broadcast %6 : vector<3x1xf32> to vector<3x256xf32>
    %105 = arith.mulf %103, %104 : vector<3x256xf32>
    %106 = vector.broadcast %7 : vector<3x1xf32> to vector<3x256xf32>
    %107 = arith.addf %105, %106 : vector<3x256xf32>
    %108 = tpu.concatenate %101, %107 in 0 : vector<4x256xf32>, vector<3x256xf32> -> vector<7x256xf32>
    %109 = vector.extract_strided_slice %108 {offsets = [0, 255], sizes = [7, 1], strides = [1, 1]} : vector<7x256xf32> to vector<7x1xf32>
    %110 = vector.extract_strided_slice %108 {offsets = [0, 0], sizes = [7, 255], strides = [1, 1]} : vector<7x256xf32> to vector<7x255xf32>
    %111 = tpu.concatenate %109, %110 in 1 : vector<7x1xf32>, vector<7x255xf32> -> vector<7x256xf32>
    %112 = vector.extract_strided_slice %108 {offsets = [0, 1], sizes = [7, 255], strides = [1, 1]} : vector<7x256xf32> to vector<7x255xf32>
    %113 = vector.extract_strided_slice %108 {offsets = [0, 0], sizes = [7, 1], strides = [1, 1]} : vector<7x256xf32> to vector<7x1xf32>
    %114 = tpu.concatenate %112, %113 in 1 : vector<7x255xf32>, vector<7x1xf32> -> vector<7x256xf32>
    %115 = vector.shape_cast %17 : vector<1x256xi1> to vector<1x256xi1>
    %116 = vector.broadcast %115 : vector<1x256xi1> to vector<7x256xi1>
    %117 = arith.select %116, %114, %111 : vector<7x256xi1>, vector<7x256xf32>
    %118 = vector.shape_cast %19 : vector<1x256xi1> to vector<1x256xi1>
    %119 = vector.broadcast %118 : vector<1x256xi1> to vector<7x256xi1>
    %120 = arith.select %119, %111, %114 : vector<7x256xi1>, vector<7x256xf32>
    %121 = vector.extract_strided_slice %117 {offsets = [0, 240], sizes = [7, 16], strides = [1, 1]} : vector<7x256xf32> to vector<7x16xf32>
    %122 = vector.extract_strided_slice %117 {offsets = [0, 0], sizes = [7, 240], strides = [1, 1]} : vector<7x256xf32> to vector<7x240xf32>
    %123 = tpu.concatenate %121, %122 in 1 : vector<7x16xf32>, vector<7x240xf32> -> vector<7x256xf32>
    %124 = vector.extract_strided_slice %117 {offsets = [0, 16], sizes = [7, 240], strides = [1, 1]} : vector<7x256xf32> to vector<7x240xf32>
    %125 = vector.extract_strided_slice %117 {offsets = [0, 0], sizes = [7, 16], strides = [1, 1]} : vector<7x256xf32> to vector<7x16xf32>
    %126 = tpu.concatenate %124, %125 in 1 : vector<7x240xf32>, vector<7x16xf32> -> vector<7x256xf32>
    %127 = vector.shape_cast %21 : vector<1x256xi1> to vector<1x256xi1>
    %128 = vector.broadcast %127 : vector<1x256xi1> to vector<7x256xi1>
    %129 = arith.select %128, %126, %123 : vector<7x256xi1>, vector<7x256xf32>
    %130 = vector.shape_cast %23 : vector<1x256xi1> to vector<1x256xi1>
    %131 = vector.broadcast %130 : vector<1x256xi1> to vector<7x256xi1>
    %132 = arith.select %131, %123, %126 : vector<7x256xi1>, vector<7x256xf32>
    %133 = vector.extract_strided_slice %0 {offsets = [0, 0, 0], sizes = [1, 32, 7], strides = [1, 1, 1]} : vector<9x32x7xf32> to vector<1x32x7xf32>
    %134 = vector.shape_cast %133 : vector<1x32x7xf32> to vector<32x7xf32>
    %cst_57 = arith.constant dense<0.000000e+00> : vector<32x256xf32>
    %135 = tpu.matmul %134, %129, %cst_57 {dimension_numbers = #tpu.dot_dimension_numbers<[1], [0], [0], [1], [0, 0, 1, 1], [], []>} : vector<32x7xf32>, vector<7x256xf32>, vector<32x256xf32> -> vector<32x256xf32>
    %136 = arith.addf %67, %135 : vector<32x256xf32>
    %137 = vector.extract_strided_slice %0 {offsets = [3, 0, 0], sizes = [1, 32, 7], strides = [1, 1, 1]} : vector<9x32x7xf32> to vector<1x32x7xf32>
    %138 = vector.shape_cast %137 : vector<1x32x7xf32> to vector<32x7xf32>
    %cst_58 = arith.constant dense<0.000000e+00> : vector<32x256xf32>
    %139 = tpu.matmul %138, %117, %cst_58 {dimension_numbers = #tpu.dot_dimension_numbers<[1], [0], [0], [1], [0, 0, 1, 1], [], []>} : vector<32x7xf32>, vector<7x256xf32>, vector<32x256xf32> -> vector<32x256xf32>
    %140 = arith.addf %136, %139 : vector<32x256xf32>
    %141 = vector.extract_strided_slice %0 {offsets = [6, 0, 0], sizes = [1, 32, 7], strides = [1, 1, 1]} : vector<9x32x7xf32> to vector<1x32x7xf32>
    %142 = vector.shape_cast %141 : vector<1x32x7xf32> to vector<32x7xf32>
    %cst_59 = arith.constant dense<0.000000e+00> : vector<32x256xf32>
    %143 = tpu.matmul %142, %132, %cst_59 {dimension_numbers = #tpu.dot_dimension_numbers<[1], [0], [0], [1], [0, 0, 1, 1], [], []>} : vector<32x7xf32>, vector<7x256xf32>, vector<32x256xf32> -> vector<32x256xf32>
    %144 = arith.addf %140, %143 : vector<32x256xf32>
    %145 = vector.extract_strided_slice %108 {offsets = [0, 240], sizes = [7, 16], strides = [1, 1]} : vector<7x256xf32> to vector<7x16xf32>
    %146 = vector.extract_strided_slice %108 {offsets = [0, 0], sizes = [7, 240], strides = [1, 1]} : vector<7x256xf32> to vector<7x240xf32>
    %147 = tpu.concatenate %145, %146 in 1 : vector<7x16xf32>, vector<7x240xf32> -> vector<7x256xf32>
    %148 = vector.extract_strided_slice %108 {offsets = [0, 16], sizes = [7, 240], strides = [1, 1]} : vector<7x256xf32> to vector<7x240xf32>
    %149 = vector.extract_strided_slice %108 {offsets = [0, 0], sizes = [7, 16], strides = [1, 1]} : vector<7x256xf32> to vector<7x16xf32>
    %150 = tpu.concatenate %148, %149 in 1 : vector<7x240xf32>, vector<7x16xf32> -> vector<7x256xf32>
    %151 = vector.shape_cast %21 : vector<1x256xi1> to vector<1x256xi1>
    %152 = vector.broadcast %151 : vector<1x256xi1> to vector<7x256xi1>
    %153 = arith.select %152, %150, %147 : vector<7x256xi1>, vector<7x256xf32>
    %154 = vector.shape_cast %23 : vector<1x256xi1> to vector<1x256xi1>
    %155 = vector.broadcast %154 : vector<1x256xi1> to vector<7x256xi1>
    %156 = arith.select %155, %147, %150 : vector<7x256xi1>, vector<7x256xf32>
    %157 = vector.extract_strided_slice %0 {offsets = [1, 0, 0], sizes = [1, 32, 7], strides = [1, 1, 1]} : vector<9x32x7xf32> to vector<1x32x7xf32>
    %158 = vector.shape_cast %157 : vector<1x32x7xf32> to vector<32x7xf32>
    %cst_60 = arith.constant dense<0.000000e+00> : vector<32x256xf32>
    %159 = tpu.matmul %158, %153, %cst_60 {dimension_numbers = #tpu.dot_dimension_numbers<[1], [0], [0], [1], [0, 0, 1, 1], [], []>} : vector<32x7xf32>, vector<7x256xf32>, vector<32x256xf32> -> vector<32x256xf32>
    %160 = arith.addf %144, %159 : vector<32x256xf32>
    %161 = vector.extract_strided_slice %0 {offsets = [4, 0, 0], sizes = [1, 32, 7], strides = [1, 1, 1]} : vector<9x32x7xf32> to vector<1x32x7xf32>
    %162 = vector.shape_cast %161 : vector<1x32x7xf32> to vector<32x7xf32>
    %cst_61 = arith.constant dense<0.000000e+00> : vector<32x256xf32>
    %163 = tpu.matmul %162, %108, %cst_61 {dimension_numbers = #tpu.dot_dimension_numbers<[1], [0], [0], [1], [0, 0, 1, 1], [], []>} : vector<32x7xf32>, vector<7x256xf32>, vector<32x256xf32> -> vector<32x256xf32>
    %164 = arith.addf %160, %163 : vector<32x256xf32>
    %165 = vector.extract_strided_slice %0 {offsets = [7, 0, 0], sizes = [1, 32, 7], strides = [1, 1, 1]} : vector<9x32x7xf32> to vector<1x32x7xf32>
    %166 = vector.shape_cast %165 : vector<1x32x7xf32> to vector<32x7xf32>
    %cst_62 = arith.constant dense<0.000000e+00> : vector<32x256xf32>
    %167 = tpu.matmul %166, %156, %cst_62 {dimension_numbers = #tpu.dot_dimension_numbers<[1], [0], [0], [1], [0, 0, 1, 1], [], []>} : vector<32x7xf32>, vector<7x256xf32>, vector<32x256xf32> -> vector<32x256xf32>
    %168 = arith.addf %164, %167 : vector<32x256xf32>
    %169 = vector.extract_strided_slice %120 {offsets = [0, 240], sizes = [7, 16], strides = [1, 1]} : vector<7x256xf32> to vector<7x16xf32>
    %170 = vector.extract_strided_slice %120 {offsets = [0, 0], sizes = [7, 240], strides = [1, 1]} : vector<7x256xf32> to vector<7x240xf32>
    %171 = tpu.concatenate %169, %170 in 1 : vector<7x16xf32>, vector<7x240xf32> -> vector<7x256xf32>
    %172 = vector.extract_strided_slice %120 {offsets = [0, 16], sizes = [7, 240], strides = [1, 1]} : vector<7x256xf32> to vector<7x240xf32>
    %173 = vector.extract_strided_slice %120 {offsets = [0, 0], sizes = [7, 16], strides = [1, 1]} : vector<7x256xf32> to vector<7x16xf32>
    %174 = tpu.concatenate %172, %173 in 1 : vector<7x240xf32>, vector<7x16xf32> -> vector<7x256xf32>
    %175 = vector.shape_cast %21 : vector<1x256xi1> to vector<1x256xi1>
    %176 = vector.broadcast %175 : vector<1x256xi1> to vector<7x256xi1>
    %177 = arith.select %176, %174, %171 : vector<7x256xi1>, vector<7x256xf32>
    %178 = vector.shape_cast %23 : vector<1x256xi1> to vector<1x256xi1>
    %179 = vector.broadcast %178 : vector<1x256xi1> to vector<7x256xi1>
    %180 = arith.select %179, %171, %174 : vector<7x256xi1>, vector<7x256xf32>
    %181 = vector.extract_strided_slice %0 {offsets = [2, 0, 0], sizes = [1, 32, 7], strides = [1, 1, 1]} : vector<9x32x7xf32> to vector<1x32x7xf32>
    %182 = vector.shape_cast %181 : vector<1x32x7xf32> to vector<32x7xf32>
    %cst_63 = arith.constant dense<0.000000e+00> : vector<32x256xf32>
    %183 = tpu.matmul %182, %177, %cst_63 {dimension_numbers = #tpu.dot_dimension_numbers<[1], [0], [0], [1], [0, 0, 1, 1], [], []>} : vector<32x7xf32>, vector<7x256xf32>, vector<32x256xf32> -> vector<32x256xf32>
    %184 = arith.addf %168, %183 : vector<32x256xf32>
    %185 = vector.extract_strided_slice %0 {offsets = [5, 0, 0], sizes = [1, 32, 7], strides = [1, 1, 1]} : vector<9x32x7xf32> to vector<1x32x7xf32>
    %186 = vector.shape_cast %185 : vector<1x32x7xf32> to vector<32x7xf32>
    %cst_64 = arith.constant dense<0.000000e+00> : vector<32x256xf32>
    %187 = tpu.matmul %186, %120, %cst_64 {dimension_numbers = #tpu.dot_dimension_numbers<[1], [0], [0], [1], [0, 0, 1, 1], [], []>} : vector<32x7xf32>, vector<7x256xf32>, vector<32x256xf32> -> vector<32x256xf32>
    %188 = arith.addf %184, %187 : vector<32x256xf32>
    %189 = vector.extract_strided_slice %0 {offsets = [8, 0, 0], sizes = [1, 32, 7], strides = [1, 1, 1]} : vector<9x32x7xf32> to vector<1x32x7xf32>
    %190 = vector.shape_cast %189 : vector<1x32x7xf32> to vector<32x7xf32>
    %cst_65 = arith.constant dense<0.000000e+00> : vector<32x256xf32>
    %191 = tpu.matmul %190, %180, %cst_65 {dimension_numbers = #tpu.dot_dimension_numbers<[1], [0], [0], [1], [0, 0, 1, 1], [], []>} : vector<32x7xf32>, vector<7x256xf32>, vector<32x256xf32> -> vector<32x256xf32>
    %192 = arith.addf %188, %191 : vector<32x256xf32>
    %cst_66 = arith.constant 0.00999999977 : f32
    %193 = vector.broadcast %cst_66 : f32 to vector<32x256xf32>
    %194 = arith.mulf %193, %192 : vector<32x256xf32>
    %195 = arith.maximumf %192, %194 : vector<32x256xf32>
    %cst_67 = arith.constant dense<0.000000e+00> : vector<4x256xf32>
    %196 = tpu.matmul %2, %195, %cst_67 {dimension_numbers = #tpu.dot_dimension_numbers<[1], [0], [0], [1], [0, 0, 1, 1], [], []>} : vector<4x32xf32>, vector<32x256xf32>, vector<4x256xf32> -> vector<4x256xf32>
    %197 = vector.broadcast %3 : vector<4x1xf32> to vector<4x256xf32>
    %198 = arith.addf %196, %197 : vector<4x256xf32>
    %199 = vector.extract_strided_slice %69 {offsets = [0, 0], sizes = [1, 256], strides = [1, 1]} : vector<2x256xf32> to vector<1x256xf32>
    %200 = vector.broadcast %199 : vector<1x256xf32> to vector<4x256xf32>
    %201 = arith.mulf %198, %200 : vector<4x256xf32>
    %202 = arith.addf %71, %201 : vector<4x256xf32>
    %203 = vector.shape_cast %202 : vector<4x256xf32> to vector<1x4x256xf32>
    %cst_68 = arith.constant dense<0.000000e+00> : vector<1xf32>
    %204 = vector.multi_reduction <add>, %203, %cst_68 [1, 2] : vector<1x4x256xf32> to vector<1xf32>
    %205 = vector.shape_cast %204 : vector<1xf32> to vector<1x1x1xf32>
    %206 = vector.extract %205[0, 0, 0] : f32 from vector<1x1x1xf32>
    %207 = arith.addf %206, %65 : f32
    %cst_69 = arith.constant 1.792000e+03 : f32
    %208 = arith.divf %207, %cst_69 : f32
    %209 = vector.broadcast %208 : f32 to vector<4x256xf32>
    %210 = arith.subf %202, %209 : vector<4x256xf32>
    %211 = vector.broadcast %208 : f32 to vector<3x256xf32>
    %212 = arith.subf %61, %211 : vector<3x256xf32>
    %213 = arith.mulf %210, %210 : vector<4x256xf32>
    %214 = vector.shape_cast %213 : vector<4x256xf32> to vector<1x4x256xf32>
    %cst_70 = arith.constant dense<0.000000e+00> : vector<1xf32>
    %215 = vector.multi_reduction <add>, %214, %cst_70 [1, 2] : vector<1x4x256xf32> to vector<1xf32>
    %216 = vector.shape_cast %215 : vector<1xf32> to vector<1x1x1xf32>
    %217 = vector.extract %216[0, 0, 0] : f32 from vector<1x1x1xf32>
    %218 = arith.mulf %212, %212 : vector<3x256xf32>
    %219 = vector.shape_cast %218 : vector<3x256xf32> to vector<1x3x256xf32>
    %cst_71 = arith.constant dense<0.000000e+00> : vector<1xf32>
    %220 = vector.multi_reduction <add>, %219, %cst_71 [1, 2] : vector<1x3x256xf32> to vector<1xf32>
    %221 = vector.shape_cast %220 : vector<1xf32> to vector<1x1x1xf32>
    %222 = vector.extract %221[0, 0, 0] : f32 from vector<1x1x1xf32>
    %223 = arith.addf %217, %222 : f32
    %cst_72 = arith.constant 1.792000e+03 : f32
    %224 = arith.divf %223, %cst_72 : f32
    %cst_73 = arith.constant 9.99999974E-6 : f32
    %225 = arith.addf %224, %cst_73 : f32
    %226 = math.rsqrt %225 : f32
    %227 = vector.broadcast %226 : f32 to vector<4x256xf32>
    %228 = arith.mulf %210, %227 : vector<4x256xf32>
    %229 = vector.broadcast %4 : vector<4x1xf32> to vector<4x256xf32>
    %230 = arith.mulf %228, %229 : vector<4x256xf32>
    %231 = vector.broadcast %5 : vector<4x1xf32> to vector<4x256xf32>
    %232 = arith.addf %230, %231 : vector<4x256xf32>
    %233 = vector.broadcast %226 : f32 to vector<3x256xf32>
    %234 = arith.mulf %212, %233 : vector<3x256xf32>
    %235 = vector.broadcast %6 : vector<3x1xf32> to vector<3x256xf32>
    %236 = arith.mulf %234, %235 : vector<3x256xf32>
    %237 = vector.broadcast %7 : vector<3x1xf32> to vector<3x256xf32>
    %238 = arith.addf %236, %237 : vector<3x256xf32>
    %239 = tpu.concatenate %232, %238 in 0 : vector<4x256xf32>, vector<3x256xf32> -> vector<7x256xf32>
    %240 = vector.extract_strided_slice %239 {offsets = [0, 255], sizes = [7, 1], strides = [1, 1]} : vector<7x256xf32> to vector<7x1xf32>
    %241 = vector.extract_strided_slice %239 {offsets = [0, 0], sizes = [7, 255], strides = [1, 1]} : vector<7x256xf32> to vector<7x255xf32>
    %242 = tpu.concatenate %240, %241 in 1 : vector<7x1xf32>, vector<7x255xf32> -> vector<7x256xf32>
    %243 = vector.extract_strided_slice %239 {offsets = [0, 1], sizes = [7, 255], strides = [1, 1]} : vector<7x256xf32> to vector<7x255xf32>
    %244 = vector.extract_strided_slice %239 {offsets = [0, 0], sizes = [7, 1], strides = [1, 1]} : vector<7x256xf32> to vector<7x1xf32>
    %245 = tpu.concatenate %243, %244 in 1 : vector<7x255xf32>, vector<7x1xf32> -> vector<7x256xf32>
    %246 = vector.shape_cast %17 : vector<1x256xi1> to vector<1x256xi1>
    %247 = vector.broadcast %246 : vector<1x256xi1> to vector<7x256xi1>
    %248 = arith.select %247, %245, %242 : vector<7x256xi1>, vector<7x256xf32>
    %249 = vector.shape_cast %19 : vector<1x256xi1> to vector<1x256xi1>
    %250 = vector.broadcast %249 : vector<1x256xi1> to vector<7x256xi1>
    %251 = arith.select %250, %242, %245 : vector<7x256xi1>, vector<7x256xf32>
    %252 = vector.extract_strided_slice %248 {offsets = [0, 240], sizes = [7, 16], strides = [1, 1]} : vector<7x256xf32> to vector<7x16xf32>
    %253 = vector.extract_strided_slice %248 {offsets = [0, 0], sizes = [7, 240], strides = [1, 1]} : vector<7x256xf32> to vector<7x240xf32>
    %254 = tpu.concatenate %252, %253 in 1 : vector<7x16xf32>, vector<7x240xf32> -> vector<7x256xf32>
    %255 = vector.extract_strided_slice %248 {offsets = [0, 16], sizes = [7, 240], strides = [1, 1]} : vector<7x256xf32> to vector<7x240xf32>
    %256 = vector.extract_strided_slice %248 {offsets = [0, 0], sizes = [7, 16], strides = [1, 1]} : vector<7x256xf32> to vector<7x16xf32>
    %257 = tpu.concatenate %255, %256 in 1 : vector<7x240xf32>, vector<7x16xf32> -> vector<7x256xf32>
    %258 = vector.shape_cast %21 : vector<1x256xi1> to vector<1x256xi1>
    %259 = vector.broadcast %258 : vector<1x256xi1> to vector<7x256xi1>
    %260 = arith.select %259, %257, %254 : vector<7x256xi1>, vector<7x256xf32>
    %261 = vector.shape_cast %23 : vector<1x256xi1> to vector<1x256xi1>
    %262 = vector.broadcast %261 : vector<1x256xi1> to vector<7x256xi1>
    %263 = arith.select %262, %254, %257 : vector<7x256xi1>, vector<7x256xf32>
    %264 = vector.extract_strided_slice %0 {offsets = [0, 0, 0], sizes = [1, 32, 7], strides = [1, 1, 1]} : vector<9x32x7xf32> to vector<1x32x7xf32>
    %265 = vector.shape_cast %264 : vector<1x32x7xf32> to vector<32x7xf32>
    %cst_74 = arith.constant dense<0.000000e+00> : vector<32x256xf32>
    %266 = tpu.matmul %265, %260, %cst_74 {dimension_numbers = #tpu.dot_dimension_numbers<[1], [0], [0], [1], [0, 0, 1, 1], [], []>} : vector<32x7xf32>, vector<7x256xf32>, vector<32x256xf32> -> vector<32x256xf32>
    %267 = arith.addf %67, %266 : vector<32x256xf32>
    %268 = vector.extract_strided_slice %0 {offsets = [3, 0, 0], sizes = [1, 32, 7], strides = [1, 1, 1]} : vector<9x32x7xf32> to vector<1x32x7xf32>
    %269 = vector.shape_cast %268 : vector<1x32x7xf32> to vector<32x7xf32>
    %cst_75 = arith.constant dense<0.000000e+00> : vector<32x256xf32>
    %270 = tpu.matmul %269, %248, %cst_75 {dimension_numbers = #tpu.dot_dimension_numbers<[1], [0], [0], [1], [0, 0, 1, 1], [], []>} : vector<32x7xf32>, vector<7x256xf32>, vector<32x256xf32> -> vector<32x256xf32>
    %271 = arith.addf %267, %270 : vector<32x256xf32>
    %272 = vector.extract_strided_slice %0 {offsets = [6, 0, 0], sizes = [1, 32, 7], strides = [1, 1, 1]} : vector<9x32x7xf32> to vector<1x32x7xf32>
    %273 = vector.shape_cast %272 : vector<1x32x7xf32> to vector<32x7xf32>
    %cst_76 = arith.constant dense<0.000000e+00> : vector<32x256xf32>
    %274 = tpu.matmul %273, %263, %cst_76 {dimension_numbers = #tpu.dot_dimension_numbers<[1], [0], [0], [1], [0, 0, 1, 1], [], []>} : vector<32x7xf32>, vector<7x256xf32>, vector<32x256xf32> -> vector<32x256xf32>
    %275 = arith.addf %271, %274 : vector<32x256xf32>
    %276 = vector.extract_strided_slice %239 {offsets = [0, 240], sizes = [7, 16], strides = [1, 1]} : vector<7x256xf32> to vector<7x16xf32>
    %277 = vector.extract_strided_slice %239 {offsets = [0, 0], sizes = [7, 240], strides = [1, 1]} : vector<7x256xf32> to vector<7x240xf32>
    %278 = tpu.concatenate %276, %277 in 1 : vector<7x16xf32>, vector<7x240xf32> -> vector<7x256xf32>
    %279 = vector.extract_strided_slice %239 {offsets = [0, 16], sizes = [7, 240], strides = [1, 1]} : vector<7x256xf32> to vector<7x240xf32>
    %280 = vector.extract_strided_slice %239 {offsets = [0, 0], sizes = [7, 16], strides = [1, 1]} : vector<7x256xf32> to vector<7x16xf32>
    %281 = tpu.concatenate %279, %280 in 1 : vector<7x240xf32>, vector<7x16xf32> -> vector<7x256xf32>
    %282 = vector.shape_cast %21 : vector<1x256xi1> to vector<1x256xi1>
    %283 = vector.broadcast %282 : vector<1x256xi1> to vector<7x256xi1>
    %284 = arith.select %283, %281, %278 : vector<7x256xi1>, vector<7x256xf32>
    %285 = vector.shape_cast %23 : vector<1x256xi1> to vector<1x256xi1>
    %286 = vector.broadcast %285 : vector<1x256xi1> to vector<7x256xi1>
    %287 = arith.select %286, %278, %281 : vector<7x256xi1>, vector<7x256xf32>
    %288 = vector.extract_strided_slice %0 {offsets = [1, 0, 0], sizes = [1, 32, 7], strides = [1, 1, 1]} : vector<9x32x7xf32> to vector<1x32x7xf32>
    %289 = vector.shape_cast %288 : vector<1x32x7xf32> to vector<32x7xf32>
    %cst_77 = arith.constant dense<0.000000e+00> : vector<32x256xf32>
    %290 = tpu.matmul %289, %284, %cst_77 {dimension_numbers = #tpu.dot_dimension_numbers<[1], [0], [0], [1], [0, 0, 1, 1], [], []>} : vector<32x7xf32>, vector<7x256xf32>, vector<32x256xf32> -> vector<32x256xf32>
    %291 = arith.addf %275, %290 : vector<32x256xf32>
    %292 = vector.extract_strided_slice %0 {offsets = [4, 0, 0], sizes = [1, 32, 7], strides = [1, 1, 1]} : vector<9x32x7xf32> to vector<1x32x7xf32>
    %293 = vector.shape_cast %292 : vector<1x32x7xf32> to vector<32x7xf32>
    %cst_78 = arith.constant dense<0.000000e+00> : vector<32x256xf32>
    %294 = tpu.matmul %293, %239, %cst_78 {dimension_numbers = #tpu.dot_dimension_numbers<[1], [0], [0], [1], [0, 0, 1, 1], [], []>} : vector<32x7xf32>, vector<7x256xf32>, vector<32x256xf32> -> vector<32x256xf32>
    %295 = arith.addf %291, %294 : vector<32x256xf32>
    %296 = vector.extract_strided_slice %0 {offsets = [7, 0, 0], sizes = [1, 32, 7], strides = [1, 1, 1]} : vector<9x32x7xf32> to vector<1x32x7xf32>
    %297 = vector.shape_cast %296 : vector<1x32x7xf32> to vector<32x7xf32>
    %cst_79 = arith.constant dense<0.000000e+00> : vector<32x256xf32>
    %298 = tpu.matmul %297, %287, %cst_79 {dimension_numbers = #tpu.dot_dimension_numbers<[1], [0], [0], [1], [0, 0, 1, 1], [], []>} : vector<32x7xf32>, vector<7x256xf32>, vector<32x256xf32> -> vector<32x256xf32>
    %299 = arith.addf %295, %298 : vector<32x256xf32>
    %300 = vector.extract_strided_slice %251 {offsets = [0, 240], sizes = [7, 16], strides = [1, 1]} : vector<7x256xf32> to vector<7x16xf32>
    %301 = vector.extract_strided_slice %251 {offsets = [0, 0], sizes = [7, 240], strides = [1, 1]} : vector<7x256xf32> to vector<7x240xf32>
    %302 = tpu.concatenate %300, %301 in 1 : vector<7x16xf32>, vector<7x240xf32> -> vector<7x256xf32>
    %303 = vector.extract_strided_slice %251 {offsets = [0, 16], sizes = [7, 240], strides = [1, 1]} : vector<7x256xf32> to vector<7x240xf32>
    %304 = vector.extract_strided_slice %251 {offsets = [0, 0], sizes = [7, 16], strides = [1, 1]} : vector<7x256xf32> to vector<7x16xf32>
    %305 = tpu.concatenate %303, %304 in 1 : vector<7x240xf32>, vector<7x16xf32> -> vector<7x256xf32>
    %306 = vector.shape_cast %21 : vector<1x256xi1> to vector<1x256xi1>
    %307 = vector.broadcast %306 : vector<1x256xi1> to vector<7x256xi1>
    %308 = arith.select %307, %305, %302 : vector<7x256xi1>, vector<7x256xf32>
    %309 = vector.shape_cast %23 : vector<1x256xi1> to vector<1x256xi1>
    %310 = vector.broadcast %309 : vector<1x256xi1> to vector<7x256xi1>
    %311 = arith.select %310, %302, %305 : vector<7x256xi1>, vector<7x256xf32>
    %312 = vector.extract_strided_slice %0 {offsets = [2, 0, 0], sizes = [1, 32, 7], strides = [1, 1, 1]} : vector<9x32x7xf32> to vector<1x32x7xf32>
    %313 = vector.shape_cast %312 : vector<1x32x7xf32> to vector<32x7xf32>
    %cst_80 = arith.constant dense<0.000000e+00> : vector<32x256xf32>
    %314 = tpu.matmul %313, %308, %cst_80 {dimension_numbers = #tpu.dot_dimension_numbers<[1], [0], [0], [1], [0, 0, 1, 1], [], []>} : vector<32x7xf32>, vector<7x256xf32>, vector<32x256xf32> -> vector<32x256xf32>
    %315 = arith.addf %299, %314 : vector<32x256xf32>
    %316 = vector.extract_strided_slice %0 {offsets = [5, 0, 0], sizes = [1, 32, 7], strides = [1, 1, 1]} : vector<9x32x7xf32> to vector<1x32x7xf32>
    %317 = vector.shape_cast %316 : vector<1x32x7xf32> to vector<32x7xf32>
    %cst_81 = arith.constant dense<0.000000e+00> : vector<32x256xf32>
    %318 = tpu.matmul %317, %251, %cst_81 {dimension_numbers = #tpu.dot_dimension_numbers<[1], [0], [0], [1], [0, 0, 1, 1], [], []>} : vector<32x7xf32>, vector<7x256xf32>, vector<32x256xf32> -> vector<32x256xf32>
    %319 = arith.addf %315, %318 : vector<32x256xf32>
    %320 = vector.extract_strided_slice %0 {offsets = [8, 0, 0], sizes = [1, 32, 7], strides = [1, 1, 1]} : vector<9x32x7xf32> to vector<1x32x7xf32>
    %321 = vector.shape_cast %320 : vector<1x32x7xf32> to vector<32x7xf32>
    %cst_82 = arith.constant dense<0.000000e+00> : vector<32x256xf32>
    %322 = tpu.matmul %321, %311, %cst_82 {dimension_numbers = #tpu.dot_dimension_numbers<[1], [0], [0], [1], [0, 0, 1, 1], [], []>} : vector<32x7xf32>, vector<7x256xf32>, vector<32x256xf32> -> vector<32x256xf32>
    %323 = arith.addf %319, %322 : vector<32x256xf32>
    %cst_83 = arith.constant 0.00999999977 : f32
    %324 = vector.broadcast %cst_83 : f32 to vector<32x256xf32>
    %325 = arith.mulf %324, %323 : vector<32x256xf32>
    %326 = arith.maximumf %323, %325 : vector<32x256xf32>
    %cst_84 = arith.constant dense<0.000000e+00> : vector<4x256xf32>
    %327 = tpu.matmul %2, %326, %cst_84 {dimension_numbers = #tpu.dot_dimension_numbers<[1], [0], [0], [1], [0, 0, 1, 1], [], []>} : vector<4x32xf32>, vector<32x256xf32>, vector<4x256xf32> -> vector<4x256xf32>
    %328 = vector.broadcast %3 : vector<4x1xf32> to vector<4x256xf32>
    %329 = arith.addf %327, %328 : vector<4x256xf32>
    %330 = vector.extract_strided_slice %69 {offsets = [1, 0], sizes = [1, 256], strides = [1, 1]} : vector<2x256xf32> to vector<1x256xf32>
    %331 = vector.broadcast %330 : vector<1x256xf32> to vector<4x256xf32>
    %332 = arith.mulf %329, %331 : vector<4x256xf32>
    %333 = arith.addf %202, %332 : vector<4x256xf32>
    %c0_85 = arith.constant 0 : index
    %c0_86 = arith.constant 0 : index
    %c0_87 = arith.constant 0 : index
    %334 = vector.load %arg18[%c0_85, %c0_86, %c0_87] : memref<1x4x256xf32, #tpu.memory_space<vmem>>, vector<1x4x256xf32>
    %335 = vector.shape_cast %334 : vector<1x4x256xf32> to vector<4x256xf32>
    %336 = vector.shape_cast %333 : vector<4x256xf32> to vector<1x4x256xf32>
    tpu.vector_store %arg18[%c0_85, %c0_86, %c0_87], %336 {strides = array<i32>} : memref<1x4x256xf32, #tpu.memory_space<vmem>>, vector<1x4x256xf32>,
    return
  }
  func.func @transform_0(%arg0: i32) -> i32 {
    %c0_i32 = arith.constant 0 : i32
    %c0_i32_0 = arith.constant 0 : i32
    return %c0_i32 : i32
  }
  func.func @transform_1(%arg0: i32) -> (i32, i32, i32) {
    %c0_i32 = arith.constant 0 : i32
    %c0_i32_0 = arith.constant 0 : i32
    %c0_i32_1 = arith.constant 0 : i32
    return %arg0, %c0_i32, %c0_i32_0 : i32, i32, i32
  }
  func.func @transform_2(%arg0: i32) -> (i32, i32, i32) {
    %c0_i32 = arith.constant 0 : i32
    %c0_i32_0 = arith.constant 0 : i32
    %c0_i32_1 = arith.constant 0 : i32
    return %arg0, %c0_i32, %c0_i32_0 : i32, i32, i32
  }
  func.func @transform_3(%arg0: i32) -> (i32, i32) {
    %c0_i32 = arith.constant 0 : i32
    %c0_i32_0 = arith.constant 0 : i32
    %c0_i32_1 = arith.constant 0 : i32
    return %c0_i32, %c0_i32_0 : i32, i32
  }
  func.func @transform_4(%arg0: i32) -> (i32, i32) {
    %c0_i32 = arith.constant 0 : i32
    %c0_i32_0 = arith.constant 0 : i32
    %c0_i32_1 = arith.constant 0 : i32
    return %c0_i32, %c0_i32_0 : i32, i32
  }
  func.func @transform_5(%arg0: i32) -> (i32, i32) {
    %c0_i32 = arith.constant 0 : i32
    %c0_i32_0 = arith.constant 0 : i32
    %c0_i32_1 = arith.constant 0 : i32
    return %c0_i32, %c0_i32_0 : i32, i32
  }
  func.func @transform_6(%arg0: i32) -> (i32, i32) {
    %c0_i32 = arith.constant 0 : i32
    %c0_i32_0 = arith.constant 0 : i32
    %c0_i32_1 = arith.constant 0 : i32
    return %c0_i32, %c0_i32_0 : i32, i32
  }
  func.func @transform_7(%arg0: i32) -> (i32, i32) {
    %c0_i32 = arith.constant 0 : i32
    %c0_i32_0 = arith.constant 0 : i32
    %c0_i32_1 = arith.constant 0 : i32
    return %c0_i32, %c0_i32_0 : i32, i32
  }
  func.func @transform_8(%arg0: i32) -> (i32, i32) {
    %c0_i32 = arith.constant 0 : i32
    %c0_i32_0 = arith.constant 0 : i32
    %c0_i32_1 = arith.constant 0 : i32
    return %c0_i32, %c0_i32_0 : i32, i32
  }
  func.func @transform_9(%arg0: i32) -> (i32, i32) {
    %c0_i32 = arith.constant 0 : i32
    %c0_i32_0 = arith.constant 0 : i32
    %c0_i32_1 = arith.constant 0 : i32
    return %c0_i32, %c0_i32_0 : i32, i32
  }
  func.func @transform_10(%arg0: i32) -> (i32, i32) {
    %c0_i32 = arith.constant 0 : i32
    %c0_i32_0 = arith.constant 0 : i32
    %c0_i32_1 = arith.constant 0 : i32
    return %c0_i32, %c0_i32_0 : i32, i32
  }
  func.func @transform_11(%arg0: i32) -> (i32, i32) {
    %c0_i32 = arith.constant 0 : i32
    %c0_i32_0 = arith.constant 0 : i32
    %c0_i32_1 = arith.constant 0 : i32
    return %c0_i32, %c0_i32_0 : i32, i32
  }
  func.func @transform_12(%arg0: i32) -> (i32, i32) {
    %c0_i32 = arith.constant 0 : i32
    %c0_i32_0 = arith.constant 0 : i32
    %c0_i32_1 = arith.constant 0 : i32
    return %c0_i32, %c0_i32_0 : i32, i32
  }
  func.func @transform_13(%arg0: i32) -> (i32, i32, i32) {
    %c0_i32 = arith.constant 0 : i32
    %c0_i32_0 = arith.constant 0 : i32
    %c0_i32_1 = arith.constant 0 : i32
    %c0_i32_2 = arith.constant 0 : i32
    return %c0_i32, %c0_i32_0, %c0_i32_1 : i32, i32, i32
  }
  func.func @transform_14(%arg0: i32) -> (i32, i32) {
    %c0_i32 = arith.constant 0 : i32
    %c0_i32_0 = arith.constant 0 : i32
    %c0_i32_1 = arith.constant 0 : i32
    return %c0_i32, %c0_i32_0 : i32, i32
  }
  func.func @transform_15(%arg0: i32) -> (i32, i32) {
    %c0_i32 = arith.constant 0 : i32
    %c0_i32_0 = arith.constant 0 : i32
    %c0_i32_1 = arith.constant 0 : i32
    return %c0_i32, %c0_i32_0 : i32, i32
  }
  func.func @transform_16(%arg0: i32) -> (i32, i32) {
    %c0_i32 = arith.constant 0 : i32
    %c0_i32_0 = arith.constant 0 : i32
    %c0_i32_1 = arith.constant 0 : i32
    return %c0_i32, %c0_i32_0 : i32, i32
  }
  func.func @transform_17(%arg0: i32) -> (i32, i32, i32) {
    %c0_i32 = arith.constant 0 : i32
    %c0_i32_0 = arith.constant 0 : i32
    %c0_i32_1 = arith.constant 0 : i32
    return %arg0, %c0_i32, %c0_i32_0 : i32, i32, i32
  }
}

</mosaic_0001>

<llo_original>
// kernel: _lambda_.2
$region0: #{_lambda_.2}
  #allocation0 [shape = 'u32[]', space=smem, size = 0x4, offset = 0x4, fixed_abs, tag = 'smem constant byte address 0x4 - core index']
  #allocation1 [shape = 'u32[144,128]{1,0:T(1,128)}', space=vmem, size = 0x12000, scoped, tag = 'internal scratch']
  %s0 = inlined_call_operand.vmem [shape: f32[2], index: 0, kind: input, shape index: {}]
  %s1 = inlined_call_operand.vmem [shape: f32[2,8,9], index: 1, kind: input, shape index: {}]
  %s2 = inlined_call_operand.vmem [shape: f32[16,3], index: 2, kind: input, shape index: {}]
  %s3 = inlined_call_operand.vmem [shape: f32[16,1], index: 3, kind: input, shape index: {}]
  %s4 = inlined_call_operand.vmem [shape: f32[16,16], index: 4, kind: input, shape index: {}]
  %s5 = inlined_call_operand.vmem [shape: f32[16,1], index: 5, kind: input, shape index: {}]
  %s6 = inlined_call_operand.vmem [shape: f32[3,16], index: 6, kind: input, shape index: {}]
  %s7 = inlined_call_operand.vmem [shape: f32[3,1], index: 7, kind: input, shape index: {}]
  %s8 = inlined_call_operand.vmem [shape: f32[8,1], index: 8, kind: input, shape index: {}]
  %s9 = inlined_call_operand.vmem [shape: f32[8,1], index: 9, kind: input, shape index: {}]
  %s10 = inlined_call_operand.vmem [shape: f32[3,1], index: 10, kind: input, shape index: {}]
  %s11 = inlined_call_operand.vmem [shape: f32[3,1], index: 11, kind: input, shape index: {}]
  %s12 = inlined_call_operand.vmem [shape: f32[9,32,11], index: 12, kind: input, shape index: {}]
  %s13 = inlined_call_operand.vmem [shape: f32[32,1], index: 13, kind: input, shape index: {}]
  %s14 = inlined_call_operand.vmem [shape: f32[8,32], index: 14, kind: input, shape index: {}]
  %s15 = inlined_call_operand.vmem [shape: f32[8,1], index: 15, kind: input, shape index: {}]
  %s16 = inlined_call_operand.vmem [shape: f32[2,8,9], index: 16, kind: output, shape index: {}]
  %s17 = sld [smem:[#allocation0]]
  $region101: #{_lambda_.2} parent=0
    _
  %s19 = ssub.s32 1, %s17
  %s20 = scalar_select 0, %s19, %s17
  $region1: #{_lambda_.2} parent=0
    #allocation2 [shape = 'u8[512]{0}', space=smem, size = 0x200, scoped, tag = 'input window, operand 0, single buffered']
    #allocation3 [shape = 's32[2]{0}', space=sflag, size = 0x8, scoped, tag = 'scoped memory for _lambda_.2']
    %21 = vsyncpa [#allocation3], 0
    loop: start=0, step=1, limit=4
    $region2: #{_lambda_.2} parent=1 // loop_pre_header
      _
    $region3: #{_lambda_.2} parent=1 // loop_header
      %s23 = sphi 0, %s27
      %p24 = scmp.ge.s32.totalorder %s23, 4
      %s31 = sphi 0, %s31
      %s33 = sphi 0, %s31
      %s34 = sphi 0, %s33
      %s48 = sphi 0, %s34
      %s54 = sphi 0, %s56
      %s57 = sphi 0, %s54
      %s58 = sphi 0, %s57
      %s74 = sphi 0, %s58
      %s78 = sphi 0, %s78
      %s80 = sphi 0, %s78
      %s81 = sphi 0, %s80
      %s95 = sphi 0, %s81
      %s99 = sphi 0, %s99
      %s101 = sphi 0, %s99
      %s102 = sphi 0, %s101
      %s116 = sphi 0, %s102
      %s120 = sphi 0, %s120
      %s122 = sphi 0, %s120
      %s123 = sphi 0, %s122
      %s137 = sphi 0, %s123
      %s141 = sphi 0, %s141
      %s143 = sphi 0, %s141
      %s144 = sphi 0, %s143
      %s158 = sphi 0, %s144
      %s162 = sphi 0, %s162
      %s164 = sphi 0, %s162
      %s165 = sphi 0, %s164
      %s179 = sphi 0, %s165
      %s183 = sphi 0, %s183
      %s185 = sphi 0, %s183
      %s186 = sphi 0, %s185
      %s200 = sphi 0, %s186
      %s204 = sphi 0, %s204
      %s206 = sphi 0, %s204
      %s207 = sphi 0, %s206
      %s221 = sphi 0, %s207
      %s225 = sphi 0, %s225
      %s227 = sphi 0, %s225
      %s228 = sphi 0, %s227
      %s242 = sphi 0, %s228
      %s246 = sphi 0, %s246
      %s248 = sphi 0, %s246
      %s249 = sphi 0, %s248
      %s263 = sphi 0, %s249
      %s267 = sphi 0, %s267
      %s269 = sphi 0, %s267
      %s270 = sphi 0, %s269
      %s284 = sphi 0, %s270
      %s288 = sphi 0, %s288
      %s290 = sphi 0, %s288
      %s291 = sphi 0, %s290
      %s305 = sphi 0, %s291
      %s309 = sphi 0, %s309
      %s311 = sphi 0, %s309
      %s312 = sphi 0, %s311
      %s326 = sphi 0, %s312
      %s330 = sphi 0, %s330
      %s332 = sphi 0, %s330
      %s333 = sphi 0, %s332
      %s347 = sphi 0, %s333
      %s351 = sphi 0, %s351
      %s353 = sphi 0, %s351
      %s354 = sphi 0, %s353
      %s368 = sphi 0, %s354
      %s374 = sphi 0, %s376
      %s377 = sphi 0, %s374
      %s378 = sphi 0, %s377
      %s394 = sphi 0, %s378
    $region4: #{_lambda_.2} parent=1 // loop_header_branch
      %26 = sbr.rel (%p24) target = $region8
    $region5: #{_lambda_.2} parent=1 // loop_body
      %s28 = ssub.s32 %s23, 1
      %s29 = ssub.s32 %s23, 2
      %s30 = sadd.s32 %s23, 1
      %s32 = sadd.s32 %s31, 1
      %p35 = scmp.eq.s32.totalorder %s23, 1
      %p36 = scmp.ne.s32.totalorder %s31, %s33
      %p37 = scmp.eq.s32.totalorder %s23, 0
      %p38 = por %p36, %p37
      %p39 = scmp.ne.s32.totalorder %s31, %s33
      %p40 = scmp.eq.s32.totalorder %s28, 1
      %p41 = por %p39, %p40
      %p42 = scmp.ne.s32.totalorder %s33, %s34
      %p43 = scmp.eq.s32.totalorder %s28, 0
      %p44 = por %p42, %p43
      %p45 = scmp.ne.s32.totalorder %s33, %s34
      %p46 = scmp.eq.s32.totalorder %s29, 1
      %p47 = por %p45, %p46
      %p49 = scmp.ne.s32.totalorder %s34, %s48
      %p50 = scmp.eq.s32.totalorder %s29, 0
      %p51 = por %p49, %p50
      %s52 = ssub.s32 %s23, %s30
      %p53 = scmp.eq.s32.totalorder %s52, 0
      %s55 = sadd.s32 %s54, 1
      %s56 = scalar_select %p53, %s54, %s55
      %p59 = pneg %p53
      %p60 = scmp.eq.s32.totalorder %s23, 1
      %p61 = por %p59, %p60
      %p62 = scmp.ne.s32.totalorder %s54, %s57
      %p63 = scmp.eq.s32.totalorder %s23, 0
      %p64 = por %p62, %p63
      %p65 = scmp.ne.s32.totalorder %s54, %s57
      %p66 = scmp.eq.s32.totalorder %s28, 1
      %p67 = por %p65, %p66
      %p68 = scmp.ne.s32.totalorder %s57, %s58
      %p69 = scmp.eq.s32.totalorder %s28, 0
      %p70 = por %p68, %p69
      %p71 = scmp.ne.s32.totalorder %s57, %s58
      %p72 = scmp.eq.s32.totalorder %s29, 1
      %p73 = por %p71, %p72
      %p75 = scmp.ne.s32.totalorder %s58, %s74
      %p76 = scmp.eq.s32.totalorder %s29, 0
      %p77 = por %p75, %p76
      %s79 = sadd.s32 %s78, 1
      %p82 = scmp.eq.s32.totalorder %s23, 1
      %p83 = scmp.ne.s32.totalorder %s78, %s80
      %p84 = scmp.eq.s32.totalorder %s23, 0
      %p85 = por %p83, %p84
      %p86 = scmp.ne.s32.totalorder %s78, %s80
      %p87 = scmp.eq.s32.totalorder %s28, 1
      %p88 = por %p86, %p87
      %p89 = scmp.ne.s32.totalorder %s80, %s81
      %p90 = scmp.eq.s32.totalorder %s28, 0
      %p91 = por %p89, %p90
      %p92 = scmp.ne.s32.totalorder %s80, %s81
      %p93 = scmp.eq.s32.totalorder %s29, 1
      %p94 = por %p92, %p93
      %p96 = scmp.ne.s32.totalorder %s81, %s95
      %p97 = scmp.eq.s32.totalorder %s29, 0
      %p98 = por %p96, %p97
      %s100 = sadd.s32 %s99, 1
      %p103 = scmp.eq.s32.totalorder %s23, 1
      %p104 = scmp.ne.s32.totalorder %s99, %s101
      %p105 = scmp.eq.s32.totalorder %s23, 0
      %p106 = por %p104, %p105
      %p107 = scmp.ne.s32.totalorder %s99, %s101
      %p108 = scmp.eq.s32.totalorder %s28, 1
      %p109 = por %p107, %p108
      %p110 = scmp.ne.s32.totalorder %s101, %s102
      %p111 = scmp.eq.s32.totalorder %s28, 0
      %p112 = por %p110, %p111
      %p113 = scmp.ne.s32.totalorder %s101, %s102
      %p114 = scmp.eq.s32.totalorder %s29, 1
      %p115 = por %p113, %p114
      %p117 = scmp.ne.s32.totalorder %s102, %s116
      %p118 = scmp.eq.s32.totalorder %s29, 0
      %p119 = por %p117, %p118
      %s121 = sadd.s32 %s120, 1
      %p124 = scmp.eq.s32.totalorder %s23, 1
      %p125 = scmp.ne.s32.totalorder %s120, %s122
      %p126 = scmp.eq.s32.totalorder %s23, 0
      %p127 = por %p125, %p126
      %p128 = scmp.ne.s32.totalorder %s120, %s122
      %p129 = scmp.eq.s32.totalorder %s28, 1
      %p130 = por %p128, %p129
      %p131 = scmp.ne.s32.totalorder %s122, %s123
      %p132 = scmp.eq.s32.totalorder %s28, 0
      %p133 = por %p131, %p132
      %p134 = scmp.ne.s32.totalorder %s122, %s123
      %p135 = scmp.eq.s32.totalorder %s29, 1
      %p136 = por %p134, %p135
      %p138 = scmp.ne.s32.totalorder %s123, %s137
      %p139 = scmp.eq.s32.totalorder %s29, 0
      %p140 = por %p138, %p139
      %s142 = sadd.s32 %s141, 1
      %p145 = scmp.eq.s32.totalorder %s23, 1
      %p146 = scmp.ne.s32.totalorder %s141, %s143
      %p147 = scmp.eq.s32.totalorder %s23, 0
      %p148 = por %p146, %p147
      %p149 = scmp.ne.s32.totalorder %s141, %s143
      %p150 = scmp.eq.s32.totalorder %s28, 1
      %p151 = por %p149, %p150
      %p152 = scmp.ne.s32.totalorder %s143, %s144
      %p153 = scmp.eq.s32.totalorder %s28, 0
      %p154 = por %p152, %p153
      %p155 = scmp.ne.s32.totalorder %s143, %s144
      %p156 = scmp.eq.s32.totalorder %s29, 1
      %p157 = por %p155, %p156
      %p159 = scmp.ne.s32.totalorder %s144, %s158
      %p160 = scmp.eq.s32.totalorder %s29, 0
      %p161 = por %p159, %p160
      %s163 = sadd.s32 %s162, 1
      %p166 = scmp.eq.s32.totalorder %s23, 1
      %p167 = scmp.ne.s32.totalorder %s162, %s164
      %p168 = scmp.eq.s32.totalorder %s23, 0
      %p169 = por %p167, %p168
      %p170 = scmp.ne.s32.totalorder %s162, %s164
      %p171 = scmp.eq.s32.totalorder %s28, 1
      %p172 = por %p170, %p171
      %p173 = scmp.ne.s32.totalorder %s164, %s165
      %p174 = scmp.eq.s32.totalorder %s28, 0
      %p175 = por %p173, %p174
      %p176 = scmp.ne.s32.totalorder %s164, %s165
      %p177 = scmp.eq.s32.totalorder %s29, 1
      %p178 = por %p176, %p177
      %p180 = scmp.ne.s32.totalorder %s165, %s179
      %p181 = scmp.eq.s32.totalorder %s29, 0
      %p182 = por %p180, %p181
      %s184 = sadd.s32 %s183, 1
      %p187 = scmp.eq.s32.totalorder %s23, 1
      %p188 = scmp.ne.s32.totalorder %s183, %s185
      %p189 = scmp.eq.s32.totalorder %s23, 0
      %p190 = por %p188, %p189
      %p191 = scmp.ne.s32.totalorder %s183, %s185
      %p192 = scmp.eq.s32.totalorder %s28, 1
      %p193 = por %p191, %p192
      %p194 = scmp.ne.s32.totalorder %s185, %s186
      %p195 = scmp.eq.s32.totalorder %s28, 0
      %p196 = por %p194, %p195
      %p197 = scmp.ne.s32.totalorder %s185, %s186
      %p198 = scmp.eq.s32.totalorder %s29, 1
      %p199 = por %p197, %p198
      %p201 = scmp.ne.s32.totalorder %s186, %s200
      %p202 = scmp.eq.s32.totalorder %s29, 0
      %p203 = por %p201, %p202
      %s205 = sadd.s32 %s204, 1
      %p208 = scmp.eq.s32.totalorder %s23, 1
      %p209 = scmp.ne.s32.totalorder %s204, %s206
      %p210 = scmp.eq.s32.totalorder %s23, 0
      %p211 = por %p209, %p210
      %p212 = scmp.ne.s32.totalorder %s204, %s206
      %p213 = scmp.eq.s32.totalorder %s28, 1
      %p214 = por %p212, %p213
      %p215 = scmp.ne.s32.totalorder %s206, %s207
      %p216 = scmp.eq.s32.totalorder %s28, 0
      %p217 = por %p215, %p216
      %p218 = scmp.ne.s32.totalorder %s206, %s207
      %p219 = scmp.eq.s32.totalorder %s29, 1
      %p220 = por %p218, %p219
      %p222 = scmp.ne.s32.totalorder %s207, %s221
      %p223 = scmp.eq.s32.totalorder %s29, 0
      %p224 = por %p222, %p223
      %s226 = sadd.s32 %s225, 1
      %p229 = scmp.eq.s32.totalorder %s23, 1
      %p230 = scmp.ne.s32.totalorder %s225, %s227
      %p231 = scmp.eq.s32.totalorder %s23, 0
      %p232 = por %p230, %p231
      %p233 = scmp.ne.s32.totalorder %s225, %s227
      %p234 = scmp.eq.s32.totalorder %s28, 1
      %p235 = por %p233, %p234
      %p236 = scmp.ne.s32.totalorder %s227, %s228
      %p237 = scmp.eq.s32.totalorder %s28, 0
      %p238 = por %p236, %p237
      %p239 = scmp.ne.s32.totalorder %s227, %s228
      %p240 = scmp.eq.s32.totalorder %s29, 1
      %p241 = por %p239, %p240
      %p243 = scmp.ne.s32.totalorder %s228, %s242
      %p244 = scmp.eq.s32.totalorder %s29, 0
      %p245 = por %p243, %p244
      %s247 = sadd.s32 %s246, 1
      %p250 = scmp.eq.s32.totalorder %s23, 1
      %p251 = scmp.ne.s32.totalorder %s246, %s248
      %p252 = scmp.eq.s32.totalorder %s23, 0
      %p253 = por %p251, %p252
      %p254 = scmp.ne.s32.totalorder %s246, %s248
      %p255 = scmp.eq.s32.totalorder %s28, 1
      %p256 = por %p254, %p255
      %p257 = scmp.ne.s32.totalorder %s248, %s249
      %p258 = scmp.eq.s32.totalorder %s28, 0
      %p259 = por %p257, %p258
      %p260 = scmp.ne.s32.totalorder %s248, %s249
      %p261 = scmp.eq.s32.totalorder %s29, 1
      %p262 = por %p260, %p261
      %p264 = scmp.ne.s32.totalorder %s249, %s263
      %p265 = scmp.eq.s32.totalorder %s29, 0
      %p266 = por %p264, %p265
      %s268 = sadd.s32 %s267, 1
      %p271 = scmp.eq.s32.totalorder %s23, 1
      %p272 = scmp.ne.s32.totalorder %s267, %s269
      %p273 = scmp.eq.s32.totalorder %s23, 0
      %p274 = por %p272, %p273
      %p275 = scmp.ne.s32.totalorder %s267, %s269
      %p276 = scmp.eq.s32.totalorder %s28, 1
      %p277 = por %p275, %p276
      %p278 = scmp.ne.s32.totalorder %s269, %s270
      %p279 = scmp.eq.s32.totalorder %s28, 0
      %p280 = por %p278, %p279
      %p281 = scmp.ne.s32.totalorder %s269, %s270
      %p282 = scmp.eq.s32.totalorder %s29, 1
      %p283 = por %p281, %p282
      %p285 = scmp.ne.s32.totalorder %s270, %s284
      %p286 = scmp.eq.s32.totalorder %s29, 0
      %p287 = por %p285, %p286
      %s289 = sadd.s32 %s288, 1
      %p292 = scmp.eq.s32.totalorder %s23, 1
      %p293 = scmp.ne.s32.totalorder %s288, %s290
      %p294 = scmp.eq.s32.totalorder %s23, 0
      %p295 = por %p293, %p294
      %p296 = scmp.ne.s32.totalorder %s288, %s290
      %p297 = scmp.eq.s32.totalorder %s28, 1
      %p298 = por %p296, %p297
      %p299 = scmp.ne.s32.totalorder %s290, %s291
      %p300 = scmp.eq.s32.totalorder %s28, 0
      %p301 = por %p299, %p300
      %p302 = scmp.ne.s32.totalorder %s290, %s291
      %p303 = scmp.eq.s32.totalorder %s29, 1
      %p304 = por %p302, %p303
      %p306 = scmp.ne.s32.totalorder %s291, %s305
      %p307 = scmp.eq.s32.totalorder %s29, 0
      %p308 = por %p306, %p307
      %s310 = sadd.s32 %s309, 1
      %p313 = scmp.eq.s32.totalorder %s23, 1
      %p314 = scmp.ne.s32.totalorder %s309, %s311
      %p315 = scmp.eq.s32.totalorder %s23, 0
      %p316 = por %p314, %p315
      %p317 = scmp.ne.s32.totalorder %s309, %s311
      %p318 = scmp.eq.s32.totalorder %s28, 1
      %p319 = por %p317, %p318
      %p320 = scmp.ne.s32.totalorder %s311, %s312
      %p321 = scmp.eq.s32.totalorder %s28, 0
      %p322 = por %p320, %p321
      %p323 = scmp.ne.s32.totalorder %s311, %s312
      %p324 = scmp.eq.s32.totalorder %s29, 1
      %p325 = por %p323, %p324
      %p327 = scmp.ne.s32.totalorder %s312, %s326
      %p328 = scmp.eq.s32.totalorder %s29, 0
      %p329 = por %p327, %p328
      %s331 = sadd.s32 %s330, 1
      %p334 = scmp.eq.s32.totalorder %s23, 1
      %p335 = scmp.ne.s32.totalorder %s330, %s332
      %p336 = scmp.eq.s32.totalorder %s23, 0
      %p337 = por %p335, %p336
      %p338 = scmp.ne.s32.totalorder %s330, %s332
      %p339 = scmp.eq.s32.totalorder %s28, 1
      %p340 = por %p338, %p339
      %p341 = scmp.ne.s32.totalorder %s332, %s333
      %p342 = scmp.eq.s32.totalorder %s28, 0
      %p343 = por %p341, %p342
      %p344 = scmp.ne.s32.totalorder %s332, %s333
      %p345 = scmp.eq.s32.totalorder %s29, 1
      %p346 = por %p344, %p345
      %p348 = scmp.ne.s32.totalorder %s333, %s347
      %p349 = scmp.eq.s32.totalorder %s29, 0
      %p350 = por %p348, %p349
      %s352 = sadd.s32 %s351, 1
      %p355 = scmp.eq.s32.totalorder %s23, 1
      %p356 = scmp.ne.s32.totalorder %s351, %s353
      %p357 = scmp.eq.s32.totalorder %s23, 0
      %p358 = por %p356, %p357
      %p359 = scmp.ne.s32.totalorder %s351, %s353
      %p360 = scmp.eq.s32.totalorder %s28, 1
      %p361 = por %p359, %p360
      %p362 = scmp.ne.s32.totalorder %s353, %s354
      %p363 = scmp.eq.s32.totalorder %s28, 0
      %p364 = por %p362, %p363
      %p365 = scmp.ne.s32.totalorder %s353, %s354
      %p366 = scmp.eq.s32.totalorder %s29, 1
      %p367 = por %p365, %p366
      %p369 = scmp.ne.s32.totalorder %s354, %s368
      %p370 = scmp.eq.s32.totalorder %s29, 0
      %p371 = por %p369, %p370
      %s372 = ssub.s32 %s23, %s30
      %p373 = scmp.eq.s32.totalorder %s372, 0
      %s375 = sadd.s32 %s374, 1
      %s376 = scalar_select %p373, %s374, %s375
      %p379 = pneg %p373
      %p380 = scmp.eq.s32.totalorder %s23, 1
      %p381 = por %p379, %p380
      %p382 = scmp.ne.s32.totalorder %s374, %s377
      %p383 = scmp.eq.s32.totalorder %s23, 0
      %p384 = por %p382, %p383
      %p385 = scmp.ne.s32.totalorder %s374, %s377
      %p386 = scmp.eq.s32.totalorder %s28, 1
      %p387 = por %p385, %p386
      %p388 = scmp.ne.s32.totalorder %s377, %s378
      %p389 = scmp.eq.s32.totalorder %s28, 0
      %p390 = por %p388, %p389
      %p391 = scmp.ne.s32.totalorder %s377, %s378
      %p392 = scmp.eq.s32.totalorder %s29, 1
      %p393 = por %p391, %p392
      %p395 = scmp.ne.s32.totalorder %s378, %s394
      %p396 = scmp.eq.s32.totalorder %s29, 0
      %p397 = por %p395, %p396
      %p398 = scmp.le.s32.totalorder 1, %s23
      %p399 = scmp.lt.s32.totalorder %s23, 3
      %p400 = pnand %p398, %p399
      %p401 = pneg %p400
      // Predicated region
      $region9: #{_lambda_.2} parent=5 // pred_check
        _
      $region10: #{_lambda_.2} parent=5 // pred_check_branch
        %403 = sbr.rel (%p400) target = $region12
      $region11: #{_lambda_.2} parent=5 // pred_region
        %s404 = ssub.s32 %s23, 1
        // Predicated region
        $region13: #{_lambda_.2} parent=11 // pred_check
          %p405 = pneg %p44
        $region14: #{_lambda_.2} parent=11 // pred_check_branch
          %407 = sbr.rel (%p405) target = $region16
        $region15: #{_lambda_.2} parent=11 // pred_region
          %s409 = ssub.s32 16, 16
          %410 = vsyncadd [#allocation3], %s409
          %s412 = sshll.u32 %s0, 4
          %s413 = int_to_ptr.vmem [resolvable:$true] %s412
          %415 = dma.vmem_to_smem %s413, 16, [#allocation2], [#allocation3]
        $region16: #{_lambda_.2} parent=11 // pred_fallthru
          _
        // Predicated region
        $region17: #{_lambda_.2} parent=11 // pred_check
          %p416 = pneg %p91
        $region18: #{_lambda_.2} parent=11 // pred_check_branch
          %418 = sbr.rel (%p416) target = $region20
        $region19: #{_lambda_.2} parent=11 // pred_region
          _
        $region20: #{_lambda_.2} parent=11 // pred_fallthru
          _
        // Predicated region
        $region21: #{_lambda_.2} parent=11 // pred_check
          %p419 = pneg %p112
        $region22: #{_lambda_.2} parent=11 // pred_check_branch
          %421 = sbr.rel (%p419) target = $region24
        $region23: #{_lambda_.2} parent=11 // pred_region
          _
        $region24: #{_lambda_.2} parent=11 // pred_fallthru
          _
        // Predicated region
        $region25: #{_lambda_.2} parent=11 // pred_check
          %p422 = pneg %p133
        $region26: #{_lambda_.2} parent=11 // pred_check_branch
          %424 = sbr.rel (%p422) target = $region28
        $region27: #{_lambda_.2} parent=11 // pred_region
          _
        $region28: #{_lambda_.2} parent=11 // pred_fallthru
          _
        // Predicated region
        $region29: #{_lambda_.2} parent=11 // pred_check
          %p425 = pneg %p154
        $region30: #{_lambda_.2} parent=11 // pred_check_branch
          %427 = sbr.rel (%p425) target = $region32
        $region31: #{_lambda_.2} parent=11 // pred_region
          _
        $region32: #{_lambda_.2} parent=11 // pred_fallthru
          _
        // Predicated region
        $region33: #{_lambda_.2} parent=11 // pred_check
          %p428 = pneg %p175
        $region34: #{_lambda_.2} parent=11 // pred_check_branch
          %430 = sbr.rel (%p428) target = $region36
        $region35: #{_lambda_.2} parent=11 // pred_region
          _
        $region36: #{_lambda_.2} parent=11 // pred_fallthru
          _
        // Predicated region
        $region37: #{_lambda_.2} parent=11 // pred_check
          %p431 = pneg %p196
        $region38: #{_lambda_.2} parent=11 // pred_check_branch
          %433 = sbr.rel (%p431) target = $region40
        $region39: #{_lambda_.2} parent=11 // pred_region
          _
        $region40: #{_lambda_.2} parent=11 // pred_fallthru
          _
        // Predicated region
        $region41: #{_lambda_.2} parent=11 // pred_check
          %p434 = pneg %p217
        $region42: #{_lambda_.2} parent=11 // pred_check_branch
          %436 = sbr.rel (%p434) target = $region44
        $region43: #{_lambda_.2} parent=11 // pred_region
          _
        $region44: #{_lambda_.2} parent=11 // pred_fallthru
          _
        // Predicated region
        $region45: #{_lambda_.2} parent=11 // pred_check
          %p437 = pneg %p238
        $region46: #{_lambda_.2} parent=11 // pred_check_branch
          %439 = sbr.rel (%p437) target = $region48
        $region47: #{_lambda_.2} parent=11 // pred_region
          _
        $region48: #{_lambda_.2} parent=11 // pred_fallthru
          _
        // Predicated region
        $region49: #{_lambda_.2} parent=11 // pred_check
          %p440 = pneg %p259
        $region50: #{_lambda_.2} parent=11 // pred_check_branch
          %442 = sbr.rel (%p440) target = $region52
        $region51: #{_lambda_.2} parent=11 // pred_region
          _
        $region52: #{_lambda_.2} parent=11 // pred_fallthru
          _
        // Predicated region
        $region53: #{_lambda_.2} parent=11 // pred_check
          %p443 = pneg %p280
        $region54: #{_lambda_.2} parent=11 // pred_check_branch
          %445 = sbr.rel (%p443) target = $region56
        $region55: #{_lambda_.2} parent=11 // pred_region
          _
        $region56: #{_lambda_.2} parent=11 // pred_fallthru
          _
        // Predicated region
        $region57: #{_lambda_.2} parent=11 // pred_check
          %p446 = pneg %p301
        $region58: #{_lambda_.2} parent=11 // pred_check_branch
          %448 = sbr.rel (%p446) target = $region60
        $region59: #{_lambda_.2} parent=11 // pred_region
          _
        $region60: #{_lambda_.2} parent=11 // pred_fallthru
          _
        // Predicated region
        $region61: #{_lambda_.2} parent=11 // pred_check
          %p449 = pneg %p322
        $region62: #{_lambda_.2} parent=11 // pred_check_branch
          %451 = sbr.rel (%p449) target = $region64
        $region63: #{_lambda_.2} parent=11 // pred_region
          _
        $region64: #{_lambda_.2} parent=11 // pred_fallthru
          _
        // Predicated region
        $region65: #{_lambda_.2} parent=11 // pred_check
          %p452 = pneg %p343
        $region66: #{_lambda_.2} parent=11 // pred_check_branch
          %454 = sbr.rel (%p452) target = $region68
        $region67: #{_lambda_.2} parent=11 // pred_region
          _
        $region68: #{_lambda_.2} parent=11 // pred_fallthru
          _
        // Predicated region
        $region69: #{_lambda_.2} parent=11 // pred_check
          %p455 = pneg %p364
        $region70: #{_lambda_.2} parent=11 // pred_check_branch
          %457 = sbr.rel (%p455) target = $region72
        $region71: #{_lambda_.2} parent=11 // pred_region
          _
        $region72: #{_lambda_.2} parent=11 // pred_fallthru
          _
      $region12: #{_lambda_.2} parent=5 // pred_fallthru
        _
      %p458 = scmp.lt.s32.totalorder %s23, 2
      // Predicated region
      $region73: #{_lambda_.2} parent=5 // pred_check
        %p459 = pneg %p458
      $region74: #{_lambda_.2} parent=5 // pred_check_branch
        %461 = sbr.rel (%p459) target = $region76
      $region75: #{_lambda_.2} parent=5 // pred_region
        // Predicated region
        $region77: #{_lambda_.2} parent=75 // pred_check
          %p462 = pneg %p64
        $region78: #{_lambda_.2} parent=75 // pred_check_branch
          %464 = sbr.rel (%p462) target = $region80
        $region79: #{_lambda_.2} parent=75 // pred_region
          %p465 = scmp.lt.s32.totalorder %s23, 1
          %s466 = scalar_select %p465, %s23, 1
          %s467 = smul.addr %s466, 8
          %s468 = scalar_lea.vmem %s1, %s467
        $region80: #{_lambda_.2} parent=75 // pred_fallthru
          _
      $region76: #{_lambda_.2} parent=5 // pred_fallthru
        _
      %p469 = scmp.le.s32.totalorder 1, %s23
      %p470 = scmp.lt.s32.totalorder %s23, 3
      %p471 = pnand %p469, %p470
      %p472 = pneg %p471
      // Predicated region
      $region81: #{_lambda_.2} parent=5 // pred_check
        _
      $region82: #{_lambda_.2} parent=5 // pred_check_branch
        %474 = sbr.rel (%p471) target = $region84
      $region83: #{_lambda_.2} parent=5 // pred_region
        %s475 = ssub.s32 %s23, 1
        // Predicated region
        $region85: #{_lambda_.2} parent=83 // pred_check
          %p476 = pneg %p44
        $region86: #{_lambda_.2} parent=83 // pred_check_branch
          %478 = sbr.rel (%p476) target = $region88
        $region87: #{_lambda_.2} parent=83 // pred_region
          %479 = dma.done [#allocation3], 16
        $region88: #{_lambda_.2} parent=83 // pred_fallthru
          _
        %480 = sfence
        %p481 = pneg %p44
        %p482 = pneg %p41
        %p483 = scmp.lt.s32.totalorder %s28, 1
        %s484 = scalar_select %p483, %s28, 1
        %s485 = smul.addr %s484, 8
        %s486 = scalar_lea.vmem %s1, %s485
        %p487 = pneg %p70
        %p488 = pneg %p67
        %p489 = pneg %p91
        %p490 = pneg %p88
        %p491 = pneg %p112
        %p492 = pneg %p109
        %p493 = pneg %p133
        %p494 = pneg %p130
        %p495 = pneg %p154
        %p496 = pneg %p151
        %p497 = pneg %p175
        %p498 = pneg %p172
        %p499 = pneg %p196
        %p500 = pneg %p193
        %p501 = pneg %p217
        %p502 = pneg %p214
        %p503 = pneg %p238
        %p504 = pneg %p235
        %p505 = pneg %p259
        %p506 = pneg %p256
        %p507 = pneg %p280
        %p508 = pneg %p277
        %p509 = pneg %p301
        %p510 = pneg %p298
        %p511 = pneg %p322
        %p512 = pneg %p319
        %p513 = pneg %p343
        %p514 = pneg %p340
        %p515 = pneg %p364
        %p516 = pneg %p361
        %p517 = pneg %p390
        %p518 = pneg %p387
        %p519 = scmp.lt.s32.totalorder %s28, 1
        %s520 = scalar_select %p519, %s28, 1
        %s521 = smul.addr %s520, 8
        %s522 = scalar_lea.vmem %s16, %s521
        %p523 = scmp.lt.s32.totalorder %s28, 1
        %s524 = scalar_select %p523, %s28, 1
        %s525 = smul.addr %s524, 8
        %s526 = scalar_lea.vmem %s1, %s525
        %p527 = scmp.lt.s32.totalorder %s28, 1
        %s528 = scalar_select %p527, %s28, 1
        %s529 = smul.addr %s528, 8
        %s530 = scalar_lea.vmem %s16, %s529
        %v531 = vld [vmem:[%s12] sm:$0xff]
        %v532 = vld [vmem:[%s12 + $0x8] sm:$0xff]
        %v533 = vld [vmem:[%s12 + $0x10] sm:$0xff]
        %v534 = vld [vmem:[%s12 + $0x18] sm:$0xff]
        %v535 = vld [vmem:[%s12 + $0x20] sm:$0xff]
        %v536 = vld [vmem:[%s12 + $0x28] sm:$0xff]
        %v537 = vld [vmem:[%s12 + $0x30] sm:$0xff]
        %v538 = vld [vmem:[%s12 + $0x38] sm:$0xff]
        %v539 = vld [vmem:[%s12 + $0x40] sm:$0xff]
        %v540 = vld [vmem:[%s12 + $0x48] sm:$0xff]
        %v541 = vld [vmem:[%s12 + $0x50] sm:$0xff]
        %v542 = vld [vmem:[%s12 + $0x58] sm:$0xff]
        %v543 = vld [vmem:[%s12 + $0x60] sm:$0xff]
        %v544 = vld [vmem:[%s12 + $0x68] sm:$0xff]
        %v545 = vld [vmem:[%s12 + $0x70] sm:$0xff]
        %v546 = vld [vmem:[%s12 + $0x78] sm:$0xff]
        %v547 = vld [vmem:[%s12 + $0x80] sm:$0xff]
        %v548 = vld [vmem:[%s12 + $0x88] sm:$0xff]
        %v549 = vld [vmem:[%s12 + $0x90] sm:$0xff]
        %v550 = vld [vmem:[%s12 + $0x98] sm:$0xff]
        %v551 = vld [vmem:[%s12 + $0xa0] sm:$0xff]
        %v552 = vld [vmem:[%s12 + $0xa8] sm:$0xff]
        %v553 = vld [vmem:[%s12 + $0xb0] sm:$0xff]
        %v554 = vld [vmem:[%s12 + $0xb8] sm:$0xff]
        %v555 = vld [vmem:[%s12 + $0xc0] sm:$0xff]
        %v556 = vld [vmem:[%s12 + $0xc8] sm:$0xff]
        %v557 = vld [vmem:[%s12 + $0xd0] sm:$0xff]
        %v558 = vld [vmem:[%s12 + $0xd8] sm:$0xff]
        %v559 = vld [vmem:[%s12 + $0xe0] sm:$0xff]
        %v560 = vld [vmem:[%s12 + $0xe8] sm:$0xff]
        %v561 = vld [vmem:[%s12 + $0xf0] sm:$0xff]
        %v562 = vld [vmem:[%s12 + $0xf8] sm:$0xff]
        %v563 = vld [vmem:[%s12 + $0x100] sm:$0xff]
        %v564 = vld [vmem:[%s12 + $0x108] sm:$0xff]
        %v565 = vld [vmem:[%s12 + $0x110] sm:$0xff]
        %v566 = vld [vmem:[%s12 + $0x118] sm:$0xff]
        %v567 = vld [vmem:[%s13] sm:$0xff]
        %v568 = vld [vmem:[%s13 + $0x8] sm:$0xff]
        %v569 = vld [vmem:[%s13 + $0x10] sm:$0xff]
        %v570 = vld [vmem:[%s13 + $0x18] sm:$0xff]
        %v571 = vld [vmem:[%s14] sm:$0xff]
        %v572 = vld [vmem:[%s15] sm:$0xff]
        %v573 = vld [vmem:[%s8] sm:$0xff]
        %v574 = vld [vmem:[%s9] sm:$0xff]
        %v575 = vld [vmem:[%s10] sm:$0x7]
        %v576 = vld [vmem:[%s11] sm:$0x7]
        %v577 = vlaneseq
        %v578 = vand.u32 %v577, 127
        %v579 = vcvt.s32.f32 %v578
        %v580 = vrcp.pop 3.0
        %v581 = vmul.f32 %v579, %v580
        %v582 = vfloor.f32 %v581
        %v583 = vmul.f32 %v582, 3.0
        %v584 = vsub.f32 %v579, %v583
        %vm585 = vcmp.eq.f32.partialorder %v584, 0.0
        %vm586 = vcmp.eq.f32.partialorder %v584, 2.0
        %vm587 = vcmp.eq.f32.partialorder %v582, 0.0
        %vm588 = vcmp.eq.f32.partialorder %v582, 2.0
        %v589 = vmul.f32 %v584, 0.5
        %v590 = vsub.f32 1.0, %v589
        %v591 = vmul.f32 %v582, 0.5
        %v592 = vsub.f32 1.0, %v591
        %s593 = sld [smem:[#allocation2 + %s28]]
        %v594 = vstv %s593
        %v595 = vadd.f32 %v594, 0.0
        %vm596 = vcmask 1040384
        %v597 = vsel %vm596, %v590, %v592
        %vm598 = vcmask 1041408
        %v599 = vsel %vm598, %v597, %v595
        %v600 = vld [vmem:[%s2] sm:$0xff]
        %v601 = vld [vmem:[%s2 + $0x8] sm:$0xff]
        %v602 = vld [vmem:[%s3] sm:$0xff]
        %v603 = vld [vmem:[%s3 + $0x8] sm:$0xff]
        %605 = vset.pattern.permute.xlu0 0
        %606 = vperm.xlu0 %605, %v602
        %v607 = vpop.permute.xlu0 %606
        %610 = vset.pattern.permute.xlu0 0
        %611 = vperm.xlu0 %610, %v603
        %v612 = vpop.permute.xlu0 %611
        %vm614 = vcmask 23552
        %v616 = vsel %vm614, %v600, 0
        %v619 = vsel %vm614, %v601, 0
        %vm621 = vcmask 1042432
        %v623 = vsel %vm621, %v599, 0
        %625 = vmatprep.subr.mxu0 0.0
        %626 = vmatpush1.msra.mxu0 %v623
        %627 = vmatprep.subr.mxu0 0.0
        %628 = vmatpush1.msra.mxu0 0.0
        %629 = vmatprep.subr.mxu0 0.0
        %630 = vmatpush1.msra.mxu0 0.0
        %631 = vmatprep.subr.mxu0 0.0
        %632 = vmatpush1.msra.mxu0 0.0
        %633 = vmatprep.subr.mxu0 0.0
        %634 = vmatpush1.msra.mxu0 0.0
        %635 = vmatprep.subr.mxu0 0.0
        %636 = vmatpush1.msra.mxu0 0.0
        %637 = vmatprep.subr.mxu0 0.0
        %638 = vmatpush1.msra.mxu0 0.0
        %639 = vmatprep.subr.mxu0 0.0
        %640 = vmatpush1.msra.mxu0 0.0
        %641 = vmatprep.subr.mxu0 0.0
        %642 = vmatpush1.msra.mxu0 0.0
        %643 = vmatprep.subr.mxu0 0.0
        %644 = vmatpush1.msra.mxu0 0.0
        %645 = vmatprep.subr.mxu0 0.0
        %646 = vmatpush1.msra.mxu0 0.0
        %647 = vmatprep.subr.mxu0 0.0
        %648 = vmatpush1.msra.mxu0 0.0
        %649 = vmatprep.subr.mxu0 0.0
        %650 = vmatpush1.msra.mxu0 0.0
        %651 = vmatprep.subr.mxu0 0.0
        %652 = vmatpush1.msra.mxu0 0.0
        %653 = vmatprep.subr.mxu0 0.0
        %654 = vmatpush1.msra.mxu0 0.0
        %655 = vmatprep.subr.mxu0 0.0
        %656 = vmatpush1.msra.mxu0 0.0
        %657 = vmatprep.subr.mxu0 0.0
        %658 = vmatpush1.msra.mxu0 0.0
        %659 = vmatprep.subr.mxu0 0.0
        %660 = vmatpush1.msra.mxu0 0.0
        %661 = vmatprep.subr.mxu0 0.0
        %662 = vmatpush1.msra.mxu0 0.0
        %663 = vmatprep.subr.mxu0 0.0
        %664 = vmatpush1.msra.mxu0 0.0
        %665 = vmatprep.subr.mxu0 0.0
        %666 = vmatpush1.msra.mxu0 0.0
        %667 = vmatprep.subr.mxu0 0.0
        %668 = vmatpush1.msra.mxu0 0.0
        %669 = vmatprep.subr.mxu0 0.0
        %670 = vmatpush1.msra.mxu0 0.0
        %671 = vmatprep.subr.mxu0 0.0
        %672 = vmatpush1.msra.mxu0 0.0
        %673 = vmatprep.subr.mxu0 0.0
        %674 = vmatpush1.msra.mxu0 0.0
        %675 = vmatprep.subr.mxu0 0.0
        %676 = vmatpush1.msra.mxu0 0.0
        %677 = vmatprep.subr.mxu0 0.0
        %678 = vmatpush1.msra.mxu0 0.0
        %679 = vmatprep.subr.mxu0 0.0
        %680 = vmatpush1.msra.mxu0 0.0
        %681 = vmatprep.subr.mxu0 0.0
        %682 = vmatpush1.msra.mxu0 0.0
        %683 = vmatprep.subr.mxu0 0.0
        %684 = vmatpush1.msra.mxu0 0.0
        %685 = vmatprep.subr.mxu0 0.0
        %686 = vmatpush1.msra.mxu0 0.0
        %687 = vmatprep.subr.mxu0 0.0
        %688 = vmatpush1.msra.mxu0 0.0
        %689 = vmatprep.mubr.f32.mxu0 0.0
        %690 = vmatmul.mubr.f32.gmra.mrb[0].mxu0 %v616
        %v691 = vpop.f32.mrb[0].mxu0
        %v692 = vadd.f32 %v607, %v691
        %v693 = vpop.f32.mrb[0].mxu0
        %694 = vmatprep.mubr.f32.mxu0 0.0
        %695 = vmatmul.mubr.f32.gmra.mrb[0].mxu0 %v619
        %v696 = vpop.f32.mrb[0].mxu0
        %v697 = vadd.f32 %v612, %v696
        %v698 = vpop.f32.mrb[0].mxu0
        %699 = vdwg.mxu0
        %v700 = vmul.f32 %v692, 0.01
        %v701 = vmul.f32 %v697, 0.01
        %v702 = vmax.f32 %v692, %v700
        %v703 = vmax.f32 %v697, %v701
        %v704 = vld [vmem:[%s4] sm:$0xff]
        %v705 = vld [vmem:[%s4 + $0x8] sm:$0xff]
        %v706 = vld [vmem:[%s5] sm:$0xff]
        %v707 = vld [vmem:[%s5 + $0x8] sm:$0xff]
        %709 = vset.pattern.permute.xlu0 0
        %710 = vperm.xlu0 %709, %v706
        %v711 = vpop.permute.xlu0 %710
        %714 = vset.pattern.permute.xlu0 0
        %715 = vperm.xlu0 %714, %v707
        %v716 = vpop.permute.xlu0 %715
        %vm718 = vcmask 130048
        %v720 = vsel %vm718, %v704, 0
        %v723 = vsel %vm718, %v705, 0
        %725 = vmatprep.subr.mxu0 0.0
        %726 = vmatpush1.msra.mxu0 %v702
        %727 = vmatprep.subr.mxu0 0.0
        %728 = vmatpush1.msra.mxu0 %v703
        %729 = vmatprep.subr.mxu0 0.0
        %730 = vmatpush1.msra.mxu0 0.0
        %731 = vmatprep.subr.mxu0 0.0
        %732 = vmatpush1.msra.mxu0 0.0
        %733 = vmatprep.subr.mxu0 0.0
        %734 = vmatpush1.msra.mxu0 0.0
        %735 = vmatprep.subr.mxu0 0.0
        %736 = vmatpush1.msra.mxu0 0.0
        %737 = vmatprep.subr.mxu0 0.0
        %738 = vmatpush1.msra.mxu0 0.0
        %739 = vmatprep.subr.mxu0 0.0
        %740 = vmatpush1.msra.mxu0 0.0
        %741 = vmatprep.subr.mxu0 0.0
        %742 = vmatpush1.msra.mxu0 0.0
        %743 = vmatprep.subr.mxu0 0.0
        %744 = vmatpush1.msra.mxu0 0.0
        %745 = vmatprep.subr.mxu0 0.0
        %746 = vmatpush1.msra.mxu0 0.0
        %747 = vmatprep.subr.mxu0 0.0
        %748 = vmatpush1.msra.mxu0 0.0
        %749 = vmatprep.subr.mxu0 0.0
        %750 = vmatpush1.msra.mxu0 0.0
        %751 = vmatprep.subr.mxu0 0.0
        %752 = vmatpush1.msra.mxu0 0.0
        %753 = vmatprep.subr.mxu0 0.0
        %754 = vmatpush1.msra.mxu0 0.0
        %755 = vmatprep.subr.mxu0 0.0
        %756 = vmatpush1.msra.mxu0 0.0
        %757 = vmatprep.subr.mxu0 0.0
        %758 = vmatpush1.msra.mxu0 0.0
        %759 = vmatprep.subr.mxu0 0.0
        %760 = vmatpush1.msra.mxu0 0.0
        %761 = vmatprep.subr.mxu0 0.0
        %762 = vmatpush1.msra.mxu0 0.0
        %763 = vmatprep.subr.mxu0 0.0
        %764 = vmatpush1.msra.mxu0 0.0
        %765 = vmatprep.subr.mxu0 0.0
        %766 = vmatpush1.msra.mxu0 0.0
        %767 = vmatprep.subr.mxu0 0.0
        %768 = vmatpush1.msra.mxu0 0.0
        %769 = vmatprep.subr.mxu0 0.0
        %770 = vmatpush1.msra.mxu0 0.0
        %771 = vmatprep.subr.mxu0 0.0
        %772 = vmatpush1.msra.mxu0 0.0
        %773 = vmatprep.subr.mxu0 0.0
        %774 = vmatpush1.msra.mxu0 0.0
        %775 = vmatprep.subr.mxu0 0.0
        %776 = vmatpush1.msra.mxu0 0.0
        %777 = vmatprep.subr.mxu0 0.0
        %778 = vmatpush1.msra.mxu0 0.0
        %779 = vmatprep.subr.mxu0 0.0
        %780 = vmatpush1.msra.mxu0 0.0
        %781 = vmatprep.subr.mxu0 0.0
        %782 = vmatpush1.msra.mxu0 0.0
        %783 = vmatprep.subr.mxu0 0.0
        %784 = vmatpush1.msra.mxu0 0.0
        %785 = vmatprep.subr.mxu0 0.0
        %786 = vmatpush1.msra.mxu0 0.0
        %787 = vmatprep.subr.mxu0 0.0
        %788 = vmatpush1.msra.mxu0 0.0
        %789 = vmatprep.mubr.f32.mxu0 0.0
        %790 = vmatmul.mubr.f32.gmra.mrb[0].mxu0 %v720
        %v791 = vpop.f32.mrb[0].mxu0
        %v792 = vadd.f32 %v711, %v791
        %v793 = vpop.f32.mrb[0].mxu0
        %794 = vmatprep.mubr.f32.mxu0 0.0
        %795 = vmatmul.mubr.f32.gmra.mrb[0].mxu0 %v723
        %v796 = vpop.f32.mrb[0].mxu0
        %v797 = vadd.f32 %v716, %v796
        %v798 = vpop.f32.mrb[0].mxu0
        %799 = vdwg.mxu0
        %v800 = vmul.f32 %v792, 0.01
        %v801 = vmul.f32 %v797, 0.01
        %v802 = vmax.f32 %v792, %v800
        %v803 = vmax.f32 %v797, %v801
        %v804 = vld [vmem:[%s6] sm:$0x7]
        %v805 = vld [vmem:[%s7] sm:$0x7]
        %807 = vset.pattern.permute.xlu0 0
        %808 = vperm.xlu0 %807, %v805
        %v809 = vpop.permute.xlu0 %808
        %v812 = vsel %vm718, %v804, 0
        %814 = vmatprep.subr.mxu0 0.0
        %815 = vmatpush1.msra.mxu0 %v802
        %816 = vmatprep.subr.mxu0 0.0
        %817 = vmatpush1.msra.mxu0 %v803
        %818 = vmatprep.subr.mxu0 0.0
        %819 = vmatpush1.msra.mxu0 0.0
        %820 = vmatprep.subr.mxu0 0.0
        %821 = vmatpush1.msra.mxu0 0.0
        %822 = vmatprep.subr.mxu0 0.0
        %823 = vmatpush1.msra.mxu0 0.0
        %824 = vmatprep.subr.mxu0 0.0
        %825 = vmatpush1.msra.mxu0 0.0
        %826 = vmatprep.subr.mxu0 0.0
        %827 = vmatpush1.msra.mxu0 0.0
        %828 = vmatprep.subr.mxu0 0.0
        %829 = vmatpush1.msra.mxu0 0.0
        %830 = vmatprep.subr.mxu0 0.0
        %831 = vmatpush1.msra.mxu0 0.0
        %832 = vmatprep.subr.mxu0 0.0
        %833 = vmatpush1.msra.mxu0 0.0
        %834 = vmatprep.subr.mxu0 0.0
        %835 = vmatpush1.msra.mxu0 0.0
        %836 = vmatprep.subr.mxu0 0.0
        %837 = vmatpush1.msra.mxu0 0.0
        %838 = vmatprep.subr.mxu0 0.0
        %839 = vmatpush1.msra.mxu0 0.0
        %840 = vmatprep.subr.mxu0 0.0
        %841 = vmatpush1.msra.mxu0 0.0
        %842 = vmatprep.subr.mxu0 0.0
        %843 = vmatpush1.msra.mxu0 0.0
        %844 = vmatprep.subr.mxu0 0.0
        %845 = vmatpush1.msra.mxu0 0.0
        %846 = vmatprep.subr.mxu0 0.0
        %847 = vmatpush1.msra.mxu0 0.0
        %848 = vmatprep.subr.mxu0 0.0
        %849 = vmatpush1.msra.mxu0 0.0
        %850 = vmatprep.subr.mxu0 0.0
        %851 = vmatpush1.msra.mxu0 0.0
        %852 = vmatprep.subr.mxu0 0.0
        %853 = vmatpush1.msra.mxu0 0.0
        %854 = vmatprep.subr.mxu0 0.0
        %855 = vmatpush1.msra.mxu0 0.0
        %856 = vmatprep.subr.mxu0 0.0
        %857 = vmatpush1.msra.mxu0 0.0
        %858 = vmatprep.subr.mxu0 0.0
        %859 = vmatpush1.msra.mxu0 0.0
        %860 = vmatprep.subr.mxu0 0.0
        %861 = vmatpush1.msra.mxu0 0.0
        %862 = vmatprep.subr.mxu0 0.0
        %863 = vmatpush1.msra.mxu0 0.0
        %864 = vmatprep.subr.mxu0 0.0
        %865 = vmatpush1.msra.mxu0 0.0
        %866 = vmatprep.subr.mxu0 0.0
        %867 = vmatpush1.msra.mxu0 0.0
        %868 = vmatprep.subr.mxu0 0.0
        %869 = vmatpush1.msra.mxu0 0.0
        %870 = vmatprep.subr.mxu0 0.0
        %871 = vmatpush1.msra.mxu0 0.0
        %872 = vmatprep.subr.mxu0 0.0
        %873 = vmatpush1.msra.mxu0 0.0
        %874 = vmatprep.subr.mxu0 0.0
        %875 = vmatpush1.msra.mxu0 0.0
        %876 = vmatprep.subr.mxu0 0.0
        %877 = vmatpush1.msra.mxu0 0.0
        %878 = vmatprep.mubr.f32.mxu0 0.0
        %879 = vmatmul.mubr.f32.gmra.mrb[0].mxu0 %v812
        %v880 = vpop.f32.mrb[0].mxu0
        %v881 = vadd.f32 %v809, %v880
        %v882 = vpop.f32.mrb[0].mxu0
        %883 = vdwg.mxu0
        %v884 = vmul.f32 %v881, 0.01
        %v885 = vmax.f32 %v881, %v884
        %vm886 = vcmask 67584
        %v887 = vsel %vm886, %v885, 0.0
        %888 = vadd.xlane.f32.xlu0 %v887
        %v889 = vpop.xlane.xlu0 %888
        %v890 = vrot.slane %v889, 4
        %v891 = vadd.f32 %v889, %v890
        %v892 = vrot.slane %v891, 2
        %v893 = vadd.f32 %v891, %v892
        %v894 = vrot.slane %v893, 1
        %v895 = vadd.f32 %v893, %v894
        %s896 = vtos %v895
        %898 = vset.pattern.permute.xlu0 0
        %899 = vperm.xlu0 %898, %v567
        %v900 = vpop.permute.xlu0 %899
        %903 = vset.pattern.permute.xlu0 0
        %904 = vperm.xlu0 %903, %v568
        %v905 = vpop.permute.xlu0 %904
        %908 = vset.pattern.permute.xlu0 0
        %909 = vperm.xlu0 %908, %v569
        %v910 = vpop.permute.xlu0 %909
        %913 = vset.pattern.permute.xlu0 0
        %914 = vperm.xlu0 %913, %v570
        %v915 = vpop.permute.xlu0 %914
        %v917 = vld [vmem:[%s526] sm:$0xff]
        %vm918 = vcmask 72704
        %v919 = vsel %vm918, %v917, 0.0
        %920 = vadd.xlane.f32.xlu0 %v919
        %v921 = vpop.xlane.xlu0 %920
        %v922 = vrot.slane %v921, 4
        %v923 = vadd.f32 %v921, %v922
        %v924 = vrot.slane %v923, 2
        %v925 = vadd.f32 %v923, %v924
        %v926 = vrot.slane %v925, 1
        %v927 = vadd.f32 %v925, %v926
        %s928 = vtos %v927
        %s929 = sadd.f32 %s928, %s896
        %v930 = vrcp.pop 99.0
        %s931 = vtos %v930
        %s932 = smul.f32 %s929, %s931
        %v933 = vstv %s932
        %v934 = vsub.f32 %v917, %v933
        %v935 = vsub.f32 %v885, %v933
        %v936 = vmul.f32 %v934, %v934
        %v937 = vsel %vm918, %v936, 0.0
        %938 = vadd.xlane.f32.xlu0 %v937
        %v939 = vpop.xlane.xlu0 %938
        %v940 = vrot.slane %v939, 4
        %v941 = vadd.f32 %v939, %v940
        %v942 = vrot.slane %v941, 2
        %v943 = vadd.f32 %v941, %v942
        %v944 = vrot.slane %v943, 1
        %v945 = vadd.f32 %v943, %v944
        %s946 = vtos %v945
        %v947 = vmul.f32 %v935, %v935
        %v948 = vsel %vm886, %v947, 0.0
        %949 = vadd.xlane.f32.xlu0 %v948
        %v950 = vpop.xlane.xlu0 %949
        %v951 = vrot.slane %v950, 4
        %v952 = vadd.f32 %v950, %v951
        %v953 = vrot.slane %v952, 2
        %v954 = vadd.f32 %v952, %v953
        %v955 = vrot.slane %v954, 1
        %v956 = vadd.f32 %v954, %v955
        %s957 = vtos %v956
        %s958 = sadd.f32 %s946, %s957
        %v959 = vrcp.pop 99.0
        %s960 = vtos %v959
        %s961 = smul.f32 %s958, %s960
        %s962 = sadd.f32 %s961, 1e-05
        %v963 = vstv %s962
        %v964 = vrsqrt.pop %v963
        %s965 = vtos %v964
        %v966 = vstv %s965
        %v967 = vmul.f32 %v934, %v966
        %969 = vset.pattern.permute.xlu0 0
        %970 = vperm.xlu0 %969, %v573
        %v971 = vpop.permute.xlu0 %970
        %v973 = vmul.f32 %v967, %v971
        %975 = vset.pattern.permute.xlu0 0
        %976 = vperm.xlu0 %975, %v574
        %v977 = vpop.permute.xlu0 %976
        %v979 = vadd.f32 %v973, %v977
        %v980 = vmul.f32 %v935, %v966
        %982 = vset.pattern.permute.xlu0 0
        %983 = vperm.xlu0 %982, %v575
        %v984 = vpop.permute.xlu0 %983
        %v986 = vmul.f32 %v980, %v984
        %988 = vset.pattern.permute.xlu0 0
        %989 = vperm.xlu0 %988, %v576
        %v990 = vpop.permute.xlu0 %989
        %v992 = vadd.f32 %v986, %v990
        %995 = vrot.lane.b32.xlu0 %v979, 120
        %v996 = vpop.permute.xlu0 %995
        %997 = vrot.lane.b32.xlu0 %v992, 120
        %v998 = vpop.permute.xlu0 %997
        %1001 = vrot.lane.b32.xlu0 %v979, 1
        %v1002 = vpop.permute.xlu0 %1001
        %1003 = vrot.lane.b32.xlu0 %v992, 1
        %v1004 = vpop.permute.xlu0 %1003
        %vm1007 = vcmask 7168
        %v1008 = vsel %vm1007, %v996, %v1002
        %v1009 = vsel %vm1007, %v998, %v1004
        %1010 = vrot.lane.b32.xlu0 %v979, 127
        %v1011 = vpop.permute.xlu0 %1010
        %1012 = vrot.lane.b32.xlu0 %v992, 127
        %v1013 = vpop.permute.xlu0 %1012
        %1016 = vrot.lane.b32.xlu0 %v979, 8
        %v1017 = vpop.permute.xlu0 %1016
        %1018 = vrot.lane.b32.xlu0 %v992, 8
        %v1019 = vpop.permute.xlu0 %1018
        %vm1022 = vcmask 64512
        %v1023 = vsel %vm1022, %v1011, %v1017
        %v1024 = vsel %vm1022, %v1013, %v1019
        %v1025 = vsel %vm585, 1, 0
        %vm1026 = vcmp.eq.s32.totalorder %v1025, 1
        %v1027 = vsel %vm1026, %v1023, %v1008
        %v1028 = vsel %vm1026, %v1024, %v1009
        %v1029 = vsel %vm586, 1, 0
        %vm1030 = vcmp.eq.s32.totalorder %v1029, 1
        %v1031 = vsel %vm1030, %v1008, %v1023
        %v1032 = vsel %vm1030, %v1009, %v1024
        %1035 = vrot.lane.b32.xlu0 %v1027, 122
        %v1036 = vpop.permute.xlu0 %1035
        %1037 = vrot.lane.b32.xlu0 %v1028, 122
        %v1038 = vpop.permute.xlu0 %1037
        %1041 = vrot.lane.b32.xlu0 %v1027, 3
        %v1042 = vpop.permute.xlu0 %1041
        %1043 = vrot.lane.b32.xlu0 %v1028, 3
        %v1044 = vpop.permute.xlu0 %1043
        %v1047 = vsel %vm614, %v1036, %v1042
        %v1048 = vsel %vm614, %v1038, %v1044
        %1049 = vrot.lane.b32.xlu0 %v1027, 125
        %v1050 = vpop.permute.xlu0 %1049
        %1051 = vrot.lane.b32.xlu0 %v1028, 125
        %v1052 = vpop.permute.xlu0 %1051
        %1055 = vrot.lane.b32.xlu0 %v1027, 6
        %v1056 = vpop.permute.xlu0 %1055
        %1057 = vrot.lane.b32.xlu0 %v1028, 6
        %v1058 = vpop.permute.xlu0 %1057
        %vm1061 = vcmask 48128
        %v1062 = vsel %vm1061, %v1050, %v1056
        %v1063 = vsel %vm1061, %v1052, %v1058
        %v1064 = vsel %vm587, 1, 0
        %vm1065 = vcmp.eq.s32.totalorder %v1064, 1
        %v1066 = vsel %vm1065, %v1062, %v1047
        %v1067 = vsel %vm1065, %v1063, %v1048
        %v1068 = vsel %vm588, 1, 0
        %vm1069 = vcmp.eq.s32.totalorder %v1068, 1
        %v1070 = vsel %vm1069, %v1047, %v1062
        %v1071 = vsel %vm1069, %v1048, %v1063
        %vm1072 = vcmask 89088
        %v1074 = vsel %vm1072, %v531, 0
        %v1077 = vsel %vm1072, %v532, 0
        %v1080 = vsel %vm1072, %v533, 0
        %v1083 = vsel %vm1072, %v534, 0
        %v1086 = vsel %vm621, %v1067, 0
        %1088 = vmatprep.subr.mxu0 0.0
        %1089 = vmatpush1.msra.mxu0 %v1066
        %1090 = vmatprep.subr.mxu0 0.0
        %1091 = vmatpush1.msra.mxu0 %v1086
        %1092 = vmatprep.subr.mxu0 0.0
        %1093 = vmatpush1.msra.mxu0 0.0
        %1094 = vmatprep.subr.mxu0 0.0
        %1095 = vmatpush1.msra.mxu0 0.0
        %1096 = vmatprep.subr.mxu0 0.0
        %1097 = vmatpush1.msra.mxu0 0.0
        %1098 = vmatprep.subr.mxu0 0.0
        %1099 = vmatpush1.msra.mxu0 0.0
        %1100 = vmatprep.subr.mxu0 0.0
        %1101 = vmatpush1.msra.mxu0 0.0
        %1102 = vmatprep.subr.mxu0 0.0
        %1103 = vmatpush1.msra.mxu0 0.0
        %1104 = vmatprep.subr.mxu0 0.0
        %1105 = vmatpush1.msra.mxu0 0.0
        %1106 = vmatprep.subr.mxu0 0.0
        %1107 = vmatpush1.msra.mxu0 0.0
        %1108 = vmatprep.subr.mxu0 0.0
        %1109 = vmatpush1.msra.mxu0 0.0
        %1110 = vmatprep.subr.mxu0 0.0
        %1111 = vmatpush1.msra.mxu0 0.0
        %1112 = vmatprep.subr.mxu0 0.0
        %1113 = vmatpush1.msra.mxu0 0.0
        %1114 = vmatprep.subr.mxu0 0.0
        %1115 = vmatpush1.msra.mxu0 0.0
        %1116 = vmatprep.subr.mxu0 0.0
        %1117 = vmatpush1.msra.mxu0 0.0
        %1118 = vmatprep.subr.mxu0 0.0
        %1119 = vmatpush1.msra.mxu0 0.0
        %1120 = vmatprep.subr.mxu0 0.0
        %1121 = vmatpush1.msra.mxu0 0.0
        %1122 = vmatprep.subr.mxu0 0.0
        %1123 = vmatpush1.msra.mxu0 0.0
        %1124 = vmatprep.subr.mxu0 0.0
        %1125 = vmatpush1.msra.mxu0 0.0
        %1126 = vmatprep.subr.mxu0 0.0
        %1127 = vmatpush1.msra.mxu0 0.0
        %1128 = vmatprep.subr.mxu0 0.0
        %1129 = vmatpush1.msra.mxu0 0.0
        %1130 = vmatprep.subr.mxu0 0.0
        %1131 = vmatpush1.msra.mxu0 0.0
        %1132 = vmatprep.subr.mxu0 0.0
        %1133 = vmatpush1.msra.mxu0 0.0
        %1134 = vmatprep.subr.mxu0 0.0
        %1135 = vmatpush1.msra.mxu0 0.0
        %1136 = vmatprep.subr.mxu0 0.0
        %1137 = vmatpush1.msra.mxu0 0.0
        %1138 = vmatprep.subr.mxu0 0.0
        %1139 = vmatpush1.msra.mxu0 0.0
        %1140 = vmatprep.subr.mxu0 0.0
        %1141 = vmatpush1.msra.mxu0 0.0
        %1142 = vmatprep.subr.mxu0 0.0
        %1143 = vmatpush1.msra.mxu0 0.0
        %1144 = vmatprep.subr.mxu0 0.0
        %1145 = vmatpush1.msra.mxu0 0.0
        %1146 = vmatprep.subr.mxu0 0.0
        %1147 = vmatpush1.msra.mxu0 0.0
        %1148 = vmatprep.subr.mxu0 0.0
        %1149 = vmatpush1.msra.mxu0 0.0
        %1150 = vmatprep.subr.mxu0 0.0
        %1151 = vmatpush1.msra.mxu0 0.0
        %1152 = vmatprep.mubr.f32.mxu0 0.0
        %1153 = vmatmul.mubr.f32.gmra.mrb[0].mxu0 %v1074
        %v1154 = vpop.f32.mrb[0].mxu0
        %v1155 = vadd.f32 0.0, %v1154
        %v1156 = vpop.f32.mrb[0].mxu0
        %1157 = vmatprep.mubr.f32.mxu0 0.0
        %1158 = vmatmul.mubr.f32.gmra.mrb[0].mxu0 %v1077
        %v1159 = vpop.f32.mrb[0].mxu0
        %v1160 = vadd.f32 0.0, %v1159
        %v1161 = vpop.f32.mrb[0].mxu0
        %1162 = vmatprep.mubr.f32.mxu0 0.0
        %1163 = vmatmul.mubr.f32.gmra.mrb[0].mxu0 %v1080
        %v1164 = vpop.f32.mrb[0].mxu0
        %v1165 = vadd.f32 0.0, %v1164
        %v1166 = vpop.f32.mrb[0].mxu0
        %1167 = vmatprep.mubr.f32.mxu0 0.0
        %1168 = vmatmul.mubr.f32.gmra.mrb[0].mxu0 %v1083
        %v1169 = vpop.f32.mrb[0].mxu0
        %v1170 = vadd.f32 0.0, %v1169
        %v1171 = vpop.f32.mrb[0].mxu0
        %1172 = vdwg.mxu0
        %v1173 = vadd.f32 %v900, %v1155
        %v1174 = vadd.f32 %v905, %v1160
        %v1175 = vadd.f32 %v910, %v1165
        %v1176 = vadd.f32 %v915, %v1170
        %v1178 = vsel %vm1072, %v543, 0
        %v1181 = vsel %vm1072, %v544, 0
        %v1184 = vsel %vm1072, %v545, 0
        %v1187 = vsel %vm1072, %v546, 0
        %v1189 = vsel %vm621, %v1028, 0
        %1191 = vmatprep.subr.mxu0 0.0
        %1192 = vmatpush1.msra.mxu0 %v1027
        %1193 = vmatprep.subr.mxu0 0.0
        %1194 = vmatpush1.msra.mxu0 %v1189
        %1195 = vmatprep.subr.mxu0 0.0
        %1196 = vmatpush1.msra.mxu0 0.0
        %1197 = vmatprep.subr.mxu0 0.0
        %1198 = vmatpush1.msra.mxu0 0.0
        %1199 = vmatprep.subr.mxu0 0.0
        %1200 = vmatpush1.msra.mxu0 0.0
        %1201 = vmatprep.subr.mxu0 0.0
        %1202 = vmatpush1.msra.mxu0 0.0
        %1203 = vmatprep.subr.mxu0 0.0
        %1204 = vmatpush1.msra.mxu0 0.0
        %1205 = vmatprep.subr.mxu0 0.0
        %1206 = vmatpush1.msra.mxu0 0.0
        %1207 = vmatprep.subr.mxu0 0.0
        %1208 = vmatpush1.msra.mxu0 0.0
        %1209 = vmatprep.subr.mxu0 0.0
        %1210 = vmatpush1.msra.mxu0 0.0
        %1211 = vmatprep.subr.mxu0 0.0
        %1212 = vmatpush1.msra.mxu0 0.0
        %1213 = vmatprep.subr.mxu0 0.0
        %1214 = vmatpush1.msra.mxu0 0.0
        %1215 = vmatprep.subr.mxu0 0.0
        %1216 = vmatpush1.msra.mxu0 0.0
        %1217 = vmatprep.subr.mxu0 0.0
        %1218 = vmatpush1.msra.mxu0 0.0
        %1219 = vmatprep.subr.mxu0 0.0
        %1220 = vmatpush1.msra.mxu0 0.0
        %1221 = vmatprep.subr.mxu0 0.0
        %1222 = vmatpush1.msra.mxu0 0.0
        %1223 = vmatprep.subr.mxu0 0.0
        %1224 = vmatpush1.msra.mxu0 0.0
        %1225 = vmatprep.subr.mxu0 0.0
        %1226 = vmatpush1.msra.mxu0 0.0
        %1227 = vmatprep.subr.mxu0 0.0
        %1228 = vmatpush1.msra.mxu0 0.0
        %1229 = vmatprep.subr.mxu0 0.0
        %1230 = vmatpush1.msra.mxu0 0.0
        %1231 = vmatprep.subr.mxu0 0.0
        %1232 = vmatpush1.msra.mxu0 0.0
        %1233 = vmatprep.subr.mxu0 0.0
        %1234 = vmatpush1.msra.mxu0 0.0
        %1235 = vmatprep.subr.mxu0 0.0
        %1236 = vmatpush1.msra.mxu0 0.0
        %1237 = vmatprep.subr.mxu0 0.0
        %1238 = vmatpush1.msra.mxu0 0.0
        %1239 = vmatprep.subr.mxu0 0.0
        %1240 = vmatpush1.msra.mxu0 0.0
        %1241 = vmatprep.subr.mxu0 0.0
        %1242 = vmatpush1.msra.mxu0 0.0
        %1243 = vmatprep.subr.mxu0 0.0
        %1244 = vmatpush1.msra.mxu0 0.0
        %1245 = vmatprep.subr.mxu0 0.0
        %1246 = vmatpush1.msra.mxu0 0.0
        %1247 = vmatprep.subr.mxu0 0.0
        %1248 = vmatpush1.msra.mxu0 0.0
        %1249 = vmatprep.subr.mxu0 0.0
        %1250 = vmatpush1.msra.mxu0 0.0
        %1251 = vmatprep.subr.mxu0 0.0
        %1252 = vmatpush1.msra.mxu0 0.0
        %1253 = vmatprep.subr.mxu0 0.0
        %1254 = vmatpush1.msra.mxu0 0.0
        %1255 = vmatprep.mubr.f32.mxu0 0.0
        %1256 = vmatmul.mubr.f32.gmra.mrb[0].mxu0 %v1178
        %v1257 = vpop.f32.mrb[0].mxu0
        %v1258 = vadd.f32 0.0, %v1257
        %v1259 = vpop.f32.mrb[0].mxu0
        %1260 = vmatprep.mubr.f32.mxu0 0.0
        %1261 = vmatmul.mubr.f32.gmra.mrb[0].mxu0 %v1181
        %v1262 = vpop.f32.mrb[0].mxu0
        %v1263 = vadd.f32 0.0, %v1262
        %v1264 = vpop.f32.mrb[0].mxu0
        %1265 = vmatprep.mubr.f32.mxu0 0.0
        %1266 = vmatmul.mubr.f32.gmra.mrb[0].mxu0 %v1184
        %v1267 = vpop.f32.mrb[0].mxu0
        %v1268 = vadd.f32 0.0, %v1267
        %v1269 = vpop.f32.mrb[0].mxu0
        %1270 = vmatprep.mubr.f32.mxu0 0.0
        %1271 = vmatmul.mubr.f32.gmra.mrb[0].mxu0 %v1187
        %v1272 = vpop.f32.mrb[0].mxu0
        %v1273 = vadd.f32 0.0, %v1272
        %v1274 = vpop.f32.mrb[0].mxu0
        %1275 = vdwg.mxu0
        %v1276 = vadd.f32 %v1173, %v1258
        %v1277 = vadd.f32 %v1174, %v1263
        %v1278 = vadd.f32 %v1175, %v1268
        %v1279 = vadd.f32 %v1176, %v1273
        %v1281 = vsel %vm1072, %v555, 0
        %v1284 = vsel %vm1072, %v556, 0
        %v1287 = vsel %vm1072, %v557, 0
        %v1290 = vsel %vm1072, %v558, 0
        %v1293 = vsel %vm621, %v1071, 0
        %1295 = vmatprep.subr.mxu0 0.0
        %1296 = vmatpush1.msra.mxu0 %v1070
        %1297 = vmatprep.subr.mxu0 0.0
        %1298 = vmatpush1.msra.mxu0 %v1293
        %1299 = vmatprep.subr.mxu0 0.0
        %1300 = vmatpush1.msra.mxu0 0.0
        %1301 = vmatprep.subr.mxu0 0.0
        %1302 = vmatpush1.msra.mxu0 0.0
        %1303 = vmatprep.subr.mxu0 0.0
        %1304 = vmatpush1.msra.mxu0 0.0
        %1305 = vmatprep.subr.mxu0 0.0
        %1306 = vmatpush1.msra.mxu0 0.0
        %1307 = vmatprep.subr.mxu0 0.0
        %1308 = vmatpush1.msra.mxu0 0.0
        %1309 = vmatprep.subr.mxu0 0.0
        %1310 = vmatpush1.msra.mxu0 0.0
        %1311 = vmatprep.subr.mxu0 0.0
        %1312 = vmatpush1.msra.mxu0 0.0
        %1313 = vmatprep.subr.mxu0 0.0
        %1314 = vmatpush1.msra.mxu0 0.0
        %1315 = vmatprep.subr.mxu0 0.0
        %1316 = vmatpush1.msra.mxu0 0.0
        %1317 = vmatprep.subr.mxu0 0.0
        %1318 = vmatpush1.msra.mxu0 0.0
        %1319 = vmatprep.subr.mxu0 0.0
        %1320 = vmatpush1.msra.mxu0 0.0
        %1321 = vmatprep.subr.mxu0 0.0
        %1322 = vmatpush1.msra.mxu0 0.0
        %1323 = vmatprep.subr.mxu0 0.0
        %1324 = vmatpush1.msra.mxu0 0.0
        %1325 = vmatprep.subr.mxu0 0.0
        %1326 = vmatpush1.msra.mxu0 0.0
        %1327 = vmatprep.subr.mxu0 0.0
        %1328 = vmatpush1.msra.mxu0 0.0
        %1329 = vmatprep.subr.mxu0 0.0
        %1330 = vmatpush1.msra.mxu0 0.0
        %1331 = vmatprep.subr.mxu0 0.0
        %1332 = vmatpush1.msra.mxu0 0.0
        %1333 = vmatprep.subr.mxu0 0.0
        %1334 = vmatpush1.msra.mxu0 0.0
        %1335 = vmatprep.subr.mxu0 0.0
        %1336 = vmatpush1.msra.mxu0 0.0
        %1337 = vmatprep.subr.mxu0 0.0
        %1338 = vmatpush1.msra.mxu0 0.0
        %1339 = vmatprep.subr.mxu0 0.0
        %1340 = vmatpush1.msra.mxu0 0.0
        %1341 = vmatprep.subr.mxu0 0.0
        %1342 = vmatpush1.msra.mxu0 0.0
        %1343 = vmatprep.subr.mxu0 0.0
        %1344 = vmatpush1.msra.mxu0 0.0
        %1345 = vmatprep.subr.mxu0 0.0
        %1346 = vmatpush1.msra.mxu0 0.0
        %1347 = vmatprep.subr.mxu0 0.0
        %1348 = vmatpush1.msra.mxu0 0.0
        %1349 = vmatprep.subr.mxu0 0.0
        %1350 = vmatpush1.msra.mxu0 0.0
        %1351 = vmatprep.subr.mxu0 0.0
        %1352 = vmatpush1.msra.mxu0 0.0
        %1353 = vmatprep.subr.mxu0 0.0
        %1354 = vmatpush1.msra.mxu0 0.0
        %1355 = vmatprep.subr.mxu0 0.0
        %1356 = vmatpush1.msra.mxu0 0.0
        %1357 = vmatprep.subr.mxu0 0.0
        %1358 = vmatpush1.msra.mxu0 0.0
        %1359 = vmatprep.mubr.f32.mxu0 0.0
        %1360 = vmatmul.mubr.f32.gmra.mrb[0].mxu0 %v1281
        %v1361 = vpop.f32.mrb[0].mxu0
        %v1362 = vadd.f32 0.0, %v1361
        %v1363 = vpop.f32.mrb[0].mxu0
        %1364 = vmatprep.mubr.f32.mxu0 0.0
        %1365 = vmatmul.mubr.f32.gmra.mrb[0].mxu0 %v1284
        %v1366 = vpop.f32.mrb[0].mxu0
        %v1367 = vadd.f32 0.0, %v1366
        %v1368 = vpop.f32.mrb[0].mxu0
        %1369 = vmatprep.mubr.f32.mxu0 0.0
        %1370 = vmatmul.mubr.f32.gmra.mrb[0].mxu0 %v1287
        %v1371 = vpop.f32.mrb[0].mxu0
        %v1372 = vadd.f32 0.0, %v1371
        %v1373 = vpop.f32.mrb[0].mxu0
        %1374 = vmatprep.mubr.f32.mxu0 0.0
        %1375 = vmatmul.mubr.f32.gmra.mrb[0].mxu0 %v1290
        %v1376 = vpop.f32.mrb[0].mxu0
        %v1377 = vadd.f32 0.0, %v1376
        %v1378 = vpop.f32.mrb[0].mxu0
        %1379 = vdwg.mxu0
        %v1380 = vadd.f32 %v1276, %v1362
        %v1381 = vadd.f32 %v1277, %v1367
        %v1382 = vadd.f32 %v1278, %v1372
        %v1383 = vadd.f32 %v1279, %v1377
        %1384 = vrot.lane.b32.xlu0 %v979, 122
        %v1385 = vpop.permute.xlu0 %1384
        %1386 = vrot.lane.b32.xlu0 %v992, 122
        %v1387 = vpop.permute.xlu0 %1386
        %1390 = vrot.lane.b32.xlu0 %v979, 3
        %v1391 = vpop.permute.xlu0 %1390
        %1392 = vrot.lane.b32.xlu0 %v992, 3
        %v1393 = vpop.permute.xlu0 %1392
        %v1396 = vsel %vm614, %v1385, %v1391
        %v1397 = vsel %vm614, %v1387, %v1393
        %1398 = vrot.lane.b32.xlu0 %v979, 125
        %v1399 = vpop.permute.xlu0 %1398
        %1400 = vrot.lane.b32.xlu0 %v992, 125
        %v1401 = vpop.permute.xlu0 %1400
        %1404 = vrot.lane.b32.xlu0 %v979, 6
        %v1405 = vpop.permute.xlu0 %1404
        %1406 = vrot.lane.b32.xlu0 %v992, 6
        %v1407 = vpop.permute.xlu0 %1406
        %v1410 = vsel %vm1061, %v1399, %v1405
        %v1411 = vsel %vm1061, %v1401, %v1407
        %v1412 = vsel %vm1065, %v1410, %v1396
        %v1413 = vsel %vm1065, %v1411, %v1397
        %v1414 = vsel %vm1069, %v1396, %v1410
        %v1415 = vsel %vm1069, %v1397, %v1411
        %v1417 = vsel %vm1072, %v535, 0
        %v1420 = vsel %vm1072, %v536, 0
        %v1423 = vsel %vm1072, %v537, 0
        %v1426 = vsel %vm1072, %v538, 0
        %v1429 = vsel %vm621, %v1413, 0
        %1431 = vmatprep.subr.mxu0 0.0
        %1432 = vmatpush1.msra.mxu0 %v1412
        %1433 = vmatprep.subr.mxu0 0.0
        %1434 = vmatpush1.msra.mxu0 %v1429
        %1435 = vmatprep.subr.mxu0 0.0
        %1436 = vmatpush1.msra.mxu0 0.0
        %1437 = vmatprep.subr.mxu0 0.0
        %1438 = vmatpush1.msra.mxu0 0.0
        %1439 = vmatprep.subr.mxu0 0.0
        %1440 = vmatpush1.msra.mxu0 0.0
        %1441 = vmatprep.subr.mxu0 0.0
        %1442 = vmatpush1.msra.mxu0 0.0
        %1443 = vmatprep.subr.mxu0 0.0
        %1444 = vmatpush1.msra.mxu0 0.0
        %1445 = vmatprep.subr.mxu0 0.0
        %1446 = vmatpush1.msra.mxu0 0.0
        %1447 = vmatprep.subr.mxu0 0.0
        %1448 = vmatpush1.msra.mxu0 0.0
        %1449 = vmatprep.subr.mxu0 0.0
        %1450 = vmatpush1.msra.mxu0 0.0
        %1451 = vmatprep.subr.mxu0 0.0
        %1452 = vmatpush1.msra.mxu0 0.0
        %1453 = vmatprep.subr.mxu0 0.0
        %1454 = vmatpush1.msra.mxu0 0.0
        %1455 = vmatprep.subr.mxu0 0.0
        %1456 = vmatpush1.msra.mxu0 0.0
        %1457 = vmatprep.subr.mxu0 0.0
        %1458 = vmatpush1.msra.mxu0 0.0
        %1459 = vmatprep.subr.mxu0 0.0
        %1460 = vmatpush1.msra.mxu0 0.0
        %1461 = vmatprep.subr.mxu0 0.0
        %1462 = vmatpush1.msra.mxu0 0.0
        %1463 = vmatprep.subr.mxu0 0.0
        %1464 = vmatpush1.msra.mxu0 0.0
        %1465 = vmatprep.subr.mxu0 0.0
        %1466 = vmatpush1.msra.mxu0 0.0
        %1467 = vmatprep.subr.mxu0 0.0
        %1468 = vmatpush1.msra.mxu0 0.0
        %1469 = vmatprep.subr.mxu0 0.0
        %1470 = vmatpush1.msra.mxu0 0.0
        %1471 = vmatprep.subr.mxu0 0.0
        %1472 = vmatpush1.msra.mxu0 0.0
        %1473 = vmatprep.subr.mxu0 0.0
        %1474 = vmatpush1.msra.mxu0 0.0
        %1475 = vmatprep.subr.mxu0 0.0
        %1476 = vmatpush1.msra.mxu0 0.0
        %1477 = vmatprep.subr.mxu0 0.0
        %1478 = vmatpush1.msra.mxu0 0.0
        %1479 = vmatprep.subr.mxu0 0.0
        %1480 = vmatpush1.msra.mxu0 0.0
        %1481 = vmatprep.subr.mxu0 0.0
        %1482 = vmatpush1.msra.mxu0 0.0
        %1483 = vmatprep.subr.mxu0 0.0
        %1484 = vmatpush1.msra.mxu0 0.0
        %1485 = vmatprep.subr.mxu0 0.0
        %1486 = vmatpush1.msra.mxu0 0.0
        %1487 = vmatprep.subr.mxu0 0.0
        %1488 = vmatpush1.msra.mxu0 0.0
        %1489 = vmatprep.subr.mxu0 0.0
        %1490 = vmatpush1.msra.mxu0 0.0
        %1491 = vmatprep.subr.mxu0 0.0
        %1492 = vmatpush1.msra.mxu0 0.0
        %1493 = vmatprep.subr.mxu0 0.0
        %1494 = vmatpush1.msra.mxu0 0.0
        %1495 = vmatprep.mubr.f32.mxu0 0.0
        %1496 = vmatmul.mubr.f32.gmra.mrb[0].mxu0 %v1417
        %v1497 = vpop.f32.mrb[0].mxu0
        %v1498 = vadd.f32 0.0, %v1497
        %v1499 = vpop.f32.mrb[0].mxu0
        %1500 = vmatprep.mubr.f32.mxu0 0.0
        %1501 = vmatmul.mubr.f32.gmra.mrb[0].mxu0 %v1420
        %v1502 = vpop.f32.mrb[0].mxu0
        %v1503 = vadd.f32 0.0, %v1502
        %v1504 = vpop.f32.mrb[0].mxu0
        %1505 = vmatprep.mubr.f32.mxu0 0.0
        %1506 = vmatmul.mubr.f32.gmra.mrb[0].mxu0 %v1423
        %v1507 = vpop.f32.mrb[0].mxu0
        %v1508 = vadd.f32 0.0, %v1507
        %v1509 = vpop.f32.mrb[0].mxu0
        %1510 = vmatprep.mubr.f32.mxu0 0.0
        %1511 = vmatmul.mubr.f32.gmra.mrb[0].mxu0 %v1426
        %v1512 = vpop.f32.mrb[0].mxu0
        %v1513 = vadd.f32 0.0, %v1512
        %v1514 = vpop.f32.mrb[0].mxu0
        %1515 = vdwg.mxu0
        %v1516 = vadd.f32 %v1380, %v1498
        %v1517 = vadd.f32 %v1381, %v1503
        %v1518 = vadd.f32 %v1382, %v1508
        %v1519 = vadd.f32 %v1383, %v1513
        %v1521 = vsel %vm1072, %v547, 0
        %v1524 = vsel %vm1072, %v548, 0
        %v1527 = vsel %vm1072, %v549, 0
        %v1530 = vsel %vm1072, %v550, 0
        %v1532 = vsel %vm621, %v992, 0
        %1534 = vmatprep.subr.mxu0 0.0
        %1535 = vmatpush1.msra.mxu0 %v979
        %1536 = vmatprep.subr.mxu0 0.0
        %1537 = vmatpush1.msra.mxu0 %v1532
        %1538 = vmatprep.subr.mxu0 0.0
        %1539 = vmatpush1.msra.mxu0 0.0
        %1540 = vmatprep.subr.mxu0 0.0
        %1541 = vmatpush1.msra.mxu0 0.0
        %1542 = vmatprep.subr.mxu0 0.0
        %1543 = vmatpush1.msra.mxu0 0.0
        %1544 = vmatprep.subr.mxu0 0.0
        %1545 = vmatpush1.msra.mxu0 0.0
        %1546 = vmatprep.subr.mxu0 0.0
        %1547 = vmatpush1.msra.mxu0 0.0
        %1548 = vmatprep.subr.mxu0 0.0
        %1549 = vmatpush1.msra.mxu0 0.0
        %1550 = vmatprep.subr.mxu0 0.0
        %1551 = vmatpush1.msra.mxu0 0.0
        %1552 = vmatprep.subr.mxu0 0.0
        %1553 = vmatpush1.msra.mxu0 0.0
        %1554 = vmatprep.subr.mxu0 0.0
        %1555 = vmatpush1.msra.mxu0 0.0
        %1556 = vmatprep.subr.mxu0 0.0
        %1557 = vmatpush1.msra.mxu0 0.0
        %1558 = vmatprep.subr.mxu0 0.0
        %1559 = vmatpush1.msra.mxu0 0.0
        %1560 = vmatprep.subr.mxu0 0.0
        %1561 = vmatpush1.msra.mxu0 0.0
        %1562 = vmatprep.subr.mxu0 0.0
        %1563 = vmatpush1.msra.mxu0 0.0
        %1564 = vmatprep.subr.mxu0 0.0
        %1565 = vmatpush1.msra.mxu0 0.0
        %1566 = vmatprep.subr.mxu0 0.0
        %1567 = vmatpush1.msra.mxu0 0.0
        %1568 = vmatprep.subr.mxu0 0.0
        %1569 = vmatpush1.msra.mxu0 0.0
        %1570 = vmatprep.subr.mxu0 0.0
        %1571 = vmatpush1.msra.mxu0 0.0
        %1572 = vmatprep.subr.mxu0 0.0
        %1573 = vmatpush1.msra.mxu0 0.0
        %1574 = vmatprep.subr.mxu0 0.0
        %1575 = vmatpush1.msra.mxu0 0.0
        %1576 = vmatprep.subr.mxu0 0.0
        %1577 = vmatpush1.msra.mxu0 0.0
        %1578 = vmatprep.subr.mxu0 0.0
        %1579 = vmatpush1.msra.mxu0 0.0
        %1580 = vmatprep.subr.mxu0 0.0
        %1581 = vmatpush1.msra.mxu0 0.0
        %1582 = vmatprep.subr.mxu0 0.0
        %1583 = vmatpush1.msra.mxu0 0.0
        %1584 = vmatprep.subr.mxu0 0.0
        %1585 = vmatpush1.msra.mxu0 0.0
        %1586 = vmatprep.subr.mxu0 0.0
        %1587 = vmatpush1.msra.mxu0 0.0
        %1588 = vmatprep.subr.mxu0 0.0
        %1589 = vmatpush1.msra.mxu0 0.0
        %1590 = vmatprep.subr.mxu0 0.0
        %1591 = vmatpush1.msra.mxu0 0.0
        %1592 = vmatprep.subr.mxu0 0.0
        %1593 = vmatpush1.msra.mxu0 0.0
        %1594 = vmatprep.subr.mxu0 0.0
        %1595 = vmatpush1.msra.mxu0 0.0
        %1596 = vmatprep.subr.mxu0 0.0
        %1597 = vmatpush1.msra.mxu0 0.0
        %1598 = vmatprep.mubr.f32.mxu0 0.0
        %1599 = vmatmul.mubr.f32.gmra.mrb[0].mxu0 %v1521
        %v1600 = vpop.f32.mrb[0].mxu0
        %v1601 = vadd.f32 0.0, %v1600
        %v1602 = vpop.f32.mrb[0].mxu0
        %1603 = vmatprep.mubr.f32.mxu0 0.0
        %1604 = vmatmul.mubr.f32.gmra.mrb[0].mxu0 %v1524
        %v1605 = vpop.f32.mrb[0].mxu0
        %v1606 = vadd.f32 0.0, %v1605
        %v1607 = vpop.f32.mrb[0].mxu0
        %1608 = vmatprep.mubr.f32.mxu0 0.0
        %1609 = vmatmul.mubr.f32.gmra.mrb[0].mxu0 %v1527
        %v1610 = vpop.f32.mrb[0].mxu0
        %v1611 = vadd.f32 0.0, %v1610
        %v1612 = vpop.f32.mrb[0].mxu0
        %1613 = vmatprep.mubr.f32.mxu0 0.0
        %1614 = vmatmul.mubr.f32.gmra.mrb[0].mxu0 %v1530
        %v1615 = vpop.f32.mrb[0].mxu0
        %v1616 = vadd.f32 0.0, %v1615
        %v1617 = vpop.f32.mrb[0].mxu0
        %1618 = vdwg.mxu0
        %v1619 = vadd.f32 %v1516, %v1601
        %v1620 = vadd.f32 %v1517, %v1606
        %v1621 = vadd.f32 %v1518, %v1611
        %v1622 = vadd.f32 %v1519, %v1616
        %v1624 = vsel %vm1072, %v559, 0
        %v1627 = vsel %vm1072, %v560, 0
        %v1630 = vsel %vm1072, %v561, 0
        %v1633 = vsel %vm1072, %v562, 0
        %v1636 = vsel %vm621, %v1415, 0
        %1638 = vmatprep.subr.mxu0 0.0
        %1639 = vmatpush1.msra.mxu0 %v1414
        %1640 = vmatprep.subr.mxu0 0.0
        %1641 = vmatpush1.msra.mxu0 %v1636
        %1642 = vmatprep.subr.mxu0 0.0
        %1643 = vmatpush1.msra.mxu0 0.0
        %1644 = vmatprep.subr.mxu0 0.0
        %1645 = vmatpush1.msra.mxu0 0.0
        %1646 = vmatprep.subr.mxu0 0.0
        %1647 = vmatpush1.msra.mxu0 0.0
        %1648 = vmatprep.subr.mxu0 0.0
        %1649 = vmatpush1.msra.mxu0 0.0
        %1650 = vmatprep.subr.mxu0 0.0
        %1651 = vmatpush1.msra.mxu0 0.0
        %1652 = vmatprep.subr.mxu0 0.0
        %1653 = vmatpush1.msra.mxu0 0.0
        %1654 = vmatprep.subr.mxu0 0.0
        %1655 = vmatpush1.msra.mxu0 0.0
        %1656 = vmatprep.subr.mxu0 0.0
        %1657 = vmatpush1.msra.mxu0 0.0
        %1658 = vmatprep.subr.mxu0 0.0
        %1659 = vmatpush1.msra.mxu0 0.0
        %1660 = vmatprep.subr.mxu0 0.0
        %1661 = vmatpush1.msra.mxu0 0.0
        %1662 = vmatprep.subr.mxu0 0.0
        %1663 = vmatpush1.msra.mxu0 0.0
        %1664 = vmatprep.subr.mxu0 0.0
        %1665 = vmatpush1.msra.mxu0 0.0
        %1666 = vmatprep.subr.mxu0 0.0
        %1667 = vmatpush1.msra.mxu0 0.0
        %1668 = vmatprep.subr.mxu0 0.0
        %1669 = vmatpush1.msra.mxu0 0.0
        %1670 = vmatprep.subr.mxu0 0.0
        %1671 = vmatpush1.msra.mxu0 0.0
        %1672 = vmatprep.subr.mxu0 0.0
        %1673 = vmatpush1.msra.mxu0 0.0
        %1674 = vmatprep.subr.mxu0 0.0
        %1675 = vmatpush1.msra.mxu0 0.0
        %1676 = vmatprep.subr.mxu0 0.0
        %1677 = vmatpush1.msra.mxu0 0.0
        %1678 = vmatprep.subr.mxu0 0.0
        %1679 = vmatpush1.msra.mxu0 0.0
        %1680 = vmatprep.subr.mxu0 0.0
        %1681 = vmatpush1.msra.mxu0 0.0
        %1682 = vmatprep.subr.mxu0 0.0
        %1683 = vmatpush1.msra.mxu0 0.0
        %1684 = vmatprep.subr.mxu0 0.0
        %1685 = vmatpush1.msra.mxu0 0.0
        %1686 = vmatprep.subr.mxu0 0.0
        %1687 = vmatpush1.msra.mxu0 0.0
        %1688 = vmatprep.subr.mxu0 0.0
        %1689 = vmatpush1.msra.mxu0 0.0
        %1690 = vmatprep.subr.mxu0 0.0
        %1691 = vmatpush1.msra.mxu0 0.0
        %1692 = vmatprep.subr.mxu0 0.0
        %1693 = vmatpush1.msra.mxu0 0.0
        %1694 = vmatprep.subr.mxu0 0.0
        %1695 = vmatpush1.msra.mxu0 0.0
        %1696 = vmatprep.subr.mxu0 0.0
        %1697 = vmatpush1.msra.mxu0 0.0
        %1698 = vmatprep.subr.mxu0 0.0
        %1699 = vmatpush1.msra.mxu0 0.0
        %1700 = vmatprep.subr.mxu0 0.0
        %1701 = vmatpush1.msra.mxu0 0.0
        %1702 = vmatprep.mubr.f32.mxu0 0.0
        %1703 = vmatmul.mubr.f32.gmra.mrb[0].mxu0 %v1624
        %v1704 = vpop.f32.mrb[0].mxu0
        %v1705 = vadd.f32 0.0, %v1704
        %v1706 = vpop.f32.mrb[0].mxu0
        %1707 = vmatprep.mubr.f32.mxu0 0.0
        %1708 = vmatmul.mubr.f32.gmra.mrb[0].mxu0 %v1627
        %v1709 = vpop.f32.mrb[0].mxu0
        %v1710 = vadd.f32 0.0, %v1709
        %v1711 = vpop.f32.mrb[0].mxu0
        %1712 = vmatprep.mubr.f32.mxu0 0.0
        %1713 = vmatmul.mubr.f32.gmra.mrb[0].mxu0 %v1630
        %v1714 = vpop.f32.mrb[0].mxu0
        %v1715 = vadd.f32 0.0, %v1714
        %v1716 = vpop.f32.mrb[0].mxu0
        %1717 = vmatprep.mubr.f32.mxu0 0.0
        %1718 = vmatmul.mubr.f32.gmra.mrb[0].mxu0 %v1633
        %v1719 = vpop.f32.mrb[0].mxu0
        %v1720 = vadd.f32 0.0, %v1719
        %v1721 = vpop.f32.mrb[0].mxu0
        %1722 = vdwg.mxu0
        %v1723 = vadd.f32 %v1619, %v1705
        %v1724 = vadd.f32 %v1620, %v1710
        %v1725 = vadd.f32 %v1621, %v1715
        %v1726 = vadd.f32 %v1622, %v1720
        %1729 = vrot.lane.b32.xlu0 %v1031, 122
        %v1730 = vpop.permute.xlu0 %1729
        %1731 = vrot.lane.b32.xlu0 %v1032, 122
        %v1732 = vpop.permute.xlu0 %1731
        %1735 = vrot.lane.b32.xlu0 %v1031, 3
        %v1736 = vpop.permute.xlu0 %1735
        %1737 = vrot.lane.b32.xlu0 %v1032, 3
        %v1738 = vpop.permute.xlu0 %1737
        %v1741 = vsel %vm614, %v1730, %v1736
        %v1742 = vsel %vm614, %v1732, %v1738
        %1743 = vrot.lane.b32.xlu0 %v1031, 125
        %v1744 = vpop.permute.xlu0 %1743
        %1745 = vrot.lane.b32.xlu0 %v1032, 125
        %v1746 = vpop.permute.xlu0 %1745
        %1749 = vrot.lane.b32.xlu0 %v1031, 6
        %v1750 = vpop.permute.xlu0 %1749
        %1751 = vrot.lane.b32.xlu0 %v1032, 6
        %v1752 = vpop.permute.xlu0 %1751
        %v1755 = vsel %vm1061, %v1744, %v1750
        %v1756 = vsel %vm1061, %v1746, %v1752
        %v1757 = vsel %vm1065, %v1755, %v1741
        %v1758 = vsel %vm1065, %v1756, %v1742
        %v1759 = vsel %vm1069, %v1741, %v1755
        %v1760 = vsel %vm1069, %v1742, %v1756
        %v1762 = vsel %vm1072, %v539, 0
        %v1765 = vsel %vm1072, %v540, 0
        %v1768 = vsel %vm1072, %v541, 0
        %v1771 = vsel %vm1072, %v542, 0
        %v1774 = vsel %vm621, %v1758, 0
        %1776 = vmatprep.subr.mxu0 0.0
        %1777 = vmatpush1.msra.mxu0 %v1757
        %1778 = vmatprep.subr.mxu0 0.0
        %1779 = vmatpush1.msra.mxu0 %v1774
        %1780 = vmatprep.subr.mxu0 0.0
        %1781 = vmatpush1.msra.mxu0 0.0
        %1782 = vmatprep.subr.mxu0 0.0
        %1783 = vmatpush1.msra.mxu0 0.0
        %1784 = vmatprep.subr.mxu0 0.0
        %1785 = vmatpush1.msra.mxu0 0.0
        %1786 = vmatprep.subr.mxu0 0.0
        %1787 = vmatpush1.msra.mxu0 0.0
        %1788 = vmatprep.subr.mxu0 0.0
        %1789 = vmatpush1.msra.mxu0 0.0
        %1790 = vmatprep.subr.mxu0 0.0
        %1791 = vmatpush1.msra.mxu0 0.0
        %1792 = vmatprep.subr.mxu0 0.0
        %1793 = vmatpush1.msra.mxu0 0.0
        %1794 = vmatprep.subr.mxu0 0.0
        %1795 = vmatpush1.msra.mxu0 0.0
        %1796 = vmatprep.subr.mxu0 0.0
        %1797 = vmatpush1.msra.mxu0 0.0
        %1798 = vmatprep.subr.mxu0 0.0
        %1799 = vmatpush1.msra.mxu0 0.0
        %1800 = vmatprep.subr.mxu0 0.0
        %1801 = vmatpush1.msra.mxu0 0.0
        %1802 = vmatprep.subr.mxu0 0.0
        %1803 = vmatpush1.msra.mxu0 0.0
        %1804 = vmatprep.subr.mxu0 0.0
        %1805 = vmatpush1.msra.mxu0 0.0
        %1806 = vmatprep.subr.mxu0 0.0
        %1807 = vmatpush1.msra.mxu0 0.0
        %1808 = vmatprep.subr.mxu0 0.0
        %1809 = vmatpush1.msra.mxu0 0.0
        %1810 = vmatprep.subr.mxu0 0.0
        %1811 = vmatpush1.msra.mxu0 0.0
        %1812 = vmatprep.subr.mxu0 0.0
        %1813 = vmatpush1.msra.mxu0 0.0
        %1814 = vmatprep.subr.mxu0 0.0
        %1815 = vmatpush1.msra.mxu0 0.0
        %1816 = vmatprep.subr.mxu0 0.0
        %1817 = vmatpush1.msra.mxu0 0.0
        %1818 = vmatprep.subr.mxu0 0.0
        %1819 = vmatpush1.msra.mxu0 0.0
        %1820 = vmatprep.subr.mxu0 0.0
        %1821 = vmatpush1.msra.mxu0 0.0
        %1822 = vmatprep.subr.mxu0 0.0
        %1823 = vmatpush1.msra.mxu0 0.0
        %1824 = vmatprep.subr.mxu0 0.0
        %1825 = vmatpush1.msra.mxu0 0.0
        %1826 = vmatprep.subr.mxu0 0.0
        %1827 = vmatpush1.msra.mxu0 0.0
        %1828 = vmatprep.subr.mxu0 0.0
        %1829 = vmatpush1.msra.mxu0 0.0
        %1830 = vmatprep.subr.mxu0 0.0
        %1831 = vmatpush1.msra.mxu0 0.0
        %1832 = vmatprep.subr.mxu0 0.0
        %1833 = vmatpush1.msra.mxu0 0.0
        %1834 = vmatprep.subr.mxu0 0.0
        %1835 = vmatpush1.msra.mxu0 0.0
        %1836 = vmatprep.subr.mxu0 0.0
        %1837 = vmatpush1.msra.mxu0 0.0
        %1838 = vmatprep.subr.mxu0 0.0
        %1839 = vmatpush1.msra.mxu0 0.0
        %1840 = vmatprep.mubr.f32.mxu0 0.0
        %1841 = vmatmul.mubr.f32.gmra.mrb[0].mxu0 %v1762
        %v1842 = vpop.f32.mrb[0].mxu0
        %v1843 = vadd.f32 0.0, %v1842
        %v1844 = vpop.f32.mrb[0].mxu0
        %1845 = vmatprep.mubr.f32.mxu0 0.0
        %1846 = vmatmul.mubr.f32.gmra.mrb[0].mxu0 %v1765
        %v1847 = vpop.f32.mrb[0].mxu0
        %v1848 = vadd.f32 0.0, %v1847
        %v1849 = vpop.f32.mrb[0].mxu0
        %1850 = vmatprep.mubr.f32.mxu0 0.0
        %1851 = vmatmul.mubr.f32.gmra.mrb[0].mxu0 %v1768
        %v1852 = vpop.f32.mrb[0].mxu0
        %v1853 = vadd.f32 0.0, %v1852
        %v1854 = vpop.f32.mrb[0].mxu0
        %1855 = vmatprep.mubr.f32.mxu0 0.0
        %1856 = vmatmul.mubr.f32.gmra.mrb[0].mxu0 %v1771
        %v1857 = vpop.f32.mrb[0].mxu0
        %v1858 = vadd.f32 0.0, %v1857
        %v1859 = vpop.f32.mrb[0].mxu0
        %1860 = vdwg.mxu0
        %v1861 = vadd.f32 %v1723, %v1843
        %v1862 = vadd.f32 %v1724, %v1848
        %v1863 = vadd.f32 %v1725, %v1853
        %v1864 = vadd.f32 %v1726, %v1858
        %v1866 = vsel %vm1072, %v551, 0
        %v1869 = vsel %vm1072, %v552, 0
        %v1872 = vsel %vm1072, %v553, 0
        %v1875 = vsel %vm1072, %v554, 0
        %v1877 = vsel %vm621, %v1032, 0
        %1879 = vmatprep.subr.mxu0 0.0
        %1880 = vmatpush1.msra.mxu0 %v1031
        %1881 = vmatprep.subr.mxu0 0.0
        %1882 = vmatpush1.msra.mxu0 %v1877
        %1883 = vmatprep.subr.mxu0 0.0
        %1884 = vmatpush1.msra.mxu0 0.0
        %1885 = vmatprep.subr.mxu0 0.0
        %1886 = vmatpush1.msra.mxu0 0.0
        %1887 = vmatprep.subr.mxu0 0.0
        %1888 = vmatpush1.msra.mxu0 0.0
        %1889 = vmatprep.subr.mxu0 0.0
        %1890 = vmatpush1.msra.mxu0 0.0
        %1891 = vmatprep.subr.mxu0 0.0
        %1892 = vmatpush1.msra.mxu0 0.0
        %1893 = vmatprep.subr.mxu0 0.0
        %1894 = vmatpush1.msra.mxu0 0.0
        %1895 = vmatprep.subr.mxu0 0.0
        %1896 = vmatpush1.msra.mxu0 0.0
        %1897 = vmatprep.subr.mxu0 0.0
        %1898 = vmatpush1.msra.mxu0 0.0
        %1899 = vmatprep.subr.mxu0 0.0
        %1900 = vmatpush1.msra.mxu0 0.0
        %1901 = vmatprep.subr.mxu0 0.0
        %1902 = vmatpush1.msra.mxu0 0.0
        %1903 = vmatprep.subr.mxu0 0.0
        %1904 = vmatpush1.msra.mxu0 0.0
        %1905 = vmatprep.subr.mxu0 0.0
        %1906 = vmatpush1.msra.mxu0 0.0
        %1907 = vmatprep.subr.mxu0 0.0
        %1908 = vmatpush1.msra.mxu0 0.0
        %1909 = vmatprep.subr.mxu0 0.0
        %1910 = vmatpush1.msra.mxu0 0.0
        %1911 = vmatprep.subr.mxu0 0.0
        %1912 = vmatpush1.msra.mxu0 0.0
        %1913 = vmatprep.subr.mxu0 0.0
        %1914 = vmatpush1.msra.mxu0 0.0
        %1915 = vmatprep.subr.mxu0 0.0
        %1916 = vmatpush1.msra.mxu0 0.0
        %1917 = vmatprep.subr.mxu0 0.0
        %1918 = vmatpush1.msra.mxu0 0.0
        %1919 = vmatprep.subr.mxu0 0.0
        %1920 = vmatpush1.msra.mxu0 0.0
        %1921 = vmatprep.subr.mxu0 0.0
        %1922 = vmatpush1.msra.mxu0 0.0
        %1923 = vmatprep.subr.mxu0 0.0
        %1924 = vmatpush1.msra.mxu0 0.0
        %1925 = vmatprep.subr.mxu0 0.0
        %1926 = vmatpush1.msra.mxu0 0.0
        %1927 = vmatprep.subr.mxu0 0.0
        %1928 = vmatpush1.msra.mxu0 0.0
        %1929 = vmatprep.subr.mxu0 0.0
        %1930 = vmatpush1.msra.mxu0 0.0
        %1931 = vmatprep.subr.mxu0 0.0
        %1932 = vmatpush1.msra.mxu0 0.0
        %1933 = vmatprep.subr.mxu0 0.0
        %1934 = vmatpush1.msra.mxu0 0.0
        %1935 = vmatprep.subr.mxu0 0.0
        %1936 = vmatpush1.msra.mxu0 0.0
        %1937 = vmatprep.subr.mxu0 0.0
        %1938 = vmatpush1.msra.mxu0 0.0
        %1939 = vmatprep.subr.mxu0 0.0
        %1940 = vmatpush1.msra.mxu0 0.0
        %1941 = vmatprep.subr.mxu0 0.0
        %1942 = vmatpush1.msra.mxu0 0.0
        %1943 = vmatprep.mubr.f32.mxu0 0.0
        %1944 = vmatmul.mubr.f32.gmra.mrb[0].mxu0 %v1866
        %v1945 = vpop.f32.mrb[0].mxu0
        %v1946 = vadd.f32 0.0, %v1945
        %v1947 = vpop.f32.mrb[0].mxu0
        %1948 = vmatprep.mubr.f32.mxu0 0.0
        %1949 = vmatmul.mubr.f32.gmra.mrb[0].mxu0 %v1869
        %v1950 = vpop.f32.mrb[0].mxu0
        %v1951 = vadd.f32 0.0, %v1950
        %v1952 = vpop.f32.mrb[0].mxu0
        %1953 = vmatprep.mubr.f32.mxu0 0.0
        %1954 = vmatmul.mubr.f32.gmra.mrb[0].mxu0 %v1872
        %v1955 = vpop.f32.mrb[0].mxu0
        %v1956 = vadd.f32 0.0, %v1955
        %v1957 = vpop.f32.mrb[0].mxu0
        %1958 = vmatprep.mubr.f32.mxu0 0.0
        %1959 = vmatmul.mubr.f32.gmra.mrb[0].mxu0 %v1875
        %v1960 = vpop.f32.mrb[0].mxu0
        %v1961 = vadd.f32 0.0, %v1960
        %v1962 = vpop.f32.mrb[0].mxu0
        %1963 = vdwg.mxu0
        %v1964 = vadd.f32 %v1861, %v1946
        %v1965 = vadd.f32 %v1862, %v1951
        %v1966 = vadd.f32 %v1863, %v1956
        %v1967 = vadd.f32 %v1864, %v1961
        %v1969 = vsel %vm1072, %v563, 0
        %v1972 = vsel %vm1072, %v564, 0
        %v1975 = vsel %vm1072, %v565, 0
        %v1978 = vsel %vm1072, %v566, 0
        %v1981 = vsel %vm621, %v1760, 0
        %1983 = vmatprep.subr.mxu0 0.0
        %1984 = vmatpush1.msra.mxu0 %v1759
        %1985 = vmatprep.subr.mxu0 0.0
        %1986 = vmatpush1.msra.mxu0 %v1981
        %1987 = vmatprep.subr.mxu0 0.0
        %1988 = vmatpush1.msra.mxu0 0.0
        %1989 = vmatprep.subr.mxu0 0.0
        %1990 = vmatpush1.msra.mxu0 0.0
        %1991 = vmatprep.subr.mxu0 0.0
        %1992 = vmatpush1.msra.mxu0 0.0
        %1993 = vmatprep.subr.mxu0 0.0
        %1994 = vmatpush1.msra.mxu0 0.0
        %1995 = vmatprep.subr.mxu0 0.0
        %1996 = vmatpush1.msra.mxu0 0.0
        %1997 = vmatprep.subr.mxu0 0.0
        %1998 = vmatpush1.msra.mxu0 0.0
        %1999 = vmatprep.subr.mxu0 0.0
        %2000 = vmatpush1.msra.mxu0 0.0
        %2001 = vmatprep.subr.mxu0 0.0
        %2002 = vmatpush1.msra.mxu0 0.0
        %2003 = vmatprep.subr.mxu0 0.0
        %2004 = vmatpush1.msra.mxu0 0.0
        %2005 = vmatprep.subr.mxu0 0.0
        %2006 = vmatpush1.msra.mxu0 0.0
        %2007 = vmatprep.subr.mxu0 0.0
        %2008 = vmatpush1.msra.mxu0 0.0
        %2009 = vmatprep.subr.mxu0 0.0
        %2010 = vmatpush1.msra.mxu0 0.0
        %2011 = vmatprep.subr.mxu0 0.0
        %2012 = vmatpush1.msra.mxu0 0.0
        %2013 = vmatprep.subr.mxu0 0.0
        %2014 = vmatpush1.msra.mxu0 0.0
        %2015 = vmatprep.subr.mxu0 0.0
        %2016 = vmatpush1.msra.mxu0 0.0
        %2017 = vmatprep.subr.mxu0 0.0
        %2018 = vmatpush1.msra.mxu0 0.0
        %2019 = vmatprep.subr.mxu0 0.0
        %2020 = vmatpush1.msra.mxu0 0.0
        %2021 = vmatprep.subr.mxu0 0.0
        %2022 = vmatpush1.msra.mxu0 0.0
        %2023 = vmatprep.subr.mxu0 0.0
        %2024 = vmatpush1.msra.mxu0 0.0
        %2025 = vmatprep.subr.mxu0 0.0
        %2026 = vmatpush1.msra.mxu0 0.0
        %2027 = vmatprep.subr.mxu0 0.0
        %2028 = vmatpush1.msra.mxu0 0.0
        %2029 = vmatprep.subr.mxu0 0.0
        %2030 = vmatpush1.msra.mxu0 0.0
        %2031 = vmatprep.subr.mxu0 0.0
        %2032 = vmatpush1.msra.mxu0 0.0
        %2033 = vmatprep.subr.mxu0 0.0
        %2034 = vmatpush1.msra.mxu0 0.0
        %2035 = vmatprep.subr.mxu0 0.0
        %2036 = vmatpush1.msra.mxu0 0.0
        %2037 = vmatprep.subr.mxu0 0.0
        %2038 = vmatpush1.msra.mxu0 0.0
        %2039 = vmatprep.subr.mxu0 0.0
        %2040 = vmatpush1.msra.mxu0 0.0
        %2041 = vmatprep.subr.mxu0 0.0
        %2042 = vmatpush1.msra.mxu0 0.0
        %2043 = vmatprep.subr.mxu0 0.0
        %2044 = vmatpush1.msra.mxu0 0.0
        %2045 = vmatprep.subr.mxu0 0.0
        %2046 = vmatpush1.msra.mxu0 0.0
        %2047 = vmatprep.mubr.f32.mxu0 0.0
        %2048 = vmatmul.mubr.f32.gmra.mrb[0].mxu0 %v1969
        %v2049 = vpop.f32.mrb[0].mxu0
        %v2050 = vadd.f32 0.0, %v2049
        %v2051 = vpop.f32.mrb[0].mxu0
        %2052 = vmatprep.mubr.f32.mxu0 0.0
        %2053 = vmatmul.mubr.f32.gmra.mrb[0].mxu0 %v1972
        %v2054 = vpop.f32.mrb[0].mxu0
        %v2055 = vadd.f32 0.0, %v2054
        %v2056 = vpop.f32.mrb[0].mxu0
        %2057 = vmatprep.mubr.f32.mxu0 0.0
        %2058 = vmatmul.mubr.f32.gmra.mrb[0].mxu0 %v1975
        %v2059 = vpop.f32.mrb[0].mxu0
        %v2060 = vadd.f32 0.0, %v2059
        %v2061 = vpop.f32.mrb[0].mxu0
        %2062 = vmatprep.mubr.f32.mxu0 0.0
        %2063 = vmatmul.mubr.f32.gmra.mrb[0].mxu0 %v1978
        %v2064 = vpop.f32.mrb[0].mxu0
        %v2065 = vadd.f32 0.0, %v2064
        %v2066 = vpop.f32.mrb[0].mxu0
        %2067 = vdwg.mxu0
        %v2068 = vadd.f32 %v1964, %v2050
        %v2069 = vadd.f32 %v1965, %v2055
        %v2070 = vadd.f32 %v1966, %v2060
        %v2071 = vadd.f32 %v1967, %v2065
        %v2072 = vmul.f32 %v2068, 0.01
        %v2073 = vmul.f32 %v2069, 0.01
        %v2074 = vmul.f32 %v2070, 0.01
        %v2075 = vmul.f32 %v2071, 0.01
        %v2076 = vmax.f32 %v2068, %v2072
        %v2077 = vmax.f32 %v2069, %v2073
        %v2078 = vmax.f32 %v2070, %v2074
        %v2079 = vmax.f32 %v2071, %v2075
        %2081 = vset.pattern.permute.xlu0 0
        %2082 = vperm.xlu0 %2081, %v572
        %v2083 = vpop.permute.xlu0 %2082
        %vm2085 = vcmask 261120
        %v2087 = vsel %vm2085, %v571, 0
        %2089 = vmatprep.subr.mxu0 0.0
        %2090 = vmatpush1.msra.mxu0 %v2076
        %2091 = vmatprep.subr.mxu0 0.0
        %2092 = vmatpush1.msra.mxu0 %v2077
        %2093 = vmatprep.subr.mxu0 0.0
        %2094 = vmatpush1.msra.mxu0 %v2078
        %2095 = vmatprep.subr.mxu0 0.0
        %2096 = vmatpush1.msra.mxu0 %v2079
        %2097 = vmatprep.subr.mxu0 0.0
        %2098 = vmatpush1.msra.mxu0 0.0
        %2099 = vmatprep.subr.mxu0 0.0
        %2100 = vmatpush1.msra.mxu0 0.0
        %2101 = vmatprep.subr.mxu0 0.0
        %2102 = vmatpush1.msra.mxu0 0.0
        %2103 = vmatprep.subr.mxu0 0.0
        %2104 = vmatpush1.msra.mxu0 0.0
        %2105 = vmatprep.subr.mxu0 0.0
        %2106 = vmatpush1.msra.mxu0 0.0
        %2107 = vmatprep.subr.mxu0 0.0
        %2108 = vmatpush1.msra.mxu0 0.0
        %2109 = vmatprep.subr.mxu0 0.0
        %2110 = vmatpush1.msra.mxu0 0.0
        %2111 = vmatprep.subr.mxu0 0.0
        %2112 = vmatpush1.msra.mxu0 0.0
        %2113 = vmatprep.subr.mxu0 0.0
        %2114 = vmatpush1.msra.mxu0 0.0
        %2115 = vmatprep.subr.mxu0 0.0
        %2116 = vmatpush1.msra.mxu0 0.0
        %2117 = vmatprep.subr.mxu0 0.0
        %2118 = vmatpush1.msra.mxu0 0.0
        %2119 = vmatprep.subr.mxu0 0.0
        %2120 = vmatpush1.msra.mxu0 0.0
        %2121 = vmatprep.subr.mxu0 0.0
        %2122 = vmatpush1.msra.mxu0 0.0
        %2123 = vmatprep.subr.mxu0 0.0
        %2124 = vmatpush1.msra.mxu0 0.0
        %2125 = vmatprep.subr.mxu0 0.0
        %2126 = vmatpush1.msra.mxu0 0.0
        %2127 = vmatprep.subr.mxu0 0.0
        %2128 = vmatpush1.msra.mxu0 0.0
        %2129 = vmatprep.subr.mxu0 0.0
        %2130 = vmatpush1.msra.mxu0 0.0
        %2131 = vmatprep.subr.mxu0 0.0
        %2132 = vmatpush1.msra.mxu0 0.0
        %2133 = vmatprep.subr.mxu0 0.0
        %2134 = vmatpush1.msra.mxu0 0.0
        %2135 = vmatprep.subr.mxu0 0.0
        %2136 = vmatpush1.msra.mxu0 0.0
        %2137 = vmatprep.subr.mxu0 0.0
        %2138 = vmatpush1.msra.mxu0 0.0
        %2139 = vmatprep.subr.mxu0 0.0
        %2140 = vmatpush1.msra.mxu0 0.0
        %2141 = vmatprep.subr.mxu0 0.0
        %2142 = vmatpush1.msra.mxu0 0.0
        %2143 = vmatprep.subr.mxu0 0.0
        %2144 = vmatpush1.msra.mxu0 0.0
        %2145 = vmatprep.subr.mxu0 0.0
        %2146 = vmatpush1.msra.mxu0 0.0
        %2147 = vmatprep.subr.mxu0 0.0
        %2148 = vmatpush1.msra.mxu0 0.0
        %2149 = vmatprep.subr.mxu0 0.0
        %2150 = vmatpush1.msra.mxu0 0.0
        %2151 = vmatprep.subr.mxu0 0.0
        %2152 = vmatpush1.msra.mxu0 0.0
        %2153 = vmatprep.mubr.f32.mxu0 0.0
        %2154 = vmatmul.mubr.f32.gmra.mrb[0].mxu0 %v2087
        %v2155 = vpop.f32.mrb[0].mxu0
        %v2156 = vadd.f32 %v2083, %v2155
        %v2157 = vpop.f32.mrb[0].mxu0
        %2158 = vdwg.mxu0
        %v2159 = vadd.f32 %v917, %v2156
        %v2160 = vsel %vm918, %v2159, 0.0
        %2161 = vadd.xlane.f32.xlu0 %v2160
        %v2162 = vpop.xlane.xlu0 %2161
        %v2163 = vrot.slane %v2162, 4
        %v2164 = vadd.f32 %v2162, %v2163
        %v2165 = vrot.slane %v2164, 2
        %v2166 = vadd.f32 %v2164, %v2165
        %v2167 = vrot.slane %v2166, 1
        %v2168 = vadd.f32 %v2166, %v2167
        %s2169 = vtos %v2168
        %s2170 = sadd.f32 %s2169, %s896
        %v2171 = vrcp.pop 99.0
        %s2172 = vtos %v2171
        %s2173 = smul.f32 %s2170, %s2172
        %v2174 = vstv %s2173
        %v2175 = vsub.f32 %v2159, %v2174
        %v2176 = vsub.f32 %v885, %v2174
        %v2177 = vmul.f32 %v2175, %v2175
        %v2178 = vsel %vm918, %v2177, 0.0
        %2179 = vadd.xlane.f32.xlu0 %v2178
        %v2180 = vpop.xlane.xlu0 %2179
        %v2181 = vrot.slane %v2180, 4
        %v2182 = vadd.f32 %v2180, %v2181
        %v2183 = vrot.slane %v2182, 2
        %v2184 = vadd.f32 %v2182, %v2183
        %v2185 = vrot.slane %v2184, 1
        %v2186 = vadd.f32 %v2184, %v2185
        %s2187 = vtos %v2186
        %v2188 = vmul.f32 %v2176, %v2176
        %v2189 = vsel %vm886, %v2188, 0.0
        %2190 = vadd.xlane.f32.xlu0 %v2189
        %v2191 = vpop.xlane.xlu0 %2190
        %v2192 = vrot.slane %v2191, 4
        %v2193 = vadd.f32 %v2191, %v2192
        %v2194 = vrot.slane %v2193, 2
        %v2195 = vadd.f32 %v2193, %v2194
        %v2196 = vrot.slane %v2195, 1
        %v2197 = vadd.f32 %v2195, %v2196
        %s2198 = vtos %v2197
        %s2199 = sadd.f32 %s2187, %s2198
        %v2200 = vrcp.pop 99.0
        %s2201 = vtos %v2200
        %s2202 = smul.f32 %s2199, %s2201
        %s2203 = sadd.f32 %s2202, 1e-05
        %v2204 = vstv %s2203
        %v2205 = vrsqrt.pop %v2204
        %s2206 = vtos %v2205
        %v2207 = vstv %s2206
        %v2208 = vmul.f32 %v2175, %v2207
        %v2209 = vmul.f32 %v2208, %v971
        %v2210 = vadd.f32 %v2209, %v977
        %v2211 = vmul.f32 %v2176, %v2207
        %v2212 = vmul.f32 %v2211, %v984
        %v2213 = vadd.f32 %v2212, %v990
        %2216 = vrot.lane.b32.xlu0 %v2210, 120
        %v2217 = vpop.permute.xlu0 %2216
        %2218 = vrot.lane.b32.xlu0 %v2213, 120
        %v2219 = vpop.permute.xlu0 %2218
        %2222 = vrot.lane.b32.xlu0 %v2210, 1
        %v2223 = vpop.permute.xlu0 %2222
        %2224 = vrot.lane.b32.xlu0 %v2213, 1
        %v2225 = vpop.permute.xlu0 %2224
        %v2228 = vsel %vm1007, %v2217, %v2223
        %v2229 = vsel %vm1007, %v2219, %v2225
        %2230 = vrot.lane.b32.xlu0 %v2210, 127
        %v2231 = vpop.permute.xlu0 %2230
        %2232 = vrot.lane.b32.xlu0 %v2213, 127
        %v2233 = vpop.permute.xlu0 %2232
        %2236 = vrot.lane.b32.xlu0 %v2210, 8
        %v2237 = vpop.permute.xlu0 %2236
        %2238 = vrot.lane.b32.xlu0 %v2213, 8
        %v2239 = vpop.permute.xlu0 %2238
        %v2242 = vsel %vm1022, %v2231, %v2237
        %v2243 = vsel %vm1022, %v2233, %v2239
        %v2244 = vsel %vm1026, %v2242, %v2228
        %v2245 = vsel %vm1026, %v2243, %v2229
        %v2246 = vsel %vm1030, %v2228, %v2242
        %v2247 = vsel %vm1030, %v2229, %v2243
        %2250 = vrot.lane.b32.xlu0 %v2244, 122
        %v2251 = vpop.permute.xlu0 %2250
        %2252 = vrot.lane.b32.xlu0 %v2245, 122
        %v2253 = vpop.permute.xlu0 %2252
        %2256 = vrot.lane.b32.xlu0 %v2244, 3
        %v2257 = vpop.permute.xlu0 %2256
        %2258 = vrot.lane.b32.xlu0 %v2245, 3
        %v2259 = vpop.permute.xlu0 %2258
        %v2262 = vsel %vm614, %v2251, %v2257
        %v2263 = vsel %vm614, %v2253, %v2259
        %2264 = vrot.lane.b32.xlu0 %v2244, 125
        %v2265 = vpop.permute.xlu0 %2264
        %2266 = vrot.lane.b32.xlu0 %v2245, 125
        %v2267 = vpop.permute.xlu0 %2266
        %2270 = vrot.lane.b32.xlu0 %v2244, 6
        %v2271 = vpop.permute.xlu0 %2270
        %2272 = vrot.lane.b32.xlu0 %v2245, 6
        %v2273 = vpop.permute.xlu0 %2272
        %v2276 = vsel %vm1061, %v2265, %v2271
        %v2277 = vsel %vm1061, %v2267, %v2273
        %v2278 = vsel %vm1065, %v2276, %v2262
        %v2279 = vsel %vm1065, %v2277, %v2263
        %v2280 = vsel %vm1069, %v2262, %v2276
        %v2281 = vsel %vm1069, %v2263, %v2277
        %v2283 = vsel %vm621, %v2279, 0
        %2285 = vmatprep.subr.mxu0 0.0
        %2286 = vmatpush1.msra.mxu0 %v2278
        %2287 = vmatprep.subr.mxu0 0.0
        %2288 = vmatpush1.msra.mxu0 %v2283
        %2289 = vmatprep.subr.mxu0 0.0
        %2290 = vmatpush1.msra.mxu0 0.0
        %2291 = vmatprep.subr.mxu0 0.0
        %2292 = vmatpush1.msra.mxu0 0.0
        %2293 = vmatprep.subr.mxu0 0.0
        %2294 = vmatpush1.msra.mxu0 0.0
        %2295 = vmatprep.subr.mxu0 0.0
        %2296 = vmatpush1.msra.mxu0 0.0
        %2297 = vmatprep.subr.mxu0 0.0
        %2298 = vmatpush1.msra.mxu0 0.0
        %2299 = vmatprep.subr.mxu0 0.0
        %2300 = vmatpush1.msra.mxu0 0.0
        %2301 = vmatprep.subr.mxu0 0.0
        %2302 = vmatpush1.msra.mxu0 0.0
        %2303 = vmatprep.subr.mxu0 0.0
        %2304 = vmatpush1.msra.mxu0 0.0
        %2305 = vmatprep.subr.mxu0 0.0
        %2306 = vmatpush1.msra.mxu0 0.0
        %2307 = vmatprep.subr.mxu0 0.0
        %2308 = vmatpush1.msra.mxu0 0.0
        %2309 = vmatprep.subr.mxu0 0.0
        %2310 = vmatpush1.msra.mxu0 0.0
        %2311 = vmatprep.subr.mxu0 0.0
        %2312 = vmatpush1.msra.mxu0 0.0
        %2313 = vmatprep.subr.mxu0 0.0
        %2314 = vmatpush1.msra.mxu0 0.0
        %2315 = vmatprep.subr.mxu0 0.0
        %2316 = vmatpush1.msra.mxu0 0.0
        %2317 = vmatprep.subr.mxu0 0.0
        %2318 = vmatpush1.msra.mxu0 0.0
        %2319 = vmatprep.subr.mxu0 0.0
        %2320 = vmatpush1.msra.mxu0 0.0
        %2321 = vmatprep.subr.mxu0 0.0
        %2322 = vmatpush1.msra.mxu0 0.0
        %2323 = vmatprep.subr.mxu0 0.0
        %2324 = vmatpush1.msra.mxu0 0.0
        %2325 = vmatprep.subr.mxu0 0.0
        %2326 = vmatpush1.msra.mxu0 0.0
        %2327 = vmatprep.subr.mxu0 0.0
        %2328 = vmatpush1.msra.mxu0 0.0
        %2329 = vmatprep.subr.mxu0 0.0
        %2330 = vmatpush1.msra.mxu0 0.0
        %2331 = vmatprep.subr.mxu0 0.0
        %2332 = vmatpush1.msra.mxu0 0.0
        %2333 = vmatprep.subr.mxu0 0.0
        %2334 = vmatpush1.msra.mxu0 0.0
        %2335 = vmatprep.subr.mxu0 0.0
        %2336 = vmatpush1.msra.mxu0 0.0
        %2337 = vmatprep.subr.mxu0 0.0
        %2338 = vmatpush1.msra.mxu0 0.0
        %2339 = vmatprep.subr.mxu0 0.0
        %2340 = vmatpush1.msra.mxu0 0.0
        %2341 = vmatprep.subr.mxu0 0.0
        %2342 = vmatpush1.msra.mxu0 0.0
        %2343 = vmatprep.subr.mxu0 0.0
        %2344 = vmatpush1.msra.mxu0 0.0
        %2345 = vmatprep.subr.mxu0 0.0
        %2346 = vmatpush1.msra.mxu0 0.0
        %2347 = vmatprep.subr.mxu0 0.0
        %2348 = vmatpush1.msra.mxu0 0.0
        %2349 = vmatprep.mubr.f32.mxu0 0.0
        %2350 = vmatmul.mubr.f32.gmra.mrb[0].mxu0 %v1074
        %v2351 = vpop.f32.mrb[0].mxu0
        %v2352 = vadd.f32 0.0, %v2351
        %v2353 = vpop.f32.mrb[0].mxu0
        %2354 = vmatprep.mubr.f32.mxu0 0.0
        %2355 = vmatmul.mubr.f32.gmra.mrb[0].mxu0 %v1077
        %v2356 = vpop.f32.mrb[0].mxu0
        %v2357 = vadd.f32 0.0, %v2356
        %v2358 = vpop.f32.mrb[0].mxu0
        %2359 = vmatprep.mubr.f32.mxu0 0.0
        %2360 = vmatmul.mubr.f32.gmra.mrb[0].mxu0 %v1080
        %v2361 = vpop.f32.mrb[0].mxu0
        %v2362 = vadd.f32 0.0, %v2361
        %v2363 = vpop.f32.mrb[0].mxu0
        %2364 = vmatprep.mubr.f32.mxu0 0.0
        %2365 = vmatmul.mubr.f32.gmra.mrb[0].mxu0 %v1083
        %v2366 = vpop.f32.mrb[0].mxu0
        %v2367 = vadd.f32 0.0, %v2366
        %v2368 = vpop.f32.mrb[0].mxu0
        %2369 = vdwg.mxu0
        %v2370 = vadd.f32 %v900, %v2352
        %v2371 = vadd.f32 %v905, %v2357
        %v2372 = vadd.f32 %v910, %v2362
        %v2373 = vadd.f32 %v915, %v2367
        %v2374 = vsel %vm621, %v2245, 0
        %2376 = vmatprep.subr.mxu0 0.0
        %2377 = vmatpush1.msra.mxu0 %v2244
        %2378 = vmatprep.subr.mxu0 0.0
        %2379 = vmatpush1.msra.mxu0 %v2374
        %2380 = vmatprep.subr.mxu0 0.0
        %2381 = vmatpush1.msra.mxu0 0.0
        %2382 = vmatprep.subr.mxu0 0.0
        %2383 = vmatpush1.msra.mxu0 0.0
        %2384 = vmatprep.subr.mxu0 0.0
        %2385 = vmatpush1.msra.mxu0 0.0
        %2386 = vmatprep.subr.mxu0 0.0
        %2387 = vmatpush1.msra.mxu0 0.0
        %2388 = vmatprep.subr.mxu0 0.0
        %2389 = vmatpush1.msra.mxu0 0.0
        %2390 = vmatprep.subr.mxu0 0.0
        %2391 = vmatpush1.msra.mxu0 0.0
        %2392 = vmatprep.subr.mxu0 0.0
        %2393 = vmatpush1.msra.mxu0 0.0
        %2394 = vmatprep.subr.mxu0 0.0
        %2395 = vmatpush1.msra.mxu0 0.0
        %2396 = vmatprep.subr.mxu0 0.0
        %2397 = vmatpush1.msra.mxu0 0.0
        %2398 = vmatprep.subr.mxu0 0.0
        %2399 = vmatpush1.msra.mxu0 0.0
        %2400 = vmatprep.subr.mxu0 0.0
        %2401 = vmatpush1.msra.mxu0 0.0
        %2402 = vmatprep.subr.mxu0 0.0
        %2403 = vmatpush1.msra.mxu0 0.0
        %2404 = vmatprep.subr.mxu0 0.0
        %2405 = vmatpush1.msra.mxu0 0.0
        %2406 = vmatprep.subr.mxu0 0.0
        %2407 = vmatpush1.msra.mxu0 0.0
        %2408 = vmatprep.subr.mxu0 0.0
        %2409 = vmatpush1.msra.mxu0 0.0
        %2410 = vmatprep.subr.mxu0 0.0
        %2411 = vmatpush1.msra.mxu0 0.0
        %2412 = vmatprep.subr.mxu0 0.0
        %2413 = vmatpush1.msra.mxu0 0.0
        %2414 = vmatprep.subr.mxu0 0.0
        %2415 = vmatpush1.msra.mxu0 0.0
        %2416 = vmatprep.subr.mxu0 0.0
        %2417 = vmatpush1.msra.mxu0 0.0
        %2418 = vmatprep.subr.mxu0 0.0
        %2419 = vmatpush1.msra.mxu0 0.0
        %2420 = vmatprep.subr.mxu0 0.0
        %2421 = vmatpush1.msra.mxu0 0.0
        %2422 = vmatprep.subr.mxu0 0.0
        %2423 = vmatpush1.msra.mxu0 0.0
        %2424 = vmatprep.subr.mxu0 0.0
        %2425 = vmatpush1.msra.mxu0 0.0
        %2426 = vmatprep.subr.mxu0 0.0
        %2427 = vmatpush1.msra.mxu0 0.0
        %2428 = vmatprep.subr.mxu0 0.0
        %2429 = vmatpush1.msra.mxu0 0.0
        %2430 = vmatprep.subr.mxu0 0.0
        %2431 = vmatpush1.msra.mxu0 0.0
        %2432 = vmatprep.subr.mxu0 0.0
        %2433 = vmatpush1.msra.mxu0 0.0
        %2434 = vmatprep.subr.mxu0 0.0
        %2435 = vmatpush1.msra.mxu0 0.0
        %2436 = vmatprep.subr.mxu0 0.0
        %2437 = vmatpush1.msra.mxu0 0.0
        %2438 = vmatprep.subr.mxu0 0.0
        %2439 = vmatpush1.msra.mxu0 0.0
        %2440 = vmatprep.mubr.f32.mxu0 0.0
        %2441 = vmatmul.mubr.f32.gmra.mrb[0].mxu0 %v1178
        %v2442 = vpop.f32.mrb[0].mxu0
        %v2443 = vadd.f32 0.0, %v2442
        %v2444 = vpop.f32.mrb[0].mxu0
        %2445 = vmatprep.mubr.f32.mxu0 0.0
        %2446 = vmatmul.mubr.f32.gmra.mrb[0].mxu0 %v1181
        %v2447 = vpop.f32.mrb[0].mxu0
        %v2448 = vadd.f32 0.0, %v2447
        %v2449 = vpop.f32.mrb[0].mxu0
        %2450 = vmatprep.mubr.f32.mxu0 0.0
        %2451 = vmatmul.mubr.f32.gmra.mrb[0].mxu0 %v1184
        %v2452 = vpop.f32.mrb[0].mxu0
        %v2453 = vadd.f32 0.0, %v2452
        %v2454 = vpop.f32.mrb[0].mxu0
        %2455 = vmatprep.mubr.f32.mxu0 0.0
        %2456 = vmatmul.mubr.f32.gmra.mrb[0].mxu0 %v1187
        %v2457 = vpop.f32.mrb[0].mxu0
        %v2458 = vadd.f32 0.0, %v2457
        %v2459 = vpop.f32.mrb[0].mxu0
        %2460 = vdwg.mxu0
        %v2461 = vadd.f32 %v2370, %v2443
        %v2462 = vadd.f32 %v2371, %v2448
        %v2463 = vadd.f32 %v2372, %v2453
        %v2464 = vadd.f32 %v2373, %v2458
        %v2466 = vsel %vm621, %v2281, 0
        %2468 = vmatprep.subr.mxu0 0.0
        %2469 = vmatpush1.msra.mxu0 %v2280
        %2470 = vmatprep.subr.mxu0 0.0
        %2471 = vmatpush1.msra.mxu0 %v2466
        %2472 = vmatprep.subr.mxu0 0.0
        %2473 = vmatpush1.msra.mxu0 0.0
        %2474 = vmatprep.subr.mxu0 0.0
        %2475 = vmatpush1.msra.mxu0 0.0
        %2476 = vmatprep.subr.mxu0 0.0
        %2477 = vmatpush1.msra.mxu0 0.0
        %2478 = vmatprep.subr.mxu0 0.0
        %2479 = vmatpush1.msra.mxu0 0.0
        %2480 = vmatprep.subr.mxu0 0.0
        %2481 = vmatpush1.msra.mxu0 0.0
        %2482 = vmatprep.subr.mxu0 0.0
        %2483 = vmatpush1.msra.mxu0 0.0
        %2484 = vmatprep.subr.mxu0 0.0
        %2485 = vmatpush1.msra.mxu0 0.0
        %2486 = vmatprep.subr.mxu0 0.0
        %2487 = vmatpush1.msra.mxu0 0.0
        %2488 = vmatprep.subr.mxu0 0.0
        %2489 = vmatpush1.msra.mxu0 0.0
        %2490 = vmatprep.subr.mxu0 0.0
        %2491 = vmatpush1.msra.mxu0 0.0
        %2492 = vmatprep.subr.mxu0 0.0
        %2493 = vmatpush1.msra.mxu0 0.0
        %2494 = vmatprep.subr.mxu0 0.0
        %2495 = vmatpush1.msra.mxu0 0.0
        %2496 = vmatprep.subr.mxu0 0.0
        %2497 = vmatpush1.msra.mxu0 0.0
        %2498 = vmatprep.subr.mxu0 0.0
        %2499 = vmatpush1.msra.mxu0 0.0
        %2500 = vmatprep.subr.mxu0 0.0
        %2501 = vmatpush1.msra.mxu0 0.0
        %2502 = vmatprep.subr.mxu0 0.0
        %2503 = vmatpush1.msra.mxu0 0.0
        %2504 = vmatprep.subr.mxu0 0.0
        %2505 = vmatpush1.msra.mxu0 0.0
        %2506 = vmatprep.subr.mxu0 0.0
        %2507 = vmatpush1.msra.mxu0 0.0
        %2508 = vmatprep.subr.mxu0 0.0
        %2509 = vmatpush1.msra.mxu0 0.0
        %2510 = vmatprep.subr.mxu0 0.0
        %2511 = vmatpush1.msra.mxu0 0.0
        %2512 = vmatprep.subr.mxu0 0.0
        %2513 = vmatpush1.msra.mxu0 0.0
        %2514 = vmatprep.subr.mxu0 0.0
        %2515 = vmatpush1.msra.mxu0 0.0
        %2516 = vmatprep.subr.mxu0 0.0
        %2517 = vmatpush1.msra.mxu0 0.0
        %2518 = vmatprep.subr.mxu0 0.0
        %2519 = vmatpush1.msra.mxu0 0.0
        %2520 = vmatprep.subr.mxu0 0.0
        %2521 = vmatpush1.msra.mxu0 0.0
        %2522 = vmatprep.subr.mxu0 0.0
        %2523 = vmatpush1.msra.mxu0 0.0
        %2524 = vmatprep.subr.mxu0 0.0
        %2525 = vmatpush1.msra.mxu0 0.0
        %2526 = vmatprep.subr.mxu0 0.0
        %2527 = vmatpush1.msra.mxu0 0.0
        %2528 = vmatprep.subr.mxu0 0.0
        %2529 = vmatpush1.msra.mxu0 0.0
        %2530 = vmatprep.subr.mxu0 0.0
        %2531 = vmatpush1.msra.mxu0 0.0
        %2532 = vmatprep.mubr.f32.mxu0 0.0
        %2533 = vmatmul.mubr.f32.gmra.mrb[0].mxu0 %v1281
        %v2534 = vpop.f32.mrb[0].mxu0
        %v2535 = vadd.f32 0.0, %v2534
        %v2536 = vpop.f32.mrb[0].mxu0
        %2537 = vmatprep.mubr.f32.mxu0 0.0
        %2538 = vmatmul.mubr.f32.gmra.mrb[0].mxu0 %v1284
        %v2539 = vpop.f32.mrb[0].mxu0
        %v2540 = vadd.f32 0.0, %v2539
        %v2541 = vpop.f32.mrb[0].mxu0
        %2542 = vmatprep.mubr.f32.mxu0 0.0
        %2543 = vmatmul.mubr.f32.gmra.mrb[0].mxu0 %v1287
        %v2544 = vpop.f32.mrb[0].mxu0
        %v2545 = vadd.f32 0.0, %v2544
        %v2546 = vpop.f32.mrb[0].mxu0
        %2547 = vmatprep.mubr.f32.mxu0 0.0
        %2548 = vmatmul.mubr.f32.gmra.mrb[0].mxu0 %v1290
        %v2549 = vpop.f32.mrb[0].mxu0
        %v2550 = vadd.f32 0.0, %v2549
        %v2551 = vpop.f32.mrb[0].mxu0
        %2552 = vdwg.mxu0
        %v2553 = vadd.f32 %v2461, %v2535
        %v2554 = vadd.f32 %v2462, %v2540
        %v2555 = vadd.f32 %v2463, %v2545
        %v2556 = vadd.f32 %v2464, %v2550
        %2557 = vrot.lane.b32.xlu0 %v2210, 122
        %v2558 = vpop.permute.xlu0 %2557
        %2559 = vrot.lane.b32.xlu0 %v2213, 122
        %v2560 = vpop.permute.xlu0 %2559
        %2563 = vrot.lane.b32.xlu0 %v2210, 3
        %v2564 = vpop.permute.xlu0 %2563
        %2565 = vrot.lane.b32.xlu0 %v2213, 3
        %v2566 = vpop.permute.xlu0 %2565
        %v2569 = vsel %vm614, %v2558, %v2564
        %v2570 = vsel %vm614, %v2560, %v2566
        %2571 = vrot.lane.b32.xlu0 %v2210, 125
        %v2572 = vpop.permute.xlu0 %2571
        %2573 = vrot.lane.b32.xlu0 %v2213, 125
        %v2574 = vpop.permute.xlu0 %2573
        %2577 = vrot.lane.b32.xlu0 %v2210, 6
        %v2578 = vpop.permute.xlu0 %2577
        %2579 = vrot.lane.b32.xlu0 %v2213, 6
        %v2580 = vpop.permute.xlu0 %2579
        %v2583 = vsel %vm1061, %v2572, %v2578
        %v2584 = vsel %vm1061, %v2574, %v2580
        %v2585 = vsel %vm1065, %v2583, %v2569
        %v2586 = vsel %vm1065, %v2584, %v2570
        %v2587 = vsel %vm1069, %v2569, %v2583
        %v2588 = vsel %vm1069, %v2570, %v2584
        %v2590 = vsel %vm621, %v2586, 0
        %2592 = vmatprep.subr.mxu0 0.0
        %2593 = vmatpush1.msra.mxu0 %v2585
        %2594 = vmatprep.subr.mxu0 0.0
        %2595 = vmatpush1.msra.mxu0 %v2590
        %2596 = vmatprep.subr.mxu0 0.0
        %2597 = vmatpush1.msra.mxu0 0.0
        %2598 = vmatprep.subr.mxu0 0.0
        %2599 = vmatpush1.msra.mxu0 0.0
        %2600 = vmatprep.subr.mxu0 0.0
        %2601 = vmatpush1.msra.mxu0 0.0
        %2602 = vmatprep.subr.mxu0 0.0
        %2603 = vmatpush1.msra.mxu0 0.0
        %2604 = vmatprep.subr.mxu0 0.0
        %2605 = vmatpush1.msra.mxu0 0.0
        %2606 = vmatprep.subr.mxu0 0.0
        %2607 = vmatpush1.msra.mxu0 0.0
        %2608 = vmatprep.subr.mxu0 0.0
        %2609 = vmatpush1.msra.mxu0 0.0
        %2610 = vmatprep.subr.mxu0 0.0
        %2611 = vmatpush1.msra.mxu0 0.0
        %2612 = vmatprep.subr.mxu0 0.0
        %2613 = vmatpush1.msra.mxu0 0.0
        %2614 = vmatprep.subr.mxu0 0.0
        %2615 = vmatpush1.msra.mxu0 0.0
        %2616 = vmatprep.subr.mxu0 0.0
        %2617 = vmatpush1.msra.mxu0 0.0
        %2618 = vmatprep.subr.mxu0 0.0
        %2619 = vmatpush1.msra.mxu0 0.0
        %2620 = vmatprep.subr.mxu0 0.0
        %2621 = vmatpush1.msra.mxu0 0.0
        %2622 = vmatprep.subr.mxu0 0.0
        %2623 = vmatpush1.msra.mxu0 0.0
        %2624 = vmatprep.subr.mxu0 0.0
        %2625 = vmatpush1.msra.mxu0 0.0
        %2626 = vmatprep.subr.mxu0 0.0
        %2627 = vmatpush1.msra.mxu0 0.0
        %2628 = vmatprep.subr.mxu0 0.0
        %2629 = vmatpush1.msra.mxu0 0.0
        %2630 = vmatprep.subr.mxu0 0.0
        %2631 = vmatpush1.msra.mxu0 0.0
        %2632 = vmatprep.subr.mxu0 0.0
        %2633 = vmatpush1.msra.mxu0 0.0
        %2634 = vmatprep.subr.mxu0 0.0
        %2635 = vmatpush1.msra.mxu0 0.0
        %2636 = vmatprep.subr.mxu0 0.0
        %2637 = vmatpush1.msra.mxu0 0.0
        %2638 = vmatprep.subr.mxu0 0.0
        %2639 = vmatpush1.msra.mxu0 0.0
        %2640 = vmatprep.subr.mxu0 0.0
        %2641 = vmatpush1.msra.mxu0 0.0
        %2642 = vmatprep.subr.mxu0 0.0
        %2643 = vmatpush1.msra.mxu0 0.0
        %2644 = vmatprep.subr.mxu0 0.0
        %2645 = vmatpush1.msra.mxu0 0.0
        %2646 = vmatprep.subr.mxu0 0.0
        %2647 = vmatpush1.msra.mxu0 0.0
        %2648 = vmatprep.subr.mxu0 0.0
        %2649 = vmatpush1.msra.mxu0 0.0
        %2650 = vmatprep.subr.mxu0 0.0
        %2651 = vmatpush1.msra.mxu0 0.0
        %2652 = vmatprep.subr.mxu0 0.0
        %2653 = vmatpush1.msra.mxu0 0.0
        %2654 = vmatprep.subr.mxu0 0.0
        %2655 = vmatpush1.msra.mxu0 0.0
        %2656 = vmatprep.mubr.f32.mxu0 0.0
        %2657 = vmatmul.mubr.f32.gmra.mrb[0].mxu0 %v1417
        %v2658 = vpop.f32.mrb[0].mxu0
        %v2659 = vadd.f32 0.0, %v2658
        %v2660 = vpop.f32.mrb[0].mxu0
        %2661 = vmatprep.mubr.f32.mxu0 0.0
        %2662 = vmatmul.mubr.f32.gmra.mrb[0].mxu0 %v1420
        %v2663 = vpop.f32.mrb[0].mxu0
        %v2664 = vadd.f32 0.0, %v2663
        %v2665 = vpop.f32.mrb[0].mxu0
        %2666 = vmatprep.mubr.f32.mxu0 0.0
        %2667 = vmatmul.mubr.f32.gmra.mrb[0].mxu0 %v1423
        %v2668 = vpop.f32.mrb[0].mxu0
        %v2669 = vadd.f32 0.0, %v2668
        %v2670 = vpop.f32.mrb[0].mxu0
        %2671 = vmatprep.mubr.f32.mxu0 0.0
        %2672 = vmatmul.mubr.f32.gmra.mrb[0].mxu0 %v1426
        %v2673 = vpop.f32.mrb[0].mxu0
        %v2674 = vadd.f32 0.0, %v2673
        %v2675 = vpop.f32.mrb[0].mxu0
        %2676 = vdwg.mxu0
        %v2677 = vadd.f32 %v2553, %v2659
        %v2678 = vadd.f32 %v2554, %v2664
        %v2679 = vadd.f32 %v2555, %v2669
        %v2680 = vadd.f32 %v2556, %v2674
        %v2681 = vsel %vm621, %v2213, 0
        %2683 = vmatprep.subr.mxu0 0.0
        %2684 = vmatpush1.msra.mxu0 %v2210
        %2685 = vmatprep.subr.mxu0 0.0
        %2686 = vmatpush1.msra.mxu0 %v2681
        %2687 = vmatprep.subr.mxu0 0.0
        %2688 = vmatpush1.msra.mxu0 0.0
        %2689 = vmatprep.subr.mxu0 0.0
        %2690 = vmatpush1.msra.mxu0 0.0
        %2691 = vmatprep.subr.mxu0 0.0
        %2692 = vmatpush1.msra.mxu0 0.0
        %2693 = vmatprep.subr.mxu0 0.0
        %2694 = vmatpush1.msra.mxu0 0.0
        %2695 = vmatprep.subr.mxu0 0.0
        %2696 = vmatpush1.msra.mxu0 0.0
        %2697 = vmatprep.subr.mxu0 0.0
        %2698 = vmatpush1.msra.mxu0 0.0
        %2699 = vmatprep.subr.mxu0 0.0
        %2700 = vmatpush1.msra.mxu0 0.0
        %2701 = vmatprep.subr.mxu0 0.0
        %2702 = vmatpush1.msra.mxu0 0.0
        %2703 = vmatprep.subr.mxu0 0.0
        %2704 = vmatpush1.msra.mxu0 0.0
        %2705 = vmatprep.subr.mxu0 0.0
        %2706 = vmatpush1.msra.mxu0 0.0
        %2707 = vmatprep.subr.mxu0 0.0
        %2708 = vmatpush1.msra.mxu0 0.0
        %2709 = vmatprep.subr.mxu0 0.0
        %2710 = vmatpush1.msra.mxu0 0.0
        %2711 = vmatprep.subr.mxu0 0.0
        %2712 = vmatpush1.msra.mxu0 0.0
        %2713 = vmatprep.subr.mxu0 0.0
        %2714 = vmatpush1.msra.mxu0 0.0
        %2715 = vmatprep.subr.mxu0 0.0
        %2716 = vmatpush1.msra.mxu0 0.0
        %2717 = vmatprep.subr.mxu0 0.0
        %2718 = vmatpush1.msra.mxu0 0.0
        %2719 = vmatprep.subr.mxu0 0.0
        %2720 = vmatpush1.msra.mxu0 0.0
        %2721 = vmatprep.subr.mxu0 0.0
        %2722 = vmatpush1.msra.mxu0 0.0
        %2723 = vmatprep.subr.mxu0 0.0
        %2724 = vmatpush1.msra.mxu0 0.0
        %2725 = vmatprep.subr.mxu0 0.0
        %2726 = vmatpush1.msra.mxu0 0.0
        %2727 = vmatprep.subr.mxu0 0.0
        %2728 = vmatpush1.msra.mxu0 0.0
        %2729 = vmatprep.subr.mxu0 0.0
        %2730 = vmatpush1.msra.mxu0 0.0
        %2731 = vmatprep.subr.mxu0 0.0
        %2732 = vmatpush1.msra.mxu0 0.0
        %2733 = vmatprep.subr.mxu0 0.0
        %2734 = vmatpush1.msra.mxu0 0.0
        %2735 = vmatprep.subr.mxu0 0.0
        %2736 = vmatpush1.msra.mxu0 0.0
        %2737 = vmatprep.subr.mxu0 0.0
        %2738 = vmatpush1.msra.mxu0 0.0
        %2739 = vmatprep.subr.mxu0 0.0
        %2740 = vmatpush1.msra.mxu0 0.0
        %2741 = vmatprep.subr.mxu0 0.0
        %2742 = vmatpush1.msra.mxu0 0.0
        %2743 = vmatprep.subr.mxu0 0.0
        %2744 = vmatpush1.msra.mxu0 0.0
        %2745 = vmatprep.subr.mxu0 0.0
        %2746 = vmatpush1.msra.mxu0 0.0
        %2747 = vmatprep.mubr.f32.mxu0 0.0
        %2748 = vmatmul.mubr.f32.gmra.mrb[0].mxu0 %v1521
        %v2749 = vpop.f32.mrb[0].mxu0
        %v2750 = vadd.f32 0.0, %v2749
        %v2751 = vpop.f32.mrb[0].mxu0
        %2752 = vmatprep.mubr.f32.mxu0 0.0
        %2753 = vmatmul.mubr.f32.gmra.mrb[0].mxu0 %v1524
        %v2754 = vpop.f32.mrb[0].mxu0
        %v2755 = vadd.f32 0.0, %v2754
        %v2756 = vpop.f32.mrb[0].mxu0
        %2757 = vmatprep.mubr.f32.mxu0 0.0
        %2758 = vmatmul.mubr.f32.gmra.mrb[0].mxu0 %v1527
        %v2759 = vpop.f32.mrb[0].mxu0
        %v2760 = vadd.f32 0.0, %v2759
        %v2761 = vpop.f32.mrb[0].mxu0
        %2762 = vmatprep.mubr.f32.mxu0 0.0
        %2763 = vmatmul.mubr.f32.gmra.mrb[0].mxu0 %v1530
        %v2764 = vpop.f32.mrb[0].mxu0
        %v2765 = vadd.f32 0.0, %v2764
        %v2766 = vpop.f32.mrb[0].mxu0
        %2767 = vdwg.mxu0
        %v2768 = vadd.f32 %v2677, %v2750
        %v2769 = vadd.f32 %v2678, %v2755
        %v2770 = vadd.f32 %v2679, %v2760
        %v2771 = vadd.f32 %v2680, %v2765
        %v2773 = vsel %vm621, %v2588, 0
        %2775 = vmatprep.subr.mxu0 0.0
        %2776 = vmatpush1.msra.mxu0 %v2587
        %2777 = vmatprep.subr.mxu0 0.0
        %2778 = vmatpush1.msra.mxu0 %v2773
        %2779 = vmatprep.subr.mxu0 0.0
        %2780 = vmatpush1.msra.mxu0 0.0
        %2781 = vmatprep.subr.mxu0 0.0
        %2782 = vmatpush1.msra.mxu0 0.0
        %2783 = vmatprep.subr.mxu0 0.0
        %2784 = vmatpush1.msra.mxu0 0.0
        %2785 = vmatprep.subr.mxu0 0.0
        %2786 = vmatpush1.msra.mxu0 0.0
        %2787 = vmatprep.subr.mxu0 0.0
        %2788 = vmatpush1.msra.mxu0 0.0
        %2789 = vmatprep.subr.mxu0 0.0
        %2790 = vmatpush1.msra.mxu0 0.0
        %2791 = vmatprep.subr.mxu0 0.0
        %2792 = vmatpush1.msra.mxu0 0.0
        %2793 = vmatprep.subr.mxu0 0.0
        %2794 = vmatpush1.msra.mxu0 0.0
        %2795 = vmatprep.subr.mxu0 0.0
        %2796 = vmatpush1.msra.mxu0 0.0
        %2797 = vmatprep.subr.mxu0 0.0
        %2798 = vmatpush1.msra.mxu0 0.0
        %2799 = vmatprep.subr.mxu0 0.0
        %2800 = vmatpush1.msra.mxu0 0.0
        %2801 = vmatprep.subr.mxu0 0.0
        %2802 = vmatpush1.msra.mxu0 0.0
        %2803 = vmatprep.subr.mxu0 0.0
        %2804 = vmatpush1.msra.mxu0 0.0
        %2805 = vmatprep.subr.mxu0 0.0
        %2806 = vmatpush1.msra.mxu0 0.0
        %2807 = vmatprep.subr.mxu0 0.0
        %2808 = vmatpush1.msra.mxu0 0.0
        %2809 = vmatprep.subr.mxu0 0.0
        %2810 = vmatpush1.msra.mxu0 0.0
        %2811 = vmatprep.subr.mxu0 0.0
        %2812 = vmatpush1.msra.mxu0 0.0
        %2813 = vmatprep.subr.mxu0 0.0
        %2814 = vmatpush1.msra.mxu0 0.0
        %2815 = vmatprep.subr.mxu0 0.0
        %2816 = vmatpush1.msra.mxu0 0.0
        %2817 = vmatprep.subr.mxu0 0.0
        %2818 = vmatpush1.msra.mxu0 0.0
        %2819 = vmatprep.subr.mxu0 0.0
        %2820 = vmatpush1.msra.mxu0 0.0
        %2821 = vmatprep.subr.mxu0 0.0
        %2822 = vmatpush1.msra.mxu0 0.0
        %2823 = vmatprep.subr.mxu0 0.0
        %2824 = vmatpush1.msra.mxu0 0.0
        %2825 = vmatprep.subr.mxu0 0.0
        %2826 = vmatpush1.msra.mxu0 0.0
        %2827 = vmatprep.subr.mxu0 0.0
        %2828 = vmatpush1.msra.mxu0 0.0
        %2829 = vmatprep.subr.mxu0 0.0
        %2830 = vmatpush1.msra.mxu0 0.0
        %2831 = vmatprep.subr.mxu0 0.0
        %2832 = vmatpush1.msra.mxu0 0.0
        %2833 = vmatprep.subr.mxu0 0.0
        %2834 = vmatpush1.msra.mxu0 0.0
        %2835 = vmatprep.subr.mxu0 0.0
        %2836 = vmatpush1.msra.mxu0 0.0
        %2837 = vmatprep.subr.mxu0 0.0
        %2838 = vmatpush1.msra.mxu0 0.0
        %2839 = vmatprep.mubr.f32.mxu0 0.0
        %2840 = vmatmul.mubr.f32.gmra.mrb[0].mxu0 %v1624
        %v2841 = vpop.f32.mrb[0].mxu0
        %v2842 = vadd.f32 0.0, %v2841
        %v2843 = vpop.f32.mrb[0].mxu0
        %2844 = vmatprep.mubr.f32.mxu0 0.0
        %2845 = vmatmul.mubr.f32.gmra.mrb[0].mxu0 %v1627
        %v2846 = vpop.f32.mrb[0].mxu0
        %v2847 = vadd.f32 0.0, %v2846
        %v2848 = vpop.f32.mrb[0].mxu0
        %2849 = vmatprep.mubr.f32.mxu0 0.0
        %2850 = vmatmul.mubr.f32.gmra.mrb[0].mxu0 %v1630
        %v2851 = vpop.f32.mrb[0].mxu0
        %v2852 = vadd.f32 0.0, %v2851
        %v2853 = vpop.f32.mrb[0].mxu0
        %2854 = vmatprep.mubr.f32.mxu0 0.0
        %2855 = vmatmul.mubr.f32.gmra.mrb[0].mxu0 %v1633
        %v2856 = vpop.f32.mrb[0].mxu0
        %v2857 = vadd.f32 0.0, %v2856
        %v2858 = vpop.f32.mrb[0].mxu0
        %2859 = vdwg.mxu0
        %v2860 = vadd.f32 %v2768, %v2842
        %v2861 = vadd.f32 %v2769, %v2847
        %v2862 = vadd.f32 %v2770, %v2852
        %v2863 = vadd.f32 %v2771, %v2857
        %2866 = vrot.lane.b32.xlu0 %v2246, 122
        %v2867 = vpop.permute.xlu0 %2866
        %2868 = vrot.lane.b32.xlu0 %v2247, 122
        %v2869 = vpop.permute.xlu0 %2868
        %2872 = vrot.lane.b32.xlu0 %v2246, 3
        %v2873 = vpop.permute.xlu0 %2872
        %2874 = vrot.lane.b32.xlu0 %v2247, 3
        %v2875 = vpop.permute.xlu0 %2874
        %v2878 = vsel %vm614, %v2867, %v2873
        %v2879 = vsel %vm614, %v2869, %v2875
        %2880 = vrot.lane.b32.xlu0 %v2246, 125
        %v2881 = vpop.permute.xlu0 %2880
        %2882 = vrot.lane.b32.xlu0 %v2247, 125
        %v2883 = vpop.permute.xlu0 %2882
        %2886 = vrot.lane.b32.xlu0 %v2246, 6
        %v2887 = vpop.permute.xlu0 %2886
        %2888 = vrot.lane.b32.xlu0 %v2247, 6
        %v2889 = vpop.permute.xlu0 %2888
        %v2892 = vsel %vm1061, %v2881, %v2887
        %v2893 = vsel %vm1061, %v2883, %v2889
        %v2894 = vsel %vm1065, %v2892, %v2878
        %v2895 = vsel %vm1065, %v2893, %v2879
        %v2896 = vsel %vm1069, %v2878, %v2892
        %v2897 = vsel %vm1069, %v2879, %v2893
        %v2899 = vsel %vm621, %v2895, 0
        %2901 = vmatprep.subr.mxu0 0.0
        %2902 = vmatpush1.msra.mxu0 %v2894
        %2903 = vmatprep.subr.mxu0 0.0
        %2904 = vmatpush1.msra.mxu0 %v2899
        %2905 = vmatprep.subr.mxu0 0.0
        %2906 = vmatpush1.msra.mxu0 0.0
        %2907 = vmatprep.subr.mxu0 0.0
        %2908 = vmatpush1.msra.mxu0 0.0
        %2909 = vmatprep.subr.mxu0 0.0
        %2910 = vmatpush1.msra.mxu0 0.0
        %2911 = vmatprep.subr.mxu0 0.0
        %2912 = vmatpush1.msra.mxu0 0.0
        %2913 = vmatprep.subr.mxu0 0.0
        %2914 = vmatpush1.msra.mxu0 0.0
        %2915 = vmatprep.subr.mxu0 0.0
        %2916 = vmatpush1.msra.mxu0 0.0
        %2917 = vmatprep.subr.mxu0 0.0
        %2918 = vmatpush1.msra.mxu0 0.0
        %2919 = vmatprep.subr.mxu0 0.0
        %2920 = vmatpush1.msra.mxu0 0.0
        %2921 = vmatprep.subr.mxu0 0.0
        %2922 = vmatpush1.msra.mxu0 0.0
        %2923 = vmatprep.subr.mxu0 0.0
        %2924 = vmatpush1.msra.mxu0 0.0
        %2925 = vmatprep.subr.mxu0 0.0
        %2926 = vmatpush1.msra.mxu0 0.0
        %2927 = vmatprep.subr.mxu0 0.0
        %2928 = vmatpush1.msra.mxu0 0.0
        %2929 = vmatprep.subr.mxu0 0.0
        %2930 = vmatpush1.msra.mxu0 0.0
        %2931 = vmatprep.subr.mxu0 0.0
        %2932 = vmatpush1.msra.mxu0 0.0
        %2933 = vmatprep.subr.mxu0 0.0
        %2934 = vmatpush1.msra.mxu0 0.0
        %2935 = vmatprep.subr.mxu0 0.0
        %2936 = vmatpush1.msra.mxu0 0.0
        %2937 = vmatprep.subr.mxu0 0.0
        %2938 = vmatpush1.msra.mxu0 0.0
        %2939 = vmatprep.subr.mxu0 0.0
        %2940 = vmatpush1.msra.mxu0 0.0
        %2941 = vmatprep.subr.mxu0 0.0
        %2942 = vmatpush1.msra.mxu0 0.0
        %2943 = vmatprep.subr.mxu0 0.0
        %2944 = vmatpush1.msra.mxu0 0.0
        %2945 = vmatprep.subr.mxu0 0.0
        %2946 = vmatpush1.msra.mxu0 0.0
        %2947 = vmatprep.subr.mxu0 0.0
        %2948 = vmatpush1.msra.mxu0 0.0
        %2949 = vmatprep.subr.mxu0 0.0
        %2950 = vmatpush1.msra.mxu0 0.0
        %2951 = vmatprep.subr.mxu0 0.0
        %2952 = vmatpush1.msra.mxu0 0.0
        %2953 = vmatprep.subr.mxu0 0.0
        %2954 = vmatpush1.msra.mxu0 0.0
        %2955 = vmatprep.subr.mxu0 0.0
        %2956 = vmatpush1.msra.mxu0 0.0
        %2957 = vmatprep.subr.mxu0 0.0
        %2958 = vmatpush1.msra.mxu0 0.0
        %2959 = vmatprep.subr.mxu0 0.0
        %2960 = vmatpush1.msra.mxu0 0.0
        %2961 = vmatprep.subr.mxu0 0.0
        %2962 = vmatpush1.msra.mxu0 0.0
        %2963 = vmatprep.subr.mxu0 0.0
        %2964 = vmatpush1.msra.mxu0 0.0
        %2965 = vmatprep.mubr.f32.mxu0 0.0
        %2966 = vmatmul.mubr.f32.gmra.mrb[0].mxu0 %v1762
        %v2967 = vpop.f32.mrb[0].mxu0
        %v2968 = vadd.f32 0.0, %v2967
        %v2969 = vpop.f32.mrb[0].mxu0
        %2970 = vmatprep.mubr.f32.mxu0 0.0
        %2971 = vmatmul.mubr.f32.gmra.mrb[0].mxu0 %v1765
        %v2972 = vpop.f32.mrb[0].mxu0
        %v2973 = vadd.f32 0.0, %v2972
        %v2974 = vpop.f32.mrb[0].mxu0
        %2975 = vmatprep.mubr.f32.mxu0 0.0
        %2976 = vmatmul.mubr.f32.gmra.mrb[0].mxu0 %v1768
        %v2977 = vpop.f32.mrb[0].mxu0
        %v2978 = vadd.f32 0.0, %v2977
        %v2979 = vpop.f32.mrb[0].mxu0
        %2980 = vmatprep.mubr.f32.mxu0 0.0
        %2981 = vmatmul.mubr.f32.gmra.mrb[0].mxu0 %v1771
        %v2982 = vpop.f32.mrb[0].mxu0
        %v2983 = vadd.f32 0.0, %v2982
        %v2984 = vpop.f32.mrb[0].mxu0
        %2985 = vdwg.mxu0
        %v2986 = vadd.f32 %v2860, %v2968
        %v2987 = vadd.f32 %v2861, %v2973
        %v2988 = vadd.f32 %v2862, %v2978
        %v2989 = vadd.f32 %v2863, %v2983
        %v2990 = vsel %vm621, %v2247, 0
        %2992 = vmatprep.subr.mxu0 0.0
        %2993 = vmatpush1.msra.mxu0 %v2246
        %2994 = vmatprep.subr.mxu0 0.0
        %2995 = vmatpush1.msra.mxu0 %v2990
        %2996 = vmatprep.subr.mxu0 0.0
        %2997 = vmatpush1.msra.mxu0 0.0
        %2998 = vmatprep.subr.mxu0 0.0
        %2999 = vmatpush1.msra.mxu0 0.0
        %3000 = vmatprep.subr.mxu0 0.0
        %3001 = vmatpush1.msra.mxu0 0.0
        %3002 = vmatprep.subr.mxu0 0.0
        %3003 = vmatpush1.msra.mxu0 0.0
        %3004 = vmatprep.subr.mxu0 0.0
        %3005 = vmatpush1.msra.mxu0 0.0
        %3006 = vmatprep.subr.mxu0 0.0
        %3007 = vmatpush1.msra.mxu0 0.0
        %3008 = vmatprep.subr.mxu0 0.0
        %3009 = vmatpush1.msra.mxu0 0.0
        %3010 = vmatprep.subr.mxu0 0.0
        %3011 = vmatpush1.msra.mxu0 0.0
        %3012 = vmatprep.subr.mxu0 0.0
        %3013 = vmatpush1.msra.mxu0 0.0
        %3014 = vmatprep.subr.mxu0 0.0
        %3015 = vmatpush1.msra.mxu0 0.0
        %3016 = vmatprep.subr.mxu0 0.0
        %3017 = vmatpush1.msra.mxu0 0.0
        %3018 = vmatprep.subr.mxu0 0.0
        %3019 = vmatpush1.msra.mxu0 0.0
        %3020 = vmatprep.subr.mxu0 0.0
        %3021 = vmatpush1.msra.mxu0 0.0
        %3022 = vmatprep.subr.mxu0 0.0
        %3023 = vmatpush1.msra.mxu0 0.0
        %3024 = vmatprep.subr.mxu0 0.0
        %3025 = vmatpush1.msra.mxu0 0.0
        %3026 = vmatprep.subr.mxu0 0.0
        %3027 = vmatpush1.msra.mxu0 0.0
        %3028 = vmatprep.subr.mxu0 0.0
        %3029 = vmatpush1.msra.mxu0 0.0
        %3030 = vmatprep.subr.mxu0 0.0
        %3031 = vmatpush1.msra.mxu0 0.0
        %3032 = vmatprep.subr.mxu0 0.0
        %3033 = vmatpush1.msra.mxu0 0.0
        %3034 = vmatprep.subr.mxu0 0.0
        %3035 = vmatpush1.msra.mxu0 0.0
        %3036 = vmatprep.subr.mxu0 0.0
        %3037 = vmatpush1.msra.mxu0 0.0
        %3038 = vmatprep.subr.mxu0 0.0
        %3039 = vmatpush1.msra.mxu0 0.0
        %3040 = vmatprep.subr.mxu0 0.0
        %3041 = vmatpush1.msra.mxu0 0.0
        %3042 = vmatprep.subr.mxu0 0.0
        %3043 = vmatpush1.msra.mxu0 0.0
        %3044 = vmatprep.subr.mxu0 0.0
        %3045 = vmatpush1.msra.mxu0 0.0
        %3046 = vmatprep.subr.mxu0 0.0
        %3047 = vmatpush1.msra.mxu0 0.0
        %3048 = vmatprep.subr.mxu0 0.0
        %3049 = vmatpush1.msra.mxu0 0.0
        %3050 = vmatprep.subr.mxu0 0.0
        %3051 = vmatpush1.msra.mxu0 0.0
        %3052 = vmatprep.subr.mxu0 0.0
        %3053 = vmatpush1.msra.mxu0 0.0
        %3054 = vmatprep.subr.mxu0 0.0
        %3055 = vmatpush1.msra.mxu0 0.0
        %3056 = vmatprep.mubr.f32.mxu0 0.0
        %3057 = vmatmul.mubr.f32.gmra.mrb[0].mxu0 %v1866
        %v3058 = vpop.f32.mrb[0].mxu0
        %v3059 = vadd.f32 0.0, %v3058
        %v3060 = vpop.f32.mrb[0].mxu0
        %3061 = vmatprep.mubr.f32.mxu0 0.0
        %3062 = vmatmul.mubr.f32.gmra.mrb[0].mxu0 %v1869
        %v3063 = vpop.f32.mrb[0].mxu0
        %v3064 = vadd.f32 0.0, %v3063
        %v3065 = vpop.f32.mrb[0].mxu0
        %3066 = vmatprep.mubr.f32.mxu0 0.0
        %3067 = vmatmul.mubr.f32.gmra.mrb[0].mxu0 %v1872
        %v3068 = vpop.f32.mrb[0].mxu0
        %v3069 = vadd.f32 0.0, %v3068
        %v3070 = vpop.f32.mrb[0].mxu0
        %3071 = vmatprep.mubr.f32.mxu0 0.0
        %3072 = vmatmul.mubr.f32.gmra.mrb[0].mxu0 %v1875
        %v3073 = vpop.f32.mrb[0].mxu0
        %v3074 = vadd.f32 0.0, %v3073
        %v3075 = vpop.f32.mrb[0].mxu0
        %3076 = vdwg.mxu0
        %v3077 = vadd.f32 %v2986, %v3059
        %v3078 = vadd.f32 %v2987, %v3064
        %v3079 = vadd.f32 %v2988, %v3069
        %v3080 = vadd.f32 %v2989, %v3074
        %v3082 = vsel %vm621, %v2897, 0
        %3084 = vmatprep.subr.mxu0 0.0
        %3085 = vmatpush1.msra.mxu0 %v2896
        %3086 = vmatprep.subr.mxu0 0.0
        %3087 = vmatpush1.msra.mxu0 %v3082
        %3088 = vmatprep.subr.mxu0 0.0
        %3089 = vmatpush1.msra.mxu0 0.0
        %3090 = vmatprep.subr.mxu0 0.0
        %3091 = vmatpush1.msra.mxu0 0.0
        %3092 = vmatprep.subr.mxu0 0.0
        %3093 = vmatpush1.msra.mxu0 0.0
        %3094 = vmatprep.subr.mxu0 0.0
        %3095 = vmatpush1.msra.mxu0 0.0
        %3096 = vmatprep.subr.mxu0 0.0
        %3097 = vmatpush1.msra.mxu0 0.0
        %3098 = vmatprep.subr.mxu0 0.0
        %3099 = vmatpush1.msra.mxu0 0.0
        %3100 = vmatprep.subr.mxu0 0.0
        %3101 = vmatpush1.msra.mxu0 0.0
        %3102 = vmatprep.subr.mxu0 0.0
        %3103 = vmatpush1.msra.mxu0 0.0
        %3104 = vmatprep.subr.mxu0 0.0
        %3105 = vmatpush1.msra.mxu0 0.0
        %3106 = vmatprep.subr.mxu0 0.0
        %3107 = vmatpush1.msra.mxu0 0.0
        %3108 = vmatprep.subr.mxu0 0.0
        %3109 = vmatpush1.msra.mxu0 0.0
        %3110 = vmatprep.subr.mxu0 0.0
        %3111 = vmatpush1.msra.mxu0 0.0
        %3112 = vmatprep.subr.mxu0 0.0
        %3113 = vmatpush1.msra.mxu0 0.0
        %3114 = vmatprep.subr.mxu0 0.0
        %3115 = vmatpush1.msra.mxu0 0.0
        %3116 = vmatprep.subr.mxu0 0.0
        %3117 = vmatpush1.msra.mxu0 0.0
        %3118 = vmatprep.subr.mxu0 0.0
        %3119 = vmatpush1.msra.mxu0 0.0
        %3120 = vmatprep.subr.mxu0 0.0
        %3121 = vmatpush1.msra.mxu0 0.0
        %3122 = vmatprep.subr.mxu0 0.0
        %3123 = vmatpush1.msra.mxu0 0.0
        %3124 = vmatprep.subr.mxu0 0.0
        %3125 = vmatpush1.msra.mxu0 0.0
        %3126 = vmatprep.subr.mxu0 0.0
        %3127 = vmatpush1.msra.mxu0 0.0
        %3128 = vmatprep.subr.mxu0 0.0
        %3129 = vmatpush1.msra.mxu0 0.0
        %3130 = vmatprep.subr.mxu0 0.0
        %3131 = vmatpush1.msra.mxu0 0.0
        %3132 = vmatprep.subr.mxu0 0.0
        %3133 = vmatpush1.msra.mxu0 0.0
        %3134 = vmatprep.subr.mxu0 0.0
        %3135 = vmatpush1.msra.mxu0 0.0
        %3136 = vmatprep.subr.mxu0 0.0
        %3137 = vmatpush1.msra.mxu0 0.0
        %3138 = vmatprep.subr.mxu0 0.0
        %3139 = vmatpush1.msra.mxu0 0.0
        %3140 = vmatprep.subr.mxu0 0.0
        %3141 = vmatpush1.msra.mxu0 0.0
        %3142 = vmatprep.subr.mxu0 0.0
        %3143 = vmatpush1.msra.mxu0 0.0
        %3144 = vmatprep.subr.mxu0 0.0
        %3145 = vmatpush1.msra.mxu0 0.0
        %3146 = vmatprep.subr.mxu0 0.0
        %3147 = vmatpush1.msra.mxu0 0.0
        %3148 = vmatprep.mubr.f32.mxu0 0.0
        %3149 = vmatmul.mubr.f32.gmra.mrb[0].mxu0 %v1969
        %v3150 = vpop.f32.mrb[0].mxu0
        %v3151 = vadd.f32 0.0, %v3150
        %v3152 = vpop.f32.mrb[0].mxu0
        %3153 = vmatprep.mubr.f32.mxu0 0.0
        %3154 = vmatmul.mubr.f32.gmra.mrb[0].mxu0 %v1972
        %v3155 = vpop.f32.mrb[0].mxu0
        %v3156 = vadd.f32 0.0, %v3155
        %v3157 = vpop.f32.mrb[0].mxu0
        %3158 = vmatprep.mubr.f32.mxu0 0.0
        %3159 = vmatmul.mubr.f32.gmra.mrb[0].mxu0 %v1975
        %v3160 = vpop.f32.mrb[0].mxu0
        %v3161 = vadd.f32 0.0, %v3160
        %v3162 = vpop.f32.mrb[0].mxu0
        %3163 = vmatprep.mubr.f32.mxu0 0.0
        %3164 = vmatmul.mubr.f32.gmra.mrb[0].mxu0 %v1978
        %v3165 = vpop.f32.mrb[0].mxu0
        %v3166 = vadd.f32 0.0, %v3165
        %v3167 = vpop.f32.mrb[0].mxu0
        %3168 = vdwg.mxu0
        %v3169 = vadd.f32 %v3077, %v3151
        %v3170 = vadd.f32 %v3078, %v3156
        %v3171 = vadd.f32 %v3079, %v3161
        %v3172 = vadd.f32 %v3080, %v3166
        %v3173 = vmul.f32 %v3169, 0.01
        %v3174 = vmul.f32 %v3170, 0.01
        %v3175 = vmul.f32 %v3171, 0.01
        %v3176 = vmul.f32 %v3172, 0.01
        %v3177 = vmax.f32 %v3169, %v3173
        %v3178 = vmax.f32 %v3170, %v3174
        %v3179 = vmax.f32 %v3171, %v3175
        %v3180 = vmax.f32 %v3172, %v3176
        %3181 = vmatprep.subr.mxu0 0.0
        %3182 = vmatpush1.msra.mxu0 %v3177
        %3183 = vmatprep.subr.mxu0 0.0
        %3184 = vmatpush1.msra.mxu0 %v3178
        %3185 = vmatprep.subr.mxu0 0.0
        %3186 = vmatpush1.msra.mxu0 %v3179
        %3187 = vmatprep.subr.mxu0 0.0
        %3188 = vmatpush1.msra.mxu0 %v3180
        %3189 = vmatprep.subr.mxu0 0.0
        %3190 = vmatpush1.msra.mxu0 0.0
        %3191 = vmatprep.subr.mxu0 0.0
        %3192 = vmatpush1.msra.mxu0 0.0
        %3193 = vmatprep.subr.mxu0 0.0
        %3194 = vmatpush1.msra.mxu0 0.0
        %3195 = vmatprep.subr.mxu0 0.0
        %3196 = vmatpush1.msra.mxu0 0.0
        %3197 = vmatprep.subr.mxu0 0.0
        %3198 = vmatpush1.msra.mxu0 0.0
        %3199 = vmatprep.subr.mxu0 0.0
        %3200 = vmatpush1.msra.mxu0 0.0
        %3201 = vmatprep.subr.mxu0 0.0
        %3202 = vmatpush1.msra.mxu0 0.0
        %3203 = vmatprep.subr.mxu0 0.0
        %3204 = vmatpush1.msra.mxu0 0.0
        %3205 = vmatprep.subr.mxu0 0.0
        %3206 = vmatpush1.msra.mxu0 0.0
        %3207 = vmatprep.subr.mxu0 0.0
        %3208 = vmatpush1.msra.mxu0 0.0
        %3209 = vmatprep.subr.mxu0 0.0
        %3210 = vmatpush1.msra.mxu0 0.0
        %3211 = vmatprep.subr.mxu0 0.0
        %3212 = vmatpush1.msra.mxu0 0.0
        %3213 = vmatprep.subr.mxu0 0.0
        %3214 = vmatpush1.msra.mxu0 0.0
        %3215 = vmatprep.subr.mxu0 0.0
        %3216 = vmatpush1.msra.mxu0 0.0
        %3217 = vmatprep.subr.mxu0 0.0
        %3218 = vmatpush1.msra.mxu0 0.0
        %3219 = vmatprep.subr.mxu0 0.0
        %3220 = vmatpush1.msra.mxu0 0.0
        %3221 = vmatprep.subr.mxu0 0.0
        %3222 = vmatpush1.msra.mxu0 0.0
        %3223 = vmatprep.subr.mxu0 0.0
        %3224 = vmatpush1.msra.mxu0 0.0
        %3225 = vmatprep.subr.mxu0 0.0
        %3226 = vmatpush1.msra.mxu0 0.0
        %3227 = vmatprep.subr.mxu0 0.0
        %3228 = vmatpush1.msra.mxu0 0.0
        %3229 = vmatprep.subr.mxu0 0.0
        %3230 = vmatpush1.msra.mxu0 0.0
        %3231 = vmatprep.subr.mxu0 0.0
        %3232 = vmatpush1.msra.mxu0 0.0
        %3233 = vmatprep.subr.mxu0 0.0
        %3234 = vmatpush1.msra.mxu0 0.0
        %3235 = vmatprep.subr.mxu0 0.0
        %3236 = vmatpush1.msra.mxu0 0.0
        %3237 = vmatprep.subr.mxu0 0.0
        %3238 = vmatpush1.msra.mxu0 0.0
        %3239 = vmatprep.subr.mxu0 0.0
        %3240 = vmatpush1.msra.mxu0 0.0
        %3241 = vmatprep.subr.mxu0 0.0
        %3242 = vmatpush1.msra.mxu0 0.0
        %3243 = vmatprep.subr.mxu0 0.0
        %3244 = vmatpush1.msra.mxu0 0.0
        %3245 = vmatprep.mubr.f32.mxu0 0.0
        %3246 = vmatmul.mubr.f32.gmra.mrb[0].mxu0 %v2087
        %v3247 = vpop.f32.mrb[0].mxu0
        %v3248 = vadd.f32 %v2083, %v3247
        %v3249 = vpop.f32.mrb[0].mxu0
        %3250 = vdwg.mxu0
        %v3251 = vadd.f32 %v2159, %v3248
        %3252 = vst.msk [vmem:[%s530] sm:$0xff] %vm918, %v3251
        %p3253 = scmp.lt.s32.totalorder %s28, 1
        %s3254 = scalar_select %p3253, %s28, 1
        %s3255 = smul.addr %s3254, 8
        %s3256 = scalar_lea.vmem %s16, %s3255
        // Predicated region
        $region89: #{_lambda_.2} parent=83 // pred_check
          %p3257 = pneg %p387
        $region90: #{_lambda_.2} parent=83 // pred_check_branch
          %3259 = sbr.rel (%p3257) target = $region92
        $region91: #{_lambda_.2} parent=83 // pred_region
          _
        $region92: #{_lambda_.2} parent=83 // pred_fallthru
          _
      $region84: #{_lambda_.2} parent=5 // pred_fallthru
        _
      %p3260 = scmp.le.s32.totalorder 2, %s23
      // Predicated region
      $region93: #{_lambda_.2} parent=5 // pred_check
        %p3261 = pneg %p3260
      $region94: #{_lambda_.2} parent=5 // pred_check_branch
        %3263 = sbr.rel (%p3261) target = $region96
      $region95: #{_lambda_.2} parent=5 // pred_region
        %s3264 = ssub.s32 %s23, 2
        // Predicated region
        $region97: #{_lambda_.2} parent=95 // pred_check
          %p3265 = pneg %p393
        $region98: #{_lambda_.2} parent=95 // pred_check_branch
          %3267 = sbr.rel (%p3265) target = $region100
        $region99: #{_lambda_.2} parent=95 // pred_region
          %p3268 = scmp.lt.s32.totalorder %s29, 1
          %s3269 = scalar_select %p3268, %s29, 1
          %s3270 = smul.addr %s3269, 8
          %s3271 = scalar_lea.vmem %s16, %s3270
        $region100: #{_lambda_.2} parent=95 // pred_fallthru
          _
      $region96: #{_lambda_.2} parent=5 // pred_fallthru
        _
    $region6: #{_lambda_.2} parent=1 // loop_footer
      %s27 = sadd.s32 1, %s23
    $region7: #{_lambda_.2} parent=1 // loop_footer_branch
      %22 = sbr.rel target = $region3
    $region8: #{_lambda_.2} parent=1 // loop_exit
      _
    %3272 = vsyncpa [#allocation3], 1
    %s3273 = scalar_lea.sflag [#allocation3], 1
    %3274 = vsyncpa %s3273, 1

// kernel: _lambda_.3
$region0: #{_lambda_.3}
  #allocation0 [shape = 'u32[]', space=smem, size = 0x4, offset = 0x4, fixed_abs, tag = 'smem constant byte address 0x4 - core index']
  #allocation1 [shape = 'u32[144,128]{1,0:T(1,128)}', space=vmem, size = 0x12000, scoped, tag = 'internal scratch']
  %s0 = inlined_call_operand.vmem [shape: f32[2], index: 0, kind: input, shape index: {}]
  %s1 = inlined_call_operand.vmem [shape: f32[2,4,256], index: 1, kind: input, shape index: {}]
  %s2 = inlined_call_operand.vmem [shape: f32[2,2,256], index: 2, kind: input, shape index: {}]
  %s3 = inlined_call_operand.vmem [shape: f32[16,3], index: 3, kind: input, shape index: {}]
  %s4 = inlined_call_operand.vmem [shape: f32[16,1], index: 4, kind: input, shape index: {}]
  %s5 = inlined_call_operand.vmem [shape: f32[16,16], index: 5, kind: input, shape index: {}]
  %s6 = inlined_call_operand.vmem [shape: f32[16,1], index: 6, kind: input, shape index: {}]
  %s7 = inlined_call_operand.vmem [shape: f32[3,16], index: 7, kind: input, shape index: {}]
  %s8 = inlined_call_operand.vmem [shape: f32[3,1], index: 8, kind: input, shape index: {}]
  %s9 = inlined_call_operand.vmem [shape: f32[4,1], index: 9, kind: input, shape index: {}]
  %s10 = inlined_call_operand.vmem [shape: f32[4,1], index: 10, kind: input, shape index: {}]
  %s11 = inlined_call_operand.vmem [shape: f32[3,1], index: 11, kind: input, shape index: {}]
  %s12 = inlined_call_operand.vmem [shape: f32[3,1], index: 12, kind: input, shape index: {}]
  %s13 = inlined_call_operand.vmem [shape: f32[9,32,7], index: 13, kind: input, shape index: {}]
  %s14 = inlined_call_operand.vmem [shape: f32[32,1], index: 14, kind: input, shape index: {}]
  %s15 = inlined_call_operand.vmem [shape: f32[4,32], index: 15, kind: input, shape index: {}]
  %s16 = inlined_call_operand.vmem [shape: f32[4,1], index: 16, kind: input, shape index: {}]
  %s17 = inlined_call_operand.vmem [shape: f32[2,4,256], index: 17, kind: output, shape index: {}]
  %s18 = sld [smem:[#allocation0]]
  $region105: #{_lambda_.3} parent=0
    _
  %s20 = ssub.s32 1, %s18
  %s21 = scalar_select 0, %s20, %s18
  $region1: #{_lambda_.3} parent=0
    #allocation2 [shape = 'u8[512]{0}', space=smem, size = 0x200, scoped, tag = 'input window, operand 0, single buffered']
    #allocation3 [shape = 's32[2]{0}', space=sflag, size = 0x8, scoped, tag = 'scoped memory for _lambda_.3']
    %22 = vsyncpa [#allocation3], 0
    loop: start=0, step=1, limit=4
    $region2: #{_lambda_.3} parent=1 // loop_pre_header
      _
    $region3: #{_lambda_.3} parent=1 // loop_header
      %s24 = sphi 0, %s28
      %p25 = scmp.ge.s32.totalorder %s24, 4
      %s32 = sphi 0, %s32
      %s34 = sphi 0, %s32
      %s35 = sphi 0, %s34
      %s49 = sphi 0, %s35
      %s55 = sphi 0, %s57
      %s58 = sphi 0, %s55
      %s59 = sphi 0, %s58
      %s75 = sphi 0, %s59
      %s81 = sphi 0, %s83
      %s84 = sphi 0, %s81
      %s85 = sphi 0, %s84
      %s101 = sphi 0, %s85
      %s105 = sphi 0, %s105
      %s107 = sphi 0, %s105
      %s108 = sphi 0, %s107
      %s122 = sphi 0, %s108
      %s126 = sphi 0, %s126
      %s128 = sphi 0, %s126
      %s129 = sphi 0, %s128
      %s143 = sphi 0, %s129
      %s147 = sphi 0, %s147
      %s149 = sphi 0, %s147
      %s150 = sphi 0, %s149
      %s164 = sphi 0, %s150
      %s168 = sphi 0, %s168
      %s170 = sphi 0, %s168
      %s171 = sphi 0, %s170
      %s185 = sphi 0, %s171
      %s189 = sphi 0, %s189
      %s191 = sphi 0, %s189
      %s192 = sphi 0, %s191
      %s206 = sphi 0, %s192
      %s210 = sphi 0, %s210
      %s212 = sphi 0, %s210
      %s213 = sphi 0, %s212
      %s227 = sphi 0, %s213
      %s231 = sphi 0, %s231
      %s233 = sphi 0, %s231
      %s234 = sphi 0, %s233
      %s248 = sphi 0, %s234
      %s252 = sphi 0, %s252
      %s254 = sphi 0, %s252
      %s255 = sphi 0, %s254
      %s269 = sphi 0, %s255
      %s273 = sphi 0, %s273
      %s275 = sphi 0, %s273
      %s276 = sphi 0, %s275
      %s290 = sphi 0, %s276
      %s294 = sphi 0, %s294
      %s296 = sphi 0, %s294
      %s297 = sphi 0, %s296
      %s311 = sphi 0, %s297
      %s315 = sphi 0, %s315
      %s317 = sphi 0, %s315
      %s318 = sphi 0, %s317
      %s332 = sphi 0, %s318
      %s336 = sphi 0, %s336
      %s338 = sphi 0, %s336
      %s339 = sphi 0, %s338
      %s353 = sphi 0, %s339
      %s357 = sphi 0, %s357
      %s359 = sphi 0, %s357
      %s360 = sphi 0, %s359
      %s374 = sphi 0, %s360
      %s378 = sphi 0, %s378
      %s380 = sphi 0, %s378
      %s381 = sphi 0, %s380
      %s395 = sphi 0, %s381
      %s401 = sphi 0, %s403
      %s404 = sphi 0, %s401
      %s405 = sphi 0, %s404
      %s421 = sphi 0, %s405
    $region4: #{_lambda_.3} parent=1 // loop_header_branch
      %27 = sbr.rel (%p25) target = $region8
    $region5: #{_lambda_.3} parent=1 // loop_body
      %s29 = ssub.s32 %s24, 1
      %s30 = ssub.s32 %s24, 2
      %s31 = sadd.s32 %s24, 1
      %s33 = sadd.s32 %s32, 1
      %p36 = scmp.eq.s32.totalorder %s24, 1
      %p37 = scmp.ne.s32.totalorder %s32, %s34
      %p38 = scmp.eq.s32.totalorder %s24, 0
      %p39 = por %p37, %p38
      %p40 = scmp.ne.s32.totalorder %s32, %s34
      %p41 = scmp.eq.s32.totalorder %s29, 1
      %p42 = por %p40, %p41
      %p43 = scmp.ne.s32.totalorder %s34, %s35
      %p44 = scmp.eq.s32.totalorder %s29, 0
      %p45 = por %p43, %p44
      %p46 = scmp.ne.s32.totalorder %s34, %s35
      %p47 = scmp.eq.s32.totalorder %s30, 1
      %p48 = por %p46, %p47
      %p50 = scmp.ne.s32.totalorder %s35, %s49
      %p51 = scmp.eq.s32.totalorder %s30, 0
      %p52 = por %p50, %p51
      %s53 = ssub.s32 %s24, %s31
      %p54 = scmp.eq.s32.totalorder %s53, 0
      %s56 = sadd.s32 %s55, 1
      %s57 = scalar_select %p54, %s55, %s56
      %p60 = pneg %p54
      %p61 = scmp.eq.s32.totalorder %s24, 1
      %p62 = por %p60, %p61
      %p63 = scmp.ne.s32.totalorder %s55, %s58
      %p64 = scmp.eq.s32.totalorder %s24, 0
      %p65 = por %p63, %p64
      %p66 = scmp.ne.s32.totalorder %s55, %s58
      %p67 = scmp.eq.s32.totalorder %s29, 1
      %p68 = por %p66, %p67
      %p69 = scmp.ne.s32.totalorder %s58, %s59
      %p70 = scmp.eq.s32.totalorder %s29, 0
      %p71 = por %p69, %p70
      %p72 = scmp.ne.s32.totalorder %s58, %s59
      %p73 = scmp.eq.s32.totalorder %s30, 1
      %p74 = por %p72, %p73
      %p76 = scmp.ne.s32.totalorder %s59, %s75
      %p77 = scmp.eq.s32.totalorder %s30, 0
      %p78 = por %p76, %p77
      %s79 = ssub.s32 %s24, %s31
      %p80 = scmp.eq.s32.totalorder %s79, 0
      %s82 = sadd.s32 %s81, 1
      %s83 = scalar_select %p80, %s81, %s82
      %p86 = pneg %p80
      %p87 = scmp.eq.s32.totalorder %s24, 1
      %p88 = por %p86, %p87
      %p89 = scmp.ne.s32.totalorder %s81, %s84
      %p90 = scmp.eq.s32.totalorder %s24, 0
      %p91 = por %p89, %p90
      %p92 = scmp.ne.s32.totalorder %s81, %s84
      %p93 = scmp.eq.s32.totalorder %s29, 1
      %p94 = por %p92, %p93
      %p95 = scmp.ne.s32.totalorder %s84, %s85
      %p96 = scmp.eq.s32.totalorder %s29, 0
      %p97 = por %p95, %p96
      %p98 = scmp.ne.s32.totalorder %s84, %s85
      %p99 = scmp.eq.s32.totalorder %s30, 1
      %p100 = por %p98, %p99
      %p102 = scmp.ne.s32.totalorder %s85, %s101
      %p103 = scmp.eq.s32.totalorder %s30, 0
      %p104 = por %p102, %p103
      %s106 = sadd.s32 %s105, 1
      %p109 = scmp.eq.s32.totalorder %s24, 1
      %p110 = scmp.ne.s32.totalorder %s105, %s107
      %p111 = scmp.eq.s32.totalorder %s24, 0
      %p112 = por %p110, %p111
      %p113 = scmp.ne.s32.totalorder %s105, %s107
      %p114 = scmp.eq.s32.totalorder %s29, 1
      %p115 = por %p113, %p114
      %p116 = scmp.ne.s32.totalorder %s107, %s108
      %p117 = scmp.eq.s32.totalorder %s29, 0
      %p118 = por %p116, %p117
      %p119 = scmp.ne.s32.totalorder %s107, %s108
      %p120 = scmp.eq.s32.totalorder %s30, 1
      %p121 = por %p119, %p120
      %p123 = scmp.ne.s32.totalorder %s108, %s122
      %p124 = scmp.eq.s32.totalorder %s30, 0
      %p125 = por %p123, %p124
      %s127 = sadd.s32 %s126, 1
      %p130 = scmp.eq.s32.totalorder %s24, 1
      %p131 = scmp.ne.s32.totalorder %s126, %s128
      %p132 = scmp.eq.s32.totalorder %s24, 0
      %p133 = por %p131, %p132
      %p134 = scmp.ne.s32.totalorder %s126, %s128
      %p135 = scmp.eq.s32.totalorder %s29, 1
      %p136 = por %p134, %p135
      %p137 = scmp.ne.s32.totalorder %s128, %s129
      %p138 = scmp.eq.s32.totalorder %s29, 0
      %p139 = por %p137, %p138
      %p140 = scmp.ne.s32.totalorder %s128, %s129
      %p141 = scmp.eq.s32.totalorder %s30, 1
      %p142 = por %p140, %p141
      %p144 = scmp.ne.s32.totalorder %s129, %s143
      %p145 = scmp.eq.s32.totalorder %s30, 0
      %p146 = por %p144, %p145
      %s148 = sadd.s32 %s147, 1
      %p151 = scmp.eq.s32.totalorder %s24, 1
      %p152 = scmp.ne.s32.totalorder %s147, %s149
      %p153 = scmp.eq.s32.totalorder %s24, 0
      %p154 = por %p152, %p153
      %p155 = scmp.ne.s32.totalorder %s147, %s149
      %p156 = scmp.eq.s32.totalorder %s29, 1
      %p157 = por %p155, %p156
      %p158 = scmp.ne.s32.totalorder %s149, %s150
      %p159 = scmp.eq.s32.totalorder %s29, 0
      %p160 = por %p158, %p159
      %p161 = scmp.ne.s32.totalorder %s149, %s150
      %p162 = scmp.eq.s32.totalorder %s30, 1
      %p163 = por %p161, %p162
      %p165 = scmp.ne.s32.totalorder %s150, %s164
      %p166 = scmp.eq.s32.totalorder %s30, 0
      %p167 = por %p165, %p166
      %s169 = sadd.s32 %s168, 1
      %p172 = scmp.eq.s32.totalorder %s24, 1
      %p173 = scmp.ne.s32.totalorder %s168, %s170
      %p174 = scmp.eq.s32.totalorder %s24, 0
      %p175 = por %p173, %p174
      %p176 = scmp.ne.s32.totalorder %s168, %s170
      %p177 = scmp.eq.s32.totalorder %s29, 1
      %p178 = por %p176, %p177
      %p179 = scmp.ne.s32.totalorder %s170, %s171
      %p180 = scmp.eq.s32.totalorder %s29, 0
      %p181 = por %p179, %p180
      %p182 = scmp.ne.s32.totalorder %s170, %s171
      %p183 = scmp.eq.s32.totalorder %s30, 1
      %p184 = por %p182, %p183
      %p186 = scmp.ne.s32.totalorder %s171, %s185
      %p187 = scmp.eq.s32.totalorder %s30, 0
      %p188 = por %p186, %p187
      %s190 = sadd.s32 %s189, 1
      %p193 = scmp.eq.s32.totalorder %s24, 1
      %p194 = scmp.ne.s32.totalorder %s189, %s191
      %p195 = scmp.eq.s32.totalorder %s24, 0
      %p196 = por %p194, %p195
      %p197 = scmp.ne.s32.totalorder %s189, %s191
      %p198 = scmp.eq.s32.totalorder %s29, 1
      %p199 = por %p197, %p198
      %p200 = scmp.ne.s32.totalorder %s191, %s192
      %p201 = scmp.eq.s32.totalorder %s29, 0
      %p202 = por %p200, %p201
      %p203 = scmp.ne.s32.totalorder %s191, %s192
      %p204 = scmp.eq.s32.totalorder %s30, 1
      %p205 = por %p203, %p204
      %p207 = scmp.ne.s32.totalorder %s192, %s206
      %p208 = scmp.eq.s32.totalorder %s30, 0
      %p209 = por %p207, %p208
      %s211 = sadd.s32 %s210, 1
      %p214 = scmp.eq.s32.totalorder %s24, 1
      %p215 = scmp.ne.s32.totalorder %s210, %s212
      %p216 = scmp.eq.s32.totalorder %s24, 0
      %p217 = por %p215, %p216
      %p218 = scmp.ne.s32.totalorder %s210, %s212
      %p219 = scmp.eq.s32.totalorder %s29, 1
      %p220 = por %p218, %p219
      %p221 = scmp.ne.s32.totalorder %s212, %s213
      %p222 = scmp.eq.s32.totalorder %s29, 0
      %p223 = por %p221, %p222
      %p224 = scmp.ne.s32.totalorder %s212, %s213
      %p225 = scmp.eq.s32.totalorder %s30, 1
      %p226 = por %p224, %p225
      %p228 = scmp.ne.s32.totalorder %s213, %s227
      %p229 = scmp.eq.s32.totalorder %s30, 0
      %p230 = por %p228, %p229
      %s232 = sadd.s32 %s231, 1
      %p235 = scmp.eq.s32.totalorder %s24, 1
      %p236 = scmp.ne.s32.totalorder %s231, %s233
      %p237 = scmp.eq.s32.totalorder %s24, 0
      %p238 = por %p236, %p237
      %p239 = scmp.ne.s32.totalorder %s231, %s233
      %p240 = scmp.eq.s32.totalorder %s29, 1
      %p241 = por %p239, %p240
      %p242 = scmp.ne.s32.totalorder %s233, %s234
      %p243 = scmp.eq.s32.totalorder %s29, 0
      %p244 = por %p242, %p243
      %p245 = scmp.ne.s32.totalorder %s233, %s234
      %p246 = scmp.eq.s32.totalorder %s30, 1
      %p247 = por %p245, %p246
      %p249 = scmp.ne.s32.totalorder %s234, %s248
      %p250 = scmp.eq.s32.totalorder %s30, 0
      %p251 = por %p249, %p250
      %s253 = sadd.s32 %s252, 1
      %p256 = scmp.eq.s32.totalorder %s24, 1
      %p257 = scmp.ne.s32.totalorder %s252, %s254
      %p258 = scmp.eq.s32.totalorder %s24, 0
      %p259 = por %p257, %p258
      %p260 = scmp.ne.s32.totalorder %s252, %s254
      %p261 = scmp.eq.s32.totalorder %s29, 1
      %p262 = por %p260, %p261
      %p263 = scmp.ne.s32.totalorder %s254, %s255
      %p264 = scmp.eq.s32.totalorder %s29, 0
      %p265 = por %p263, %p264
      %p266 = scmp.ne.s32.totalorder %s254, %s255
      %p267 = scmp.eq.s32.totalorder %s30, 1
      %p268 = por %p266, %p267
      %p270 = scmp.ne.s32.totalorder %s255, %s269
      %p271 = scmp.eq.s32.totalorder %s30, 0
      %p272 = por %p270, %p271
      %s274 = sadd.s32 %s273, 1
      %p277 = scmp.eq.s32.totalorder %s24, 1
      %p278 = scmp.ne.s32.totalorder %s273, %s275
      %p279 = scmp.eq.s32.totalorder %s24, 0
      %p280 = por %p278, %p279
      %p281 = scmp.ne.s32.totalorder %s273, %s275
      %p282 = scmp.eq.s32.totalorder %s29, 1
      %p283 = por %p281, %p282
      %p284 = scmp.ne.s32.totalorder %s275, %s276
      %p285 = scmp.eq.s32.totalorder %s29, 0
      %p286 = por %p284, %p285
      %p287 = scmp.ne.s32.totalorder %s275, %s276
      %p288 = scmp.eq.s32.totalorder %s30, 1
      %p289 = por %p287, %p288
      %p291 = scmp.ne.s32.totalorder %s276, %s290
      %p292 = scmp.eq.s32.totalorder %s30, 0
      %p293 = por %p291, %p292
      %s295 = sadd.s32 %s294, 1
      %p298 = scmp.eq.s32.totalorder %s24, 1
      %p299 = scmp.ne.s32.totalorder %s294, %s296
      %p300 = scmp.eq.s32.totalorder %s24, 0
      %p301 = por %p299, %p300
      %p302 = scmp.ne.s32.totalorder %s294, %s296
      %p303 = scmp.eq.s32.totalorder %s29, 1
      %p304 = por %p302, %p303
      %p305 = scmp.ne.s32.totalorder %s296, %s297
      %p306 = scmp.eq.s32.totalorder %s29, 0
      %p307 = por %p305, %p306
      %p308 = scmp.ne.s32.totalorder %s296, %s297
      %p309 = scmp.eq.s32.totalorder %s30, 1
      %p310 = por %p308, %p309
      %p312 = scmp.ne.s32.totalorder %s297, %s311
      %p313 = scmp.eq.s32.totalorder %s30, 0
      %p314 = por %p312, %p313
      %s316 = sadd.s32 %s315, 1
      %p319 = scmp.eq.s32.totalorder %s24, 1
      %p320 = scmp.ne.s32.totalorder %s315, %s317
      %p321 = scmp.eq.s32.totalorder %s24, 0
      %p322 = por %p320, %p321
      %p323 = scmp.ne.s32.totalorder %s315, %s317
      %p324 = scmp.eq.s32.totalorder %s29, 1
      %p325 = por %p323, %p324
      %p326 = scmp.ne.s32.totalorder %s317, %s318
      %p327 = scmp.eq.s32.totalorder %s29, 0
      %p328 = por %p326, %p327
      %p329 = scmp.ne.s32.totalorder %s317, %s318
      %p330 = scmp.eq.s32.totalorder %s30, 1
      %p331 = por %p329, %p330
      %p333 = scmp.ne.s32.totalorder %s318, %s332
      %p334 = scmp.eq.s32.totalorder %s30, 0
      %p335 = por %p333, %p334
      %s337 = sadd.s32 %s336, 1
      %p340 = scmp.eq.s32.totalorder %s24, 1
      %p341 = scmp.ne.s32.totalorder %s336, %s338
      %p342 = scmp.eq.s32.totalorder %s24, 0
      %p343 = por %p341, %p342
      %p344 = scmp.ne.s32.totalorder %s336, %s338
      %p345 = scmp.eq.s32.totalorder %s29, 1
      %p346 = por %p344, %p345
      %p347 = scmp.ne.s32.totalorder %s338, %s339
      %p348 = scmp.eq.s32.totalorder %s29, 0
      %p349 = por %p347, %p348
      %p350 = scmp.ne.s32.totalorder %s338, %s339
      %p351 = scmp.eq.s32.totalorder %s30, 1
      %p352 = por %p350, %p351
      %p354 = scmp.ne.s32.totalorder %s339, %s353
      %p355 = scmp.eq.s32.totalorder %s30, 0
      %p356 = por %p354, %p355
      %s358 = sadd.s32 %s357, 1
      %p361 = scmp.eq.s32.totalorder %s24, 1
      %p362 = scmp.ne.s32.totalorder %s357, %s359
      %p363 = scmp.eq.s32.totalorder %s24, 0
      %p364 = por %p362, %p363
      %p365 = scmp.ne.s32.totalorder %s357, %s359
      %p366 = scmp.eq.s32.totalorder %s29, 1
      %p367 = por %p365, %p366
      %p368 = scmp.ne.s32.totalorder %s359, %s360
      %p369 = scmp.eq.s32.totalorder %s29, 0
      %p370 = por %p368, %p369
      %p371 = scmp.ne.s32.totalorder %s359, %s360
      %p372 = scmp.eq.s32.totalorder %s30, 1
      %p373 = por %p371, %p372
      %p375 = scmp.ne.s32.totalorder %s360, %s374
      %p376 = scmp.eq.s32.totalorder %s30, 0
      %p377 = por %p375, %p376
      %s379 = sadd.s32 %s378, 1
      %p382 = scmp.eq.s32.totalorder %s24, 1
      %p383 = scmp.ne.s32.totalorder %s378, %s380
      %p384 = scmp.eq.s32.totalorder %s24, 0
      %p385 = por %p383, %p384
      %p386 = scmp.ne.s32.totalorder %s378, %s380
      %p387 = scmp.eq.s32.totalorder %s29, 1
      %p388 = por %p386, %p387
      %p389 = scmp.ne.s32.totalorder %s380, %s381
      %p390 = scmp.eq.s32.totalorder %s29, 0
      %p391 = por %p389, %p390
      %p392 = scmp.ne.s32.totalorder %s380, %s381
      %p393 = scmp.eq.s32.totalorder %s30, 1
      %p394 = por %p392, %p393
      %p396 = scmp.ne.s32.totalorder %s381, %s395
      %p397 = scmp.eq.s32.totalorder %s30, 0
      %p398 = por %p396, %p397
      %s399 = ssub.s32 %s24, %s31
      %p400 = scmp.eq.s32.totalorder %s399, 0
      %s402 = sadd.s32 %s401, 1
      %s403 = scalar_select %p400, %s401, %s402
      %p406 = pneg %p400
      %p407 = scmp.eq.s32.totalorder %s24, 1
      %p408 = por %p406, %p407
      %p409 = scmp.ne.s32.totalorder %s401, %s404
      %p410 = scmp.eq.s32.totalorder %s24, 0
      %p411 = por %p409, %p410
      %p412 = scmp.ne.s32.totalorder %s401, %s404
      %p413 = scmp.eq.s32.totalorder %s29, 1
      %p414 = por %p412, %p413
      %p415 = scmp.ne.s32.totalorder %s404, %s405
      %p416 = scmp.eq.s32.totalorder %s29, 0
      %p417 = por %p415, %p416
      %p418 = scmp.ne.s32.totalorder %s404, %s405
      %p419 = scmp.eq.s32.totalorder %s30, 1
      %p420 = por %p418, %p419
      %p422 = scmp.ne.s32.totalorder %s405, %s421
      %p423 = scmp.eq.s32.totalorder %s30, 0
      %p424 = por %p422, %p423
      %p425 = scmp.le.s32.totalorder 1, %s24
      %p426 = scmp.lt.s32.totalorder %s24, 3
      %p427 = pnand %p425, %p426
      %p428 = pneg %p427
      // Predicated region
      $region9: #{_lambda_.3} parent=5 // pred_check
        _
      $region10: #{_lambda_.3} parent=5 // pred_check_branch
        %430 = sbr.rel (%p427) target = $region12
      $region11: #{_lambda_.3} parent=5 // pred_region
        %s431 = ssub.s32 %s24, 1
        // Predicated region
        $region13: #{_lambda_.3} parent=11 // pred_check
          %p432 = pneg %p45
        $region14: #{_lambda_.3} parent=11 // pred_check_branch
          %434 = sbr.rel (%p432) target = $region16
        $region15: #{_lambda_.3} parent=11 // pred_region
          %s436 = ssub.s32 16, 16
          %437 = vsyncadd [#allocation3], %s436
          %s439 = sshll.u32 %s0, 4
          %s440 = int_to_ptr.vmem [resolvable:$true] %s439
          %442 = dma.vmem_to_smem %s440, 16, [#allocation2], [#allocation3]
        $region16: #{_lambda_.3} parent=11 // pred_fallthru
          _
        // Predicated region
        $region17: #{_lambda_.3} parent=11 // pred_check
          %p443 = pneg %p118
        $region18: #{_lambda_.3} parent=11 // pred_check_branch
          %445 = sbr.rel (%p443) target = $region20
        $region19: #{_lambda_.3} parent=11 // pred_region
          _
        $region20: #{_lambda_.3} parent=11 // pred_fallthru
          _
        // Predicated region
        $region21: #{_lambda_.3} parent=11 // pred_check
          %p446 = pneg %p139
        $region22: #{_lambda_.3} parent=11 // pred_check_branch
          %448 = sbr.rel (%p446) target = $region24
        $region23: #{_lambda_.3} parent=11 // pred_region
          _
        $region24: #{_lambda_.3} parent=11 // pred_fallthru
          _
        // Predicated region
        $region25: #{_lambda_.3} parent=11 // pred_check
          %p449 = pneg %p160
        $region26: #{_lambda_.3} parent=11 // pred_check_branch
          %451 = sbr.rel (%p449) target = $region28
        $region27: #{_lambda_.3} parent=11 // pred_region
          _
        $region28: #{_lambda_.3} parent=11 // pred_fallthru
          _
        // Predicated region
        $region29: #{_lambda_.3} parent=11 // pred_check
          %p452 = pneg %p181
        $region30: #{_lambda_.3} parent=11 // pred_check_branch
          %454 = sbr.rel (%p452) target = $region32
        $region31: #{_lambda_.3} parent=11 // pred_region
          _
        $region32: #{_lambda_.3} parent=11 // pred_fallthru
          _
        // Predicated region
        $region33: #{_lambda_.3} parent=11 // pred_check
          %p455 = pneg %p202
        $region34: #{_lambda_.3} parent=11 // pred_check_branch
          %457 = sbr.rel (%p455) target = $region36
        $region35: #{_lambda_.3} parent=11 // pred_region
          _
        $region36: #{_lambda_.3} parent=11 // pred_fallthru
          _
        // Predicated region
        $region37: #{_lambda_.3} parent=11 // pred_check
          %p458 = pneg %p223
        $region38: #{_lambda_.3} parent=11 // pred_check_branch
          %460 = sbr.rel (%p458) target = $region40
        $region39: #{_lambda_.3} parent=11 // pred_region
          _
        $region40: #{_lambda_.3} parent=11 // pred_fallthru
          _
        // Predicated region
        $region41: #{_lambda_.3} parent=11 // pred_check
          %p461 = pneg %p244
        $region42: #{_lambda_.3} parent=11 // pred_check_branch
          %463 = sbr.rel (%p461) target = $region44
        $region43: #{_lambda_.3} parent=11 // pred_region
          _
        $region44: #{_lambda_.3} parent=11 // pred_fallthru
          _
        // Predicated region
        $region45: #{_lambda_.3} parent=11 // pred_check
          %p464 = pneg %p265
        $region46: #{_lambda_.3} parent=11 // pred_check_branch
          %466 = sbr.rel (%p464) target = $region48
        $region47: #{_lambda_.3} parent=11 // pred_region
          _
        $region48: #{_lambda_.3} parent=11 // pred_fallthru
          _
        // Predicated region
        $region49: #{_lambda_.3} parent=11 // pred_check
          %p467 = pneg %p286
        $region50: #{_lambda_.3} parent=11 // pred_check_branch
          %469 = sbr.rel (%p467) target = $region52
        $region51: #{_lambda_.3} parent=11 // pred_region
          _
        $region52: #{_lambda_.3} parent=11 // pred_fallthru
          _
        // Predicated region
        $region53: #{_lambda_.3} parent=11 // pred_check
          %p470 = pneg %p307
        $region54: #{_lambda_.3} parent=11 // pred_check_branch
          %472 = sbr.rel (%p470) target = $region56
        $region55: #{_lambda_.3} parent=11 // pred_region
          _
        $region56: #{_lambda_.3} parent=11 // pred_fallthru
          _
        // Predicated region
        $region57: #{_lambda_.3} parent=11 // pred_check
          %p473 = pneg %p328
        $region58: #{_lambda_.3} parent=11 // pred_check_branch
          %475 = sbr.rel (%p473) target = $region60
        $region59: #{_lambda_.3} parent=11 // pred_region
          _
        $region60: #{_lambda_.3} parent=11 // pred_fallthru
          _
        // Predicated region
        $region61: #{_lambda_.3} parent=11 // pred_check
          %p476 = pneg %p349
        $region62: #{_lambda_.3} parent=11 // pred_check_branch
          %478 = sbr.rel (%p476) target = $region64
        $region63: #{_lambda_.3} parent=11 // pred_region
          _
        $region64: #{_lambda_.3} parent=11 // pred_fallthru
          _
        // Predicated region
        $region65: #{_lambda_.3} parent=11 // pred_check
          %p479 = pneg %p370
        $region66: #{_lambda_.3} parent=11 // pred_check_branch
          %481 = sbr.rel (%p479) target = $region68
        $region67: #{_lambda_.3} parent=11 // pred_region
          _
        $region68: #{_lambda_.3} parent=11 // pred_fallthru
          _
        // Predicated region
        $region69: #{_lambda_.3} parent=11 // pred_check
          %p482 = pneg %p391
        $region70: #{_lambda_.3} parent=11 // pred_check_branch
          %484 = sbr.rel (%p482) target = $region72
        $region71: #{_lambda_.3} parent=11 // pred_region
          _
        $region72: #{_lambda_.3} parent=11 // pred_fallthru
          _
      $region12: #{_lambda_.3} parent=5 // pred_fallthru
        _
      %p485 = scmp.lt.s32.totalorder %s24, 2
      // Predicated region
      $region73: #{_lambda_.3} parent=5 // pred_check
        %p486 = pneg %p485
      $region74: #{_lambda_.3} parent=5 // pred_check_branch
        %488 = sbr.rel (%p486) target = $region76
      $region75: #{_lambda_.3} parent=5 // pred_region
        // Predicated region
        $region77: #{_lambda_.3} parent=75 // pred_check
          %p489 = pneg %p65
        $region78: #{_lambda_.3} parent=75 // pred_check_branch
          %491 = sbr.rel (%p489) target = $region80
        $region79: #{_lambda_.3} parent=75 // pred_region
          %p492 = scmp.lt.s32.totalorder %s24, 1
          %s493 = scalar_select %p492, %s24, 1
          %s494 = smul.addr %s493, 2
          %s495 = smul.addr %s494, 4
          %s496 = scalar_lea.vmem %s1, %s495
        $region80: #{_lambda_.3} parent=75 // pred_fallthru
          _
        // Predicated region
        $region81: #{_lambda_.3} parent=75 // pred_check
          %p497 = pneg %p91
        $region82: #{_lambda_.3} parent=75 // pred_check_branch
          %499 = sbr.rel (%p497) target = $region84
        $region83: #{_lambda_.3} parent=75 // pred_region
          %p500 = scmp.lt.s32.totalorder %s24, 1
          %s501 = scalar_select %p500, %s24, 1
          %s502 = smul.addr %s501, 2
          %s503 = smul.addr %s502, 2
          %s504 = scalar_lea.vmem %s2, %s503
        $region84: #{_lambda_.3} parent=75 // pred_fallthru
          _
      $region76: #{_lambda_.3} parent=5 // pred_fallthru
        _
      %p505 = scmp.le.s32.totalorder 1, %s24
      %p506 = scmp.lt.s32.totalorder %s24, 3
      %p507 = pnand %p505, %p506
      %p508 = pneg %p507
      // Predicated region
      $region85: #{_lambda_.3} parent=5 // pred_check
        _
      $region86: #{_lambda_.3} parent=5 // pred_check_branch
        %510 = sbr.rel (%p507) target = $region88
      $region87: #{_lambda_.3} parent=5 // pred_region
        %s511 = ssub.s32 %s24, 1
        // Predicated region
        $region89: #{_lambda_.3} parent=87 // pred_check
          %p512 = pneg %p45
        $region90: #{_lambda_.3} parent=87 // pred_check_branch
          %514 = sbr.rel (%p512) target = $region92
        $region91: #{_lambda_.3} parent=87 // pred_region
          %515 = dma.done [#allocation3], 16
        $region92: #{_lambda_.3} parent=87 // pred_fallthru
          _
        %516 = sfence
        %p517 = pneg %p45
        %p518 = pneg %p42
        %p519 = scmp.lt.s32.totalorder %s29, 1
        %s520 = scalar_select %p519, %s29, 1
        %s521 = smul.addr %s520, 2
        %s522 = smul.addr %s521, 4
        %s523 = scalar_lea.vmem %s1, %s522
        %p524 = pneg %p71
        %p525 = pneg %p68
        %p526 = scmp.lt.s32.totalorder %s29, 1
        %s527 = scalar_select %p526, %s29, 1
        %s528 = smul.addr %s527, 2
        %s529 = smul.addr %s528, 2
        %s530 = scalar_lea.vmem %s2, %s529
        %p531 = pneg %p97
        %p532 = pneg %p94
        %p533 = pneg %p118
        %p534 = pneg %p115
        %p535 = pneg %p139
        %p536 = pneg %p136
        %p537 = pneg %p160
        %p538 = pneg %p157
        %p539 = pneg %p181
        %p540 = pneg %p178
        %p541 = pneg %p202
        %p542 = pneg %p199
        %p543 = pneg %p223
        %p544 = pneg %p220
        %p545 = pneg %p244
        %p546 = pneg %p241
        %p547 = pneg %p265
        %p548 = pneg %p262
        %p549 = pneg %p286
        %p550 = pneg %p283
        %p551 = pneg %p307
        %p552 = pneg %p304
        %p553 = pneg %p328
        %p554 = pneg %p325
        %p555 = pneg %p349
        %p556 = pneg %p346
        %p557 = pneg %p370
        %p558 = pneg %p367
        %p559 = pneg %p391
        %p560 = pneg %p388
        %p561 = pneg %p417
        %p562 = pneg %p414
        %p563 = scmp.lt.s32.totalorder %s29, 1
        %s564 = scalar_select %p563, %s29, 1
        %s565 = smul.addr %s564, 2
        %s566 = smul.addr %s565, 4
        %s567 = scalar_lea.vmem %s17, %s566
        %p568 = scmp.lt.s32.totalorder %s29, 1
        %s569 = scalar_select %p568, %s29, 1
        %s570 = smul.addr %s569, 2
        %s571 = smul.addr %s570, 4
        %s572 = scalar_lea.vmem %s1, %s571
        %p573 = scmp.lt.s32.totalorder %s29, 1
        %s574 = scalar_select %p573, %s29, 1
        %s575 = smul.addr %s574, 2
        %s576 = smul.addr %s575, 2
        %s577 = scalar_lea.vmem %s2, %s576
        %p578 = scmp.lt.s32.totalorder %s29, 1
        %s579 = scalar_select %p578, %s29, 1
        %s580 = smul.addr %s579, 2
        %s581 = smul.addr %s580, 4
        %s582 = scalar_lea.vmem %s17, %s581
        %v583 = vld [vmem:[%s13] sm:$0xff]
        %v584 = vld [vmem:[%s13 + $0x8] sm:$0xff]
        %v585 = vld [vmem:[%s13 + $0x10] sm:$0xff]
        %v586 = vld [vmem:[%s13 + $0x18] sm:$0xff]
        %v587 = vld [vmem:[%s13 + $0x20] sm:$0xff]
        %v588 = vld [vmem:[%s13 + $0x28] sm:$0xff]
        %v589 = vld [vmem:[%s13 + $0x30] sm:$0xff]
        %v590 = vld [vmem:[%s13 + $0x38] sm:$0xff]
        %v591 = vld [vmem:[%s13 + $0x40] sm:$0xff]
        %v592 = vld [vmem:[%s13 + $0x48] sm:$0xff]
        %v593 = vld [vmem:[%s13 + $0x50] sm:$0xff]
        %v594 = vld [vmem:[%s13 + $0x58] sm:$0xff]
        %v595 = vld [vmem:[%s13 + $0x60] sm:$0xff]
        %v596 = vld [vmem:[%s13 + $0x68] sm:$0xff]
        %v597 = vld [vmem:[%s13 + $0x70] sm:$0xff]
        %v598 = vld [vmem:[%s13 + $0x78] sm:$0xff]
        %v599 = vld [vmem:[%s13 + $0x80] sm:$0xff]
        %v600 = vld [vmem:[%s13 + $0x88] sm:$0xff]
        %v601 = vld [vmem:[%s13 + $0x90] sm:$0xff]
        %v602 = vld [vmem:[%s13 + $0x98] sm:$0xff]
        %v603 = vld [vmem:[%s13 + $0xa0] sm:$0xff]
        %v604 = vld [vmem:[%s13 + $0xa8] sm:$0xff]
        %v605 = vld [vmem:[%s13 + $0xb0] sm:$0xff]
        %v606 = vld [vmem:[%s13 + $0xb8] sm:$0xff]
        %v607 = vld [vmem:[%s13 + $0xc0] sm:$0xff]
        %v608 = vld [vmem:[%s13 + $0xc8] sm:$0xff]
        %v609 = vld [vmem:[%s13 + $0xd0] sm:$0xff]
        %v610 = vld [vmem:[%s13 + $0xd8] sm:$0xff]
        %v611 = vld [vmem:[%s13 + $0xe0] sm:$0xff]
        %v612 = vld [vmem:[%s13 + $0xe8] sm:$0xff]
        %v613 = vld [vmem:[%s13 + $0xf0] sm:$0xff]
        %v614 = vld [vmem:[%s13 + $0xf8] sm:$0xff]
        %v615 = vld [vmem:[%s13 + $0x100] sm:$0xff]
        %v616 = vld [vmem:[%s13 + $0x108] sm:$0xff]
        %v617 = vld [vmem:[%s13 + $0x110] sm:$0xff]
        %v618 = vld [vmem:[%s13 + $0x118] sm:$0xff]
        %v619 = vld [vmem:[%s14] sm:$0xff]
        %v620 = vld [vmem:[%s14 + $0x8] sm:$0xff]
        %v621 = vld [vmem:[%s14 + $0x10] sm:$0xff]
        %v622 = vld [vmem:[%s14 + $0x18] sm:$0xff]
        %v623 = vld [vmem:[%s15] sm:$0xf]
        %v624 = vld [vmem:[%s16] sm:$0xf]
        %v625 = vld [vmem:[%s9] sm:$0xf]
        %v626 = vld [vmem:[%s10] sm:$0xf]
        %v627 = vld [vmem:[%s11] sm:$0x7]
        %v628 = vld [vmem:[%s12] sm:$0x7]
        %v629 = vlaneseq
        %v630 = vand.u32 %v629, 127
        %v631 = vadd.s32 %v630, 128
        %v632 = vcvt.s32.f32 %v630
        %v633 = vcvt.s32.f32 %v631
        %v634 = vrcp.pop 16.0
        %v635 = vmul.f32 %v632, %v634
        %v636 = vmul.f32 %v633, %v634
        %v637 = vfloor.f32 %v635
        %v638 = vfloor.f32 %v636
        %v639 = vmul.f32 %v637, 16.0
        %v640 = vmul.f32 %v638, 16.0
        %v641 = vsub.f32 %v632, %v639
        %v642 = vsub.f32 %v633, %v640
        %vm643 = vcmp.eq.f32.partialorder %v641, 0.0
        %vm644 = vcmp.eq.f32.partialorder %v642, 0.0
        %vm645 = vcmp.eq.f32.partialorder %v641, 15.0
        %vm646 = vcmp.eq.f32.partialorder %v642, 15.0
        %vm647 = vcmp.eq.f32.partialorder %v637, 0.0
        %vm648 = vcmp.eq.f32.partialorder %v638, 0.0
        %vm649 = vcmp.eq.f32.partialorder %v637, 15.0
        %vm650 = vcmp.eq.f32.partialorder %v638, 15.0
        %v651 = vmul.f32 %v641, 0.06666667
        %v652 = vmul.f32 %v642, 0.06666667
        %v653 = vsub.f32 1.0, %v651
        %v654 = vsub.f32 1.0, %v652
        %v655 = vmul.f32 %v637, 0.06666667
        %v656 = vmul.f32 %v638, 0.06666667
        %v657 = vsub.f32 1.0, %v655
        %v658 = vsub.f32 1.0, %v656
        %s659 = sld [smem:[#allocation2 + %s29]]
        %v660 = vstv %s659
        %v661 = vadd.f32 %v660, 0.0
        %vm662 = vcmask 1040384
        %v663 = vsel %vm662, %v653, %v657
        %v664 = vsel %vm662, %v654, %v658
        %vm665 = vcmask 1041408
        %v666 = vsel %vm665, %v663, %v661
        %v667 = vsel %vm665, %v664, %v661
        %v668 = vld [vmem:[%s3] sm:$0xff]
        %v669 = vld [vmem:[%s3 + $0x8] sm:$0xff]
        %v670 = vld [vmem:[%s4] sm:$0xff]
        %v671 = vld [vmem:[%s4 + $0x8] sm:$0xff]
        %673 = vset.pattern.permute.xlu0 0
        %674 = vperm.xlu0 %673, %v670
        %v675 = vpop.permute.xlu0 %674
        %678 = vset.pattern.permute.xlu0 0
        %679 = vperm.xlu0 %678, %v671
        %v680 = vpop.permute.xlu0 %679
        %vm682 = vcmask 23552
        %v684 = vsel %vm682, %v668, 0
        %v687 = vsel %vm682, %v669, 0
        %vm689 = vcmask 1042432
        %v691 = vsel %vm689, %v666, 0
        %v694 = vsel %vm689, %v667, 0
        %696 = vmatprep.subr.mxu0 %v694
        %697 = vmatpush1.msra.mxu0 %v691
        %698 = vmatprep.subr.mxu0 0.0
        %699 = vmatpush1.msra.mxu0 0.0
        %700 = vmatprep.subr.mxu0 0.0
        %701 = vmatpush1.msra.mxu0 0.0
        %702 = vmatprep.subr.mxu0 0.0
        %703 = vmatpush1.msra.mxu0 0.0
        %704 = vmatprep.subr.mxu0 0.0
        %705 = vmatpush1.msra.mxu0 0.0
        %706 = vmatprep.subr.mxu0 0.0
        %707 = vmatpush1.msra.mxu0 0.0
        %708 = vmatprep.subr.mxu0 0.0
        %709 = vmatpush1.msra.mxu0 0.0
        %710 = vmatprep.subr.mxu0 0.0
        %711 = vmatpush1.msra.mxu0 0.0
        %712 = vmatprep.subr.mxu0 0.0
        %713 = vmatpush1.msra.mxu0 0.0
        %714 = vmatprep.subr.mxu0 0.0
        %715 = vmatpush1.msra.mxu0 0.0
        %716 = vmatprep.subr.mxu0 0.0
        %717 = vmatpush1.msra.mxu0 0.0
        %718 = vmatprep.subr.mxu0 0.0
        %719 = vmatpush1.msra.mxu0 0.0
        %720 = vmatprep.subr.mxu0 0.0
        %721 = vmatpush1.msra.mxu0 0.0
        %722 = vmatprep.subr.mxu0 0.0
        %723 = vmatpush1.msra.mxu0 0.0
        %724 = vmatprep.subr.mxu0 0.0
        %725 = vmatpush1.msra.mxu0 0.0
        %726 = vmatprep.subr.mxu0 0.0
        %727 = vmatpush1.msra.mxu0 0.0
        %728 = vmatprep.subr.mxu0 0.0
        %729 = vmatpush1.msra.mxu0 0.0
        %730 = vmatprep.subr.mxu0 0.0
        %731 = vmatpush1.msra.mxu0 0.0
        %732 = vmatprep.subr.mxu0 0.0
        %733 = vmatpush1.msra.mxu0 0.0
        %734 = vmatprep.subr.mxu0 0.0
        %735 = vmatpush1.msra.mxu0 0.0
        %736 = vmatprep.subr.mxu0 0.0
        %737 = vmatpush1.msra.mxu0 0.0
        %738 = vmatprep.subr.mxu0 0.0
        %739 = vmatpush1.msra.mxu0 0.0
        %740 = vmatprep.subr.mxu0 0.0
        %741 = vmatpush1.msra.mxu0 0.0
        %742 = vmatprep.subr.mxu0 0.0
        %743 = vmatpush1.msra.mxu0 0.0
        %744 = vmatprep.subr.mxu0 0.0
        %745 = vmatpush1.msra.mxu0 0.0
        %746 = vmatprep.subr.mxu0 0.0
        %747 = vmatpush1.msra.mxu0 0.0
        %748 = vmatprep.subr.mxu0 0.0
        %749 = vmatpush1.msra.mxu0 0.0
        %750 = vmatprep.subr.mxu0 0.0
        %751 = vmatpush1.msra.mxu0 0.0
        %752 = vmatprep.subr.mxu0 0.0
        %753 = vmatpush1.msra.mxu0 0.0
        %754 = vmatprep.subr.mxu0 0.0
        %755 = vmatpush1.msra.mxu0 0.0
        %756 = vmatprep.subr.mxu0 0.0
        %757 = vmatpush1.msra.mxu0 0.0
        %758 = vmatprep.subr.mxu0 0.0
        %759 = vmatpush1.msra.mxu0 0.0
        %760 = vmatprep.mubr.f32.mxu0 0.0
        %761 = vmatmul.mubr.f32.gmra.mrb[0].mxu0 %v684
        %v762 = vpop.f32.mrb[0].mxu0
        %v763 = vadd.f32 %v675, %v762
        %v764 = vpop.f32.mrb[0].mxu0
        %v765 = vadd.f32 %v675, %v764
        %766 = vmatprep.mubr.f32.mxu0 0.0
        %767 = vmatmul.mubr.f32.gmra.mrb[0].mxu0 %v687
        %v768 = vpop.f32.mrb[0].mxu0
        %v769 = vadd.f32 %v680, %v768
        %v770 = vpop.f32.mrb[0].mxu0
        %v771 = vadd.f32 %v680, %v770
        %772 = vdwg.mxu0
        %v773 = vmul.f32 %v763, 0.01
        %v774 = vmul.f32 %v765, 0.01
        %v775 = vmul.f32 %v769, 0.01
        %v776 = vmul.f32 %v771, 0.01
        %v777 = vmax.f32 %v763, %v773
        %v778 = vmax.f32 %v765, %v774
        %v779 = vmax.f32 %v769, %v775
        %v780 = vmax.f32 %v771, %v776
        %v781 = vld [vmem:[%s5] sm:$0xff]
        %v782 = vld [vmem:[%s5 + $0x8] sm:$0xff]
        %v783 = vld [vmem:[%s6] sm:$0xff]
        %v784 = vld [vmem:[%s6 + $0x8] sm:$0xff]
        %786 = vset.pattern.permute.xlu0 0
        %787 = vperm.xlu0 %786, %v783
        %v788 = vpop.permute.xlu0 %787
        %791 = vset.pattern.permute.xlu0 0
        %792 = vperm.xlu0 %791, %v784
        %v793 = vpop.permute.xlu0 %792
        %vm795 = vcmask 130048
        %v797 = vsel %vm795, %v781, 0
        %v800 = vsel %vm795, %v782, 0
        %802 = vmatprep.subr.mxu0 %v778
        %803 = vmatpush1.msra.mxu0 %v777
        %804 = vmatprep.subr.mxu0 %v780
        %805 = vmatpush1.msra.mxu0 %v779
        %806 = vmatprep.subr.mxu0 0.0
        %807 = vmatpush1.msra.mxu0 0.0
        %808 = vmatprep.subr.mxu0 0.0
        %809 = vmatpush1.msra.mxu0 0.0
        %810 = vmatprep.subr.mxu0 0.0
        %811 = vmatpush1.msra.mxu0 0.0
        %812 = vmatprep.subr.mxu0 0.0
        %813 = vmatpush1.msra.mxu0 0.0
        %814 = vmatprep.subr.mxu0 0.0
        %815 = vmatpush1.msra.mxu0 0.0
        %816 = vmatprep.subr.mxu0 0.0
        %817 = vmatpush1.msra.mxu0 0.0
        %818 = vmatprep.subr.mxu0 0.0
        %819 = vmatpush1.msra.mxu0 0.0
        %820 = vmatprep.subr.mxu0 0.0
        %821 = vmatpush1.msra.mxu0 0.0
        %822 = vmatprep.subr.mxu0 0.0
        %823 = vmatpush1.msra.mxu0 0.0
        %824 = vmatprep.subr.mxu0 0.0
        %825 = vmatpush1.msra.mxu0 0.0
        %826 = vmatprep.subr.mxu0 0.0
        %827 = vmatpush1.msra.mxu0 0.0
        %828 = vmatprep.subr.mxu0 0.0
        %829 = vmatpush1.msra.mxu0 0.0
        %830 = vmatprep.subr.mxu0 0.0
        %831 = vmatpush1.msra.mxu0 0.0
        %832 = vmatprep.subr.mxu0 0.0
        %833 = vmatpush1.msra.mxu0 0.0
        %834 = vmatprep.subr.mxu0 0.0
        %835 = vmatpush1.msra.mxu0 0.0
        %836 = vmatprep.subr.mxu0 0.0
        %837 = vmatpush1.msra.mxu0 0.0
        %838 = vmatprep.subr.mxu0 0.0
        %839 = vmatpush1.msra.mxu0 0.0
        %840 = vmatprep.subr.mxu0 0.0
        %841 = vmatpush1.msra.mxu0 0.0
        %842 = vmatprep.subr.mxu0 0.0
        %843 = vmatpush1.msra.mxu0 0.0
        %844 = vmatprep.subr.mxu0 0.0
        %845 = vmatpush1.msra.mxu0 0.0
        %846 = vmatprep.subr.mxu0 0.0
        %847 = vmatpush1.msra.mxu0 0.0
        %848 = vmatprep.subr.mxu0 0.0
        %849 = vmatpush1.msra.mxu0 0.0
        %850 = vmatprep.subr.mxu0 0.0
        %851 = vmatpush1.msra.mxu0 0.0
        %852 = vmatprep.subr.mxu0 0.0
        %853 = vmatpush1.msra.mxu0 0.0
        %854 = vmatprep.subr.mxu0 0.0
        %855 = vmatpush1.msra.mxu0 0.0
        %856 = vmatprep.subr.mxu0 0.0
        %857 = vmatpush1.msra.mxu0 0.0
        %858 = vmatprep.subr.mxu0 0.0
        %859 = vmatpush1.msra.mxu0 0.0
        %860 = vmatprep.subr.mxu0 0.0
        %861 = vmatpush1.msra.mxu0 0.0
        %862 = vmatprep.subr.mxu0 0.0
        %863 = vmatpush1.msra.mxu0 0.0
        %864 = vmatprep.subr.mxu0 0.0
        %865 = vmatpush1.msra.mxu0 0.0
        %866 = vmatprep.mubr.f32.mxu0 0.0
        %867 = vmatmul.mubr.f32.gmra.mrb[0].mxu0 %v797
        %v868 = vpop.f32.mrb[0].mxu0
        %v869 = vadd.f32 %v788, %v868
        %v870 = vpop.f32.mrb[0].mxu0
        %v871 = vadd.f32 %v788, %v870
        %872 = vmatprep.mubr.f32.mxu0 0.0
        %873 = vmatmul.mubr.f32.gmra.mrb[0].mxu0 %v800
        %v874 = vpop.f32.mrb[0].mxu0
        %v875 = vadd.f32 %v793, %v874
        %v876 = vpop.f32.mrb[0].mxu0
        %v877 = vadd.f32 %v793, %v876
        %878 = vdwg.mxu0
        %v879 = vmul.f32 %v869, 0.01
        %v880 = vmul.f32 %v871, 0.01
        %v881 = vmul.f32 %v875, 0.01
        %v882 = vmul.f32 %v877, 0.01
        %v883 = vmax.f32 %v869, %v879
        %v884 = vmax.f32 %v871, %v880
        %v885 = vmax.f32 %v875, %v881
        %v886 = vmax.f32 %v877, %v882
        %v887 = vld [vmem:[%s7] sm:$0x7]
        %v888 = vld [vmem:[%s8] sm:$0x7]
        %890 = vset.pattern.permute.xlu0 0
        %891 = vperm.xlu0 %890, %v888
        %v892 = vpop.permute.xlu0 %891
        %v895 = vsel %vm795, %v887, 0
        %897 = vmatprep.subr.mxu0 %v884
        %898 = vmatpush1.msra.mxu0 %v883
        %899 = vmatprep.subr.mxu0 %v886
        %900 = vmatpush1.msra.mxu0 %v885
        %901 = vmatprep.subr.mxu0 0.0
        %902 = vmatpush1.msra.mxu0 0.0
        %903 = vmatprep.subr.mxu0 0.0
        %904 = vmatpush1.msra.mxu0 0.0
        %905 = vmatprep.subr.mxu0 0.0
        %906 = vmatpush1.msra.mxu0 0.0
        %907 = vmatprep.subr.mxu0 0.0
        %908 = vmatpush1.msra.mxu0 0.0
        %909 = vmatprep.subr.mxu0 0.0
        %910 = vmatpush1.msra.mxu0 0.0
        %911 = vmatprep.subr.mxu0 0.0
        %912 = vmatpush1.msra.mxu0 0.0
        %913 = vmatprep.subr.mxu0 0.0
        %914 = vmatpush1.msra.mxu0 0.0
        %915 = vmatprep.subr.mxu0 0.0
        %916 = vmatpush1.msra.mxu0 0.0
        %917 = vmatprep.subr.mxu0 0.0
        %918 = vmatpush1.msra.mxu0 0.0
        %919 = vmatprep.subr.mxu0 0.0
        %920 = vmatpush1.msra.mxu0 0.0
        %921 = vmatprep.subr.mxu0 0.0
        %922 = vmatpush1.msra.mxu0 0.0
        %923 = vmatprep.subr.mxu0 0.0
        %924 = vmatpush1.msra.mxu0 0.0
        %925 = vmatprep.subr.mxu0 0.0
        %926 = vmatpush1.msra.mxu0 0.0
        %927 = vmatprep.subr.mxu0 0.0
        %928 = vmatpush1.msra.mxu0 0.0
        %929 = vmatprep.subr.mxu0 0.0
        %930 = vmatpush1.msra.mxu0 0.0
        %931 = vmatprep.subr.mxu0 0.0
        %932 = vmatpush1.msra.mxu0 0.0
        %933 = vmatprep.subr.mxu0 0.0
        %934 = vmatpush1.msra.mxu0 0.0
        %935 = vmatprep.subr.mxu0 0.0
        %936 = vmatpush1.msra.mxu0 0.0
        %937 = vmatprep.subr.mxu0 0.0
        %938 = vmatpush1.msra.mxu0 0.0
        %939 = vmatprep.subr.mxu0 0.0
        %940 = vmatpush1.msra.mxu0 0.0
        %941 = vmatprep.subr.mxu0 0.0
        %942 = vmatpush1.msra.mxu0 0.0
        %943 = vmatprep.subr.mxu0 0.0
        %944 = vmatpush1.msra.mxu0 0.0
        %945 = vmatprep.subr.mxu0 0.0
        %946 = vmatpush1.msra.mxu0 0.0
        %947 = vmatprep.subr.mxu0 0.0
        %948 = vmatpush1.msra.mxu0 0.0
        %949 = vmatprep.subr.mxu0 0.0
        %950 = vmatpush1.msra.mxu0 0.0
        %951 = vmatprep.subr.mxu0 0.0
        %952 = vmatpush1.msra.mxu0 0.0
        %953 = vmatprep.subr.mxu0 0.0
        %954 = vmatpush1.msra.mxu0 0.0
        %955 = vmatprep.subr.mxu0 0.0
        %956 = vmatpush1.msra.mxu0 0.0
        %957 = vmatprep.subr.mxu0 0.0
        %958 = vmatpush1.msra.mxu0 0.0
        %959 = vmatprep.subr.mxu0 0.0
        %960 = vmatpush1.msra.mxu0 0.0
        %961 = vmatprep.mubr.f32.mxu0 0.0
        %962 = vmatmul.mubr.f32.gmra.mrb[0].mxu0 %v895
        %v963 = vpop.f32.mrb[0].mxu0
        %v964 = vadd.f32 %v892, %v963
        %v965 = vpop.f32.mrb[0].mxu0
        %v966 = vadd.f32 %v892, %v965
        %967 = vdwg.mxu0
        %v968 = vmul.f32 %v964, 0.01
        %v969 = vmul.f32 %v966, 0.01
        %v970 = vmax.f32 %v964, %v968
        %v971 = vmax.f32 %v966, %v969
        %v972 = vsel %vm689, %v970, 0.0
        %v973 = vsel %vm689, %v971, 0.0
        %v974 = vadd.f32 %v972, %v973
        %975 = vadd.xlane.f32.xlu0 %v974
        %v976 = vpop.xlane.xlu0 %975
        %v977 = vrot.slane %v976, 4
        %v978 = vadd.f32 %v976, %v977
        %v979 = vrot.slane %v978, 2
        %v980 = vadd.f32 %v978, %v979
        %v981 = vrot.slane %v980, 1
        %v982 = vadd.f32 %v980, %v981
        %s983 = vtos %v982
        %985 = vset.pattern.permute.xlu0 0
        %986 = vperm.xlu0 %985, %v619
        %v987 = vpop.permute.xlu0 %986
        %990 = vset.pattern.permute.xlu0 0
        %991 = vperm.xlu0 %990, %v620
        %v992 = vpop.permute.xlu0 %991
        %995 = vset.pattern.permute.xlu0 0
        %996 = vperm.xlu0 %995, %v621
        %v997 = vpop.permute.xlu0 %996
        %1000 = vset.pattern.permute.xlu0 0
        %1001 = vperm.xlu0 %1000, %v622
        %v1002 = vpop.permute.xlu0 %1001
        %v1004 = vld [vmem:[%s577] sm:$0xf]
        %v1005 = vld [vmem:[%s572] sm:$0xff]
        %v1007 = vcombine.high %v1005, %v1005
        %vm1009 = vcmask 1043456
        %v1010 = vsel %vm1009, %v1005, 0.0
        %v1011 = vsel %vm1009, %v1007, 0.0
        %v1012 = vadd.f32 %v1010, %v1011
        %1013 = vadd.xlane.f32.xlu0 %v1012
        %v1014 = vpop.xlane.xlu0 %1013
        %v1015 = vrot.slane %v1014, 4
        %v1016 = vadd.f32 %v1014, %v1015
        %v1017 = vrot.slane %v1016, 2
        %v1018 = vadd.f32 %v1016, %v1017
        %v1019 = vrot.slane %v1018, 1
        %v1020 = vadd.f32 %v1018, %v1019
        %s1021 = vtos %v1020
        %s1022 = sadd.f32 %s1021, %s983
        %v1023 = vrcp.pop 1792.0
        %s1024 = vtos %v1023
        %s1025 = smul.f32 %s1022, %s1024
        %v1026 = vstv %s1025
        %v1027 = vsub.f32 %v1005, %v1026
        %v1028 = vsub.f32 %v970, %v1026
        %v1029 = vsub.f32 %v971, %v1026
        %v1030 = vmul.f32 %v1027, %v1027
        %v1032 = vcombine.high %v1030, %v1030
        %v1034 = vsel %vm1009, %v1030, 0.0
        %v1035 = vsel %vm1009, %v1032, 0.0
        %v1036 = vadd.f32 %v1034, %v1035
        %1037 = vadd.xlane.f32.xlu0 %v1036
        %v1038 = vpop.xlane.xlu0 %1037
        %v1039 = vrot.slane %v1038, 4
        %v1040 = vadd.f32 %v1038, %v1039
        %v1041 = vrot.slane %v1040, 2
        %v1042 = vadd.f32 %v1040, %v1041
        %v1043 = vrot.slane %v1042, 1
        %v1044 = vadd.f32 %v1042, %v1043
        %s1045 = vtos %v1044
        %v1046 = vmul.f32 %v1028, %v1028
        %v1047 = vmul.f32 %v1029, %v1029
        %v1048 = vsel %vm689, %v1046, 0.0
        %v1049 = vsel %vm689, %v1047, 0.0
        %v1050 = vadd.f32 %v1048, %v1049
        %1051 = vadd.xlane.f32.xlu0 %v1050
        %v1052 = vpop.xlane.xlu0 %1051
        %v1053 = vrot.slane %v1052, 4
        %v1054 = vadd.f32 %v1052, %v1053
        %v1055 = vrot.slane %v1054, 2
        %v1056 = vadd.f32 %v1054, %v1055
        %v1057 = vrot.slane %v1056, 1
        %v1058 = vadd.f32 %v1056, %v1057
        %s1059 = vtos %v1058
        %s1060 = sadd.f32 %s1045, %s1059
        %v1061 = vrcp.pop 1792.0
        %s1062 = vtos %v1061
        %s1063 = smul.f32 %s1060, %s1062
        %s1064 = sadd.f32 %s1063, 1e-05
        %v1065 = vstv %s1064
        %v1066 = vrsqrt.pop %v1065
        %s1067 = vtos %v1066
        %v1068 = vstv %s1067
        %v1069 = vmul.f32 %v1027, %v1068
        %1071 = vset.pattern.permute.xlu0 0
        %1072 = vperm.xlu0 %1071, %v625
        %v1073 = vpop.permute.xlu0 %1072
        %v1075 = vunpack.c.l.s4 839922192
        %v1076 = vunpack.c.0.s8 %v1075
        %v1077 = vlaneseq
        %v1078 = vshrl.u32 %v1077, 7
        %v1079 = vsub.s32 %v1076, %v1078
        %v1080 = vrot.slane %v1073, %v1079
        %v1082 = vmul.f32 %v1069, %v1080
        %1084 = vset.pattern.permute.xlu0 0
        %1085 = vperm.xlu0 %1084, %v626
        %v1086 = vpop.permute.xlu0 %1085
        %v1088 = vunpack.c.l.s4 839922192
        %v1089 = vunpack.c.0.s8 %v1088
        %v1090 = vlaneseq
        %v1091 = vshrl.u32 %v1090, 7
        %v1092 = vsub.s32 %v1089, %v1091
        %v1093 = vrot.slane %v1086, %v1092
        %v1095 = vadd.f32 %v1082, %v1093
        %v1096 = vmul.f32 %v1028, %v1068
        %v1097 = vmul.f32 %v1029, %v1068
        %1099 = vset.pattern.permute.xlu0 0
        %1100 = vperm.xlu0 %1099, %v627
        %v1101 = vpop.permute.xlu0 %1100
        %v1103 = vmul.f32 %v1096, %v1101
        %v1104 = vmul.f32 %v1097, %v1101
        %1106 = vset.pattern.permute.xlu0 0
        %1107 = vperm.xlu0 %1106, %v628
        %v1108 = vpop.permute.xlu0 %1107
        %v1110 = vadd.f32 %v1103, %v1108
        %v1111 = vadd.f32 %v1104, %v1108
        %v1113 = vcombine.high %v1095, %v1095
        %v1117 = vrot.slane %v1110, 4
        %v1118 = vrot.slane %v1111, 4
        %v1121 = vsel %vm1009, %v1095, %v1117
        %v1122 = vsel %vm1009, %v1113, %v1118
        %1124 = vrot.lane.b32.xlu0 %v1122, 1
        %v1125 = vpop.permute.xlu0 %1124
        %1128 = vrot.lane.b32.xlu0 %v1121, 1
        %v1129 = vpop.permute.xlu0 %1128
        %vm1130 = vcmask 7168
        %v1131 = vsel %vm1130, %v1129, %v1125
        %v1134 = vsel %vm1130, %v1125, %v1129
        %1135 = vrot.lane.b32.xlu0 %v1121, 127
        %v1136 = vpop.permute.xlu0 %1135
        %1137 = vrot.lane.b32.xlu0 %v1122, 127
        %v1138 = vpop.permute.xlu0 %1137
        %vm1139 = vcmask 1039360
        %v1140 = vsel %vm1139, %v1136, %v1138
        %v1144 = vsel %vm1139, %v1138, %v1136
        %v1145 = vsel %vm643, 1, 0
        %v1146 = vsel %vm644, 1, 0
        %vm1147 = vcmp.eq.s32.totalorder %v1145, 1
        %vm1148 = vcmp.eq.s32.totalorder %v1146, 1
        %v1149 = vsel %vm1147, %v1140, %v1134
        %v1150 = vsel %vm1148, %v1144, %v1131
        %v1151 = vsel %vm645, 1, 0
        %v1152 = vsel %vm646, 1, 0
        %vm1153 = vcmp.eq.s32.totalorder %v1151, 1
        %vm1154 = vcmp.eq.s32.totalorder %v1152, 1
        %v1155 = vsel %vm1153, %v1134, %v1140
        %v1156 = vsel %vm1154, %v1131, %v1144
        %1158 = vrot.lane.b32.xlu0 %v1150, 16
        %v1159 = vpop.permute.xlu0 %1158
        %1162 = vrot.lane.b32.xlu0 %v1149, 16
        %v1163 = vpop.permute.xlu0 %1162
        %v1164 = vsel %vm795, %v1163, %v1159
        %v1167 = vsel %vm795, %v1159, %v1163
        %1168 = vrot.lane.b32.xlu0 %v1149, 112
        %v1169 = vpop.permute.xlu0 %1168
        %1170 = vrot.lane.b32.xlu0 %v1150, 112
        %v1171 = vpop.permute.xlu0 %1170
        %vm1172 = vcmask 916480
        %v1173 = vsel %vm1172, %v1169, %v1171
        %v1177 = vsel %vm1172, %v1171, %v1169
        %v1178 = vsel %vm647, 1, 0
        %v1179 = vsel %vm648, 1, 0
        %vm1180 = vcmp.eq.s32.totalorder %v1178, 1
        %vm1181 = vcmp.eq.s32.totalorder %v1179, 1
        %v1182 = vsel %vm1180, %v1173, %v1167
        %v1183 = vsel %vm1181, %v1177, %v1164
        %v1184 = vsel %vm649, 1, 0
        %v1185 = vsel %vm650, 1, 0
        %vm1186 = vcmp.eq.s32.totalorder %v1184, 1
        %vm1187 = vcmp.eq.s32.totalorder %v1185, 1
        %v1188 = vsel %vm1186, %v1167, %v1173
        %v1189 = vsel %vm1187, %v1164, %v1177
        %vm1190 = vcmask 56320
        %v1192 = vsel %vm1190, %v583, 0
        %v1195 = vsel %vm1190, %v584, 0
        %v1198 = vsel %vm1190, %v585, 0
        %v1201 = vsel %vm1190, %v586, 0
        %vm1203 = vcmask 1046528
        %v1205 = vsel %vm1203, %v1182, 0
        %v1208 = vsel %vm1203, %v1183, 0
        %1210 = vmatprep.subr.mxu0 %v1208
        %1211 = vmatpush1.msra.mxu0 %v1205
        %1212 = vmatprep.subr.mxu0 0.0
        %1213 = vmatpush1.msra.mxu0 0.0
        %1214 = vmatprep.subr.mxu0 0.0
        %1215 = vmatpush1.msra.mxu0 0.0
        %1216 = vmatprep.subr.mxu0 0.0
        %1217 = vmatpush1.msra.mxu0 0.0
        %1218 = vmatprep.subr.mxu0 0.0
        %1219 = vmatpush1.msra.mxu0 0.0
        %1220 = vmatprep.subr.mxu0 0.0
        %1221 = vmatpush1.msra.mxu0 0.0
        %1222 = vmatprep.subr.mxu0 0.0
        %1223 = vmatpush1.msra.mxu0 0.0
        %1224 = vmatprep.subr.mxu0 0.0
        %1225 = vmatpush1.msra.mxu0 0.0
        %1226 = vmatprep.subr.mxu0 0.0
        %1227 = vmatpush1.msra.mxu0 0.0
        %1228 = vmatprep.subr.mxu0 0.0
        %1229 = vmatpush1.msra.mxu0 0.0
        %1230 = vmatprep.subr.mxu0 0.0
        %1231 = vmatpush1.msra.mxu0 0.0
        %1232 = vmatprep.subr.mxu0 0.0
        %1233 = vmatpush1.msra.mxu0 0.0
        %1234 = vmatprep.subr.mxu0 0.0
        %1235 = vmatpush1.msra.mxu0 0.0
        %1236 = vmatprep.subr.mxu0 0.0
        %1237 = vmatpush1.msra.mxu0 0.0
        %1238 = vmatprep.subr.mxu0 0.0
        %1239 = vmatpush1.msra.mxu0 0.0
        %1240 = vmatprep.subr.mxu0 0.0
        %1241 = vmatpush1.msra.mxu0 0.0
        %1242 = vmatprep.subr.mxu0 0.0
        %1243 = vmatpush1.msra.mxu0 0.0
        %1244 = vmatprep.subr.mxu0 0.0
        %1245 = vmatpush1.msra.mxu0 0.0
        %1246 = vmatprep.subr.mxu0 0.0
        %1247 = vmatpush1.msra.mxu0 0.0
        %1248 = vmatprep.subr.mxu0 0.0
        %1249 = vmatpush1.msra.mxu0 0.0
        %1250 = vmatprep.subr.mxu0 0.0
        %1251 = vmatpush1.msra.mxu0 0.0
        %1252 = vmatprep.subr.mxu0 0.0
        %1253 = vmatpush1.msra.mxu0 0.0
        %1254 = vmatprep.subr.mxu0 0.0
        %1255 = vmatpush1.msra.mxu0 0.0
        %1256 = vmatprep.subr.mxu0 0.0
        %1257 = vmatpush1.msra.mxu0 0.0
        %1258 = vmatprep.subr.mxu0 0.0
        %1259 = vmatpush1.msra.mxu0 0.0
        %1260 = vmatprep.subr.mxu0 0.0
        %1261 = vmatpush1.msra.mxu0 0.0
        %1262 = vmatprep.subr.mxu0 0.0
        %1263 = vmatpush1.msra.mxu0 0.0
        %1264 = vmatprep.subr.mxu0 0.0
        %1265 = vmatpush1.msra.mxu0 0.0
        %1266 = vmatprep.subr.mxu0 0.0
        %1267 = vmatpush1.msra.mxu0 0.0
        %1268 = vmatprep.subr.mxu0 0.0
        %1269 = vmatpush1.msra.mxu0 0.0
        %1270 = vmatprep.subr.mxu0 0.0
        %1271 = vmatpush1.msra.mxu0 0.0
        %1272 = vmatprep.subr.mxu0 0.0
        %1273 = vmatpush1.msra.mxu0 0.0
        %1274 = vmatprep.mubr.f32.mxu0 0.0
        %1275 = vmatmul.mubr.f32.gmra.mrb[0].mxu0 %v1192
        %v1276 = vpop.f32.mrb[0].mxu0
        %v1277 = vadd.f32 0.0, %v1276
        %v1278 = vpop.f32.mrb[0].mxu0
        %v1279 = vadd.f32 0.0, %v1278
        %1280 = vmatprep.mubr.f32.mxu0 0.0
        %1281 = vmatmul.mubr.f32.gmra.mrb[0].mxu0 %v1195
        %v1282 = vpop.f32.mrb[0].mxu0
        %v1283 = vadd.f32 0.0, %v1282
        %v1284 = vpop.f32.mrb[0].mxu0
        %v1285 = vadd.f32 0.0, %v1284
        %1286 = vmatprep.mubr.f32.mxu0 0.0
        %1287 = vmatmul.mubr.f32.gmra.mrb[0].mxu0 %v1198
        %v1288 = vpop.f32.mrb[0].mxu0
        %v1289 = vadd.f32 0.0, %v1288
        %v1290 = vpop.f32.mrb[0].mxu0
        %v1291 = vadd.f32 0.0, %v1290
        %1292 = vmatprep.mubr.f32.mxu0 0.0
        %1293 = vmatmul.mubr.f32.gmra.mrb[0].mxu0 %v1201
        %v1294 = vpop.f32.mrb[0].mxu0
        %v1295 = vadd.f32 0.0, %v1294
        %v1296 = vpop.f32.mrb[0].mxu0
        %v1297 = vadd.f32 0.0, %v1296
        %1298 = vdwg.mxu0
        %v1299 = vadd.f32 %v987, %v1277
        %v1300 = vadd.f32 %v987, %v1279
        %v1301 = vadd.f32 %v992, %v1283
        %v1302 = vadd.f32 %v992, %v1285
        %v1303 = vadd.f32 %v997, %v1289
        %v1304 = vadd.f32 %v997, %v1291
        %v1305 = vadd.f32 %v1002, %v1295
        %v1306 = vadd.f32 %v1002, %v1297
        %v1308 = vsel %vm1190, %v595, 0
        %v1311 = vsel %vm1190, %v596, 0
        %v1314 = vsel %vm1190, %v597, 0
        %v1317 = vsel %vm1190, %v598, 0
        %v1319 = vsel %vm1203, %v1149, 0
        %v1321 = vsel %vm1203, %v1150, 0
        %1323 = vmatprep.subr.mxu0 %v1321
        %1324 = vmatpush1.msra.mxu0 %v1319
        %1325 = vmatprep.subr.mxu0 0.0
        %1326 = vmatpush1.msra.mxu0 0.0
        %1327 = vmatprep.subr.mxu0 0.0
        %1328 = vmatpush1.msra.mxu0 0.0
        %1329 = vmatprep.subr.mxu0 0.0
        %1330 = vmatpush1.msra.mxu0 0.0
        %1331 = vmatprep.subr.mxu0 0.0
        %1332 = vmatpush1.msra.mxu0 0.0
        %1333 = vmatprep.subr.mxu0 0.0
        %1334 = vmatpush1.msra.mxu0 0.0
        %1335 = vmatprep.subr.mxu0 0.0
        %1336 = vmatpush1.msra.mxu0 0.0
        %1337 = vmatprep.subr.mxu0 0.0
        %1338 = vmatpush1.msra.mxu0 0.0
        %1339 = vmatprep.subr.mxu0 0.0
        %1340 = vmatpush1.msra.mxu0 0.0
        %1341 = vmatprep.subr.mxu0 0.0
        %1342 = vmatpush1.msra.mxu0 0.0
        %1343 = vmatprep.subr.mxu0 0.0
        %1344 = vmatpush1.msra.mxu0 0.0
        %1345 = vmatprep.subr.mxu0 0.0
        %1346 = vmatpush1.msra.mxu0 0.0
        %1347 = vmatprep.subr.mxu0 0.0
        %1348 = vmatpush1.msra.mxu0 0.0
        %1349 = vmatprep.subr.mxu0 0.0
        %1350 = vmatpush1.msra.mxu0 0.0
        %1351 = vmatprep.subr.mxu0 0.0
        %1352 = vmatpush1.msra.mxu0 0.0
        %1353 = vmatprep.subr.mxu0 0.0
        %1354 = vmatpush1.msra.mxu0 0.0
        %1355 = vmatprep.subr.mxu0 0.0
        %1356 = vmatpush1.msra.mxu0 0.0
        %1357 = vmatprep.subr.mxu0 0.0
        %1358 = vmatpush1.msra.mxu0 0.0
        %1359 = vmatprep.subr.mxu0 0.0
        %1360 = vmatpush1.msra.mxu0 0.0
        %1361 = vmatprep.subr.mxu0 0.0
        %1362 = vmatpush1.msra.mxu0 0.0
        %1363 = vmatprep.subr.mxu0 0.0
        %1364 = vmatpush1.msra.mxu0 0.0
        %1365 = vmatprep.subr.mxu0 0.0
        %1366 = vmatpush1.msra.mxu0 0.0
        %1367 = vmatprep.subr.mxu0 0.0
        %1368 = vmatpush1.msra.mxu0 0.0
        %1369 = vmatprep.subr.mxu0 0.0
        %1370 = vmatpush1.msra.mxu0 0.0
        %1371 = vmatprep.subr.mxu0 0.0
        %1372 = vmatpush1.msra.mxu0 0.0
        %1373 = vmatprep.subr.mxu0 0.0
        %1374 = vmatpush1.msra.mxu0 0.0
        %1375 = vmatprep.subr.mxu0 0.0
        %1376 = vmatpush1.msra.mxu0 0.0
        %1377 = vmatprep.subr.mxu0 0.0
        %1378 = vmatpush1.msra.mxu0 0.0
        %1379 = vmatprep.subr.mxu0 0.0
        %1380 = vmatpush1.msra.mxu0 0.0
        %1381 = vmatprep.subr.mxu0 0.0
        %1382 = vmatpush1.msra.mxu0 0.0
        %1383 = vmatprep.subr.mxu0 0.0
        %1384 = vmatpush1.msra.mxu0 0.0
        %1385 = vmatprep.subr.mxu0 0.0
        %1386 = vmatpush1.msra.mxu0 0.0
        %1387 = vmatprep.mubr.f32.mxu0 0.0
        %1388 = vmatmul.mubr.f32.gmra.mrb[0].mxu0 %v1308
        %v1389 = vpop.f32.mrb[0].mxu0
        %v1390 = vadd.f32 0.0, %v1389
        %v1391 = vpop.f32.mrb[0].mxu0
        %v1392 = vadd.f32 0.0, %v1391
        %1393 = vmatprep.mubr.f32.mxu0 0.0
        %1394 = vmatmul.mubr.f32.gmra.mrb[0].mxu0 %v1311
        %v1395 = vpop.f32.mrb[0].mxu0
        %v1396 = vadd.f32 0.0, %v1395
        %v1397 = vpop.f32.mrb[0].mxu0
        %v1398 = vadd.f32 0.0, %v1397
        %1399 = vmatprep.mubr.f32.mxu0 0.0
        %1400 = vmatmul.mubr.f32.gmra.mrb[0].mxu0 %v1314
        %v1401 = vpop.f32.mrb[0].mxu0
        %v1402 = vadd.f32 0.0, %v1401
        %v1403 = vpop.f32.mrb[0].mxu0
        %v1404 = vadd.f32 0.0, %v1403
        %1405 = vmatprep.mubr.f32.mxu0 0.0
        %1406 = vmatmul.mubr.f32.gmra.mrb[0].mxu0 %v1317
        %v1407 = vpop.f32.mrb[0].mxu0
        %v1408 = vadd.f32 0.0, %v1407
        %v1409 = vpop.f32.mrb[0].mxu0
        %v1410 = vadd.f32 0.0, %v1409
        %1411 = vdwg.mxu0
        %v1412 = vadd.f32 %v1299, %v1390
        %v1413 = vadd.f32 %v1300, %v1392
        %v1414 = vadd.f32 %v1301, %v1396
        %v1415 = vadd.f32 %v1302, %v1398
        %v1416 = vadd.f32 %v1303, %v1402
        %v1417 = vadd.f32 %v1304, %v1404
        %v1418 = vadd.f32 %v1305, %v1408
        %v1419 = vadd.f32 %v1306, %v1410
        %v1421 = vsel %vm1190, %v607, 0
        %v1424 = vsel %vm1190, %v608, 0
        %v1427 = vsel %vm1190, %v609, 0
        %v1430 = vsel %vm1190, %v610, 0
        %v1433 = vsel %vm1203, %v1188, 0
        %v1436 = vsel %vm1203, %v1189, 0
        %1438 = vmatprep.subr.mxu0 %v1436
        %1439 = vmatpush1.msra.mxu0 %v1433
        %1440 = vmatprep.subr.mxu0 0.0
        %1441 = vmatpush1.msra.mxu0 0.0
        %1442 = vmatprep.subr.mxu0 0.0
        %1443 = vmatpush1.msra.mxu0 0.0
        %1444 = vmatprep.subr.mxu0 0.0
        %1445 = vmatpush1.msra.mxu0 0.0
        %1446 = vmatprep.subr.mxu0 0.0
        %1447 = vmatpush1.msra.mxu0 0.0
        %1448 = vmatprep.subr.mxu0 0.0
        %1449 = vmatpush1.msra.mxu0 0.0
        %1450 = vmatprep.subr.mxu0 0.0
        %1451 = vmatpush1.msra.mxu0 0.0
        %1452 = vmatprep.subr.mxu0 0.0
        %1453 = vmatpush1.msra.mxu0 0.0
        %1454 = vmatprep.subr.mxu0 0.0
        %1455 = vmatpush1.msra.mxu0 0.0
        %1456 = vmatprep.subr.mxu0 0.0
        %1457 = vmatpush1.msra.mxu0 0.0
        %1458 = vmatprep.subr.mxu0 0.0
        %1459 = vmatpush1.msra.mxu0 0.0
        %1460 = vmatprep.subr.mxu0 0.0
        %1461 = vmatpush1.msra.mxu0 0.0
        %1462 = vmatprep.subr.mxu0 0.0
        %1463 = vmatpush1.msra.mxu0 0.0
        %1464 = vmatprep.subr.mxu0 0.0
        %1465 = vmatpush1.msra.mxu0 0.0
        %1466 = vmatprep.subr.mxu0 0.0
        %1467 = vmatpush1.msra.mxu0 0.0
        %1468 = vmatprep.subr.mxu0 0.0
        %1469 = vmatpush1.msra.mxu0 0.0
        %1470 = vmatprep.subr.mxu0 0.0
        %1471 = vmatpush1.msra.mxu0 0.0
        %1472 = vmatprep.subr.mxu0 0.0
        %1473 = vmatpush1.msra.mxu0 0.0
        %1474 = vmatprep.subr.mxu0 0.0
        %1475 = vmatpush1.msra.mxu0 0.0
        %1476 = vmatprep.subr.mxu0 0.0
        %1477 = vmatpush1.msra.mxu0 0.0
        %1478 = vmatprep.subr.mxu0 0.0
        %1479 = vmatpush1.msra.mxu0 0.0
        %1480 = vmatprep.subr.mxu0 0.0
        %1481 = vmatpush1.msra.mxu0 0.0
        %1482 = vmatprep.subr.mxu0 0.0
        %1483 = vmatpush1.msra.mxu0 0.0
        %1484 = vmatprep.subr.mxu0 0.0
        %1485 = vmatpush1.msra.mxu0 0.0
        %1486 = vmatprep.subr.mxu0 0.0
        %1487 = vmatpush1.msra.mxu0 0.0
        %1488 = vmatprep.subr.mxu0 0.0
        %1489 = vmatpush1.msra.mxu0 0.0
        %1490 = vmatprep.subr.mxu0 0.0
        %1491 = vmatpush1.msra.mxu0 0.0
        %1492 = vmatprep.subr.mxu0 0.0
        %1493 = vmatpush1.msra.mxu0 0.0
        %1494 = vmatprep.subr.mxu0 0.0
        %1495 = vmatpush1.msra.mxu0 0.0
        %1496 = vmatprep.subr.mxu0 0.0
        %1497 = vmatpush1.msra.mxu0 0.0
        %1498 = vmatprep.subr.mxu0 0.0
        %1499 = vmatpush1.msra.mxu0 0.0
        %1500 = vmatprep.subr.mxu0 0.0
        %1501 = vmatpush1.msra.mxu0 0.0
        %1502 = vmatprep.mubr.f32.mxu0 0.0
        %1503 = vmatmul.mubr.f32.gmra.mrb[0].mxu0 %v1421
        %v1504 = vpop.f32.mrb[0].mxu0
        %v1505 = vadd.f32 0.0, %v1504
        %v1506 = vpop.f32.mrb[0].mxu0
        %v1507 = vadd.f32 0.0, %v1506
        %1508 = vmatprep.mubr.f32.mxu0 0.0
        %1509 = vmatmul.mubr.f32.gmra.mrb[0].mxu0 %v1424
        %v1510 = vpop.f32.mrb[0].mxu0
        %v1511 = vadd.f32 0.0, %v1510
        %v1512 = vpop.f32.mrb[0].mxu0
        %v1513 = vadd.f32 0.0, %v1512
        %1514 = vmatprep.mubr.f32.mxu0 0.0
        %1515 = vmatmul.mubr.f32.gmra.mrb[0].mxu0 %v1427
        %v1516 = vpop.f32.mrb[0].mxu0
        %v1517 = vadd.f32 0.0, %v1516
        %v1518 = vpop.f32.mrb[0].mxu0
        %v1519 = vadd.f32 0.0, %v1518
        %1520 = vmatprep.mubr.f32.mxu0 0.0
        %1521 = vmatmul.mubr.f32.gmra.mrb[0].mxu0 %v1430
        %v1522 = vpop.f32.mrb[0].mxu0
        %v1523 = vadd.f32 0.0, %v1522
        %v1524 = vpop.f32.mrb[0].mxu0
        %v1525 = vadd.f32 0.0, %v1524
        %1526 = vdwg.mxu0
        %v1527 = vadd.f32 %v1412, %v1505
        %v1528 = vadd.f32 %v1413, %v1507
        %v1529 = vadd.f32 %v1414, %v1511
        %v1530 = vadd.f32 %v1415, %v1513
        %v1531 = vadd.f32 %v1416, %v1517
        %v1532 = vadd.f32 %v1417, %v1519
        %v1533 = vadd.f32 %v1418, %v1523
        %v1534 = vadd.f32 %v1419, %v1525
        %1535 = vrot.lane.b32.xlu0 %v1122, 16
        %v1536 = vpop.permute.xlu0 %1535
        %1538 = vrot.lane.b32.xlu0 %v1121, 16
        %v1539 = vpop.permute.xlu0 %1538
        %v1540 = vsel %vm795, %v1539, %v1536
        %v1543 = vsel %vm795, %v1536, %v1539
        %1544 = vrot.lane.b32.xlu0 %v1121, 112
        %v1545 = vpop.permute.xlu0 %1544
        %1546 = vrot.lane.b32.xlu0 %v1122, 112
        %v1547 = vpop.permute.xlu0 %1546
        %v1548 = vsel %vm1172, %v1545, %v1547
        %v1552 = vsel %vm1172, %v1547, %v1545
        %v1553 = vsel %vm1180, %v1548, %v1543
        %v1554 = vsel %vm1181, %v1552, %v1540
        %v1555 = vsel %vm1186, %v1543, %v1548
        %v1556 = vsel %vm1187, %v1540, %v1552
        %v1558 = vsel %vm1190, %v587, 0
        %v1561 = vsel %vm1190, %v588, 0
        %v1564 = vsel %vm1190, %v589, 0
        %v1567 = vsel %vm1190, %v590, 0
        %v1570 = vsel %vm1203, %v1553, 0
        %v1573 = vsel %vm1203, %v1554, 0
        %1575 = vmatprep.subr.mxu0 %v1573
        %1576 = vmatpush1.msra.mxu0 %v1570
        %1577 = vmatprep.subr.mxu0 0.0
        %1578 = vmatpush1.msra.mxu0 0.0
        %1579 = vmatprep.subr.mxu0 0.0
        %1580 = vmatpush1.msra.mxu0 0.0
        %1581 = vmatprep.subr.mxu0 0.0
        %1582 = vmatpush1.msra.mxu0 0.0
        %1583 = vmatprep.subr.mxu0 0.0
        %1584 = vmatpush1.msra.mxu0 0.0
        %1585 = vmatprep.subr.mxu0 0.0
        %1586 = vmatpush1.msra.mxu0 0.0
        %1587 = vmatprep.subr.mxu0 0.0
        %1588 = vmatpush1.msra.mxu0 0.0
        %1589 = vmatprep.subr.mxu0 0.0
        %1590 = vmatpush1.msra.mxu0 0.0
        %1591 = vmatprep.subr.mxu0 0.0
        %1592 = vmatpush1.msra.mxu0 0.0
        %1593 = vmatprep.subr.mxu0 0.0
        %1594 = vmatpush1.msra.mxu0 0.0
        %1595 = vmatprep.subr.mxu0 0.0
        %1596 = vmatpush1.msra.mxu0 0.0
        %1597 = vmatprep.subr.mxu0 0.0
        %1598 = vmatpush1.msra.mxu0 0.0
        %1599 = vmatprep.subr.mxu0 0.0
        %1600 = vmatpush1.msra.mxu0 0.0
        %1601 = vmatprep.subr.mxu0 0.0
        %1602 = vmatpush1.msra.mxu0 0.0
        %1603 = vmatprep.subr.mxu0 0.0
        %1604 = vmatpush1.msra.mxu0 0.0
        %1605 = vmatprep.subr.mxu0 0.0
        %1606 = vmatpush1.msra.mxu0 0.0
        %1607 = vmatprep.subr.mxu0 0.0
        %1608 = vmatpush1.msra.mxu0 0.0
        %1609 = vmatprep.subr.mxu0 0.0
        %1610 = vmatpush1.msra.mxu0 0.0
        %1611 = vmatprep.subr.mxu0 0.0
        %1612 = vmatpush1.msra.mxu0 0.0
        %1613 = vmatprep.subr.mxu0 0.0
        %1614 = vmatpush1.msra.mxu0 0.0
        %1615 = vmatprep.subr.mxu0 0.0
        %1616 = vmatpush1.msra.mxu0 0.0
        %1617 = vmatprep.subr.mxu0 0.0
        %1618 = vmatpush1.msra.mxu0 0.0
        %1619 = vmatprep.subr.mxu0 0.0
        %1620 = vmatpush1.msra.mxu0 0.0
        %1621 = vmatprep.subr.mxu0 0.0
        %1622 = vmatpush1.msra.mxu0 0.0
        %1623 = vmatprep.subr.mxu0 0.0
        %1624 = vmatpush1.msra.mxu0 0.0
        %1625 = vmatprep.subr.mxu0 0.0
        %1626 = vmatpush1.msra.mxu0 0.0
        %1627 = vmatprep.subr.mxu0 0.0
        %1628 = vmatpush1.msra.mxu0 0.0
        %1629 = vmatprep.subr.mxu0 0.0
        %1630 = vmatpush1.msra.mxu0 0.0
        %1631 = vmatprep.subr.mxu0 0.0
        %1632 = vmatpush1.msra.mxu0 0.0
        %1633 = vmatprep.subr.mxu0 0.0
        %1634 = vmatpush1.msra.mxu0 0.0
        %1635 = vmatprep.subr.mxu0 0.0
        %1636 = vmatpush1.msra.mxu0 0.0
        %1637 = vmatprep.subr.mxu0 0.0
        %1638 = vmatpush1.msra.mxu0 0.0
        %1639 = vmatprep.mubr.f32.mxu0 0.0
        %1640 = vmatmul.mubr.f32.gmra.mrb[0].mxu0 %v1558
        %v1641 = vpop.f32.mrb[0].mxu0
        %v1642 = vadd.f32 0.0, %v1641
        %v1643 = vpop.f32.mrb[0].mxu0
        %v1644 = vadd.f32 0.0, %v1643
        %1645 = vmatprep.mubr.f32.mxu0 0.0
        %1646 = vmatmul.mubr.f32.gmra.mrb[0].mxu0 %v1561
        %v1647 = vpop.f32.mrb[0].mxu0
        %v1648 = vadd.f32 0.0, %v1647
        %v1649 = vpop.f32.mrb[0].mxu0
        %v1650 = vadd.f32 0.0, %v1649
        %1651 = vmatprep.mubr.f32.mxu0 0.0
        %1652 = vmatmul.mubr.f32.gmra.mrb[0].mxu0 %v1564
        %v1653 = vpop.f32.mrb[0].mxu0
        %v1654 = vadd.f32 0.0, %v1653
        %v1655 = vpop.f32.mrb[0].mxu0
        %v1656 = vadd.f32 0.0, %v1655
        %1657 = vmatprep.mubr.f32.mxu0 0.0
        %1658 = vmatmul.mubr.f32.gmra.mrb[0].mxu0 %v1567
        %v1659 = vpop.f32.mrb[0].mxu0
        %v1660 = vadd.f32 0.0, %v1659
        %v1661 = vpop.f32.mrb[0].mxu0
        %v1662 = vadd.f32 0.0, %v1661
        %1663 = vdwg.mxu0
        %v1664 = vadd.f32 %v1527, %v1642
        %v1665 = vadd.f32 %v1528, %v1644
        %v1666 = vadd.f32 %v1529, %v1648
        %v1667 = vadd.f32 %v1530, %v1650
        %v1668 = vadd.f32 %v1531, %v1654
        %v1669 = vadd.f32 %v1532, %v1656
        %v1670 = vadd.f32 %v1533, %v1660
        %v1671 = vadd.f32 %v1534, %v1662
        %v1673 = vsel %vm1190, %v599, 0
        %v1676 = vsel %vm1190, %v600, 0
        %v1679 = vsel %vm1190, %v601, 0
        %v1682 = vsel %vm1190, %v602, 0
        %v1684 = vsel %vm1203, %v1121, 0
        %v1686 = vsel %vm1203, %v1122, 0
        %1688 = vmatprep.subr.mxu0 %v1686
        %1689 = vmatpush1.msra.mxu0 %v1684
        %1690 = vmatprep.subr.mxu0 0.0
        %1691 = vmatpush1.msra.mxu0 0.0
        %1692 = vmatprep.subr.mxu0 0.0
        %1693 = vmatpush1.msra.mxu0 0.0
        %1694 = vmatprep.subr.mxu0 0.0
        %1695 = vmatpush1.msra.mxu0 0.0
        %1696 = vmatprep.subr.mxu0 0.0
        %1697 = vmatpush1.msra.mxu0 0.0
        %1698 = vmatprep.subr.mxu0 0.0
        %1699 = vmatpush1.msra.mxu0 0.0
        %1700 = vmatprep.subr.mxu0 0.0
        %1701 = vmatpush1.msra.mxu0 0.0
        %1702 = vmatprep.subr.mxu0 0.0
        %1703 = vmatpush1.msra.mxu0 0.0
        %1704 = vmatprep.subr.mxu0 0.0
        %1705 = vmatpush1.msra.mxu0 0.0
        %1706 = vmatprep.subr.mxu0 0.0
        %1707 = vmatpush1.msra.mxu0 0.0
        %1708 = vmatprep.subr.mxu0 0.0
        %1709 = vmatpush1.msra.mxu0 0.0
        %1710 = vmatprep.subr.mxu0 0.0
        %1711 = vmatpush1.msra.mxu0 0.0
        %1712 = vmatprep.subr.mxu0 0.0
        %1713 = vmatpush1.msra.mxu0 0.0
        %1714 = vmatprep.subr.mxu0 0.0
        %1715 = vmatpush1.msra.mxu0 0.0
        %1716 = vmatprep.subr.mxu0 0.0
        %1717 = vmatpush1.msra.mxu0 0.0
        %1718 = vmatprep.subr.mxu0 0.0
        %1719 = vmatpush1.msra.mxu0 0.0
        %1720 = vmatprep.subr.mxu0 0.0
        %1721 = vmatpush1.msra.mxu0 0.0
        %1722 = vmatprep.subr.mxu0 0.0
        %1723 = vmatpush1.msra.mxu0 0.0
        %1724 = vmatprep.subr.mxu0 0.0
        %1725 = vmatpush1.msra.mxu0 0.0
        %1726 = vmatprep.subr.mxu0 0.0
        %1727 = vmatpush1.msra.mxu0 0.0
        %1728 = vmatprep.subr.mxu0 0.0
        %1729 = vmatpush1.msra.mxu0 0.0
        %1730 = vmatprep.subr.mxu0 0.0
        %1731 = vmatpush1.msra.mxu0 0.0
        %1732 = vmatprep.subr.mxu0 0.0
        %1733 = vmatpush1.msra.mxu0 0.0
        %1734 = vmatprep.subr.mxu0 0.0
        %1735 = vmatpush1.msra.mxu0 0.0
        %1736 = vmatprep.subr.mxu0 0.0
        %1737 = vmatpush1.msra.mxu0 0.0
        %1738 = vmatprep.subr.mxu0 0.0
        %1739 = vmatpush1.msra.mxu0 0.0
        %1740 = vmatprep.subr.mxu0 0.0
        %1741 = vmatpush1.msra.mxu0 0.0
        %1742 = vmatprep.subr.mxu0 0.0
        %1743 = vmatpush1.msra.mxu0 0.0
        %1744 = vmatprep.subr.mxu0 0.0
        %1745 = vmatpush1.msra.mxu0 0.0
        %1746 = vmatprep.subr.mxu0 0.0
        %1747 = vmatpush1.msra.mxu0 0.0
        %1748 = vmatprep.subr.mxu0 0.0
        %1749 = vmatpush1.msra.mxu0 0.0
        %1750 = vmatprep.subr.mxu0 0.0
        %1751 = vmatpush1.msra.mxu0 0.0
        %1752 = vmatprep.mubr.f32.mxu0 0.0
        %1753 = vmatmul.mubr.f32.gmra.mrb[0].mxu0 %v1673
        %v1754 = vpop.f32.mrb[0].mxu0
        %v1755 = vadd.f32 0.0, %v1754
        %v1756 = vpop.f32.mrb[0].mxu0
        %v1757 = vadd.f32 0.0, %v1756
        %1758 = vmatprep.mubr.f32.mxu0 0.0
        %1759 = vmatmul.mubr.f32.gmra.mrb[0].mxu0 %v1676
        %v1760 = vpop.f32.mrb[0].mxu0
        %v1761 = vadd.f32 0.0, %v1760
        %v1762 = vpop.f32.mrb[0].mxu0
        %v1763 = vadd.f32 0.0, %v1762
        %1764 = vmatprep.mubr.f32.mxu0 0.0
        %1765 = vmatmul.mubr.f32.gmra.mrb[0].mxu0 %v1679
        %v1766 = vpop.f32.mrb[0].mxu0
        %v1767 = vadd.f32 0.0, %v1766
        %v1768 = vpop.f32.mrb[0].mxu0
        %v1769 = vadd.f32 0.0, %v1768
        %1770 = vmatprep.mubr.f32.mxu0 0.0
        %1771 = vmatmul.mubr.f32.gmra.mrb[0].mxu0 %v1682
        %v1772 = vpop.f32.mrb[0].mxu0
        %v1773 = vadd.f32 0.0, %v1772
        %v1774 = vpop.f32.mrb[0].mxu0
        %v1775 = vadd.f32 0.0, %v1774
        %1776 = vdwg.mxu0
        %v1777 = vadd.f32 %v1664, %v1755
        %v1778 = vadd.f32 %v1665, %v1757
        %v1779 = vadd.f32 %v1666, %v1761
        %v1780 = vadd.f32 %v1667, %v1763
        %v1781 = vadd.f32 %v1668, %v1767
        %v1782 = vadd.f32 %v1669, %v1769
        %v1783 = vadd.f32 %v1670, %v1773
        %v1784 = vadd.f32 %v1671, %v1775
        %v1786 = vsel %vm1190, %v611, 0
        %v1789 = vsel %vm1190, %v612, 0
        %v1792 = vsel %vm1190, %v613, 0
        %v1795 = vsel %vm1190, %v614, 0
        %v1798 = vsel %vm1203, %v1555, 0
        %v1801 = vsel %vm1203, %v1556, 0
        %1803 = vmatprep.subr.mxu0 %v1801
        %1804 = vmatpush1.msra.mxu0 %v1798
        %1805 = vmatprep.subr.mxu0 0.0
        %1806 = vmatpush1.msra.mxu0 0.0
        %1807 = vmatprep.subr.mxu0 0.0
        %1808 = vmatpush1.msra.mxu0 0.0
        %1809 = vmatprep.subr.mxu0 0.0
        %1810 = vmatpush1.msra.mxu0 0.0
        %1811 = vmatprep.subr.mxu0 0.0
        %1812 = vmatpush1.msra.mxu0 0.0
        %1813 = vmatprep.subr.mxu0 0.0
        %1814 = vmatpush1.msra.mxu0 0.0
        %1815 = vmatprep.subr.mxu0 0.0
        %1816 = vmatpush1.msra.mxu0 0.0
        %1817 = vmatprep.subr.mxu0 0.0
        %1818 = vmatpush1.msra.mxu0 0.0
        %1819 = vmatprep.subr.mxu0 0.0
        %1820 = vmatpush1.msra.mxu0 0.0
        %1821 = vmatprep.subr.mxu0 0.0
        %1822 = vmatpush1.msra.mxu0 0.0
        %1823 = vmatprep.subr.mxu0 0.0
        %1824 = vmatpush1.msra.mxu0 0.0
        %1825 = vmatprep.subr.mxu0 0.0
        %1826 = vmatpush1.msra.mxu0 0.0
        %1827 = vmatprep.subr.mxu0 0.0
        %1828 = vmatpush1.msra.mxu0 0.0
        %1829 = vmatprep.subr.mxu0 0.0
        %1830 = vmatpush1.msra.mxu0 0.0
        %1831 = vmatprep.subr.mxu0 0.0
        %1832 = vmatpush1.msra.mxu0 0.0
        %1833 = vmatprep.subr.mxu0 0.0
        %1834 = vmatpush1.msra.mxu0 0.0
        %1835 = vmatprep.subr.mxu0 0.0
        %1836 = vmatpush1.msra.mxu0 0.0
        %1837 = vmatprep.subr.mxu0 0.0
        %1838 = vmatpush1.msra.mxu0 0.0
        %1839 = vmatprep.subr.mxu0 0.0
        %1840 = vmatpush1.msra.mxu0 0.0
        %1841 = vmatprep.subr.mxu0 0.0
        %1842 = vmatpush1.msra.mxu0 0.0
        %1843 = vmatprep.subr.mxu0 0.0
        %1844 = vmatpush1.msra.mxu0 0.0
        %1845 = vmatprep.subr.mxu0 0.0
        %1846 = vmatpush1.msra.mxu0 0.0
        %1847 = vmatprep.subr.mxu0 0.0
        %1848 = vmatpush1.msra.mxu0 0.0
        %1849 = vmatprep.subr.mxu0 0.0
        %1850 = vmatpush1.msra.mxu0 0.0
        %1851 = vmatprep.subr.mxu0 0.0
        %1852 = vmatpush1.msra.mxu0 0.0
        %1853 = vmatprep.subr.mxu0 0.0
        %1854 = vmatpush1.msra.mxu0 0.0
        %1855 = vmatprep.subr.mxu0 0.0
        %1856 = vmatpush1.msra.mxu0 0.0
        %1857 = vmatprep.subr.mxu0 0.0
        %1858 = vmatpush1.msra.mxu0 0.0
        %1859 = vmatprep.subr.mxu0 0.0
        %1860 = vmatpush1.msra.mxu0 0.0
        %1861 = vmatprep.subr.mxu0 0.0
        %1862 = vmatpush1.msra.mxu0 0.0
        %1863 = vmatprep.subr.mxu0 0.0
        %1864 = vmatpush1.msra.mxu0 0.0
        %1865 = vmatprep.subr.mxu0 0.0
        %1866 = vmatpush1.msra.mxu0 0.0
        %1867 = vmatprep.mubr.f32.mxu0 0.0
        %1868 = vmatmul.mubr.f32.gmra.mrb[0].mxu0 %v1786
        %v1869 = vpop.f32.mrb[0].mxu0
        %v1870 = vadd.f32 0.0, %v1869
        %v1871 = vpop.f32.mrb[0].mxu0
        %v1872 = vadd.f32 0.0, %v1871
        %1873 = vmatprep.mubr.f32.mxu0 0.0
        %1874 = vmatmul.mubr.f32.gmra.mrb[0].mxu0 %v1789
        %v1875 = vpop.f32.mrb[0].mxu0
        %v1876 = vadd.f32 0.0, %v1875
        %v1877 = vpop.f32.mrb[0].mxu0
        %v1878 = vadd.f32 0.0, %v1877
        %1879 = vmatprep.mubr.f32.mxu0 0.0
        %1880 = vmatmul.mubr.f32.gmra.mrb[0].mxu0 %v1792
        %v1881 = vpop.f32.mrb[0].mxu0
        %v1882 = vadd.f32 0.0, %v1881
        %v1883 = vpop.f32.mrb[0].mxu0
        %v1884 = vadd.f32 0.0, %v1883
        %1885 = vmatprep.mubr.f32.mxu0 0.0
        %1886 = vmatmul.mubr.f32.gmra.mrb[0].mxu0 %v1795
        %v1887 = vpop.f32.mrb[0].mxu0
        %v1888 = vadd.f32 0.0, %v1887
        %v1889 = vpop.f32.mrb[0].mxu0
        %v1890 = vadd.f32 0.0, %v1889
        %1891 = vdwg.mxu0
        %v1892 = vadd.f32 %v1777, %v1870
        %v1893 = vadd.f32 %v1778, %v1872
        %v1894 = vadd.f32 %v1779, %v1876
        %v1895 = vadd.f32 %v1780, %v1878
        %v1896 = vadd.f32 %v1781, %v1882
        %v1897 = vadd.f32 %v1782, %v1884
        %v1898 = vadd.f32 %v1783, %v1888
        %v1899 = vadd.f32 %v1784, %v1890
        %1901 = vrot.lane.b32.xlu0 %v1156, 16
        %v1902 = vpop.permute.xlu0 %1901
        %1905 = vrot.lane.b32.xlu0 %v1155, 16
        %v1906 = vpop.permute.xlu0 %1905
        %v1907 = vsel %vm795, %v1906, %v1902
        %v1910 = vsel %vm795, %v1902, %v1906
        %1911 = vrot.lane.b32.xlu0 %v1155, 112
        %v1912 = vpop.permute.xlu0 %1911
        %1913 = vrot.lane.b32.xlu0 %v1156, 112
        %v1914 = vpop.permute.xlu0 %1913
        %v1915 = vsel %vm1172, %v1912, %v1914
        %v1919 = vsel %vm1172, %v1914, %v1912
        %v1920 = vsel %vm1180, %v1915, %v1910
        %v1921 = vsel %vm1181, %v1919, %v1907
        %v1922 = vsel %vm1186, %v1910, %v1915
        %v1923 = vsel %vm1187, %v1907, %v1919
        %v1925 = vsel %vm1190, %v591, 0
        %v1928 = vsel %vm1190, %v592, 0
        %v1931 = vsel %vm1190, %v593, 0
        %v1934 = vsel %vm1190, %v594, 0
        %v1937 = vsel %vm1203, %v1920, 0
        %v1940 = vsel %vm1203, %v1921, 0
        %1942 = vmatprep.subr.mxu0 %v1940
        %1943 = vmatpush1.msra.mxu0 %v1937
        %1944 = vmatprep.subr.mxu0 0.0
        %1945 = vmatpush1.msra.mxu0 0.0
        %1946 = vmatprep.subr.mxu0 0.0
        %1947 = vmatpush1.msra.mxu0 0.0
        %1948 = vmatprep.subr.mxu0 0.0
        %1949 = vmatpush1.msra.mxu0 0.0
        %1950 = vmatprep.subr.mxu0 0.0
        %1951 = vmatpush1.msra.mxu0 0.0
        %1952 = vmatprep.subr.mxu0 0.0
        %1953 = vmatpush1.msra.mxu0 0.0
        %1954 = vmatprep.subr.mxu0 0.0
        %1955 = vmatpush1.msra.mxu0 0.0
        %1956 = vmatprep.subr.mxu0 0.0
        %1957 = vmatpush1.msra.mxu0 0.0
        %1958 = vmatprep.subr.mxu0 0.0
        %1959 = vmatpush1.msra.mxu0 0.0
        %1960 = vmatprep.subr.mxu0 0.0
        %1961 = vmatpush1.msra.mxu0 0.0
        %1962 = vmatprep.subr.mxu0 0.0
        %1963 = vmatpush1.msra.mxu0 0.0
        %1964 = vmatprep.subr.mxu0 0.0
        %1965 = vmatpush1.msra.mxu0 0.0
        %1966 = vmatprep.subr.mxu0 0.0
        %1967 = vmatpush1.msra.mxu0 0.0
        %1968 = vmatprep.subr.mxu0 0.0
        %1969 = vmatpush1.msra.mxu0 0.0
        %1970 = vmatprep.subr.mxu0 0.0
        %1971 = vmatpush1.msra.mxu0 0.0
        %1972 = vmatprep.subr.mxu0 0.0
        %1973 = vmatpush1.msra.mxu0 0.0
        %1974 = vmatprep.subr.mxu0 0.0
        %1975 = vmatpush1.msra.mxu0 0.0
        %1976 = vmatprep.subr.mxu0 0.0
        %1977 = vmatpush1.msra.mxu0 0.0
        %1978 = vmatprep.subr.mxu0 0.0
        %1979 = vmatpush1.msra.mxu0 0.0
        %1980 = vmatprep.subr.mxu0 0.0
        %1981 = vmatpush1.msra.mxu0 0.0
        %1982 = vmatprep.subr.mxu0 0.0
        %1983 = vmatpush1.msra.mxu0 0.0
        %1984 = vmatprep.subr.mxu0 0.0
        %1985 = vmatpush1.msra.mxu0 0.0
        %1986 = vmatprep.subr.mxu0 0.0
        %1987 = vmatpush1.msra.mxu0 0.0
        %1988 = vmatprep.subr.mxu0 0.0
        %1989 = vmatpush1.msra.mxu0 0.0
        %1990 = vmatprep.subr.mxu0 0.0
        %1991 = vmatpush1.msra.mxu0 0.0
        %1992 = vmatprep.subr.mxu0 0.0
        %1993 = vmatpush1.msra.mxu0 0.0
        %1994 = vmatprep.subr.mxu0 0.0
        %1995 = vmatpush1.msra.mxu0 0.0
        %1996 = vmatprep.subr.mxu0 0.0
        %1997 = vmatpush1.msra.mxu0 0.0
        %1998 = vmatprep.subr.mxu0 0.0
        %1999 = vmatpush1.msra.mxu0 0.0
        %2000 = vmatprep.subr.mxu0 0.0
        %2001 = vmatpush1.msra.mxu0 0.0
        %2002 = vmatprep.subr.mxu0 0.0
        %2003 = vmatpush1.msra.mxu0 0.0
        %2004 = vmatprep.subr.mxu0 0.0
        %2005 = vmatpush1.msra.mxu0 0.0
        %2006 = vmatprep.mubr.f32.mxu0 0.0
        %2007 = vmatmul.mubr.f32.gmra.mrb[0].mxu0 %v1925
        %v2008 = vpop.f32.mrb[0].mxu0
        %v2009 = vadd.f32 0.0, %v2008
        %v2010 = vpop.f32.mrb[0].mxu0
        %v2011 = vadd.f32 0.0, %v2010
        %2012 = vmatprep.mubr.f32.mxu0 0.0
        %2013 = vmatmul.mubr.f32.gmra.mrb[0].mxu0 %v1928
        %v2014 = vpop.f32.mrb[0].mxu0
        %v2015 = vadd.f32 0.0, %v2014
        %v2016 = vpop.f32.mrb[0].mxu0
        %v2017 = vadd.f32 0.0, %v2016
        %2018 = vmatprep.mubr.f32.mxu0 0.0
        %2019 = vmatmul.mubr.f32.gmra.mrb[0].mxu0 %v1931
        %v2020 = vpop.f32.mrb[0].mxu0
        %v2021 = vadd.f32 0.0, %v2020
        %v2022 = vpop.f32.mrb[0].mxu0
        %v2023 = vadd.f32 0.0, %v2022
        %2024 = vmatprep.mubr.f32.mxu0 0.0
        %2025 = vmatmul.mubr.f32.gmra.mrb[0].mxu0 %v1934
        %v2026 = vpop.f32.mrb[0].mxu0
        %v2027 = vadd.f32 0.0, %v2026
        %v2028 = vpop.f32.mrb[0].mxu0
        %v2029 = vadd.f32 0.0, %v2028
        %2030 = vdwg.mxu0
        %v2031 = vadd.f32 %v1892, %v2009
        %v2032 = vadd.f32 %v1893, %v2011
        %v2033 = vadd.f32 %v1894, %v2015
        %v2034 = vadd.f32 %v1895, %v2017
        %v2035 = vadd.f32 %v1896, %v2021
        %v2036 = vadd.f32 %v1897, %v2023
        %v2037 = vadd.f32 %v1898, %v2027
        %v2038 = vadd.f32 %v1899, %v2029
        %v2040 = vsel %vm1190, %v603, 0
        %v2043 = vsel %vm1190, %v604, 0
        %v2046 = vsel %vm1190, %v605, 0
        %v2049 = vsel %vm1190, %v606, 0
        %v2051 = vsel %vm1203, %v1155, 0
        %v2053 = vsel %vm1203, %v1156, 0
        %2055 = vmatprep.subr.mxu0 %v2053
        %2056 = vmatpush1.msra.mxu0 %v2051
        %2057 = vmatprep.subr.mxu0 0.0
        %2058 = vmatpush1.msra.mxu0 0.0
        %2059 = vmatprep.subr.mxu0 0.0
        %2060 = vmatpush1.msra.mxu0 0.0
        %2061 = vmatprep.subr.mxu0 0.0
        %2062 = vmatpush1.msra.mxu0 0.0
        %2063 = vmatprep.subr.mxu0 0.0
        %2064 = vmatpush1.msra.mxu0 0.0
        %2065 = vmatprep.subr.mxu0 0.0
        %2066 = vmatpush1.msra.mxu0 0.0
        %2067 = vmatprep.subr.mxu0 0.0
        %2068 = vmatpush1.msra.mxu0 0.0
        %2069 = vmatprep.subr.mxu0 0.0
        %2070 = vmatpush1.msra.mxu0 0.0
        %2071 = vmatprep.subr.mxu0 0.0
        %2072 = vmatpush1.msra.mxu0 0.0
        %2073 = vmatprep.subr.mxu0 0.0
        %2074 = vmatpush1.msra.mxu0 0.0
        %2075 = vmatprep.subr.mxu0 0.0
        %2076 = vmatpush1.msra.mxu0 0.0
        %2077 = vmatprep.subr.mxu0 0.0
        %2078 = vmatpush1.msra.mxu0 0.0
        %2079 = vmatprep.subr.mxu0 0.0
        %2080 = vmatpush1.msra.mxu0 0.0
        %2081 = vmatprep.subr.mxu0 0.0
        %2082 = vmatpush1.msra.mxu0 0.0
        %2083 = vmatprep.subr.mxu0 0.0
        %2084 = vmatpush1.msra.mxu0 0.0
        %2085 = vmatprep.subr.mxu0 0.0
        %2086 = vmatpush1.msra.mxu0 0.0
        %2087 = vmatprep.subr.mxu0 0.0
        %2088 = vmatpush1.msra.mxu0 0.0
        %2089 = vmatprep.subr.mxu0 0.0
        %2090 = vmatpush1.msra.mxu0 0.0
        %2091 = vmatprep.subr.mxu0 0.0
        %2092 = vmatpush1.msra.mxu0 0.0
        %2093 = vmatprep.subr.mxu0 0.0
        %2094 = vmatpush1.msra.mxu0 0.0
        %2095 = vmatprep.subr.mxu0 0.0
        %2096 = vmatpush1.msra.mxu0 0.0
        %2097 = vmatprep.subr.mxu0 0.0
        %2098 = vmatpush1.msra.mxu0 0.0
        %2099 = vmatprep.subr.mxu0 0.0
        %2100 = vmatpush1.msra.mxu0 0.0
        %2101 = vmatprep.subr.mxu0 0.0
        %2102 = vmatpush1.msra.mxu0 0.0
        %2103 = vmatprep.subr.mxu0 0.0
        %2104 = vmatpush1.msra.mxu0 0.0
        %2105 = vmatprep.subr.mxu0 0.0
        %2106 = vmatpush1.msra.mxu0 0.0
        %2107 = vmatprep.subr.mxu0 0.0
        %2108 = vmatpush1.msra.mxu0 0.0
        %2109 = vmatprep.subr.mxu0 0.0
        %2110 = vmatpush1.msra.mxu0 0.0
        %2111 = vmatprep.subr.mxu0 0.0
        %2112 = vmatpush1.msra.mxu0 0.0
        %2113 = vmatprep.subr.mxu0 0.0
        %2114 = vmatpush1.msra.mxu0 0.0
        %2115 = vmatprep.subr.mxu0 0.0
        %2116 = vmatpush1.msra.mxu0 0.0
        %2117 = vmatprep.subr.mxu0 0.0
        %2118 = vmatpush1.msra.mxu0 0.0
        %2119 = vmatprep.mubr.f32.mxu0 0.0
        %2120 = vmatmul.mubr.f32.gmra.mrb[0].mxu0 %v2040
        %v2121 = vpop.f32.mrb[0].mxu0
        %v2122 = vadd.f32 0.0, %v2121
        %v2123 = vpop.f32.mrb[0].mxu0
        %v2124 = vadd.f32 0.0, %v2123
        %2125 = vmatprep.mubr.f32.mxu0 0.0
        %2126 = vmatmul.mubr.f32.gmra.mrb[0].mxu0 %v2043
        %v2127 = vpop.f32.mrb[0].mxu0
        %v2128 = vadd.f32 0.0, %v2127
        %v2129 = vpop.f32.mrb[0].mxu0
        %v2130 = vadd.f32 0.0, %v2129
        %2131 = vmatprep.mubr.f32.mxu0 0.0
        %2132 = vmatmul.mubr.f32.gmra.mrb[0].mxu0 %v2046
        %v2133 = vpop.f32.mrb[0].mxu0
        %v2134 = vadd.f32 0.0, %v2133
        %v2135 = vpop.f32.mrb[0].mxu0
        %v2136 = vadd.f32 0.0, %v2135
        %2137 = vmatprep.mubr.f32.mxu0 0.0
        %2138 = vmatmul.mubr.f32.gmra.mrb[0].mxu0 %v2049
        %v2139 = vpop.f32.mrb[0].mxu0
        %v2140 = vadd.f32 0.0, %v2139
        %v2141 = vpop.f32.mrb[0].mxu0
        %v2142 = vadd.f32 0.0, %v2141
        %2143 = vdwg.mxu0
        %v2144 = vadd.f32 %v2031, %v2122
        %v2145 = vadd.f32 %v2032, %v2124
        %v2146 = vadd.f32 %v2033, %v2128
        %v2147 = vadd.f32 %v2034, %v2130
        %v2148 = vadd.f32 %v2035, %v2134
        %v2149 = vadd.f32 %v2036, %v2136
        %v2150 = vadd.f32 %v2037, %v2140
        %v2151 = vadd.f32 %v2038, %v2142
        %v2153 = vsel %vm1190, %v615, 0
        %v2156 = vsel %vm1190, %v616, 0
        %v2159 = vsel %vm1190, %v617, 0
        %v2162 = vsel %vm1190, %v618, 0
        %v2165 = vsel %vm1203, %v1922, 0
        %v2168 = vsel %vm1203, %v1923, 0
        %2170 = vmatprep.subr.mxu0 %v2168
        %2171 = vmatpush1.msra.mxu0 %v2165
        %2172 = vmatprep.subr.mxu0 0.0
        %2173 = vmatpush1.msra.mxu0 0.0
        %2174 = vmatprep.subr.mxu0 0.0
        %2175 = vmatpush1.msra.mxu0 0.0
        %2176 = vmatprep.subr.mxu0 0.0
        %2177 = vmatpush1.msra.mxu0 0.0
        %2178 = vmatprep.subr.mxu0 0.0
        %2179 = vmatpush1.msra.mxu0 0.0
        %2180 = vmatprep.subr.mxu0 0.0
        %2181 = vmatpush1.msra.mxu0 0.0
        %2182 = vmatprep.subr.mxu0 0.0
        %2183 = vmatpush1.msra.mxu0 0.0
        %2184 = vmatprep.subr.mxu0 0.0
        %2185 = vmatpush1.msra.mxu0 0.0
        %2186 = vmatprep.subr.mxu0 0.0
        %2187 = vmatpush1.msra.mxu0 0.0
        %2188 = vmatprep.subr.mxu0 0.0
        %2189 = vmatpush1.msra.mxu0 0.0
        %2190 = vmatprep.subr.mxu0 0.0
        %2191 = vmatpush1.msra.mxu0 0.0
        %2192 = vmatprep.subr.mxu0 0.0
        %2193 = vmatpush1.msra.mxu0 0.0
        %2194 = vmatprep.subr.mxu0 0.0
        %2195 = vmatpush1.msra.mxu0 0.0
        %2196 = vmatprep.subr.mxu0 0.0
        %2197 = vmatpush1.msra.mxu0 0.0
        %2198 = vmatprep.subr.mxu0 0.0
        %2199 = vmatpush1.msra.mxu0 0.0
        %2200 = vmatprep.subr.mxu0 0.0
        %2201 = vmatpush1.msra.mxu0 0.0
        %2202 = vmatprep.subr.mxu0 0.0
        %2203 = vmatpush1.msra.mxu0 0.0
        %2204 = vmatprep.subr.mxu0 0.0
        %2205 = vmatpush1.msra.mxu0 0.0
        %2206 = vmatprep.subr.mxu0 0.0
        %2207 = vmatpush1.msra.mxu0 0.0
        %2208 = vmatprep.subr.mxu0 0.0
        %2209 = vmatpush1.msra.mxu0 0.0
        %2210 = vmatprep.subr.mxu0 0.0
        %2211 = vmatpush1.msra.mxu0 0.0
        %2212 = vmatprep.subr.mxu0 0.0
        %2213 = vmatpush1.msra.mxu0 0.0
        %2214 = vmatprep.subr.mxu0 0.0
        %2215 = vmatpush1.msra.mxu0 0.0
        %2216 = vmatprep.subr.mxu0 0.0
        %2217 = vmatpush1.msra.mxu0 0.0
        %2218 = vmatprep.subr.mxu0 0.0
        %2219 = vmatpush1.msra.mxu0 0.0
        %2220 = vmatprep.subr.mxu0 0.0
        %2221 = vmatpush1.msra.mxu0 0.0
        %2222 = vmatprep.subr.mxu0 0.0
        %2223 = vmatpush1.msra.mxu0 0.0
        %2224 = vmatprep.subr.mxu0 0.0
        %2225 = vmatpush1.msra.mxu0 0.0
        %2226 = vmatprep.subr.mxu0 0.0
        %2227 = vmatpush1.msra.mxu0 0.0
        %2228 = vmatprep.subr.mxu0 0.0
        %2229 = vmatpush1.msra.mxu0 0.0
        %2230 = vmatprep.subr.mxu0 0.0
        %2231 = vmatpush1.msra.mxu0 0.0
        %2232 = vmatprep.subr.mxu0 0.0
        %2233 = vmatpush1.msra.mxu0 0.0
        %2234 = vmatprep.mubr.f32.mxu0 0.0
        %2235 = vmatmul.mubr.f32.gmra.mrb[0].mxu0 %v2153
        %v2236 = vpop.f32.mrb[0].mxu0
        %v2237 = vadd.f32 0.0, %v2236
        %v2238 = vpop.f32.mrb[0].mxu0
        %v2239 = vadd.f32 0.0, %v2238
        %2240 = vmatprep.mubr.f32.mxu0 0.0
        %2241 = vmatmul.mubr.f32.gmra.mrb[0].mxu0 %v2156
        %v2242 = vpop.f32.mrb[0].mxu0
        %v2243 = vadd.f32 0.0, %v2242
        %v2244 = vpop.f32.mrb[0].mxu0
        %v2245 = vadd.f32 0.0, %v2244
        %2246 = vmatprep.mubr.f32.mxu0 0.0
        %2247 = vmatmul.mubr.f32.gmra.mrb[0].mxu0 %v2159
        %v2248 = vpop.f32.mrb[0].mxu0
        %v2249 = vadd.f32 0.0, %v2248
        %v2250 = vpop.f32.mrb[0].mxu0
        %v2251 = vadd.f32 0.0, %v2250
        %2252 = vmatprep.mubr.f32.mxu0 0.0
        %2253 = vmatmul.mubr.f32.gmra.mrb[0].mxu0 %v2162
        %v2254 = vpop.f32.mrb[0].mxu0
        %v2255 = vadd.f32 0.0, %v2254
        %v2256 = vpop.f32.mrb[0].mxu0
        %v2257 = vadd.f32 0.0, %v2256
        %2258 = vdwg.mxu0
        %v2259 = vadd.f32 %v2144, %v2237
        %v2260 = vadd.f32 %v2145, %v2239
        %v2261 = vadd.f32 %v2146, %v2243
        %v2262 = vadd.f32 %v2147, %v2245
        %v2263 = vadd.f32 %v2148, %v2249
        %v2264 = vadd.f32 %v2149, %v2251
        %v2265 = vadd.f32 %v2150, %v2255
        %v2266 = vadd.f32 %v2151, %v2257
        %v2267 = vmul.f32 %v2259, 0.01
        %v2268 = vmul.f32 %v2260, 0.01
        %v2269 = vmul.f32 %v2261, 0.01
        %v2270 = vmul.f32 %v2262, 0.01
        %v2271 = vmul.f32 %v2263, 0.01
        %v2272 = vmul.f32 %v2264, 0.01
        %v2273 = vmul.f32 %v2265, 0.01
        %v2274 = vmul.f32 %v2266, 0.01
        %v2275 = vmax.f32 %v2259, %v2267
        %v2276 = vmax.f32 %v2260, %v2268
        %v2277 = vmax.f32 %v2261, %v2269
        %v2278 = vmax.f32 %v2262, %v2270
        %v2279 = vmax.f32 %v2263, %v2271
        %v2280 = vmax.f32 %v2264, %v2272
        %v2281 = vmax.f32 %v2265, %v2273
        %v2282 = vmax.f32 %v2266, %v2274
        %2284 = vset.pattern.permute.xlu0 0
        %2285 = vperm.xlu0 %2284, %v624
        %v2286 = vpop.permute.xlu0 %2285
        %vm2288 = vcmask 261120
        %v2290 = vsel %vm2288, %v623, 0
        %2292 = vmatprep.subr.mxu0 %v2276
        %2293 = vmatpush1.msra.mxu0 %v2275
        %2294 = vmatprep.subr.mxu0 %v2278
        %2295 = vmatpush1.msra.mxu0 %v2277
        %2296 = vmatprep.subr.mxu0 %v2280
        %2297 = vmatpush1.msra.mxu0 %v2279
        %2298 = vmatprep.subr.mxu0 %v2282
        %2299 = vmatpush1.msra.mxu0 %v2281
        %2300 = vmatprep.subr.mxu0 0.0
        %2301 = vmatpush1.msra.mxu0 0.0
        %2302 = vmatprep.subr.mxu0 0.0
        %2303 = vmatpush1.msra.mxu0 0.0
        %2304 = vmatprep.subr.mxu0 0.0
        %2305 = vmatpush1.msra.mxu0 0.0
        %2306 = vmatprep.subr.mxu0 0.0
        %2307 = vmatpush1.msra.mxu0 0.0
        %2308 = vmatprep.subr.mxu0 0.0
        %2309 = vmatpush1.msra.mxu0 0.0
        %2310 = vmatprep.subr.mxu0 0.0
        %2311 = vmatpush1.msra.mxu0 0.0
        %2312 = vmatprep.subr.mxu0 0.0
        %2313 = vmatpush1.msra.mxu0 0.0
        %2314 = vmatprep.subr.mxu0 0.0
        %2315 = vmatpush1.msra.mxu0 0.0
        %2316 = vmatprep.subr.mxu0 0.0
        %2317 = vmatpush1.msra.mxu0 0.0
        %2318 = vmatprep.subr.mxu0 0.0
        %2319 = vmatpush1.msra.mxu0 0.0
        %2320 = vmatprep.subr.mxu0 0.0
        %2321 = vmatpush1.msra.mxu0 0.0
        %2322 = vmatprep.subr.mxu0 0.0
        %2323 = vmatpush1.msra.mxu0 0.0
        %2324 = vmatprep.subr.mxu0 0.0
        %2325 = vmatpush1.msra.mxu0 0.0
        %2326 = vmatprep.subr.mxu0 0.0
        %2327 = vmatpush1.msra.mxu0 0.0
        %2328 = vmatprep.subr.mxu0 0.0
        %2329 = vmatpush1.msra.mxu0 0.0
        %2330 = vmatprep.subr.mxu0 0.0
        %2331 = vmatpush1.msra.mxu0 0.0
        %2332 = vmatprep.subr.mxu0 0.0
        %2333 = vmatpush1.msra.mxu0 0.0
        %2334 = vmatprep.subr.mxu0 0.0
        %2335 = vmatpush1.msra.mxu0 0.0
        %2336 = vmatprep.subr.mxu0 0.0
        %2337 = vmatpush1.msra.mxu0 0.0
        %2338 = vmatprep.subr.mxu0 0.0
        %2339 = vmatpush1.msra.mxu0 0.0
        %2340 = vmatprep.subr.mxu0 0.0
        %2341 = vmatpush1.msra.mxu0 0.0
        %2342 = vmatprep.subr.mxu0 0.0
        %2343 = vmatpush1.msra.mxu0 0.0
        %2344 = vmatprep.subr.mxu0 0.0
        %2345 = vmatpush1.msra.mxu0 0.0
        %2346 = vmatprep.subr.mxu0 0.0
        %2347 = vmatpush1.msra.mxu0 0.0
        %2348 = vmatprep.subr.mxu0 0.0
        %2349 = vmatpush1.msra.mxu0 0.0
        %2350 = vmatprep.subr.mxu0 0.0
        %2351 = vmatpush1.msra.mxu0 0.0
        %2352 = vmatprep.subr.mxu0 0.0
        %2353 = vmatpush1.msra.mxu0 0.0
        %2354 = vmatprep.subr.mxu0 0.0
        %2355 = vmatpush1.msra.mxu0 0.0
        %2356 = vmatprep.mubr.f32.mxu0 0.0
        %2357 = vmatmul.mubr.f32.gmra.mrb[0].mxu0 %v2290
        %v2358 = vpop.f32.mrb[0].mxu0
        %v2359 = vadd.f32 %v2286, %v2358
        %v2360 = vpop.f32.mrb[0].mxu0
        %v2361 = vadd.f32 %v2286, %v2360
        %2362 = vdwg.mxu0
        %v2364 = vlaneseq
        %v2365 = vshrl.u32 %v2364, 7
        %v2366 = vsub.s32 0, %v2365
        %v2367 = vrot.slane %v1004, %v2366
        %v2368 = vlaneseq
        %v2369 = vshrl.u32 %v2368, 7
        %v2370 = vsub.s32 2, %v2369
        %v2371 = vrot.slane %v1004, %v2370
        %v2374 = vlaneseq
        %v2375 = vshrl.u32 %v2374, 7
        %v2376 = vsub.s32 0, %v2375
        %v2377 = vrot.slane %v2367, %v2376
        %v2378 = vlaneseq
        %v2379 = vshrl.u32 %v2378, 7
        %v2380 = vsub.s32 0, %v2379
        %v2381 = vrot.slane %v2371, %v2380
        %v2382 = vmul.f32 %v2359, %v2377
        %v2383 = vmul.f32 %v2361, %v2381
        %v2386 = vcombine.low %v2382, %v2383
        %v2388 = vadd.f32 %v1005, %v2386
        %v2390 = vcombine.high %v2388, %v2388
        %v2392 = vsel %vm1009, %v2388, 0.0
        %v2393 = vsel %vm1009, %v2390, 0.0
        %v2394 = vadd.f32 %v2392, %v2393
        %2395 = vadd.xlane.f32.xlu0 %v2394
        %v2396 = vpop.xlane.xlu0 %2395
        %v2397 = vrot.slane %v2396, 4
        %v2398 = vadd.f32 %v2396, %v2397
        %v2399 = vrot.slane %v2398, 2
        %v2400 = vadd.f32 %v2398, %v2399
        %v2401 = vrot.slane %v2400, 1
        %v2402 = vadd.f32 %v2400, %v2401
        %s2403 = vtos %v2402
        %s2404 = sadd.f32 %s2403, %s983
        %v2405 = vrcp.pop 1792.0
        %s2406 = vtos %v2405
        %s2407 = smul.f32 %s2404, %s2406
        %v2408 = vstv %s2407
        %v2409 = vsub.f32 %v2388, %v2408
        %v2410 = vsub.f32 %v970, %v2408
        %v2411 = vsub.f32 %v971, %v2408
        %v2412 = vmul.f32 %v2409, %v2409
        %v2414 = vcombine.high %v2412, %v2412
        %v2416 = vsel %vm1009, %v2412, 0.0
        %v2417 = vsel %vm1009, %v2414, 0.0
        %v2418 = vadd.f32 %v2416, %v2417
        %2419 = vadd.xlane.f32.xlu0 %v2418
        %v2420 = vpop.xlane.xlu0 %2419
        %v2421 = vrot.slane %v2420, 4
        %v2422 = vadd.f32 %v2420, %v2421
        %v2423 = vrot.slane %v2422, 2
        %v2424 = vadd.f32 %v2422, %v2423
        %v2425 = vrot.slane %v2424, 1
        %v2426 = vadd.f32 %v2424, %v2425
        %s2427 = vtos %v2426
        %v2428 = vmul.f32 %v2410, %v2410
        %v2429 = vmul.f32 %v2411, %v2411
        %v2430 = vsel %vm689, %v2428, 0.0
        %v2431 = vsel %vm689, %v2429, 0.0
        %v2432 = vadd.f32 %v2430, %v2431
        %2433 = vadd.xlane.f32.xlu0 %v2432
        %v2434 = vpop.xlane.xlu0 %2433
        %v2435 = vrot.slane %v2434, 4
        %v2436 = vadd.f32 %v2434, %v2435
        %v2437 = vrot.slane %v2436, 2
        %v2438 = vadd.f32 %v2436, %v2437
        %v2439 = vrot.slane %v2438, 1
        %v2440 = vadd.f32 %v2438, %v2439
        %s2441 = vtos %v2440
        %s2442 = sadd.f32 %s2427, %s2441
        %v2443 = vrcp.pop 1792.0
        %s2444 = vtos %v2443
        %s2445 = smul.f32 %s2442, %s2444
        %s2446 = sadd.f32 %s2445, 1e-05
        %v2447 = vstv %s2446
        %v2448 = vrsqrt.pop %v2447
        %s2449 = vtos %v2448
        %v2450 = vstv %s2449
        %v2451 = vmul.f32 %v2409, %v2450
        %v2452 = vmul.f32 %v2451, %v1080
        %v2453 = vadd.f32 %v2452, %v1093
        %v2454 = vmul.f32 %v2410, %v2450
        %v2455 = vmul.f32 %v2411, %v2450
        %v2456 = vmul.f32 %v2454, %v1101
        %v2457 = vmul.f32 %v2455, %v1101
        %v2458 = vadd.f32 %v2456, %v1108
        %v2459 = vadd.f32 %v2457, %v1108
        %v2461 = vcombine.high %v2453, %v2453
        %v2465 = vrot.slane %v2458, 4
        %v2466 = vrot.slane %v2459, 4
        %v2469 = vsel %vm1009, %v2453, %v2465
        %v2470 = vsel %vm1009, %v2461, %v2466
        %2472 = vrot.lane.b32.xlu0 %v2470, 1
        %v2473 = vpop.permute.xlu0 %2472
        %2476 = vrot.lane.b32.xlu0 %v2469, 1
        %v2477 = vpop.permute.xlu0 %2476
        %v2478 = vsel %vm1130, %v2477, %v2473
        %v2481 = vsel %vm1130, %v2473, %v2477
        %2482 = vrot.lane.b32.xlu0 %v2469, 127
        %v2483 = vpop.permute.xlu0 %2482
        %2484 = vrot.lane.b32.xlu0 %v2470, 127
        %v2485 = vpop.permute.xlu0 %2484
        %v2486 = vsel %vm1139, %v2483, %v2485
        %v2490 = vsel %vm1139, %v2485, %v2483
        %v2491 = vsel %vm1147, %v2486, %v2481
        %v2492 = vsel %vm1148, %v2490, %v2478
        %v2493 = vsel %vm1153, %v2481, %v2486
        %v2494 = vsel %vm1154, %v2478, %v2490
        %2496 = vrot.lane.b32.xlu0 %v2492, 16
        %v2497 = vpop.permute.xlu0 %2496
        %2500 = vrot.lane.b32.xlu0 %v2491, 16
        %v2501 = vpop.permute.xlu0 %2500
        %v2502 = vsel %vm795, %v2501, %v2497
        %v2505 = vsel %vm795, %v2497, %v2501
        %2506 = vrot.lane.b32.xlu0 %v2491, 112
        %v2507 = vpop.permute.xlu0 %2506
        %2508 = vrot.lane.b32.xlu0 %v2492, 112
        %v2509 = vpop.permute.xlu0 %2508
        %v2510 = vsel %vm1172, %v2507, %v2509
        %v2514 = vsel %vm1172, %v2509, %v2507
        %v2515 = vsel %vm1180, %v2510, %v2505
        %v2516 = vsel %vm1181, %v2514, %v2502
        %v2517 = vsel %vm1186, %v2505, %v2510
        %v2518 = vsel %vm1187, %v2502, %v2514
        %v2520 = vsel %vm1203, %v2515, 0
        %v2523 = vsel %vm1203, %v2516, 0
        %2525 = vmatprep.subr.mxu0 %v2523
        %2526 = vmatpush1.msra.mxu0 %v2520
        %2527 = vmatprep.subr.mxu0 0.0
        %2528 = vmatpush1.msra.mxu0 0.0
        %2529 = vmatprep.subr.mxu0 0.0
        %2530 = vmatpush1.msra.mxu0 0.0
        %2531 = vmatprep.subr.mxu0 0.0
        %2532 = vmatpush1.msra.mxu0 0.0
        %2533 = vmatprep.subr.mxu0 0.0
        %2534 = vmatpush1.msra.mxu0 0.0
        %2535 = vmatprep.subr.mxu0 0.0
        %2536 = vmatpush1.msra.mxu0 0.0
        %2537 = vmatprep.subr.mxu0 0.0
        %2538 = vmatpush1.msra.mxu0 0.0
        %2539 = vmatprep.subr.mxu0 0.0
        %2540 = vmatpush1.msra.mxu0 0.0
        %2541 = vmatprep.subr.mxu0 0.0
        %2542 = vmatpush1.msra.mxu0 0.0
        %2543 = vmatprep.subr.mxu0 0.0
        %2544 = vmatpush1.msra.mxu0 0.0
        %2545 = vmatprep.subr.mxu0 0.0
        %2546 = vmatpush1.msra.mxu0 0.0
        %2547 = vmatprep.subr.mxu0 0.0
        %2548 = vmatpush1.msra.mxu0 0.0
        %2549 = vmatprep.subr.mxu0 0.0
        %2550 = vmatpush1.msra.mxu0 0.0
        %2551 = vmatprep.subr.mxu0 0.0
        %2552 = vmatpush1.msra.mxu0 0.0
        %2553 = vmatprep.subr.mxu0 0.0
        %2554 = vmatpush1.msra.mxu0 0.0
        %2555 = vmatprep.subr.mxu0 0.0
        %2556 = vmatpush1.msra.mxu0 0.0
        %2557 = vmatprep.subr.mxu0 0.0
        %2558 = vmatpush1.msra.mxu0 0.0
        %2559 = vmatprep.subr.mxu0 0.0
        %2560 = vmatpush1.msra.mxu0 0.0
        %2561 = vmatprep.subr.mxu0 0.0
        %2562 = vmatpush1.msra.mxu0 0.0
        %2563 = vmatprep.subr.mxu0 0.0
        %2564 = vmatpush1.msra.mxu0 0.0
        %2565 = vmatprep.subr.mxu0 0.0
        %2566 = vmatpush1.msra.mxu0 0.0
        %2567 = vmatprep.subr.mxu0 0.0
        %2568 = vmatpush1.msra.mxu0 0.0
        %2569 = vmatprep.subr.mxu0 0.0
        %2570 = vmatpush1.msra.mxu0 0.0
        %2571 = vmatprep.subr.mxu0 0.0
        %2572 = vmatpush1.msra.mxu0 0.0
        %2573 = vmatprep.subr.mxu0 0.0
        %2574 = vmatpush1.msra.mxu0 0.0
        %2575 = vmatprep.subr.mxu0 0.0
        %2576 = vmatpush1.msra.mxu0 0.0
        %2577 = vmatprep.subr.mxu0 0.0
        %2578 = vmatpush1.msra.mxu0 0.0
        %2579 = vmatprep.subr.mxu0 0.0
        %2580 = vmatpush1.msra.mxu0 0.0
        %2581 = vmatprep.subr.mxu0 0.0
        %2582 = vmatpush1.msra.mxu0 0.0
        %2583 = vmatprep.subr.mxu0 0.0
        %2584 = vmatpush1.msra.mxu0 0.0
        %2585 = vmatprep.subr.mxu0 0.0
        %2586 = vmatpush1.msra.mxu0 0.0
        %2587 = vmatprep.subr.mxu0 0.0
        %2588 = vmatpush1.msra.mxu0 0.0
        %2589 = vmatprep.mubr.f32.mxu0 0.0
        %2590 = vmatmul.mubr.f32.gmra.mrb[0].mxu0 %v1192
        %v2591 = vpop.f32.mrb[0].mxu0
        %v2592 = vadd.f32 0.0, %v2591
        %v2593 = vpop.f32.mrb[0].mxu0
        %v2594 = vadd.f32 0.0, %v2593
        %2595 = vmatprep.mubr.f32.mxu0 0.0
        %2596 = vmatmul.mubr.f32.gmra.mrb[0].mxu0 %v1195
        %v2597 = vpop.f32.mrb[0].mxu0
        %v2598 = vadd.f32 0.0, %v2597
        %v2599 = vpop.f32.mrb[0].mxu0
        %v2600 = vadd.f32 0.0, %v2599
        %2601 = vmatprep.mubr.f32.mxu0 0.0
        %2602 = vmatmul.mubr.f32.gmra.mrb[0].mxu0 %v1198
        %v2603 = vpop.f32.mrb[0].mxu0
        %v2604 = vadd.f32 0.0, %v2603
        %v2605 = vpop.f32.mrb[0].mxu0
        %v2606 = vadd.f32 0.0, %v2605
        %2607 = vmatprep.mubr.f32.mxu0 0.0
        %2608 = vmatmul.mubr.f32.gmra.mrb[0].mxu0 %v1201
        %v2609 = vpop.f32.mrb[0].mxu0
        %v2610 = vadd.f32 0.0, %v2609
        %v2611 = vpop.f32.mrb[0].mxu0
        %v2612 = vadd.f32 0.0, %v2611
        %2613 = vdwg.mxu0
        %v2614 = vadd.f32 %v987, %v2592
        %v2615 = vadd.f32 %v987, %v2594
        %v2616 = vadd.f32 %v992, %v2598
        %v2617 = vadd.f32 %v992, %v2600
        %v2618 = vadd.f32 %v997, %v2604
        %v2619 = vadd.f32 %v997, %v2606
        %v2620 = vadd.f32 %v1002, %v2610
        %v2621 = vadd.f32 %v1002, %v2612
        %v2622 = vsel %vm1203, %v2491, 0
        %v2624 = vsel %vm1203, %v2492, 0
        %2626 = vmatprep.subr.mxu0 %v2624
        %2627 = vmatpush1.msra.mxu0 %v2622
        %2628 = vmatprep.subr.mxu0 0.0
        %2629 = vmatpush1.msra.mxu0 0.0
        %2630 = vmatprep.subr.mxu0 0.0
        %2631 = vmatpush1.msra.mxu0 0.0
        %2632 = vmatprep.subr.mxu0 0.0
        %2633 = vmatpush1.msra.mxu0 0.0
        %2634 = vmatprep.subr.mxu0 0.0
        %2635 = vmatpush1.msra.mxu0 0.0
        %2636 = vmatprep.subr.mxu0 0.0
        %2637 = vmatpush1.msra.mxu0 0.0
        %2638 = vmatprep.subr.mxu0 0.0
        %2639 = vmatpush1.msra.mxu0 0.0
        %2640 = vmatprep.subr.mxu0 0.0
        %2641 = vmatpush1.msra.mxu0 0.0
        %2642 = vmatprep.subr.mxu0 0.0
        %2643 = vmatpush1.msra.mxu0 0.0
        %2644 = vmatprep.subr.mxu0 0.0
        %2645 = vmatpush1.msra.mxu0 0.0
        %2646 = vmatprep.subr.mxu0 0.0
        %2647 = vmatpush1.msra.mxu0 0.0
        %2648 = vmatprep.subr.mxu0 0.0
        %2649 = vmatpush1.msra.mxu0 0.0
        %2650 = vmatprep.subr.mxu0 0.0
        %2651 = vmatpush1.msra.mxu0 0.0
        %2652 = vmatprep.subr.mxu0 0.0
        %2653 = vmatpush1.msra.mxu0 0.0
        %2654 = vmatprep.subr.mxu0 0.0
        %2655 = vmatpush1.msra.mxu0 0.0
        %2656 = vmatprep.subr.mxu0 0.0
        %2657 = vmatpush1.msra.mxu0 0.0
        %2658 = vmatprep.subr.mxu0 0.0
        %2659 = vmatpush1.msra.mxu0 0.0
        %2660 = vmatprep.subr.mxu0 0.0
        %2661 = vmatpush1.msra.mxu0 0.0
        %2662 = vmatprep.subr.mxu0 0.0
        %2663 = vmatpush1.msra.mxu0 0.0
        %2664 = vmatprep.subr.mxu0 0.0
        %2665 = vmatpush1.msra.mxu0 0.0
        %2666 = vmatprep.subr.mxu0 0.0
        %2667 = vmatpush1.msra.mxu0 0.0
        %2668 = vmatprep.subr.mxu0 0.0
        %2669 = vmatpush1.msra.mxu0 0.0
        %2670 = vmatprep.subr.mxu0 0.0
        %2671 = vmatpush1.msra.mxu0 0.0
        %2672 = vmatprep.subr.mxu0 0.0
        %2673 = vmatpush1.msra.mxu0 0.0
        %2674 = vmatprep.subr.mxu0 0.0
        %2675 = vmatpush1.msra.mxu0 0.0
        %2676 = vmatprep.subr.mxu0 0.0
        %2677 = vmatpush1.msra.mxu0 0.0
        %2678 = vmatprep.subr.mxu0 0.0
        %2679 = vmatpush1.msra.mxu0 0.0
        %2680 = vmatprep.subr.mxu0 0.0
        %2681 = vmatpush1.msra.mxu0 0.0
        %2682 = vmatprep.subr.mxu0 0.0
        %2683 = vmatpush1.msra.mxu0 0.0
        %2684 = vmatprep.subr.mxu0 0.0
        %2685 = vmatpush1.msra.mxu0 0.0
        %2686 = vmatprep.subr.mxu0 0.0
        %2687 = vmatpush1.msra.mxu0 0.0
        %2688 = vmatprep.subr.mxu0 0.0
        %2689 = vmatpush1.msra.mxu0 0.0
        %2690 = vmatprep.mubr.f32.mxu0 0.0
        %2691 = vmatmul.mubr.f32.gmra.mrb[0].mxu0 %v1308
        %v2692 = vpop.f32.mrb[0].mxu0
        %v2693 = vadd.f32 0.0, %v2692
        %v2694 = vpop.f32.mrb[0].mxu0
        %v2695 = vadd.f32 0.0, %v2694
        %2696 = vmatprep.mubr.f32.mxu0 0.0
        %2697 = vmatmul.mubr.f32.gmra.mrb[0].mxu0 %v1311
        %v2698 = vpop.f32.mrb[0].mxu0
        %v2699 = vadd.f32 0.0, %v2698
        %v2700 = vpop.f32.mrb[0].mxu0
        %v2701 = vadd.f32 0.0, %v2700
        %2702 = vmatprep.mubr.f32.mxu0 0.0
        %2703 = vmatmul.mubr.f32.gmra.mrb[0].mxu0 %v1314
        %v2704 = vpop.f32.mrb[0].mxu0
        %v2705 = vadd.f32 0.0, %v2704
        %v2706 = vpop.f32.mrb[0].mxu0
        %v2707 = vadd.f32 0.0, %v2706
        %2708 = vmatprep.mubr.f32.mxu0 0.0
        %2709 = vmatmul.mubr.f32.gmra.mrb[0].mxu0 %v1317
        %v2710 = vpop.f32.mrb[0].mxu0
        %v2711 = vadd.f32 0.0, %v2710
        %v2712 = vpop.f32.mrb[0].mxu0
        %v2713 = vadd.f32 0.0, %v2712
        %2714 = vdwg.mxu0
        %v2715 = vadd.f32 %v2614, %v2693
        %v2716 = vadd.f32 %v2615, %v2695
        %v2717 = vadd.f32 %v2616, %v2699
        %v2718 = vadd.f32 %v2617, %v2701
        %v2719 = vadd.f32 %v2618, %v2705
        %v2720 = vadd.f32 %v2619, %v2707
        %v2721 = vadd.f32 %v2620, %v2711
        %v2722 = vadd.f32 %v2621, %v2713
        %v2724 = vsel %vm1203, %v2517, 0
        %v2727 = vsel %vm1203, %v2518, 0
        %2729 = vmatprep.subr.mxu0 %v2727
        %2730 = vmatpush1.msra.mxu0 %v2724
        %2731 = vmatprep.subr.mxu0 0.0
        %2732 = vmatpush1.msra.mxu0 0.0
        %2733 = vmatprep.subr.mxu0 0.0
        %2734 = vmatpush1.msra.mxu0 0.0
        %2735 = vmatprep.subr.mxu0 0.0
        %2736 = vmatpush1.msra.mxu0 0.0
        %2737 = vmatprep.subr.mxu0 0.0
        %2738 = vmatpush1.msra.mxu0 0.0
        %2739 = vmatprep.subr.mxu0 0.0
        %2740 = vmatpush1.msra.mxu0 0.0
        %2741 = vmatprep.subr.mxu0 0.0
        %2742 = vmatpush1.msra.mxu0 0.0
        %2743 = vmatprep.subr.mxu0 0.0
        %2744 = vmatpush1.msra.mxu0 0.0
        %2745 = vmatprep.subr.mxu0 0.0
        %2746 = vmatpush1.msra.mxu0 0.0
        %2747 = vmatprep.subr.mxu0 0.0
        %2748 = vmatpush1.msra.mxu0 0.0
        %2749 = vmatprep.subr.mxu0 0.0
        %2750 = vmatpush1.msra.mxu0 0.0
        %2751 = vmatprep.subr.mxu0 0.0
        %2752 = vmatpush1.msra.mxu0 0.0
        %2753 = vmatprep.subr.mxu0 0.0
        %2754 = vmatpush1.msra.mxu0 0.0
        %2755 = vmatprep.subr.mxu0 0.0
        %2756 = vmatpush1.msra.mxu0 0.0
        %2757 = vmatprep.subr.mxu0 0.0
        %2758 = vmatpush1.msra.mxu0 0.0
        %2759 = vmatprep.subr.mxu0 0.0
        %2760 = vmatpush1.msra.mxu0 0.0
        %2761 = vmatprep.subr.mxu0 0.0
        %2762 = vmatpush1.msra.mxu0 0.0
        %2763 = vmatprep.subr.mxu0 0.0
        %2764 = vmatpush1.msra.mxu0 0.0
        %2765 = vmatprep.subr.mxu0 0.0
        %2766 = vmatpush1.msra.mxu0 0.0
        %2767 = vmatprep.subr.mxu0 0.0
        %2768 = vmatpush1.msra.mxu0 0.0
        %2769 = vmatprep.subr.mxu0 0.0
        %2770 = vmatpush1.msra.mxu0 0.0
        %2771 = vmatprep.subr.mxu0 0.0
        %2772 = vmatpush1.msra.mxu0 0.0
        %2773 = vmatprep.subr.mxu0 0.0
        %2774 = vmatpush1.msra.mxu0 0.0
        %2775 = vmatprep.subr.mxu0 0.0
        %2776 = vmatpush1.msra.mxu0 0.0
        %2777 = vmatprep.subr.mxu0 0.0
        %2778 = vmatpush1.msra.mxu0 0.0
        %2779 = vmatprep.subr.mxu0 0.0
        %2780 = vmatpush1.msra.mxu0 0.0
        %2781 = vmatprep.subr.mxu0 0.0
        %2782 = vmatpush1.msra.mxu0 0.0
        %2783 = vmatprep.subr.mxu0 0.0
        %2784 = vmatpush1.msra.mxu0 0.0
        %2785 = vmatprep.subr.mxu0 0.0
        %2786 = vmatpush1.msra.mxu0 0.0
        %2787 = vmatprep.subr.mxu0 0.0
        %2788 = vmatpush1.msra.mxu0 0.0
        %2789 = vmatprep.subr.mxu0 0.0
        %2790 = vmatpush1.msra.mxu0 0.0
        %2791 = vmatprep.subr.mxu0 0.0
        %2792 = vmatpush1.msra.mxu0 0.0
        %2793 = vmatprep.mubr.f32.mxu0 0.0
        %2794 = vmatmul.mubr.f32.gmra.mrb[0].mxu0 %v1421
        %v2795 = vpop.f32.mrb[0].mxu0
        %v2796 = vadd.f32 0.0, %v2795
        %v2797 = vpop.f32.mrb[0].mxu0
        %v2798 = vadd.f32 0.0, %v2797
        %2799 = vmatprep.mubr.f32.mxu0 0.0
        %2800 = vmatmul.mubr.f32.gmra.mrb[0].mxu0 %v1424
        %v2801 = vpop.f32.mrb[0].mxu0
        %v2802 = vadd.f32 0.0, %v2801
        %v2803 = vpop.f32.mrb[0].mxu0
        %v2804 = vadd.f32 0.0, %v2803
        %2805 = vmatprep.mubr.f32.mxu0 0.0
        %2806 = vmatmul.mubr.f32.gmra.mrb[0].mxu0 %v1427
        %v2807 = vpop.f32.mrb[0].mxu0
        %v2808 = vadd.f32 0.0, %v2807
        %v2809 = vpop.f32.mrb[0].mxu0
        %v2810 = vadd.f32 0.0, %v2809
        %2811 = vmatprep.mubr.f32.mxu0 0.0
        %2812 = vmatmul.mubr.f32.gmra.mrb[0].mxu0 %v1430
        %v2813 = vpop.f32.mrb[0].mxu0
        %v2814 = vadd.f32 0.0, %v2813
        %v2815 = vpop.f32.mrb[0].mxu0
        %v2816 = vadd.f32 0.0, %v2815
        %2817 = vdwg.mxu0
        %v2818 = vadd.f32 %v2715, %v2796
        %v2819 = vadd.f32 %v2716, %v2798
        %v2820 = vadd.f32 %v2717, %v2802
        %v2821 = vadd.f32 %v2718, %v2804
        %v2822 = vadd.f32 %v2719, %v2808
        %v2823 = vadd.f32 %v2720, %v2810
        %v2824 = vadd.f32 %v2721, %v2814
        %v2825 = vadd.f32 %v2722, %v2816
        %2826 = vrot.lane.b32.xlu0 %v2470, 16
        %v2827 = vpop.permute.xlu0 %2826
        %2829 = vrot.lane.b32.xlu0 %v2469, 16
        %v2830 = vpop.permute.xlu0 %2829
        %v2831 = vsel %vm795, %v2830, %v2827
        %v2834 = vsel %vm795, %v2827, %v2830
        %2835 = vrot.lane.b32.xlu0 %v2469, 112
        %v2836 = vpop.permute.xlu0 %2835
        %2837 = vrot.lane.b32.xlu0 %v2470, 112
        %v2838 = vpop.permute.xlu0 %2837
        %v2839 = vsel %vm1172, %v2836, %v2838
        %v2843 = vsel %vm1172, %v2838, %v2836
        %v2844 = vsel %vm1180, %v2839, %v2834
        %v2845 = vsel %vm1181, %v2843, %v2831
        %v2846 = vsel %vm1186, %v2834, %v2839
        %v2847 = vsel %vm1187, %v2831, %v2843
        %v2849 = vsel %vm1203, %v2844, 0
        %v2852 = vsel %vm1203, %v2845, 0
        %2854 = vmatprep.subr.mxu0 %v2852
        %2855 = vmatpush1.msra.mxu0 %v2849
        %2856 = vmatprep.subr.mxu0 0.0
        %2857 = vmatpush1.msra.mxu0 0.0
        %2858 = vmatprep.subr.mxu0 0.0
        %2859 = vmatpush1.msra.mxu0 0.0
        %2860 = vmatprep.subr.mxu0 0.0
        %2861 = vmatpush1.msra.mxu0 0.0
        %2862 = vmatprep.subr.mxu0 0.0
        %2863 = vmatpush1.msra.mxu0 0.0
        %2864 = vmatprep.subr.mxu0 0.0
        %2865 = vmatpush1.msra.mxu0 0.0
        %2866 = vmatprep.subr.mxu0 0.0
        %2867 = vmatpush1.msra.mxu0 0.0
        %2868 = vmatprep.subr.mxu0 0.0
        %2869 = vmatpush1.msra.mxu0 0.0
        %2870 = vmatprep.subr.mxu0 0.0
        %2871 = vmatpush1.msra.mxu0 0.0
        %2872 = vmatprep.subr.mxu0 0.0
        %2873 = vmatpush1.msra.mxu0 0.0
        %2874 = vmatprep.subr.mxu0 0.0
        %2875 = vmatpush1.msra.mxu0 0.0
        %2876 = vmatprep.subr.mxu0 0.0
        %2877 = vmatpush1.msra.mxu0 0.0
        %2878 = vmatprep.subr.mxu0 0.0
        %2879 = vmatpush1.msra.mxu0 0.0
        %2880 = vmatprep.subr.mxu0 0.0
        %2881 = vmatpush1.msra.mxu0 0.0
        %2882 = vmatprep.subr.mxu0 0.0
        %2883 = vmatpush1.msra.mxu0 0.0
        %2884 = vmatprep.subr.mxu0 0.0
        %2885 = vmatpush1.msra.mxu0 0.0
        %2886 = vmatprep.subr.mxu0 0.0
        %2887 = vmatpush1.msra.mxu0 0.0
        %2888 = vmatprep.subr.mxu0 0.0
        %2889 = vmatpush1.msra.mxu0 0.0
        %2890 = vmatprep.subr.mxu0 0.0
        %2891 = vmatpush1.msra.mxu0 0.0
        %2892 = vmatprep.subr.mxu0 0.0
        %2893 = vmatpush1.msra.mxu0 0.0
        %2894 = vmatprep.subr.mxu0 0.0
        %2895 = vmatpush1.msra.mxu0 0.0
        %2896 = vmatprep.subr.mxu0 0.0
        %2897 = vmatpush1.msra.mxu0 0.0
        %2898 = vmatprep.subr.mxu0 0.0
        %2899 = vmatpush1.msra.mxu0 0.0
        %2900 = vmatprep.subr.mxu0 0.0
        %2901 = vmatpush1.msra.mxu0 0.0
        %2902 = vmatprep.subr.mxu0 0.0
        %2903 = vmatpush1.msra.mxu0 0.0
        %2904 = vmatprep.subr.mxu0 0.0
        %2905 = vmatpush1.msra.mxu0 0.0
        %2906 = vmatprep.subr.mxu0 0.0
        %2907 = vmatpush1.msra.mxu0 0.0
        %2908 = vmatprep.subr.mxu0 0.0
        %2909 = vmatpush1.msra.mxu0 0.0
        %2910 = vmatprep.subr.mxu0 0.0
        %2911 = vmatpush1.msra.mxu0 0.0
        %2912 = vmatprep.subr.mxu0 0.0
        %2913 = vmatpush1.msra.mxu0 0.0
        %2914 = vmatprep.subr.mxu0 0.0
        %2915 = vmatpush1.msra.mxu0 0.0
        %2916 = vmatprep.subr.mxu0 0.0
        %2917 = vmatpush1.msra.mxu0 0.0
        %2918 = vmatprep.mubr.f32.mxu0 0.0
        %2919 = vmatmul.mubr.f32.gmra.mrb[0].mxu0 %v1558
        %v2920 = vpop.f32.mrb[0].mxu0
        %v2921 = vadd.f32 0.0, %v2920
        %v2922 = vpop.f32.mrb[0].mxu0
        %v2923 = vadd.f32 0.0, %v2922
        %2924 = vmatprep.mubr.f32.mxu0 0.0
        %2925 = vmatmul.mubr.f32.gmra.mrb[0].mxu0 %v1561
        %v2926 = vpop.f32.mrb[0].mxu0
        %v2927 = vadd.f32 0.0, %v2926
        %v2928 = vpop.f32.mrb[0].mxu0
        %v2929 = vadd.f32 0.0, %v2928
        %2930 = vmatprep.mubr.f32.mxu0 0.0
        %2931 = vmatmul.mubr.f32.gmra.mrb[0].mxu0 %v1564
        %v2932 = vpop.f32.mrb[0].mxu0
        %v2933 = vadd.f32 0.0, %v2932
        %v2934 = vpop.f32.mrb[0].mxu0
        %v2935 = vadd.f32 0.0, %v2934
        %2936 = vmatprep.mubr.f32.mxu0 0.0
        %2937 = vmatmul.mubr.f32.gmra.mrb[0].mxu0 %v1567
        %v2938 = vpop.f32.mrb[0].mxu0
        %v2939 = vadd.f32 0.0, %v2938
        %v2940 = vpop.f32.mrb[0].mxu0
        %v2941 = vadd.f32 0.0, %v2940
        %2942 = vdwg.mxu0
        %v2943 = vadd.f32 %v2818, %v2921
        %v2944 = vadd.f32 %v2819, %v2923
        %v2945 = vadd.f32 %v2820, %v2927
        %v2946 = vadd.f32 %v2821, %v2929
        %v2947 = vadd.f32 %v2822, %v2933
        %v2948 = vadd.f32 %v2823, %v2935
        %v2949 = vadd.f32 %v2824, %v2939
        %v2950 = vadd.f32 %v2825, %v2941
        %v2951 = vsel %vm1203, %v2469, 0
        %v2953 = vsel %vm1203, %v2470, 0
        %2955 = vmatprep.subr.mxu0 %v2953
        %2956 = vmatpush1.msra.mxu0 %v2951
        %2957 = vmatprep.subr.mxu0 0.0
        %2958 = vmatpush1.msra.mxu0 0.0
        %2959 = vmatprep.subr.mxu0 0.0
        %2960 = vmatpush1.msra.mxu0 0.0
        %2961 = vmatprep.subr.mxu0 0.0
        %2962 = vmatpush1.msra.mxu0 0.0
        %2963 = vmatprep.subr.mxu0 0.0
        %2964 = vmatpush1.msra.mxu0 0.0
        %2965 = vmatprep.subr.mxu0 0.0
        %2966 = vmatpush1.msra.mxu0 0.0
        %2967 = vmatprep.subr.mxu0 0.0
        %2968 = vmatpush1.msra.mxu0 0.0
        %2969 = vmatprep.subr.mxu0 0.0
        %2970 = vmatpush1.msra.mxu0 0.0
        %2971 = vmatprep.subr.mxu0 0.0
        %2972 = vmatpush1.msra.mxu0 0.0
        %2973 = vmatprep.subr.mxu0 0.0
        %2974 = vmatpush1.msra.mxu0 0.0
        %2975 = vmatprep.subr.mxu0 0.0
        %2976 = vmatpush1.msra.mxu0 0.0
        %2977 = vmatprep.subr.mxu0 0.0
        %2978 = vmatpush1.msra.mxu0 0.0
        %2979 = vmatprep.subr.mxu0 0.0
        %2980 = vmatpush1.msra.mxu0 0.0
        %2981 = vmatprep.subr.mxu0 0.0
        %2982 = vmatpush1.msra.mxu0 0.0
        %2983 = vmatprep.subr.mxu0 0.0
        %2984 = vmatpush1.msra.mxu0 0.0
        %2985 = vmatprep.subr.mxu0 0.0
        %2986 = vmatpush1.msra.mxu0 0.0
        %2987 = vmatprep.subr.mxu0 0.0
        %2988 = vmatpush1.msra.mxu0 0.0
        %2989 = vmatprep.subr.mxu0 0.0
        %2990 = vmatpush1.msra.mxu0 0.0
        %2991 = vmatprep.subr.mxu0 0.0
        %2992 = vmatpush1.msra.mxu0 0.0
        %2993 = vmatprep.subr.mxu0 0.0
        %2994 = vmatpush1.msra.mxu0 0.0
        %2995 = vmatprep.subr.mxu0 0.0
        %2996 = vmatpush1.msra.mxu0 0.0
        %2997 = vmatprep.subr.mxu0 0.0
        %2998 = vmatpush1.msra.mxu0 0.0
        %2999 = vmatprep.subr.mxu0 0.0
        %3000 = vmatpush1.msra.mxu0 0.0
        %3001 = vmatprep.subr.mxu0 0.0
        %3002 = vmatpush1.msra.mxu0 0.0
        %3003 = vmatprep.subr.mxu0 0.0
        %3004 = vmatpush1.msra.mxu0 0.0
        %3005 = vmatprep.subr.mxu0 0.0
        %3006 = vmatpush1.msra.mxu0 0.0
        %3007 = vmatprep.subr.mxu0 0.0
        %3008 = vmatpush1.msra.mxu0 0.0
        %3009 = vmatprep.subr.mxu0 0.0
        %3010 = vmatpush1.msra.mxu0 0.0
        %3011 = vmatprep.subr.mxu0 0.0
        %3012 = vmatpush1.msra.mxu0 0.0
        %3013 = vmatprep.subr.mxu0 0.0
        %3014 = vmatpush1.msra.mxu0 0.0
        %3015 = vmatprep.subr.mxu0 0.0
        %3016 = vmatpush1.msra.mxu0 0.0
        %3017 = vmatprep.subr.mxu0 0.0
        %3018 = vmatpush1.msra.mxu0 0.0
        %3019 = vmatprep.mubr.f32.mxu0 0.0
        %3020 = vmatmul.mubr.f32.gmra.mrb[0].mxu0 %v1673
        %v3021 = vpop.f32.mrb[0].mxu0
        %v3022 = vadd.f32 0.0, %v3021
        %v3023 = vpop.f32.mrb[0].mxu0
        %v3024 = vadd.f32 0.0, %v3023
        %3025 = vmatprep.mubr.f32.mxu0 0.0
        %3026 = vmatmul.mubr.f32.gmra.mrb[0].mxu0 %v1676
        %v3027 = vpop.f32.mrb[0].mxu0
        %v3028 = vadd.f32 0.0, %v3027
        %v3029 = vpop.f32.mrb[0].mxu0
        %v3030 = vadd.f32 0.0, %v3029
        %3031 = vmatprep.mubr.f32.mxu0 0.0
        %3032 = vmatmul.mubr.f32.gmra.mrb[0].mxu0 %v1679
        %v3033 = vpop.f32.mrb[0].mxu0
        %v3034 = vadd.f32 0.0, %v3033
        %v3035 = vpop.f32.mrb[0].mxu0
        %v3036 = vadd.f32 0.0, %v3035
        %3037 = vmatprep.mubr.f32.mxu0 0.0
        %3038 = vmatmul.mubr.f32.gmra.mrb[0].mxu0 %v1682
        %v3039 = vpop.f32.mrb[0].mxu0
        %v3040 = vadd.f32 0.0, %v3039
        %v3041 = vpop.f32.mrb[0].mxu0
        %v3042 = vadd.f32 0.0, %v3041
        %3043 = vdwg.mxu0
        %v3044 = vadd.f32 %v2943, %v3022
        %v3045 = vadd.f32 %v2944, %v3024
        %v3046 = vadd.f32 %v2945, %v3028
        %v3047 = vadd.f32 %v2946, %v3030
        %v3048 = vadd.f32 %v2947, %v3034
        %v3049 = vadd.f32 %v2948, %v3036
        %v3050 = vadd.f32 %v2949, %v3040
        %v3051 = vadd.f32 %v2950, %v3042
        %v3053 = vsel %vm1203, %v2846, 0
        %v3056 = vsel %vm1203, %v2847, 0
        %3058 = vmatprep.subr.mxu0 %v3056
        %3059 = vmatpush1.msra.mxu0 %v3053
        %3060 = vmatprep.subr.mxu0 0.0
        %3061 = vmatpush1.msra.mxu0 0.0
        %3062 = vmatprep.subr.mxu0 0.0
        %3063 = vmatpush1.msra.mxu0 0.0
        %3064 = vmatprep.subr.mxu0 0.0
        %3065 = vmatpush1.msra.mxu0 0.0
        %3066 = vmatprep.subr.mxu0 0.0
        %3067 = vmatpush1.msra.mxu0 0.0
        %3068 = vmatprep.subr.mxu0 0.0
        %3069 = vmatpush1.msra.mxu0 0.0
        %3070 = vmatprep.subr.mxu0 0.0
        %3071 = vmatpush1.msra.mxu0 0.0
        %3072 = vmatprep.subr.mxu0 0.0
        %3073 = vmatpush1.msra.mxu0 0.0
        %3074 = vmatprep.subr.mxu0 0.0
        %3075 = vmatpush1.msra.mxu0 0.0
        %3076 = vmatprep.subr.mxu0 0.0
        %3077 = vmatpush1.msra.mxu0 0.0
        %3078 = vmatprep.subr.mxu0 0.0
        %3079 = vmatpush1.msra.mxu0 0.0
        %3080 = vmatprep.subr.mxu0 0.0
        %3081 = vmatpush1.msra.mxu0 0.0
        %3082 = vmatprep.subr.mxu0 0.0
        %3083 = vmatpush1.msra.mxu0 0.0
        %3084 = vmatprep.subr.mxu0 0.0
        %3085 = vmatpush1.msra.mxu0 0.0
        %3086 = vmatprep.subr.mxu0 0.0
        %3087 = vmatpush1.msra.mxu0 0.0
        %3088 = vmatprep.subr.mxu0 0.0
        %3089 = vmatpush1.msra.mxu0 0.0
        %3090 = vmatprep.subr.mxu0 0.0
        %3091 = vmatpush1.msra.mxu0 0.0
        %3092 = vmatprep.subr.mxu0 0.0
        %3093 = vmatpush1.msra.mxu0 0.0
        %3094 = vmatprep.subr.mxu0 0.0
        %3095 = vmatpush1.msra.mxu0 0.0
        %3096 = vmatprep.subr.mxu0 0.0
        %3097 = vmatpush1.msra.mxu0 0.0
        %3098 = vmatprep.subr.mxu0 0.0
        %3099 = vmatpush1.msra.mxu0 0.0
        %3100 = vmatprep.subr.mxu0 0.0
        %3101 = vmatpush1.msra.mxu0 0.0
        %3102 = vmatprep.subr.mxu0 0.0
        %3103 = vmatpush1.msra.mxu0 0.0
        %3104 = vmatprep.subr.mxu0 0.0
        %3105 = vmatpush1.msra.mxu0 0.0
        %3106 = vmatprep.subr.mxu0 0.0
        %3107 = vmatpush1.msra.mxu0 0.0
        %3108 = vmatprep.subr.mxu0 0.0
        %3109 = vmatpush1.msra.mxu0 0.0
        %3110 = vmatprep.subr.mxu0 0.0
        %3111 = vmatpush1.msra.mxu0 0.0
        %3112 = vmatprep.subr.mxu0 0.0
        %3113 = vmatpush1.msra.mxu0 0.0
        %3114 = vmatprep.subr.mxu0 0.0
        %3115 = vmatpush1.msra.mxu0 0.0
        %3116 = vmatprep.subr.mxu0 0.0
        %3117 = vmatpush1.msra.mxu0 0.0
        %3118 = vmatprep.subr.mxu0 0.0
        %3119 = vmatpush1.msra.mxu0 0.0
        %3120 = vmatprep.subr.mxu0 0.0
        %3121 = vmatpush1.msra.mxu0 0.0
        %3122 = vmatprep.mubr.f32.mxu0 0.0
        %3123 = vmatmul.mubr.f32.gmra.mrb[0].mxu0 %v1786
        %v3124 = vpop.f32.mrb[0].mxu0
        %v3125 = vadd.f32 0.0, %v3124
        %v3126 = vpop.f32.mrb[0].mxu0
        %v3127 = vadd.f32 0.0, %v3126
        %3128 = vmatprep.mubr.f32.mxu0 0.0
        %3129 = vmatmul.mubr.f32.gmra.mrb[0].mxu0 %v1789
        %v3130 = vpop.f32.mrb[0].mxu0
        %v3131 = vadd.f32 0.0, %v3130
        %v3132 = vpop.f32.mrb[0].mxu0
        %v3133 = vadd.f32 0.0, %v3132
        %3134 = vmatprep.mubr.f32.mxu0 0.0
        %3135 = vmatmul.mubr.f32.gmra.mrb[0].mxu0 %v1792
        %v3136 = vpop.f32.mrb[0].mxu0
        %v3137 = vadd.f32 0.0, %v3136
        %v3138 = vpop.f32.mrb[0].mxu0
        %v3139 = vadd.f32 0.0, %v3138
        %3140 = vmatprep.mubr.f32.mxu0 0.0
        %3141 = vmatmul.mubr.f32.gmra.mrb[0].mxu0 %v1795
        %v3142 = vpop.f32.mrb[0].mxu0
        %v3143 = vadd.f32 0.0, %v3142
        %v3144 = vpop.f32.mrb[0].mxu0
        %v3145 = vadd.f32 0.0, %v3144
        %3146 = vdwg.mxu0
        %v3147 = vadd.f32 %v3044, %v3125
        %v3148 = vadd.f32 %v3045, %v3127
        %v3149 = vadd.f32 %v3046, %v3131
        %v3150 = vadd.f32 %v3047, %v3133
        %v3151 = vadd.f32 %v3048, %v3137
        %v3152 = vadd.f32 %v3049, %v3139
        %v3153 = vadd.f32 %v3050, %v3143
        %v3154 = vadd.f32 %v3051, %v3145
        %3156 = vrot.lane.b32.xlu0 %v2494, 16
        %v3157 = vpop.permute.xlu0 %3156
        %3160 = vrot.lane.b32.xlu0 %v2493, 16
        %v3161 = vpop.permute.xlu0 %3160
        %v3162 = vsel %vm795, %v3161, %v3157
        %v3165 = vsel %vm795, %v3157, %v3161
        %3166 = vrot.lane.b32.xlu0 %v2493, 112
        %v3167 = vpop.permute.xlu0 %3166
        %3168 = vrot.lane.b32.xlu0 %v2494, 112
        %v3169 = vpop.permute.xlu0 %3168
        %v3170 = vsel %vm1172, %v3167, %v3169
        %v3174 = vsel %vm1172, %v3169, %v3167
        %v3175 = vsel %vm1180, %v3170, %v3165
        %v3176 = vsel %vm1181, %v3174, %v3162
        %v3177 = vsel %vm1186, %v3165, %v3170
        %v3178 = vsel %vm1187, %v3162, %v3174
        %v3180 = vsel %vm1203, %v3175, 0
        %v3183 = vsel %vm1203, %v3176, 0
        %3185 = vmatprep.subr.mxu0 %v3183
        %3186 = vmatpush1.msra.mxu0 %v3180
        %3187 = vmatprep.subr.mxu0 0.0
        %3188 = vmatpush1.msra.mxu0 0.0
        %3189 = vmatprep.subr.mxu0 0.0
        %3190 = vmatpush1.msra.mxu0 0.0
        %3191 = vmatprep.subr.mxu0 0.0
        %3192 = vmatpush1.msra.mxu0 0.0
        %3193 = vmatprep.subr.mxu0 0.0
        %3194 = vmatpush1.msra.mxu0 0.0
        %3195 = vmatprep.subr.mxu0 0.0
        %3196 = vmatpush1.msra.mxu0 0.0
        %3197 = vmatprep.subr.mxu0 0.0
        %3198 = vmatpush1.msra.mxu0 0.0
        %3199 = vmatprep.subr.mxu0 0.0
        %3200 = vmatpush1.msra.mxu0 0.0
        %3201 = vmatprep.subr.mxu0 0.0
        %3202 = vmatpush1.msra.mxu0 0.0
        %3203 = vmatprep.subr.mxu0 0.0
        %3204 = vmatpush1.msra.mxu0 0.0
        %3205 = vmatprep.subr.mxu0 0.0
        %3206 = vmatpush1.msra.mxu0 0.0
        %3207 = vmatprep.subr.mxu0 0.0
        %3208 = vmatpush1.msra.mxu0 0.0
        %3209 = vmatprep.subr.mxu0 0.0
        %3210 = vmatpush1.msra.mxu0 0.0
        %3211 = vmatprep.subr.mxu0 0.0
        %3212 = vmatpush1.msra.mxu0 0.0
        %3213 = vmatprep.subr.mxu0 0.0
        %3214 = vmatpush1.msra.mxu0 0.0
        %3215 = vmatprep.subr.mxu0 0.0
        %3216 = vmatpush1.msra.mxu0 0.0
        %3217 = vmatprep.subr.mxu0 0.0
        %3218 = vmatpush1.msra.mxu0 0.0
        %3219 = vmatprep.subr.mxu0 0.0
        %3220 = vmatpush1.msra.mxu0 0.0
        %3221 = vmatprep.subr.mxu0 0.0
        %3222 = vmatpush1.msra.mxu0 0.0
        %3223 = vmatprep.subr.mxu0 0.0
        %3224 = vmatpush1.msra.mxu0 0.0
        %3225 = vmatprep.subr.mxu0 0.0
        %3226 = vmatpush1.msra.mxu0 0.0
        %3227 = vmatprep.subr.mxu0 0.0
        %3228 = vmatpush1.msra.mxu0 0.0
        %3229 = vmatprep.subr.mxu0 0.0
        %3230 = vmatpush1.msra.mxu0 0.0
        %3231 = vmatprep.subr.mxu0 0.0
        %3232 = vmatpush1.msra.mxu0 0.0
        %3233 = vmatprep.subr.mxu0 0.0
        %3234 = vmatpush1.msra.mxu0 0.0
        %3235 = vmatprep.subr.mxu0 0.0
        %3236 = vmatpush1.msra.mxu0 0.0
        %3237 = vmatprep.subr.mxu0 0.0
        %3238 = vmatpush1.msra.mxu0 0.0
        %3239 = vmatprep.subr.mxu0 0.0
        %3240 = vmatpush1.msra.mxu0 0.0
        %3241 = vmatprep.subr.mxu0 0.0
        %3242 = vmatpush1.msra.mxu0 0.0
        %3243 = vmatprep.subr.mxu0 0.0
        %3244 = vmatpush1.msra.mxu0 0.0
        %3245 = vmatprep.subr.mxu0 0.0
        %3246 = vmatpush1.msra.mxu0 0.0
        %3247 = vmatprep.subr.mxu0 0.0
        %3248 = vmatpush1.msra.mxu0 0.0
        %3249 = vmatprep.mubr.f32.mxu0 0.0
        %3250 = vmatmul.mubr.f32.gmra.mrb[0].mxu0 %v1925
        %v3251 = vpop.f32.mrb[0].mxu0
        %v3252 = vadd.f32 0.0, %v3251
        %v3253 = vpop.f32.mrb[0].mxu0
        %v3254 = vadd.f32 0.0, %v3253
        %3255 = vmatprep.mubr.f32.mxu0 0.0
        %3256 = vmatmul.mubr.f32.gmra.mrb[0].mxu0 %v1928
        %v3257 = vpop.f32.mrb[0].mxu0
        %v3258 = vadd.f32 0.0, %v3257
        %v3259 = vpop.f32.mrb[0].mxu0
        %v3260 = vadd.f32 0.0, %v3259
        %3261 = vmatprep.mubr.f32.mxu0 0.0
        %3262 = vmatmul.mubr.f32.gmra.mrb[0].mxu0 %v1931
        %v3263 = vpop.f32.mrb[0].mxu0
        %v3264 = vadd.f32 0.0, %v3263
        %v3265 = vpop.f32.mrb[0].mxu0
        %v3266 = vadd.f32 0.0, %v3265
        %3267 = vmatprep.mubr.f32.mxu0 0.0
        %3268 = vmatmul.mubr.f32.gmra.mrb[0].mxu0 %v1934
        %v3269 = vpop.f32.mrb[0].mxu0
        %v3270 = vadd.f32 0.0, %v3269
        %v3271 = vpop.f32.mrb[0].mxu0
        %v3272 = vadd.f32 0.0, %v3271
        %3273 = vdwg.mxu0
        %v3274 = vadd.f32 %v3147, %v3252
        %v3275 = vadd.f32 %v3148, %v3254
        %v3276 = vadd.f32 %v3149, %v3258
        %v3277 = vadd.f32 %v3150, %v3260
        %v3278 = vadd.f32 %v3151, %v3264
        %v3279 = vadd.f32 %v3152, %v3266
        %v3280 = vadd.f32 %v3153, %v3270
        %v3281 = vadd.f32 %v3154, %v3272
        %v3282 = vsel %vm1203, %v2493, 0
        %v3284 = vsel %vm1203, %v2494, 0
        %3286 = vmatprep.subr.mxu0 %v3284
        %3287 = vmatpush1.msra.mxu0 %v3282
        %3288 = vmatprep.subr.mxu0 0.0
        %3289 = vmatpush1.msra.mxu0 0.0
        %3290 = vmatprep.subr.mxu0 0.0
        %3291 = vmatpush1.msra.mxu0 0.0
        %3292 = vmatprep.subr.mxu0 0.0
        %3293 = vmatpush1.msra.mxu0 0.0
        %3294 = vmatprep.subr.mxu0 0.0
        %3295 = vmatpush1.msra.mxu0 0.0
        %3296 = vmatprep.subr.mxu0 0.0
        %3297 = vmatpush1.msra.mxu0 0.0
        %3298 = vmatprep.subr.mxu0 0.0
        %3299 = vmatpush1.msra.mxu0 0.0
        %3300 = vmatprep.subr.mxu0 0.0
        %3301 = vmatpush1.msra.mxu0 0.0
        %3302 = vmatprep.subr.mxu0 0.0
        %3303 = vmatpush1.msra.mxu0 0.0
        %3304 = vmatprep.subr.mxu0 0.0
        %3305 = vmatpush1.msra.mxu0 0.0
        %3306 = vmatprep.subr.mxu0 0.0
        %3307 = vmatpush1.msra.mxu0 0.0
        %3308 = vmatprep.subr.mxu0 0.0
        %3309 = vmatpush1.msra.mxu0 0.0
        %3310 = vmatprep.subr.mxu0 0.0
        %3311 = vmatpush1.msra.mxu0 0.0
        %3312 = vmatprep.subr.mxu0 0.0
        %3313 = vmatpush1.msra.mxu0 0.0
        %3314 = vmatprep.subr.mxu0 0.0
        %3315 = vmatpush1.msra.mxu0 0.0
        %3316 = vmatprep.subr.mxu0 0.0
        %3317 = vmatpush1.msra.mxu0 0.0
        %3318 = vmatprep.subr.mxu0 0.0
        %3319 = vmatpush1.msra.mxu0 0.0
        %3320 = vmatprep.subr.mxu0 0.0
        %3321 = vmatpush1.msra.mxu0 0.0
        %3322 = vmatprep.subr.mxu0 0.0
        %3323 = vmatpush1.msra.mxu0 0.0
        %3324 = vmatprep.subr.mxu0 0.0
        %3325 = vmatpush1.msra.mxu0 0.0
        %3326 = vmatprep.subr.mxu0 0.0
        %3327 = vmatpush1.msra.mxu0 0.0
        %3328 = vmatprep.subr.mxu0 0.0
        %3329 = vmatpush1.msra.mxu0 0.0
        %3330 = vmatprep.subr.mxu0 0.0
        %3331 = vmatpush1.msra.mxu0 0.0
        %3332 = vmatprep.subr.mxu0 0.0
        %3333 = vmatpush1.msra.mxu0 0.0
        %3334 = vmatprep.subr.mxu0 0.0
        %3335 = vmatpush1.msra.mxu0 0.0
        %3336 = vmatprep.subr.mxu0 0.0
        %3337 = vmatpush1.msra.mxu0 0.0
        %3338 = vmatprep.subr.mxu0 0.0
        %3339 = vmatpush1.msra.mxu0 0.0
        %3340 = vmatprep.subr.mxu0 0.0
        %3341 = vmatpush1.msra.mxu0 0.0
        %3342 = vmatprep.subr.mxu0 0.0
        %3343 = vmatpush1.msra.mxu0 0.0
        %3344 = vmatprep.subr.mxu0 0.0
        %3345 = vmatpush1.msra.mxu0 0.0
        %3346 = vmatprep.subr.mxu0 0.0
        %3347 = vmatpush1.msra.mxu0 0.0
        %3348 = vmatprep.subr.mxu0 0.0
        %3349 = vmatpush1.msra.mxu0 0.0
        %3350 = vmatprep.mubr.f32.mxu0 0.0
        %3351 = vmatmul.mubr.f32.gmra.mrb[0].mxu0 %v2040
        %v3352 = vpop.f32.mrb[0].mxu0
        %v3353 = vadd.f32 0.0, %v3352
        %v3354 = vpop.f32.mrb[0].mxu0
        %v3355 = vadd.f32 0.0, %v3354
        %3356 = vmatprep.mubr.f32.mxu0 0.0
        %3357 = vmatmul.mubr.f32.gmra.mrb[0].mxu0 %v2043
        %v3358 = vpop.f32.mrb[0].mxu0
        %v3359 = vadd.f32 0.0, %v3358
        %v3360 = vpop.f32.mrb[0].mxu0
        %v3361 = vadd.f32 0.0, %v3360
        %3362 = vmatprep.mubr.f32.mxu0 0.0
        %3363 = vmatmul.mubr.f32.gmra.mrb[0].mxu0 %v2046
        %v3364 = vpop.f32.mrb[0].mxu0
        %v3365 = vadd.f32 0.0, %v3364
        %v3366 = vpop.f32.mrb[0].mxu0
        %v3367 = vadd.f32 0.0, %v3366
        %3368 = vmatprep.mubr.f32.mxu0 0.0
        %3369 = vmatmul.mubr.f32.gmra.mrb[0].mxu0 %v2049
        %v3370 = vpop.f32.mrb[0].mxu0
        %v3371 = vadd.f32 0.0, %v3370
        %v3372 = vpop.f32.mrb[0].mxu0
        %v3373 = vadd.f32 0.0, %v3372
        %3374 = vdwg.mxu0
        %v3375 = vadd.f32 %v3274, %v3353
        %v3376 = vadd.f32 %v3275, %v3355
        %v3377 = vadd.f32 %v3276, %v3359
        %v3378 = vadd.f32 %v3277, %v3361
        %v3379 = vadd.f32 %v3278, %v3365
        %v3380 = vadd.f32 %v3279, %v3367
        %v3381 = vadd.f32 %v3280, %v3371
        %v3382 = vadd.f32 %v3281, %v3373
        %v3384 = vsel %vm1203, %v3177, 0
        %v3387 = vsel %vm1203, %v3178, 0
        %3389 = vmatprep.subr.mxu0 %v3387
        %3390 = vmatpush1.msra.mxu0 %v3384
        %3391 = vmatprep.subr.mxu0 0.0
        %3392 = vmatpush1.msra.mxu0 0.0
        %3393 = vmatprep.subr.mxu0 0.0
        %3394 = vmatpush1.msra.mxu0 0.0
        %3395 = vmatprep.subr.mxu0 0.0
        %3396 = vmatpush1.msra.mxu0 0.0
        %3397 = vmatprep.subr.mxu0 0.0
        %3398 = vmatpush1.msra.mxu0 0.0
        %3399 = vmatprep.subr.mxu0 0.0
        %3400 = vmatpush1.msra.mxu0 0.0
        %3401 = vmatprep.subr.mxu0 0.0
        %3402 = vmatpush1.msra.mxu0 0.0
        %3403 = vmatprep.subr.mxu0 0.0
        %3404 = vmatpush1.msra.mxu0 0.0
        %3405 = vmatprep.subr.mxu0 0.0
        %3406 = vmatpush1.msra.mxu0 0.0
        %3407 = vmatprep.subr.mxu0 0.0
        %3408 = vmatpush1.msra.mxu0 0.0
        %3409 = vmatprep.subr.mxu0 0.0
        %3410 = vmatpush1.msra.mxu0 0.0
        %3411 = vmatprep.subr.mxu0 0.0
        %3412 = vmatpush1.msra.mxu0 0.0
        %3413 = vmatprep.subr.mxu0 0.0
        %3414 = vmatpush1.msra.mxu0 0.0
        %3415 = vmatprep.subr.mxu0 0.0
        %3416 = vmatpush1.msra.mxu0 0.0
        %3417 = vmatprep.subr.mxu0 0.0
        %3418 = vmatpush1.msra.mxu0 0.0
        %3419 = vmatprep.subr.mxu0 0.0
        %3420 = vmatpush1.msra.mxu0 0.0
        %3421 = vmatprep.subr.mxu0 0.0
        %3422 = vmatpush1.msra.mxu0 0.0
        %3423 = vmatprep.subr.mxu0 0.0
        %3424 = vmatpush1.msra.mxu0 0.0
        %3425 = vmatprep.subr.mxu0 0.0
        %3426 = vmatpush1.msra.mxu0 0.0
        %3427 = vmatprep.subr.mxu0 0.0
        %3428 = vmatpush1.msra.mxu0 0.0
        %3429 = vmatprep.subr.mxu0 0.0
        %3430 = vmatpush1.msra.mxu0 0.0
        %3431 = vmatprep.subr.mxu0 0.0
        %3432 = vmatpush1.msra.mxu0 0.0
        %3433 = vmatprep.subr.mxu0 0.0
        %3434 = vmatpush1.msra.mxu0 0.0
        %3435 = vmatprep.subr.mxu0 0.0
        %3436 = vmatpush1.msra.mxu0 0.0
        %3437 = vmatprep.subr.mxu0 0.0
        %3438 = vmatpush1.msra.mxu0 0.0
        %3439 = vmatprep.subr.mxu0 0.0
        %3440 = vmatpush1.msra.mxu0 0.0
        %3441 = vmatprep.subr.mxu0 0.0
        %3442 = vmatpush1.msra.mxu0 0.0
        %3443 = vmatprep.subr.mxu0 0.0
        %3444 = vmatpush1.msra.mxu0 0.0
        %3445 = vmatprep.subr.mxu0 0.0
        %3446 = vmatpush1.msra.mxu0 0.0
        %3447 = vmatprep.subr.mxu0 0.0
        %3448 = vmatpush1.msra.mxu0 0.0
        %3449 = vmatprep.subr.mxu0 0.0
        %3450 = vmatpush1.msra.mxu0 0.0
        %3451 = vmatprep.subr.mxu0 0.0
        %3452 = vmatpush1.msra.mxu0 0.0
        %3453 = vmatprep.mubr.f32.mxu0 0.0
        %3454 = vmatmul.mubr.f32.gmra.mrb[0].mxu0 %v2153
        %v3455 = vpop.f32.mrb[0].mxu0
        %v3456 = vadd.f32 0.0, %v3455
        %v3457 = vpop.f32.mrb[0].mxu0
        %v3458 = vadd.f32 0.0, %v3457
        %3459 = vmatprep.mubr.f32.mxu0 0.0
        %3460 = vmatmul.mubr.f32.gmra.mrb[0].mxu0 %v2156
        %v3461 = vpop.f32.mrb[0].mxu0
        %v3462 = vadd.f32 0.0, %v3461
        %v3463 = vpop.f32.mrb[0].mxu0
        %v3464 = vadd.f32 0.0, %v3463
        %3465 = vmatprep.mubr.f32.mxu0 0.0
        %3466 = vmatmul.mubr.f32.gmra.mrb[0].mxu0 %v2159
        %v3467 = vpop.f32.mrb[0].mxu0
        %v3468 = vadd.f32 0.0, %v3467
        %v3469 = vpop.f32.mrb[0].mxu0
        %v3470 = vadd.f32 0.0, %v3469
        %3471 = vmatprep.mubr.f32.mxu0 0.0
        %3472 = vmatmul.mubr.f32.gmra.mrb[0].mxu0 %v2162
        %v3473 = vpop.f32.mrb[0].mxu0
        %v3474 = vadd.f32 0.0, %v3473
        %v3475 = vpop.f32.mrb[0].mxu0
        %v3476 = vadd.f32 0.0, %v3475
        %3477 = vdwg.mxu0
        %v3478 = vadd.f32 %v3375, %v3456
        %v3479 = vadd.f32 %v3376, %v3458
        %v3480 = vadd.f32 %v3377, %v3462
        %v3481 = vadd.f32 %v3378, %v3464
        %v3482 = vadd.f32 %v3379, %v3468
        %v3483 = vadd.f32 %v3380, %v3470
        %v3484 = vadd.f32 %v3381, %v3474
        %v3485 = vadd.f32 %v3382, %v3476
        %v3486 = vmul.f32 %v3478, 0.01
        %v3487 = vmul.f32 %v3479, 0.01
        %v3488 = vmul.f32 %v3480, 0.01
        %v3489 = vmul.f32 %v3481, 0.01
        %v3490 = vmul.f32 %v3482, 0.01
        %v3491 = vmul.f32 %v3483, 0.01
        %v3492 = vmul.f32 %v3484, 0.01
        %v3493 = vmul.f32 %v3485, 0.01
        %v3494 = vmax.f32 %v3478, %v3486
        %v3495 = vmax.f32 %v3479, %v3487
        %v3496 = vmax.f32 %v3480, %v3488
        %v3497 = vmax.f32 %v3481, %v3489
        %v3498 = vmax.f32 %v3482, %v3490
        %v3499 = vmax.f32 %v3483, %v3491
        %v3500 = vmax.f32 %v3484, %v3492
        %v3501 = vmax.f32 %v3485, %v3493
        %3502 = vmatprep.subr.mxu0 %v3495
        %3503 = vmatpush1.msra.mxu0 %v3494
        %3504 = vmatprep.subr.mxu0 %v3497
        %3505 = vmatpush1.msra.mxu0 %v3496
        %3506 = vmatprep.subr.mxu0 %v3499
        %3507 = vmatpush1.msra.mxu0 %v3498
        %3508 = vmatprep.subr.mxu0 %v3501
        %3509 = vmatpush1.msra.mxu0 %v3500
        %3510 = vmatprep.subr.mxu0 0.0
        %3511 = vmatpush1.msra.mxu0 0.0
        %3512 = vmatprep.subr.mxu0 0.0
        %3513 = vmatpush1.msra.mxu0 0.0
        %3514 = vmatprep.subr.mxu0 0.0
        %3515 = vmatpush1.msra.mxu0 0.0
        %3516 = vmatprep.subr.mxu0 0.0
        %3517 = vmatpush1.msra.mxu0 0.0
        %3518 = vmatprep.subr.mxu0 0.0
        %3519 = vmatpush1.msra.mxu0 0.0
        %3520 = vmatprep.subr.mxu0 0.0
        %3521 = vmatpush1.msra.mxu0 0.0
        %3522 = vmatprep.subr.mxu0 0.0
        %3523 = vmatpush1.msra.mxu0 0.0
        %3524 = vmatprep.subr.mxu0 0.0
        %3525 = vmatpush1.msra.mxu0 0.0
        %3526 = vmatprep.subr.mxu0 0.0
        %3527 = vmatpush1.msra.mxu0 0.0
        %3528 = vmatprep.subr.mxu0 0.0
        %3529 = vmatpush1.msra.mxu0 0.0
        %3530 = vmatprep.subr.mxu0 0.0
        %3531 = vmatpush1.msra.mxu0 0.0
        %3532 = vmatprep.subr.mxu0 0.0
        %3533 = vmatpush1.msra.mxu0 0.0
        %3534 = vmatprep.subr.mxu0 0.0
        %3535 = vmatpush1.msra.mxu0 0.0
        %3536 = vmatprep.subr.mxu0 0.0
        %3537 = vmatpush1.msra.mxu0 0.0
        %3538 = vmatprep.subr.mxu0 0.0
        %3539 = vmatpush1.msra.mxu0 0.0
        %3540 = vmatprep.subr.mxu0 0.0
        %3541 = vmatpush1.msra.mxu0 0.0
        %3542 = vmatprep.subr.mxu0 0.0
        %3543 = vmatpush1.msra.mxu0 0.0
        %3544 = vmatprep.subr.mxu0 0.0
        %3545 = vmatpush1.msra.mxu0 0.0
        %3546 = vmatprep.subr.mxu0 0.0
        %3547 = vmatpush1.msra.mxu0 0.0
        %3548 = vmatprep.subr.mxu0 0.0
        %3549 = vmatpush1.msra.mxu0 0.0
        %3550 = vmatprep.subr.mxu0 0.0
        %3551 = vmatpush1.msra.mxu0 0.0
        %3552 = vmatprep.subr.mxu0 0.0
        %3553 = vmatpush1.msra.mxu0 0.0
        %3554 = vmatprep.subr.mxu0 0.0
        %3555 = vmatpush1.msra.mxu0 0.0
        %3556 = vmatprep.subr.mxu0 0.0
        %3557 = vmatpush1.msra.mxu0 0.0
        %3558 = vmatprep.subr.mxu0 0.0
        %3559 = vmatpush1.msra.mxu0 0.0
        %3560 = vmatprep.subr.mxu0 0.0
        %3561 = vmatpush1.msra.mxu0 0.0
        %3562 = vmatprep.subr.mxu0 0.0
        %3563 = vmatpush1.msra.mxu0 0.0
        %3564 = vmatprep.subr.mxu0 0.0
        %3565 = vmatpush1.msra.mxu0 0.0
        %3566 = vmatprep.mubr.f32.mxu0 0.0
        %3567 = vmatmul.mubr.f32.gmra.mrb[0].mxu0 %v2290
        %v3568 = vpop.f32.mrb[0].mxu0
        %v3569 = vadd.f32 %v2286, %v3568
        %v3570 = vpop.f32.mrb[0].mxu0
        %v3571 = vadd.f32 %v2286, %v3570
        %3572 = vdwg.mxu0
        %v3573 = vlaneseq
        %v3574 = vshrl.u32 %v3573, 7
        %v3575 = vsub.s32 1, %v3574
        %v3576 = vrot.slane %v1004, %v3575
        %v3577 = vlaneseq
        %v3578 = vshrl.u32 %v3577, 7
        %v3579 = vsub.s32 3, %v3578
        %v3580 = vrot.slane %v1004, %v3579
        %v3583 = vlaneseq
        %v3584 = vshrl.u32 %v3583, 7
        %v3585 = vsub.s32 1, %v3584
        %v3586 = vrot.slane %v3576, %v3585
        %v3587 = vlaneseq
        %v3588 = vshrl.u32 %v3587, 7
        %v3589 = vsub.s32 1, %v3588
        %v3590 = vrot.slane %v3580, %v3589
        %v3591 = vmul.f32 %v3569, %v3586
        %v3592 = vmul.f32 %v3571, %v3590
        %v3595 = vcombine.low %v3591, %v3592
        %v3597 = vadd.f32 %v2388, %v3595
        %3598 = vst [vmem:[%s582] sm:$0xff] %v3597
        %p3599 = scmp.lt.s32.totalorder %s29, 1
        %s3600 = scalar_select %p3599, %s29, 1
        %s3601 = smul.addr %s3600, 2
        %s3602 = smul.addr %s3601, 4
        %s3603 = scalar_lea.vmem %s17, %s3602
        // Predicated region
        $region93: #{_lambda_.3} parent=87 // pred_check
          %p3604 = pneg %p414
        $region94: #{_lambda_.3} parent=87 // pred_check_branch
          %3606 = sbr.rel (%p3604) target = $region96
        $region95: #{_lambda_.3} parent=87 // pred_region
          _
        $region96: #{_lambda_.3} parent=87 // pred_fallthru
          _
      $region88: #{_lambda_.3} parent=5 // pred_fallthru
        _
      %p3607 = scmp.le.s32.totalorder 2, %s24
      // Predicated region
      $region97: #{_lambda_.3} parent=5 // pred_check
        %p3608 = pneg %p3607
      $region98: #{_lambda_.3} parent=5 // pred_check_branch
        %3610 = sbr.rel (%p3608) target = $region100
      $region99: #{_lambda_.3} parent=5 // pred_region
        %s3611 = ssub.s32 %s24, 2
        // Predicated region
        $region101: #{_lambda_.3} parent=99 // pred_check
          %p3612 = pneg %p420
        $region102: #{_lambda_.3} parent=99 // pred_check_branch
          %3614 = sbr.rel (%p3612) target = $region104
        $region103: #{_lambda_.3} parent=99 // pred_region
          %p3615 = scmp.lt.s32.totalorder %s30, 1
          %s3616 = scalar_select %p3615, %s30, 1
          %s3617 = smul.addr %s3616, 2
          %s3618 = smul.addr %s3617, 4
          %s3619 = scalar_lea.vmem %s17, %s3618
        $region104: #{_lambda_.3} parent=99 // pred_fallthru
          _
      $region100: #{_lambda_.3} parent=5 // pred_fallthru
        _
    $region6: #{_lambda_.3} parent=1 // loop_footer
      %s28 = sadd.s32 1, %s24
    $region7: #{_lambda_.3} parent=1 // loop_footer_branch
      %23 = sbr.rel target = $region3
    $region8: #{_lambda_.3} parent=1 // loop_exit
      _
    %3620 = vsyncpa [#allocation3], 1
    %s3621 = scalar_lea.sflag [#allocation3], 1
    %3622 = vsyncpa %s3621, 1

</llo_original>
